<compile_context>
chip_gen: v7x
topology: tpu7x:2x2x1
jax: 0.10.0
libtpu: 0.0.40
codegen_flags: <defaults>
</compile_context>

<pallas_src>
import math

import jax
import jax.numpy as jnp
from jax.experimental import pallas as pl
from jax.experimental.pallas import tpu as pltpu

KH = KW = 3                  # kernel size of every conv in this instance
EPS = 1e-5                   # torch BatchNorm2d default
RESIDUAL_WEIGHT = 1.0
MARG = 128                   # 128-aligned left margin of every canvas


def _round_up(x, m):
    return (x + m - 1) // m * m


# ----------------------------------------------------------------------------
# In-kernel math helpers (Python-float constants only -- no captured arrays)
# ----------------------------------------------------------------------------
def _erf(x):
    # Abramowitz & Stegun 7.1.26 rational approximation (~1.5e-7 abs error).
    a1, a2, a3, a4, a5 = (0.254829592, -0.284496736, 1.421413741,
                          -1.453152027, 1.061405429)
    p = 0.3275911
    sgn = jnp.where(x >= 0.0, 1.0, -1.0)
    ax = jnp.abs(x)
    t = pl.reciprocal(1.0 + p * ax, approx=True)    # EUP slot, co-issues w/ VPU
    poly = ((((a5 * t + a4) * t + a3) * t + a2) * t + a1) * t
    return sgn * (1.0 - poly * jnp.exp(-ax * ax))


def _gelu(x):
    # PyTorch nn.GELU() default (erf form).
    return 0.5 * x * (1.0 + _erf(x * 0.7071067811865476))


# ----------------------------------------------------------------------------
# Fused forward kernel.  Canvas convention: every activation lives on an
# (HC, WC) = (H+2, W+2) per-image canvas, flattened row-major and concatenated
# over the batch along lanes; canonical position q maps to canvas column
# MARG + q (MARG = 128 keeps every full-width store lane-aligned).  Each conv
# layer stages 9 shifted copies of its input canvas into a tap-major im2col
# buffer and runs a single MXU matmul; the transposed convs reuse the same
# pattern with tap offsets shifted by -SH and a zero-masked input canvas.
# ----------------------------------------------------------------------------
def _make_kernel(iw, cw, wc, cin, cmid, cnt1, cnt2):
    sh = (KH - 1) * wc + (KW - 1)          # flat offset of the (+2,+2) shift
    taps = [kh * wc + kw for kh in range(KH) for kw in range(KW)]
    f32 = jnp.float32
    bf16 = jnp.bfloat16

    def kernel(x_ref, m_ref,
               g1_ref, be1_ref, w1_ref, b1_ref,       # encoder.layer_1
               w2_ref, b2_ref,                        # encoder.layer_2
               g2_ref, be2_ref, wt1_ref, bt1_ref,     # decoder.layer_1
               wt2_ref, bt2_ref,                      # decoder.layer_2
               o_ref,
               col1, col, s1c, s2c, rc):
        # Zero ONLY the never-overwritten canvas margins (left margin + the
        # tail past the data region); the data columns are fully overwritten.
        for c in (s1c, s2c, rc):
            c[:, :MARG] = jnp.zeros((cmid, MARG), bf16)
            c[:, MARG + iw:] = jnp.zeros((cmid, cw - MARG - iw), bf16)

        m2 = m_ref[0:1, :]      # enc2-output valid window (12x12 per image)
        mr = m_ref[1:2, :]      # residual valid window    (14x14 per image)

        # ---- encoder.layer_1: training-mode BatchNorm2d(Cin) + conv + GELU.
        # The x canvas is zero outside the valid windows, so raw sums give the
        # batch statistics directly (biased variance, like torch).
        xv = x_ref[:, MARG:MARG + iw]
        mean1 = jnp.sum(xv, axis=1, keepdims=True) * (1.0 / cnt1)
        ex2 = jnp.sum(xv * xv, axis=1, keepdims=True) * (1.0 / cnt1)
        var1 = jnp.maximum(ex2 - mean1 * mean1, 0.0)
        scale1 = g1_ref[...] * jax.lax.rsqrt(var1 + EPS)       # (Cin, 1)
        shift1 = be1_ref[...] - mean1 * scale1                 # (Cin, 1)

        # Stage the BN'd input (tap-major rows), then one K=9*Cin matmul.
        for t, off in enumerate(taps):
            patch = x_ref[:, MARG + off:MARG + off + iw]
            col1[t * cin:(t + 1) * cin, :] = patch * scale1 + shift1
        s1 = _gelu(jnp.dot(w1_ref[...], col1[...],
                           preferred_element_type=f32) + b1_ref[...])
        s1c[:, MARG:MARG + iw] = s1.astype(bf16)       # lane-dense, aligned

        # ---- encoder.layer_2: Conv2d == one K=9*Cmid bf16 matmul -----------
        for t, off in enumerate(taps):
            col[t * cmid:(t + 1) * cmid, :] = s1c[:, MARG + off:MARG + off + iw]
        s2 = jnp.dot(w2_ref[...], col[...],
                     preferred_element_type=f32) + b2_ref[...]

        # ---- decoder.layer_1: training-mode BatchNorm2d(Cmid) over the valid
        # 12x12 windows; the masked store's zeros are ConvTranspose2d's
        # implicit padding.  The transposed conv is a conv with the flipped /
        # channel-swapped kernel and tap offsets shifted by -sh (no shifted
        # store -- realignment lives on the load side).
        s2m = jnp.where(m2 != 0.0, s2, 0.0)
        mean2 = jnp.sum(s2m, axis=1, keepdims=True) * (1.0 / cnt2)
        ex22 = jnp.sum(s2m * s2m, axis=1, keepdims=True) * (1.0 / cnt2)
        var2 = jnp.maximum(ex22 - mean2 * mean2, 0.0)
        s2bn = (s2 - mean2) * (g2_ref[...] * jax.lax.rsqrt(var2 + EPS)) \
            + be2_ref[...]
        s2c[:, MARG:MARG + iw] = jnp.where(m2 != 0.0, s2bn, 0.0).astype(bf16)

        for t, off in enumerate(taps):
            col[t * cmid:(t + 1) * cmid, :] = \
                s2c[:, MARG + off - sh:MARG + off - sh + iw]
        d1 = _gelu(jnp.dot(wt1_ref[...], col[...],
                           preferred_element_type=f32) + bt1_ref[...])

        # ---- decoder.layer_2: residual add (live f32 s1), masked to the
        # valid 14x14 windows, then the final transposed conv.
        r = jnp.where(mr != 0.0, d1 + RESIDUAL_WEIGHT * s1, 0.0)
        rc[:, MARG:MARG + iw] = r.astype(bf16)

        for t, off in enumerate(taps):
            col[t * cmid:(t + 1) * cmid, :] = \
                rc[:, MARG + off - sh:MARG + off - sh + iw]
        o_ref[...] = jnp.dot(wt2_ref[...], col[...],
                             preferred_element_type=f32) + bt2_ref[...]

    return kernel


# ----------------------------------------------------------------------------
# Wrapper: layout glue (canvas embedding, masks, weight re-layout, final crop)
# around the single fused pallas_call.  The mask / weight glue constant-folds
# under jit.
# ----------------------------------------------------------------------------
def resconv_forward(x_nchw, params):
    f32 = jnp.float32
    bf16 = jnp.bfloat16
    N, Cin, H, W = x_nchw.shape
    Cmid = params["enc1_w"].shape[0]
    Cout = params["dec2_w"].shape[1]

    P = KH - 1
    HC, WC = H + P, W + P                 # per-image canvas (top/left margin)
    LC = HC * WC
    L = N * LC
    SH = (KH - 1) * WC + (KW - 1)
    IW = _round_up(L, 128)                        # lane-dense working width
    CW = _round_up(MARG + IW + SH, 128)           # canvas width incl. margins

    # glue: embed x on a zero canvas, images concatenated along the lanes.
    xp = jnp.pad(x_nchw.astype(f32), ((0, 0), (0, 0), (P, 0), (P, 0)))
    xc = jnp.transpose(xp, (1, 0, 2, 3)).reshape(Cin, L)
    xc = jnp.pad(xc, ((0, 0), (MARG, CW - MARG - L)))

    # glue: valid-window indicator masks, tiled per image.
    rr = jnp.arange(LC, dtype=jnp.int32) // WC
    cc = jnp.arange(LC, dtype=jnp.int32) % WC

    def win(hv, wv):
        m = ((rr >= P) & (rr < P + hv) & (cc >= P) & (cc < P + wv))
        return jnp.pad(jnp.tile(m.astype(f32), (N,)), (0, IW - L))

    masks = jnp.stack([win(H - 2 * (KH - 1), W - 2 * (KW - 1)),   # m2 (12x12)
                       win(H - (KH - 1), W - (KW - 1))])          # mr (14x14)

    # glue: weights -> im2col layout (Cout, 9*Cin), column order = tap-major.
    def conv_w(w, dt):                    # torch Conv2d (O, I, KH, KW)
        o, i = w.shape[0], w.shape[1]
        return jnp.transpose(w, (0, 2, 3, 1)).reshape(o, KH * KW * i).astype(dt)

    def convT_w(w, dt):                   # torch ConvTranspose2d (I, O, KH, KW)
        i, o = w.shape[0], w.shape[1]
        wf = w[:, :, ::-1, ::-1]          # spatial flip + channel swap
        return jnp.transpose(wf, (1, 2, 3, 0)).reshape(o, KH * KW * i).astype(dt)

    col_v = lambda v: v.reshape(-1, 1).astype(f32)

    args = (xc, masks,
            col_v(params["enc1_bn_g"]), col_v(params["enc1_bn_b"]),
            conv_w(params["enc1_w"], f32), col_v(params["enc1_b"]),
            conv_w(params["enc2_w"], bf16), col_v(params["enc2_b"]),
            col_v(params["dec1_bn_g"]), col_v(params["dec1_bn_b"]),
            convT_w(params["dec1_w"], bf16), col_v(params["dec1_b"]),
            convT_w(params["dec2_w"], bf16), col_v(params["dec2_b"]))

    cnt1 = float(N * H * W)
    cnt2 = float(N * (H - 2 * (KH - 1)) * (W - 2 * (KW - 1)))

    flops = int(2 * KH * KW * IW
                * (Cin * Cmid + 2 * Cmid * Cmid + Cmid * Cout))
    transcendentals = int(4 * Cmid * IW)            # exp + rcp in two GELUs
    bytes_accessed = int(sum(a.size * a.dtype.itemsize for a in args)
                         + 4 * Cout * IW)

    out_flat = pl.pallas_call(
        _make_kernel(IW, CW, WC, Cin, Cmid, cnt1, cnt2),
        out_shape=jax.ShapeDtypeStruct((Cout, IW), f32),
        scratch_shapes=[pltpu.VMEM((KH * KW * Cin, IW), f32),    # enc1 im2col
                        pltpu.VMEM((KH * KW * Cmid, IW), bf16),  # shared im2col
                        pltpu.VMEM((Cmid, CW), bf16),            # s1 canvas
                        pltpu.VMEM((Cmid, CW), bf16),            # s2bn canvas
                        pltpu.VMEM((Cmid, CW), bf16)],           # residual canvas
        cost_estimate=pl.CostEstimate(flops=flops,
                                      transcendentals=transcendentals,
                                      bytes_accessed=bytes_accessed),
    )(*args)

    # glue: crop the valid 16x16 windows -> NCHW.
    out = out_flat[:, :L].reshape(Cout, N, HC, WC)[:, :, P:, P:]
    return jnp.transpose(out, (1, 0, 2, 3)).astype(x_nchw.dtype)


# ----------------------------------------------------------------------------
# Pure-JAX f32 reference of the PyTorch module (for the in-script tolerance
# check recommended by the review).
# ----------------------------------------------------------------------------
def resconv_reference(x_nchw, params):
    f32 = jnp.float32
    x = x_nchw.astype(f32)
    dn = ("NCHW", "OIHW", "NCHW")

    def bn(v, g, b):
        mean = jnp.mean(v, axis=(0, 2, 3), keepdims=True)
        var = jnp.mean((v - mean) ** 2, axis=(0, 2, 3), keepdims=True)
        return (v - mean) * jax.lax.rsqrt(var + EPS) * g.reshape(1, -1, 1, 1) \
            + b.reshape(1, -1, 1, 1)

    def conv(v, w, b):
        y = jax.lax.conv_general_dilated(v, w.astype(f32), (1, 1), "VALID",
                                         dimension_numbers=dn)
        return y + b.reshape(1, -1, 1, 1).astype(f32)

    def convT(v, w, b):
        # torch ConvTranspose2d(stride=1, padding=0) == full conv with the
        # spatially flipped, channel-swapped kernel.
        weff = jnp.transpose(w, (1, 0, 2, 3))[:, :, ::-1, ::-1].astype(f32)
        y = jax.lax.conv_general_dilated(v, weff, (1, 1),
                                         [(KH - 1, KH - 1), (KW - 1, KW - 1)],
                                         dimension_numbers=dn)
        return y + b.reshape(1, -1, 1, 1).astype(f32)

    def gelu(v):
        return 0.5 * v * (1.0 + jax.lax.erf(v * 0.7071067811865476))

    s1 = gelu(conv(bn(x, params["enc1_bn_g"], params["enc1_bn_b"]),
                   params["enc1_w"], params["enc1_b"]))
    s2 = conv(s1, params["enc2_w"], params["enc2_b"])
    d1 = gelu(convT(bn(s2, params["dec1_bn_g"], params["dec1_bn_b"]),
                    params["dec1_w"], params["dec1_b"]))
    return convT(d1 + RESIDUAL_WEIGHT * s1, params["dec2_w"], params["dec2_b"])


# ----------------------------------------------------------------------------
# Deterministic parameters (torch layouts / torch-default init) + smoke test.
# ----------------------------------------------------------------------------
if __name__ == "__main__":
    C_in, C_mid, K = 4, 32, 3

    key = jax.random.PRNGKey(0)
    keys = jax.random.split(key, 9)

    def uinit(k, shape, fan_in):
        bound = 1.0 / math.sqrt(fan_in)
        return jax.random.uniform(k, shape, jnp.float32, -bound, bound)

    params = {
        # BatchNorm2d default init: weight=1, bias=0
        "enc1_bn_g": jnp.ones((C_in,), jnp.float32),
        "enc1_bn_b": jnp.zeros((C_in,), jnp.float32),
        "dec1_bn_g": jnp.ones((C_mid,), jnp.float32),
        "dec1_bn_b": jnp.zeros((C_mid,), jnp.float32),
        # torch-native layouts: Conv2d (O,I,KH,KW), ConvTranspose2d (I,O,KH,KW)
        "enc1_w": uinit(keys[0], (C_mid, C_in, K, K), C_in * K * K),
        "enc1_b": uinit(keys[1], (C_mid,), C_in * K * K),
        "enc2_w": uinit(keys[2], (C_mid, C_mid, K, K), C_mid * K * K),
        "enc2_b": uinit(keys[3], (C_mid,), C_mid * K * K),
        "dec1_w": uinit(keys[4], (C_mid, C_mid, K, K), C_mid * K * K),
        "dec1_b": uinit(keys[5], (C_mid,), C_mid * K * K),
        "dec2_w": uinit(keys[6], (C_mid, C_in, K, K), C_mid * K * K),
        "dec2_b": uinit(keys[7], (C_in,), C_mid * K * K),
    }

    x = jax.random.normal(keys[8], (2, C_in, 16, 16), jnp.float32)  # NCHW

    y = jax.block_until_ready(jax.jit(resconv_forward)(x, params))
    assert y.shape == (2, C_in, 16, 16), y.shape
    assert bool(jnp.all(jnp.isfinite(y)))

    # Tolerance check vs. the pure-JAX reference (bf16 MXU operands + the erf
    # rational approximation keep the deviation at the ~1e-3 level).
    y_ref = jax.block_until_ready(jax.jit(resconv_reference)(x, params))
    max_err = float(jnp.max(jnp.abs(y - y_ref)))
    assert bool(jnp.allclose(y, y_ref, rtol=5e-2, atol=5e-2)), max_err

    print("KERNEL_OK")
</pallas_src>

<mosaic_0001>
module attributes {stable_mosaic.version = 11 : i64} {
  func.func @kernel(%arg0: memref<4x1024xf32, #tpu.memory_space<vmem>>, %arg1: memref<2x768xf32, #tpu.memory_space<vmem>>, %arg2: memref<4x1xf32, #tpu.memory_space<vmem>>, %arg3: memref<4x1xf32, #tpu.memory_space<vmem>>, %arg4: memref<32x36xf32, #tpu.memory_space<vmem>>, %arg5: memref<32x1xf32, #tpu.memory_space<vmem>>, %arg6: memref<32x288xbf16, #tpu.memory_space<vmem>>, %arg7: memref<32x1xf32, #tpu.memory_space<vmem>>, %arg8: memref<32x1xf32, #tpu.memory_space<vmem>>, %arg9: memref<32x1xf32, #tpu.memory_space<vmem>>, %arg10: memref<32x288xbf16, #tpu.memory_space<vmem>>, %arg11: memref<32x1xf32, #tpu.memory_space<vmem>>, %arg12: memref<4x288xbf16, #tpu.memory_space<vmem>>, %arg13: memref<4x1xf32, #tpu.memory_space<vmem>>, %arg14: memref<4x768xf32, #tpu.memory_space<vmem>>, %arg15: memref<36x768xf32, #tpu.memory_space<vmem>>, %arg16: memref<288x768xbf16, #tpu.memory_space<vmem>>, %arg17: memref<32x1024xbf16, #tpu.memory_space<vmem>>, %arg18: memref<32x1024xbf16, #tpu.memory_space<vmem>>, %arg19: memref<32x1024xbf16, #tpu.memory_space<vmem>>) attributes {dimension_semantics = [], scalar_prefetch = 0 : i64, scratch_operands = 5 : i64, tpu.core_type = #tpu.core_type<tc>} {
    %cst = arith.constant 0.000000e+00 : bf16
    %0 = vector.broadcast %cst : bf16 to vector<32x128xbf16>
    %c0 = arith.constant 0 : index
    %c0_0 = arith.constant 0 : index
    %1 = vector.load %arg17[%c0, %c0_0] : memref<32x1024xbf16, #tpu.memory_space<vmem>>, vector<32x128xbf16>
    tpu.vector_store %arg17[%c0, %c0_0], %0 {strides = array<i32>} : memref<32x1024xbf16, #tpu.memory_space<vmem>>, vector<32x128xbf16>,
    %cst_1 = arith.constant 0.000000e+00 : bf16
    %2 = vector.broadcast %cst_1 : bf16 to vector<32x128xbf16>
    %c0_2 = arith.constant 0 : index
    %c896 = arith.constant 896 : index
    %3 = vector.load %arg17[%c0_2, %c896] : memref<32x1024xbf16, #tpu.memory_space<vmem>>, vector<32x128xbf16>
    tpu.vector_store %arg17[%c0_2, %c896], %2 {strides = array<i32>} : memref<32x1024xbf16, #tpu.memory_space<vmem>>, vector<32x128xbf16>,
    %cst_3 = arith.constant 0.000000e+00 : bf16
    %4 = vector.broadcast %cst_3 : bf16 to vector<32x128xbf16>
    %c0_4 = arith.constant 0 : index
    %c0_5 = arith.constant 0 : index
    %5 = vector.load %arg18[%c0_4, %c0_5] : memref<32x1024xbf16, #tpu.memory_space<vmem>>, vector<32x128xbf16>
    tpu.vector_store %arg18[%c0_4, %c0_5], %4 {strides = array<i32>} : memref<32x1024xbf16, #tpu.memory_space<vmem>>, vector<32x128xbf16>,
    %cst_6 = arith.constant 0.000000e+00 : bf16
    %6 = vector.broadcast %cst_6 : bf16 to vector<32x128xbf16>
    %c0_7 = arith.constant 0 : index
    %c896_8 = arith.constant 896 : index
    %7 = vector.load %arg18[%c0_7, %c896_8] : memref<32x1024xbf16, #tpu.memory_space<vmem>>, vector<32x128xbf16>
    tpu.vector_store %arg18[%c0_7, %c896_8], %6 {strides = array<i32>} : memref<32x1024xbf16, #tpu.memory_space<vmem>>, vector<32x128xbf16>,
    %cst_9 = arith.constant 0.000000e+00 : bf16
    %8 = vector.broadcast %cst_9 : bf16 to vector<32x128xbf16>
    %c0_10 = arith.constant 0 : index
    %c0_11 = arith.constant 0 : index
    %9 = vector.load %arg19[%c0_10, %c0_11] : memref<32x1024xbf16, #tpu.memory_space<vmem>>, vector<32x128xbf16>
    tpu.vector_store %arg19[%c0_10, %c0_11], %8 {strides = array<i32>} : memref<32x1024xbf16, #tpu.memory_space<vmem>>, vector<32x128xbf16>,
    %cst_12 = arith.constant 0.000000e+00 : bf16
    %10 = vector.broadcast %cst_12 : bf16 to vector<32x128xbf16>
    %c0_13 = arith.constant 0 : index
    %c896_14 = arith.constant 896 : index
    %11 = vector.load %arg19[%c0_13, %c896_14] : memref<32x1024xbf16, #tpu.memory_space<vmem>>, vector<32x128xbf16>
    tpu.vector_store %arg19[%c0_13, %c896_14], %10 {strides = array<i32>} : memref<32x1024xbf16, #tpu.memory_space<vmem>>, vector<32x128xbf16>,
    %c0_15 = arith.constant 0 : index
    %c0_16 = arith.constant 0 : index
    %12 = vector.load %arg1[%c0_15, %c0_16] : memref<2x768xf32, #tpu.memory_space<vmem>>, vector<1x768xf32>
    %c1 = arith.constant 1 : index
    %c0_17 = arith.constant 0 : index
    %13 = vector.load %arg1[%c1, %c0_17] : memref<2x768xf32, #tpu.memory_space<vmem>>, vector<1x768xf32>
    %c0_18 = arith.constant 0 : index
    %c128 = arith.constant 128 : index
    %14 = vector.load %arg0[%c0_18, %c128] : memref<4x1024xf32, #tpu.memory_space<vmem>>, vector<4x768xf32>
    %cst_19 = arith.constant dense<0.000000e+00> : vector<4xf32>
    %15 = vector.multi_reduction <add>, %14, %cst_19 [1] : vector<4x768xf32> to vector<4xf32>
    %16 = vector.shape_cast %15 : vector<4xf32> to vector<4x1xf32>
    %cst_20 = arith.constant 0.001953125 : f32
    %17 = vector.broadcast %cst_20 : f32 to vector<4x1xf32>
    %18 = arith.mulf %16, %17 : vector<4x1xf32>
    %19 = arith.mulf %14, %14 : vector<4x768xf32>
    %cst_21 = arith.constant dense<0.000000e+00> : vector<4xf32>
    %20 = vector.multi_reduction <add>, %19, %cst_21 [1] : vector<4x768xf32> to vector<4xf32>
    %21 = vector.shape_cast %20 : vector<4xf32> to vector<4x1xf32>
    %cst_22 = arith.constant 0.001953125 : f32
    %22 = vector.broadcast %cst_22 : f32 to vector<4x1xf32>
    %23 = arith.mulf %21, %22 : vector<4x1xf32>
    %24 = arith.mulf %18, %18 : vector<4x1xf32>
    %25 = arith.subf %23, %24 : vector<4x1xf32>
    %cst_23 = arith.constant 0.000000e+00 : f32
    %26 = vector.broadcast %cst_23 : f32 to vector<4x1xf32>
    %27 = arith.maximumf %25, %26 : vector<4x1xf32>
    %c0_24 = arith.constant 0 : index
    %c0_25 = arith.constant 0 : index
    %28 = vector.load %arg2[%c0_24, %c0_25] : memref<4x1xf32, #tpu.memory_space<vmem>>, vector<4x1xf32>
    %cst_26 = arith.constant 9.99999974E-6 : f32
    %29 = vector.broadcast %cst_26 : f32 to vector<4x1xf32>
    %30 = arith.addf %27, %29 : vector<4x1xf32>
    %31 = math.rsqrt %30 : vector<4x1xf32>
    %32 = arith.mulf %28, %31 : vector<4x1xf32>
    %c0_27 = arith.constant 0 : index
    %c0_28 = arith.constant 0 : index
    %33 = vector.load %arg3[%c0_27, %c0_28] : memref<4x1xf32, #tpu.memory_space<vmem>>, vector<4x1xf32>
    %34 = arith.mulf %18, %32 : vector<4x1xf32>
    %35 = arith.subf %33, %34 : vector<4x1xf32>
    %c0_29 = arith.constant 0 : index
    %c128_30 = arith.constant 128 : index
    %36 = vector.load %arg0[%c0_29, %c128_30] : memref<4x1024xf32, #tpu.memory_space<vmem>>, vector<4x768xf32>
    %37 = vector.broadcast %32 : vector<4x1xf32> to vector<4x768xf32>
    %38 = arith.mulf %36, %37 : vector<4x768xf32>
    %39 = vector.broadcast %35 : vector<4x1xf32> to vector<4x768xf32>
    %40 = arith.addf %38, %39 : vector<4x768xf32>
    %c0_31 = arith.constant 0 : index
    %c0_32 = arith.constant 0 : index
    %41 = vector.load %arg15[%c0_31, %c0_32] : memref<36x768xf32, #tpu.memory_space<vmem>>, vector<4x768xf32>
    tpu.vector_store %arg15[%c0_31, %c0_32], %40 {strides = array<i32>} : memref<36x768xf32, #tpu.memory_space<vmem>>, vector<4x768xf32>,
    %c0_33 = arith.constant 0 : index
    %c129 = arith.constant 129 : index
    %42 = vector.load %arg0[%c0_33, %c129] : memref<4x1024xf32, #tpu.memory_space<vmem>>, vector<4x768xf32>
    %43 = vector.broadcast %32 : vector<4x1xf32> to vector<4x768xf32>
    %44 = arith.mulf %42, %43 : vector<4x768xf32>
    %45 = vector.broadcast %35 : vector<4x1xf32> to vector<4x768xf32>
    %46 = arith.addf %44, %45 : vector<4x768xf32>
    %c4 = arith.constant 4 : index
    %c0_34 = arith.constant 0 : index
    %47 = vector.load %arg15[%c4, %c0_34] : memref<36x768xf32, #tpu.memory_space<vmem>>, vector<4x768xf32>
    tpu.vector_store %arg15[%c4, %c0_34], %46 {strides = array<i32>} : memref<36x768xf32, #tpu.memory_space<vmem>>, vector<4x768xf32>,
    %c0_35 = arith.constant 0 : index
    %c130 = arith.constant 130 : index
    %48 = vector.load %arg0[%c0_35, %c130] : memref<4x1024xf32, #tpu.memory_space<vmem>>, vector<4x768xf32>
    %49 = vector.broadcast %32 : vector<4x1xf32> to vector<4x768xf32>
    %50 = arith.mulf %48, %49 : vector<4x768xf32>
    %51 = vector.broadcast %35 : vector<4x1xf32> to vector<4x768xf32>
    %52 = arith.addf %50, %51 : vector<4x768xf32>
    %c8 = arith.constant 8 : index
    %c0_36 = arith.constant 0 : index
    %53 = vector.load %arg15[%c8, %c0_36] : memref<36x768xf32, #tpu.memory_space<vmem>>, vector<4x768xf32>
    tpu.vector_store %arg15[%c8, %c0_36], %52 {strides = array<i32>} : memref<36x768xf32, #tpu.memory_space<vmem>>, vector<4x768xf32>,
    %c0_37 = arith.constant 0 : index
    %c146 = arith.constant 146 : index
    %54 = vector.load %arg0[%c0_37, %c146] : memref<4x1024xf32, #tpu.memory_space<vmem>>, vector<4x768xf32>
    %55 = vector.broadcast %32 : vector<4x1xf32> to vector<4x768xf32>
    %56 = arith.mulf %54, %55 : vector<4x768xf32>
    %57 = vector.broadcast %35 : vector<4x1xf32> to vector<4x768xf32>
    %58 = arith.addf %56, %57 : vector<4x768xf32>
    %c12 = arith.constant 12 : index
    %c0_38 = arith.constant 0 : index
    %59 = vector.load %arg15[%c12, %c0_38] : memref<36x768xf32, #tpu.memory_space<vmem>>, vector<4x768xf32>
    tpu.vector_store %arg15[%c12, %c0_38], %58 {strides = array<i32>} : memref<36x768xf32, #tpu.memory_space<vmem>>, vector<4x768xf32>,
    %c0_39 = arith.constant 0 : index
    %c147 = arith.constant 147 : index
    %60 = vector.load %arg0[%c0_39, %c147] : memref<4x1024xf32, #tpu.memory_space<vmem>>, vector<4x768xf32>
    %61 = vector.broadcast %32 : vector<4x1xf32> to vector<4x768xf32>
    %62 = arith.mulf %60, %61 : vector<4x768xf32>
    %63 = vector.broadcast %35 : vector<4x1xf32> to vector<4x768xf32>
    %64 = arith.addf %62, %63 : vector<4x768xf32>
    %c16 = arith.constant 16 : index
    %c0_40 = arith.constant 0 : index
    %65 = vector.load %arg15[%c16, %c0_40] : memref<36x768xf32, #tpu.memory_space<vmem>>, vector<4x768xf32>
    tpu.vector_store %arg15[%c16, %c0_40], %64 {strides = array<i32>} : memref<36x768xf32, #tpu.memory_space<vmem>>, vector<4x768xf32>,
    %c0_41 = arith.constant 0 : index
    %c148 = arith.constant 148 : index
    %66 = vector.load %arg0[%c0_41, %c148] : memref<4x1024xf32, #tpu.memory_space<vmem>>, vector<4x768xf32>
    %67 = vector.broadcast %32 : vector<4x1xf32> to vector<4x768xf32>
    %68 = arith.mulf %66, %67 : vector<4x768xf32>
    %69 = vector.broadcast %35 : vector<4x1xf32> to vector<4x768xf32>
    %70 = arith.addf %68, %69 : vector<4x768xf32>
    %c20 = arith.constant 20 : index
    %c0_42 = arith.constant 0 : index
    %71 = vector.load %arg15[%c20, %c0_42] : memref<36x768xf32, #tpu.memory_space<vmem>>, vector<4x768xf32>
    tpu.vector_store %arg15[%c20, %c0_42], %70 {strides = array<i32>} : memref<36x768xf32, #tpu.memory_space<vmem>>, vector<4x768xf32>,
    %c0_43 = arith.constant 0 : index
    %c164 = arith.constant 164 : index
    %72 = vector.load %arg0[%c0_43, %c164] : memref<4x1024xf32, #tpu.memory_space<vmem>>, vector<4x768xf32>
    %73 = vector.broadcast %32 : vector<4x1xf32> to vector<4x768xf32>
    %74 = arith.mulf %72, %73 : vector<4x768xf32>
    %75 = vector.broadcast %35 : vector<4x1xf32> to vector<4x768xf32>
    %76 = arith.addf %74, %75 : vector<4x768xf32>
    %c24 = arith.constant 24 : index
    %c0_44 = arith.constant 0 : index
    %77 = vector.load %arg15[%c24, %c0_44] : memref<36x768xf32, #tpu.memory_space<vmem>>, vector<4x768xf32>
    tpu.vector_store %arg15[%c24, %c0_44], %76 {strides = array<i32>} : memref<36x768xf32, #tpu.memory_space<vmem>>, vector<4x768xf32>,
    %c0_45 = arith.constant 0 : index
    %c165 = arith.constant 165 : index
    %78 = vector.load %arg0[%c0_45, %c165] : memref<4x1024xf32, #tpu.memory_space<vmem>>, vector<4x768xf32>
    %79 = vector.broadcast %32 : vector<4x1xf32> to vector<4x768xf32>
    %80 = arith.mulf %78, %79 : vector<4x768xf32>
    %81 = vector.broadcast %35 : vector<4x1xf32> to vector<4x768xf32>
    %82 = arith.addf %80, %81 : vector<4x768xf32>
    %c28 = arith.constant 28 : index
    %c0_46 = arith.constant 0 : index
    %83 = vector.load %arg15[%c28, %c0_46] : memref<36x768xf32, #tpu.memory_space<vmem>>, vector<4x768xf32>
    tpu.vector_store %arg15[%c28, %c0_46], %82 {strides = array<i32>} : memref<36x768xf32, #tpu.memory_space<vmem>>, vector<4x768xf32>,
    %c0_47 = arith.constant 0 : index
    %c166 = arith.constant 166 : index
    %84 = vector.load %arg0[%c0_47, %c166] : memref<4x1024xf32, #tpu.memory_space<vmem>>, vector<4x768xf32>
    %85 = vector.broadcast %32 : vector<4x1xf32> to vector<4x768xf32>
    %86 = arith.mulf %84, %85 : vector<4x768xf32>
    %87 = vector.broadcast %35 : vector<4x1xf32> to vector<4x768xf32>
    %88 = arith.addf %86, %87 : vector<4x768xf32>
    %c32 = arith.constant 32 : index
    %c0_48 = arith.constant 0 : index
    %89 = vector.load %arg15[%c32, %c0_48] : memref<36x768xf32, #tpu.memory_space<vmem>>, vector<4x768xf32>
    tpu.vector_store %arg15[%c32, %c0_48], %88 {strides = array<i32>} : memref<36x768xf32, #tpu.memory_space<vmem>>, vector<4x768xf32>,
    %c0_49 = arith.constant 0 : index
    %c0_50 = arith.constant 0 : index
    %90 = vector.load %arg4[%c0_49, %c0_50] : memref<32x36xf32, #tpu.memory_space<vmem>>, vector<32x36xf32>
    %c0_51 = arith.constant 0 : index
    %c0_52 = arith.constant 0 : index
    %91 = vector.load %arg15[%c0_51, %c0_52] : memref<36x768xf32, #tpu.memory_space<vmem>>, vector<36x768xf32>
    %cst_53 = arith.constant dense<0.000000e+00> : vector<32x768xf32>
    %92 = tpu.matmul %90, %91, %cst_53 {dimension_numbers = #tpu.dot_dimension_numbers<[1], [0], [0], [1], [0, 0, 1, 1], [], []>} : vector<32x36xf32>, vector<36x768xf32>, vector<32x768xf32> -> vector<32x768xf32>
    %c0_54 = arith.constant 0 : index
    %c0_55 = arith.constant 0 : index
    %93 = vector.load %arg5[%c0_54, %c0_55] : memref<32x1xf32, #tpu.memory_space<vmem>>, vector<32x1xf32>
    %94 = vector.broadcast %93 : vector<32x1xf32> to vector<32x768xf32>
    %95 = arith.addf %92, %94 : vector<32x768xf32>
    %cst_56 = arith.constant 5.000000e-01 : f32
    %96 = vector.broadcast %cst_56 : f32 to vector<32x768xf32>
    %97 = arith.mulf %96, %95 : vector<32x768xf32>
    %cst_57 = arith.constant 0.707106769 : f32
    %98 = vector.broadcast %cst_57 : f32 to vector<32x768xf32>
    %99 = arith.mulf %95, %98 : vector<32x768xf32>
    %cst_58 = arith.constant 0.000000e+00 : f32
    %100 = vector.broadcast %cst_58 : f32 to vector<32x768xf32>
    %101 = arith.cmpf oge, %99, %100 : vector<32x768xf32>
    %cst_59 = arith.constant 1.000000e+00 : f32
    %cst_60 = arith.constant -1.000000e+00 : f32
    %102 = vector.broadcast %cst_59 : f32 to vector<32x768xf32>
    %103 = vector.broadcast %cst_60 : f32 to vector<32x768xf32>
    %104 = arith.select %101, %102, %103 : vector<32x768xi1>, vector<32x768xf32>
    %105 = math.absf %99 : vector<32x768xf32>
    %cst_61 = arith.constant 0.327591091 : f32
    %106 = vector.broadcast %cst_61 : f32 to vector<32x768xf32>
    %107 = arith.mulf %106, %105 : vector<32x768xf32>
    %cst_62 = arith.constant 1.000000e+00 : f32
    %108 = vector.broadcast %cst_62 : f32 to vector<32x768xf32>
    %109 = arith.addf %108, %107 : vector<32x768xf32>
    %110 = tpu.reciprocal %109 {approx = true} : vector<32x768xf32> -> vector<32x768xf32>
    %cst_63 = arith.constant 1.06140542 : f32
    %111 = vector.broadcast %cst_63 : f32 to vector<32x768xf32>
    %112 = arith.mulf %111, %110 : vector<32x768xf32>
    %cst_64 = arith.constant -1.45315206 : f32
    %113 = vector.broadcast %cst_64 : f32 to vector<32x768xf32>
    %114 = arith.addf %112, %113 : vector<32x768xf32>
    %115 = arith.mulf %114, %110 : vector<32x768xf32>
    %cst_65 = arith.constant 1.42141378 : f32
    %116 = vector.broadcast %cst_65 : f32 to vector<32x768xf32>
    %117 = arith.addf %115, %116 : vector<32x768xf32>
    %118 = arith.mulf %117, %110 : vector<32x768xf32>
    %cst_66 = arith.constant -0.284496725 : f32
    %119 = vector.broadcast %cst_66 : f32 to vector<32x768xf32>
    %120 = arith.addf %118, %119 : vector<32x768xf32>
    %121 = arith.mulf %120, %110 : vector<32x768xf32>
    %cst_67 = arith.constant 0.254829586 : f32
    %122 = vector.broadcast %cst_67 : f32 to vector<32x768xf32>
    %123 = arith.addf %121, %122 : vector<32x768xf32>
    %124 = arith.mulf %123, %110 : vector<32x768xf32>
    %cst_68 = arith.constant 0.000000e+00 : f32
    %125 = vector.broadcast %cst_68 : f32 to vector<32x768xf32>
    %126 = arith.subf %125, %105 : vector<32x768xf32>
    %127 = arith.mulf %126, %105 : vector<32x768xf32>
    %128 = math.exp %127 : vector<32x768xf32>
    %129 = arith.mulf %124, %128 : vector<32x768xf32>
    %cst_69 = arith.constant 1.000000e+00 : f32
    %130 = vector.broadcast %cst_69 : f32 to vector<32x768xf32>
    %131 = arith.subf %130, %129 : vector<32x768xf32>
    %132 = arith.mulf %104, %131 : vector<32x768xf32>
    %cst_70 = arith.constant 1.000000e+00 : f32
    %133 = vector.broadcast %cst_70 : f32 to vector<32x768xf32>
    %134 = arith.addf %133, %132 : vector<32x768xf32>
    %135 = arith.mulf %97, %134 : vector<32x768xf32>
    %136 = arith.truncf %135 : vector<32x768xf32> to vector<32x768xbf16>
    %c0_71 = arith.constant 0 : index
    %c128_72 = arith.constant 128 : index
    %137 = vector.load %arg17[%c0_71, %c128_72] : memref<32x1024xbf16, #tpu.memory_space<vmem>>, vector<32x768xbf16>
    tpu.vector_store %arg17[%c0_71, %c128_72], %136 {strides = array<i32>} : memref<32x1024xbf16, #tpu.memory_space<vmem>>, vector<32x768xbf16>,
    %c0_73 = arith.constant 0 : index
    %c128_74 = arith.constant 128 : index
    %138 = vector.load %arg17[%c0_73, %c128_74] : memref<32x1024xbf16, #tpu.memory_space<vmem>>, vector<32x768xbf16>
    %c0_75 = arith.constant 0 : index
    %c0_76 = arith.constant 0 : index
    %139 = vector.load %arg16[%c0_75, %c0_76] : memref<288x768xbf16, #tpu.memory_space<vmem>>, vector<32x768xbf16>
    tpu.vector_store %arg16[%c0_75, %c0_76], %138 {strides = array<i32>} : memref<288x768xbf16, #tpu.memory_space<vmem>>, vector<32x768xbf16>,
    %c0_77 = arith.constant 0 : index
    %c129_78 = arith.constant 129 : index
    %140 = vector.load %arg17[%c0_77, %c129_78] : memref<32x1024xbf16, #tpu.memory_space<vmem>>, vector<32x768xbf16>
    %c32_79 = arith.constant 32 : index
    %c0_80 = arith.constant 0 : index
    %141 = vector.load %arg16[%c32_79, %c0_80] : memref<288x768xbf16, #tpu.memory_space<vmem>>, vector<32x768xbf16>
    tpu.vector_store %arg16[%c32_79, %c0_80], %140 {strides = array<i32>} : memref<288x768xbf16, #tpu.memory_space<vmem>>, vector<32x768xbf16>,
    %c0_81 = arith.constant 0 : index
    %c130_82 = arith.constant 130 : index
    %142 = vector.load %arg17[%c0_81, %c130_82] : memref<32x1024xbf16, #tpu.memory_space<vmem>>, vector<32x768xbf16>
    %c64 = arith.constant 64 : index
    %c0_83 = arith.constant 0 : index
    %143 = vector.load %arg16[%c64, %c0_83] : memref<288x768xbf16, #tpu.memory_space<vmem>>, vector<32x768xbf16>
    tpu.vector_store %arg16[%c64, %c0_83], %142 {strides = array<i32>} : memref<288x768xbf16, #tpu.memory_space<vmem>>, vector<32x768xbf16>,
    %c0_84 = arith.constant 0 : index
    %c146_85 = arith.constant 146 : index
    %144 = vector.load %arg17[%c0_84, %c146_85] : memref<32x1024xbf16, #tpu.memory_space<vmem>>, vector<32x768xbf16>
    %c96 = arith.constant 96 : index
    %c0_86 = arith.constant 0 : index
    %145 = vector.load %arg16[%c96, %c0_86] : memref<288x768xbf16, #tpu.memory_space<vmem>>, vector<32x768xbf16>
    tpu.vector_store %arg16[%c96, %c0_86], %144 {strides = array<i32>} : memref<288x768xbf16, #tpu.memory_space<vmem>>, vector<32x768xbf16>,
    %c0_87 = arith.constant 0 : index
    %c147_88 = arith.constant 147 : index
    %146 = vector.load %arg17[%c0_87, %c147_88] : memref<32x1024xbf16, #tpu.memory_space<vmem>>, vector<32x768xbf16>
    %c128_89 = arith.constant 128 : index
    %c0_90 = arith.constant 0 : index
    %147 = vector.load %arg16[%c128_89, %c0_90] : memref<288x768xbf16, #tpu.memory_space<vmem>>, vector<32x768xbf16>
    tpu.vector_store %arg16[%c128_89, %c0_90], %146 {strides = array<i32>} : memref<288x768xbf16, #tpu.memory_space<vmem>>, vector<32x768xbf16>,
    %c0_91 = arith.constant 0 : index
    %c148_92 = arith.constant 148 : index
    %148 = vector.load %arg17[%c0_91, %c148_92] : memref<32x1024xbf16, #tpu.memory_space<vmem>>, vector<32x768xbf16>
    %c160 = arith.constant 160 : index
    %c0_93 = arith.constant 0 : index
    %149 = vector.load %arg16[%c160, %c0_93] : memref<288x768xbf16, #tpu.memory_space<vmem>>, vector<32x768xbf16>
    tpu.vector_store %arg16[%c160, %c0_93], %148 {strides = array<i32>} : memref<288x768xbf16, #tpu.memory_space<vmem>>, vector<32x768xbf16>,
    %c0_94 = arith.constant 0 : index
    %c164_95 = arith.constant 164 : index
    %150 = vector.load %arg17[%c0_94, %c164_95] : memref<32x1024xbf16, #tpu.memory_space<vmem>>, vector<32x768xbf16>
    %c192 = arith.constant 192 : index
    %c0_96 = arith.constant 0 : index
    %151 = vector.load %arg16[%c192, %c0_96] : memref<288x768xbf16, #tpu.memory_space<vmem>>, vector<32x768xbf16>
    tpu.vector_store %arg16[%c192, %c0_96], %150 {strides = array<i32>} : memref<288x768xbf16, #tpu.memory_space<vmem>>, vector<32x768xbf16>,
    %c0_97 = arith.constant 0 : index
    %c165_98 = arith.constant 165 : index
    %152 = vector.load %arg17[%c0_97, %c165_98] : memref<32x1024xbf16, #tpu.memory_space<vmem>>, vector<32x768xbf16>
    %c224 = arith.constant 224 : index
    %c0_99 = arith.constant 0 : index
    %153 = vector.load %arg16[%c224, %c0_99] : memref<288x768xbf16, #tpu.memory_space<vmem>>, vector<32x768xbf16>
    tpu.vector_store %arg16[%c224, %c0_99], %152 {strides = array<i32>} : memref<288x768xbf16, #tpu.memory_space<vmem>>, vector<32x768xbf16>,
    %c0_100 = arith.constant 0 : index
    %c166_101 = arith.constant 166 : index
    %154 = vector.load %arg17[%c0_100, %c166_101] : memref<32x1024xbf16, #tpu.memory_space<vmem>>, vector<32x768xbf16>
    %c256 = arith.constant 256 : index
    %c0_102 = arith.constant 0 : index
    %155 = vector.load %arg16[%c256, %c0_102] : memref<288x768xbf16, #tpu.memory_space<vmem>>, vector<32x768xbf16>
    tpu.vector_store %arg16[%c256, %c0_102], %154 {strides = array<i32>} : memref<288x768xbf16, #tpu.memory_space<vmem>>, vector<32x768xbf16>,
    %c0_103 = arith.constant 0 : index
    %c0_104 = arith.constant 0 : index
    %156 = vector.load %arg6[%c0_103, %c0_104] : memref<32x288xbf16, #tpu.memory_space<vmem>>, vector<32x288xbf16>
    %c0_105 = arith.constant 0 : index
    %c0_106 = arith.constant 0 : index
    %157 = vector.load %arg16[%c0_105, %c0_106] : memref<288x768xbf16, #tpu.memory_space<vmem>>, vector<288x768xbf16>
    %cst_107 = arith.constant dense<0.000000e+00> : vector<32x768xf32>
    %158 = tpu.matmul %156, %157, %cst_107 {dimension_numbers = #tpu.dot_dimension_numbers<[1], [0], [0], [1], [0, 0, 1, 1], [], []>} : vector<32x288xbf16>, vector<288x768xbf16>, vector<32x768xf32> -> vector<32x768xf32>
    %c0_108 = arith.constant 0 : index
    %c0_109 = arith.constant 0 : index
    %159 = vector.load %arg7[%c0_108, %c0_109] : memref<32x1xf32, #tpu.memory_space<vmem>>, vector<32x1xf32>
    %160 = vector.broadcast %159 : vector<32x1xf32> to vector<32x768xf32>
    %161 = arith.addf %158, %160 : vector<32x768xf32>
    %cst_110 = arith.constant 0.000000e+00 : f32
    %162 = vector.broadcast %cst_110 : f32 to vector<1x768xf32>
    %163 = arith.cmpf one, %12, %162 : vector<1x768xf32>
    %cst_111 = arith.constant 0.000000e+00 : f32
    %164 = vector.shape_cast %163 : vector<1x768xi1> to vector<1x768xi1>
    %165 = vector.broadcast %164 : vector<1x768xi1> to vector<32x768xi1>
    %166 = vector.broadcast %cst_111 : f32 to vector<32x768xf32>
    %167 = arith.select %165, %161, %166 : vector<32x768xi1>, vector<32x768xf32>
    %cst_112 = arith.constant dense<0.000000e+00> : vector<32xf32>
    %168 = vector.multi_reduction <add>, %167, %cst_112 [1] : vector<32x768xf32> to vector<32xf32>
    %169 = vector.shape_cast %168 : vector<32xf32> to vector<32x1xf32>
    %cst_113 = arith.constant 0.00347222225 : f32
    %170 = vector.broadcast %cst_113 : f32 to vector<32x1xf32>
    %171 = arith.mulf %169, %170 : vector<32x1xf32>
    %172 = arith.mulf %167, %167 : vector<32x768xf32>
    %cst_114 = arith.constant dense<0.000000e+00> : vector<32xf32>
    %173 = vector.multi_reduction <add>, %172, %cst_114 [1] : vector<32x768xf32> to vector<32xf32>
    %174 = vector.shape_cast %173 : vector<32xf32> to vector<32x1xf32>
    %cst_115 = arith.constant 0.00347222225 : f32
    %175 = vector.broadcast %cst_115 : f32 to vector<32x1xf32>
    %176 = arith.mulf %174, %175 : vector<32x1xf32>
    %177 = arith.mulf %171, %171 : vector<32x1xf32>
    %178 = arith.subf %176, %177 : vector<32x1xf32>
    %cst_116 = arith.constant 0.000000e+00 : f32
    %179 = vector.broadcast %cst_116 : f32 to vector<32x1xf32>
    %180 = arith.maximumf %178, %179 : vector<32x1xf32>
    %181 = vector.broadcast %171 : vector<32x1xf32> to vector<32x768xf32>
    %182 = arith.subf %161, %181 : vector<32x768xf32>
    %c0_117 = arith.constant 0 : index
    %c0_118 = arith.constant 0 : index
    %183 = vector.load %arg8[%c0_117, %c0_118] : memref<32x1xf32, #tpu.memory_space<vmem>>, vector<32x1xf32>
    %cst_119 = arith.constant 9.99999974E-6 : f32
    %184 = vector.broadcast %cst_119 : f32 to vector<32x1xf32>
    %185 = arith.addf %180, %184 : vector<32x1xf32>
    %186 = math.rsqrt %185 : vector<32x1xf32>
    %187 = arith.mulf %183, %186 : vector<32x1xf32>
    %188 = vector.broadcast %187 : vector<32x1xf32> to vector<32x768xf32>
    %189 = arith.mulf %182, %188 : vector<32x768xf32>
    %c0_120 = arith.constant 0 : index
    %c0_121 = arith.constant 0 : index
    %190 = vector.load %arg9[%c0_120, %c0_121] : memref<32x1xf32, #tpu.memory_space<vmem>>, vector<32x1xf32>
    %191 = vector.broadcast %190 : vector<32x1xf32> to vector<32x768xf32>
    %192 = arith.addf %189, %191 : vector<32x768xf32>
    %cst_122 = arith.constant 0.000000e+00 : f32
    %193 = vector.broadcast %cst_122 : f32 to vector<1x768xf32>
    %194 = arith.cmpf one, %12, %193 : vector<1x768xf32>
    %cst_123 = arith.constant 0.000000e+00 : f32
    %195 = vector.shape_cast %194 : vector<1x768xi1> to vector<1x768xi1>
    %196 = vector.broadcast %195 : vector<1x768xi1> to vector<32x768xi1>
    %197 = vector.broadcast %cst_123 : f32 to vector<32x768xf32>
    %198 = arith.select %196, %192, %197 : vector<32x768xi1>, vector<32x768xf32>
    %199 = arith.truncf %198 : vector<32x768xf32> to vector<32x768xbf16>
    %c0_124 = arith.constant 0 : index
    %c128_125 = arith.constant 128 : index
    %200 = vector.load %arg18[%c0_124, %c128_125] : memref<32x1024xbf16, #tpu.memory_space<vmem>>, vector<32x768xbf16>
    tpu.vector_store %arg18[%c0_124, %c128_125], %199 {strides = array<i32>} : memref<32x1024xbf16, #tpu.memory_space<vmem>>, vector<32x768xbf16>,
    %c0_126 = arith.constant 0 : index
    %c90 = arith.constant 90 : index
    %201 = vector.load %arg18[%c0_126, %c90] : memref<32x1024xbf16, #tpu.memory_space<vmem>>, vector<32x768xbf16>
    %c0_127 = arith.constant 0 : index
    %c0_128 = arith.constant 0 : index
    %202 = vector.load %arg16[%c0_127, %c0_128] : memref<288x768xbf16, #tpu.memory_space<vmem>>, vector<32x768xbf16>
    tpu.vector_store %arg16[%c0_127, %c0_128], %201 {strides = array<i32>} : memref<288x768xbf16, #tpu.memory_space<vmem>>, vector<32x768xbf16>,
    %c0_129 = arith.constant 0 : index
    %c91 = arith.constant 91 : index
    %203 = vector.load %arg18[%c0_129, %c91] : memref<32x1024xbf16, #tpu.memory_space<vmem>>, vector<32x768xbf16>
    %c32_130 = arith.constant 32 : index
    %c0_131 = arith.constant 0 : index
    %204 = vector.load %arg16[%c32_130, %c0_131] : memref<288x768xbf16, #tpu.memory_space<vmem>>, vector<32x768xbf16>
    tpu.vector_store %arg16[%c32_130, %c0_131], %203 {strides = array<i32>} : memref<288x768xbf16, #tpu.memory_space<vmem>>, vector<32x768xbf16>,
    %c0_132 = arith.constant 0 : index
    %c92 = arith.constant 92 : index
    %205 = vector.load %arg18[%c0_132, %c92] : memref<32x1024xbf16, #tpu.memory_space<vmem>>, vector<32x768xbf16>
    %c64_133 = arith.constant 64 : index
    %c0_134 = arith.constant 0 : index
    %206 = vector.load %arg16[%c64_133, %c0_134] : memref<288x768xbf16, #tpu.memory_space<vmem>>, vector<32x768xbf16>
    tpu.vector_store %arg16[%c64_133, %c0_134], %205 {strides = array<i32>} : memref<288x768xbf16, #tpu.memory_space<vmem>>, vector<32x768xbf16>,
    %c0_135 = arith.constant 0 : index
    %c108 = arith.constant 108 : index
    %207 = vector.load %arg18[%c0_135, %c108] : memref<32x1024xbf16, #tpu.memory_space<vmem>>, vector<32x768xbf16>
    %c96_136 = arith.constant 96 : index
    %c0_137 = arith.constant 0 : index
    %208 = vector.load %arg16[%c96_136, %c0_137] : memref<288x768xbf16, #tpu.memory_space<vmem>>, vector<32x768xbf16>
    tpu.vector_store %arg16[%c96_136, %c0_137], %207 {strides = array<i32>} : memref<288x768xbf16, #tpu.memory_space<vmem>>, vector<32x768xbf16>,
    %c0_138 = arith.constant 0 : index
    %c109 = arith.constant 109 : index
    %209 = vector.load %arg18[%c0_138, %c109] : memref<32x1024xbf16, #tpu.memory_space<vmem>>, vector<32x768xbf16>
    %c128_139 = arith.constant 128 : index
    %c0_140 = arith.constant 0 : index
    %210 = vector.load %arg16[%c128_139, %c0_140] : memref<288x768xbf16, #tpu.memory_space<vmem>>, vector<32x768xbf16>
    tpu.vector_store %arg16[%c128_139, %c0_140], %209 {strides = array<i32>} : memref<288x768xbf16, #tpu.memory_space<vmem>>, vector<32x768xbf16>,
    %c0_141 = arith.constant 0 : index
    %c110 = arith.constant 110 : index
    %211 = vector.load %arg18[%c0_141, %c110] : memref<32x1024xbf16, #tpu.memory_space<vmem>>, vector<32x768xbf16>
    %c160_142 = arith.constant 160 : index
    %c0_143 = arith.constant 0 : index
    %212 = vector.load %arg16[%c160_142, %c0_143] : memref<288x768xbf16, #tpu.memory_space<vmem>>, vector<32x768xbf16>
    tpu.vector_store %arg16[%c160_142, %c0_143], %211 {strides = array<i32>} : memref<288x768xbf16, #tpu.memory_space<vmem>>, vector<32x768xbf16>,
    %c0_144 = arith.constant 0 : index
    %c126 = arith.constant 126 : index
    %213 = vector.load %arg18[%c0_144, %c126] : memref<32x1024xbf16, #tpu.memory_space<vmem>>, vector<32x768xbf16>
    %c192_145 = arith.constant 192 : index
    %c0_146 = arith.constant 0 : index
    %214 = vector.load %arg16[%c192_145, %c0_146] : memref<288x768xbf16, #tpu.memory_space<vmem>>, vector<32x768xbf16>
    tpu.vector_store %arg16[%c192_145, %c0_146], %213 {strides = array<i32>} : memref<288x768xbf16, #tpu.memory_space<vmem>>, vector<32x768xbf16>,
    %c0_147 = arith.constant 0 : index
    %c127 = arith.constant 127 : index
    %215 = vector.load %arg18[%c0_147, %c127] : memref<32x1024xbf16, #tpu.memory_space<vmem>>, vector<32x768xbf16>
    %c224_148 = arith.constant 224 : index
    %c0_149 = arith.constant 0 : index
    %216 = vector.load %arg16[%c224_148, %c0_149] : memref<288x768xbf16, #tpu.memory_space<vmem>>, vector<32x768xbf16>
    tpu.vector_store %arg16[%c224_148, %c0_149], %215 {strides = array<i32>} : memref<288x768xbf16, #tpu.memory_space<vmem>>, vector<32x768xbf16>,
    %c0_150 = arith.constant 0 : index
    %c128_151 = arith.constant 128 : index
    %217 = vector.load %arg18[%c0_150, %c128_151] : memref<32x1024xbf16, #tpu.memory_space<vmem>>, vector<32x768xbf16>
    %c256_152 = arith.constant 256 : index
    %c0_153 = arith.constant 0 : index
    %218 = vector.load %arg16[%c256_152, %c0_153] : memref<288x768xbf16, #tpu.memory_space<vmem>>, vector<32x768xbf16>
    tpu.vector_store %arg16[%c256_152, %c0_153], %217 {strides = array<i32>} : memref<288x768xbf16, #tpu.memory_space<vmem>>, vector<32x768xbf16>,
    %c0_154 = arith.constant 0 : index
    %c0_155 = arith.constant 0 : index
    %219 = vector.load %arg10[%c0_154, %c0_155] : memref<32x288xbf16, #tpu.memory_space<vmem>>, vector<32x288xbf16>
    %c0_156 = arith.constant 0 : index
    %c0_157 = arith.constant 0 : index
    %220 = vector.load %arg16[%c0_156, %c0_157] : memref<288x768xbf16, #tpu.memory_space<vmem>>, vector<288x768xbf16>
    %cst_158 = arith.constant dense<0.000000e+00> : vector<32x768xf32>
    %221 = tpu.matmul %219, %220, %cst_158 {dimension_numbers = #tpu.dot_dimension_numbers<[1], [0], [0], [1], [0, 0, 1, 1], [], []>} : vector<32x288xbf16>, vector<288x768xbf16>, vector<32x768xf32> -> vector<32x768xf32>
    %c0_159 = arith.constant 0 : index
    %c0_160 = arith.constant 0 : index
    %222 = vector.load %arg11[%c0_159, %c0_160] : memref<32x1xf32, #tpu.memory_space<vmem>>, vector<32x1xf32>
    %223 = vector.broadcast %222 : vector<32x1xf32> to vector<32x768xf32>
    %224 = arith.addf %221, %223 : vector<32x768xf32>
    %cst_161 = arith.constant 5.000000e-01 : f32
    %225 = vector.broadcast %cst_161 : f32 to vector<32x768xf32>
    %226 = arith.mulf %225, %224 : vector<32x768xf32>
    %cst_162 = arith.constant 0.707106769 : f32
    %227 = vector.broadcast %cst_162 : f32 to vector<32x768xf32>
    %228 = arith.mulf %224, %227 : vector<32x768xf32>
    %cst_163 = arith.constant 0.000000e+00 : f32
    %229 = vector.broadcast %cst_163 : f32 to vector<32x768xf32>
    %230 = arith.cmpf oge, %228, %229 : vector<32x768xf32>
    %cst_164 = arith.constant 1.000000e+00 : f32
    %cst_165 = arith.constant -1.000000e+00 : f32
    %231 = vector.broadcast %cst_164 : f32 to vector<32x768xf32>
    %232 = vector.broadcast %cst_165 : f32 to vector<32x768xf32>
    %233 = arith.select %230, %231, %232 : vector<32x768xi1>, vector<32x768xf32>
    %234 = math.absf %228 : vector<32x768xf32>
    %cst_166 = arith.constant 0.327591091 : f32
    %235 = vector.broadcast %cst_166 : f32 to vector<32x768xf32>
    %236 = arith.mulf %235, %234 : vector<32x768xf32>
    %cst_167 = arith.constant 1.000000e+00 : f32
    %237 = vector.broadcast %cst_167 : f32 to vector<32x768xf32>
    %238 = arith.addf %237, %236 : vector<32x768xf32>
    %239 = tpu.reciprocal %238 {approx = true} : vector<32x768xf32> -> vector<32x768xf32>
    %cst_168 = arith.constant 1.06140542 : f32
    %240 = vector.broadcast %cst_168 : f32 to vector<32x768xf32>
    %241 = arith.mulf %240, %239 : vector<32x768xf32>
    %cst_169 = arith.constant -1.45315206 : f32
    %242 = vector.broadcast %cst_169 : f32 to vector<32x768xf32>
    %243 = arith.addf %241, %242 : vector<32x768xf32>
    %244 = arith.mulf %243, %239 : vector<32x768xf32>
    %cst_170 = arith.constant 1.42141378 : f32
    %245 = vector.broadcast %cst_170 : f32 to vector<32x768xf32>
    %246 = arith.addf %244, %245 : vector<32x768xf32>
    %247 = arith.mulf %246, %239 : vector<32x768xf32>
    %cst_171 = arith.constant -0.284496725 : f32
    %248 = vector.broadcast %cst_171 : f32 to vector<32x768xf32>
    %249 = arith.addf %247, %248 : vector<32x768xf32>
    %250 = arith.mulf %249, %239 : vector<32x768xf32>
    %cst_172 = arith.constant 0.254829586 : f32
    %251 = vector.broadcast %cst_172 : f32 to vector<32x768xf32>
    %252 = arith.addf %250, %251 : vector<32x768xf32>
    %253 = arith.mulf %252, %239 : vector<32x768xf32>
    %cst_173 = arith.constant 0.000000e+00 : f32
    %254 = vector.broadcast %cst_173 : f32 to vector<32x768xf32>
    %255 = arith.subf %254, %234 : vector<32x768xf32>
    %256 = arith.mulf %255, %234 : vector<32x768xf32>
    %257 = math.exp %256 : vector<32x768xf32>
    %258 = arith.mulf %253, %257 : vector<32x768xf32>
    %cst_174 = arith.constant 1.000000e+00 : f32
    %259 = vector.broadcast %cst_174 : f32 to vector<32x768xf32>
    %260 = arith.subf %259, %258 : vector<32x768xf32>
    %261 = arith.mulf %233, %260 : vector<32x768xf32>
    %cst_175 = arith.constant 1.000000e+00 : f32
    %262 = vector.broadcast %cst_175 : f32 to vector<32x768xf32>
    %263 = arith.addf %262, %261 : vector<32x768xf32>
    %264 = arith.mulf %226, %263 : vector<32x768xf32>
    %cst_176 = arith.constant 0.000000e+00 : f32
    %265 = vector.broadcast %cst_176 : f32 to vector<1x768xf32>
    %266 = arith.cmpf one, %13, %265 : vector<1x768xf32>
    %cst_177 = arith.constant 1.000000e+00 : f32
    %267 = vector.broadcast %cst_177 : f32 to vector<32x768xf32>
    %268 = arith.mulf %267, %135 : vector<32x768xf32>
    %269 = arith.addf %264, %268 : vector<32x768xf32>
    %cst_178 = arith.constant 0.000000e+00 : f32
    %270 = vector.shape_cast %266 : vector<1x768xi1> to vector<1x768xi1>
    %271 = vector.broadcast %270 : vector<1x768xi1> to vector<32x768xi1>
    %272 = vector.broadcast %cst_178 : f32 to vector<32x768xf32>
    %273 = arith.select %271, %269, %272 : vector<32x768xi1>, vector<32x768xf32>
    %274 = arith.truncf %273 : vector<32x768xf32> to vector<32x768xbf16>
    %c0_179 = arith.constant 0 : index
    %c128_180 = arith.constant 128 : index
    %275 = vector.load %arg19[%c0_179, %c128_180] : memref<32x1024xbf16, #tpu.memory_space<vmem>>, vector<32x768xbf16>
    tpu.vector_store %arg19[%c0_179, %c128_180], %274 {strides = array<i32>} : memref<32x1024xbf16, #tpu.memory_space<vmem>>, vector<32x768xbf16>,
    %c0_181 = arith.constant 0 : index
    %c90_182 = arith.constant 90 : index
    %276 = vector.load %arg19[%c0_181, %c90_182] : memref<32x1024xbf16, #tpu.memory_space<vmem>>, vector<32x768xbf16>
    %c0_183 = arith.constant 0 : index
    %c0_184 = arith.constant 0 : index
    %277 = vector.load %arg16[%c0_183, %c0_184] : memref<288x768xbf16, #tpu.memory_space<vmem>>, vector<32x768xbf16>
    tpu.vector_store %arg16[%c0_183, %c0_184], %276 {strides = array<i32>} : memref<288x768xbf16, #tpu.memory_space<vmem>>, vector<32x768xbf16>,
    %c0_185 = arith.constant 0 : index
    %c91_186 = arith.constant 91 : index
    %278 = vector.load %arg19[%c0_185, %c91_186] : memref<32x1024xbf16, #tpu.memory_space<vmem>>, vector<32x768xbf16>
    %c32_187 = arith.constant 32 : index
    %c0_188 = arith.constant 0 : index
    %279 = vector.load %arg16[%c32_187, %c0_188] : memref<288x768xbf16, #tpu.memory_space<vmem>>, vector<32x768xbf16>
    tpu.vector_store %arg16[%c32_187, %c0_188], %278 {strides = array<i32>} : memref<288x768xbf16, #tpu.memory_space<vmem>>, vector<32x768xbf16>,
    %c0_189 = arith.constant 0 : index
    %c92_190 = arith.constant 92 : index
    %280 = vector.load %arg19[%c0_189, %c92_190] : memref<32x1024xbf16, #tpu.memory_space<vmem>>, vector<32x768xbf16>
    %c64_191 = arith.constant 64 : index
    %c0_192 = arith.constant 0 : index
    %281 = vector.load %arg16[%c64_191, %c0_192] : memref<288x768xbf16, #tpu.memory_space<vmem>>, vector<32x768xbf16>
    tpu.vector_store %arg16[%c64_191, %c0_192], %280 {strides = array<i32>} : memref<288x768xbf16, #tpu.memory_space<vmem>>, vector<32x768xbf16>,
    %c0_193 = arith.constant 0 : index
    %c108_194 = arith.constant 108 : index
    %282 = vector.load %arg19[%c0_193, %c108_194] : memref<32x1024xbf16, #tpu.memory_space<vmem>>, vector<32x768xbf16>
    %c96_195 = arith.constant 96 : index
    %c0_196 = arith.constant 0 : index
    %283 = vector.load %arg16[%c96_195, %c0_196] : memref<288x768xbf16, #tpu.memory_space<vmem>>, vector<32x768xbf16>
    tpu.vector_store %arg16[%c96_195, %c0_196], %282 {strides = array<i32>} : memref<288x768xbf16, #tpu.memory_space<vmem>>, vector<32x768xbf16>,
    %c0_197 = arith.constant 0 : index
    %c109_198 = arith.constant 109 : index
    %284 = vector.load %arg19[%c0_197, %c109_198] : memref<32x1024xbf16, #tpu.memory_space<vmem>>, vector<32x768xbf16>
    %c128_199 = arith.constant 128 : index
    %c0_200 = arith.constant 0 : index
    %285 = vector.load %arg16[%c128_199, %c0_200] : memref<288x768xbf16, #tpu.memory_space<vmem>>, vector<32x768xbf16>
    tpu.vector_store %arg16[%c128_199, %c0_200], %284 {strides = array<i32>} : memref<288x768xbf16, #tpu.memory_space<vmem>>, vector<32x768xbf16>,
    %c0_201 = arith.constant 0 : index
    %c110_202 = arith.constant 110 : index
    %286 = vector.load %arg19[%c0_201, %c110_202] : memref<32x1024xbf16, #tpu.memory_space<vmem>>, vector<32x768xbf16>
    %c160_203 = arith.constant 160 : index
    %c0_204 = arith.constant 0 : index
    %287 = vector.load %arg16[%c160_203, %c0_204] : memref<288x768xbf16, #tpu.memory_space<vmem>>, vector<32x768xbf16>
    tpu.vector_store %arg16[%c160_203, %c0_204], %286 {strides = array<i32>} : memref<288x768xbf16, #tpu.memory_space<vmem>>, vector<32x768xbf16>,
    %c0_205 = arith.constant 0 : index
    %c126_206 = arith.constant 126 : index
    %288 = vector.load %arg19[%c0_205, %c126_206] : memref<32x1024xbf16, #tpu.memory_space<vmem>>, vector<32x768xbf16>
    %c192_207 = arith.constant 192 : index
    %c0_208 = arith.constant 0 : index
    %289 = vector.load %arg16[%c192_207, %c0_208] : memref<288x768xbf16, #tpu.memory_space<vmem>>, vector<32x768xbf16>
    tpu.vector_store %arg16[%c192_207, %c0_208], %288 {strides = array<i32>} : memref<288x768xbf16, #tpu.memory_space<vmem>>, vector<32x768xbf16>,
    %c0_209 = arith.constant 0 : index
    %c127_210 = arith.constant 127 : index
    %290 = vector.load %arg19[%c0_209, %c127_210] : memref<32x1024xbf16, #tpu.memory_space<vmem>>, vector<32x768xbf16>
    %c224_211 = arith.constant 224 : index
    %c0_212 = arith.constant 0 : index
    %291 = vector.load %arg16[%c224_211, %c0_212] : memref<288x768xbf16, #tpu.memory_space<vmem>>, vector<32x768xbf16>
    tpu.vector_store %arg16[%c224_211, %c0_212], %290 {strides = array<i32>} : memref<288x768xbf16, #tpu.memory_space<vmem>>, vector<32x768xbf16>,
    %c0_213 = arith.constant 0 : index
    %c128_214 = arith.constant 128 : index
    %292 = vector.load %arg19[%c0_213, %c128_214] : memref<32x1024xbf16, #tpu.memory_space<vmem>>, vector<32x768xbf16>
    %c256_215 = arith.constant 256 : index
    %c0_216 = arith.constant 0 : index
    %293 = vector.load %arg16[%c256_215, %c0_216] : memref<288x768xbf16, #tpu.memory_space<vmem>>, vector<32x768xbf16>
    tpu.vector_store %arg16[%c256_215, %c0_216], %292 {strides = array<i32>} : memref<288x768xbf16, #tpu.memory_space<vmem>>, vector<32x768xbf16>,
    %c0_217 = arith.constant 0 : index
    %c0_218 = arith.constant 0 : index
    %294 = vector.load %arg12[%c0_217, %c0_218] : memref<4x288xbf16, #tpu.memory_space<vmem>>, vector<4x288xbf16>
    %c0_219 = arith.constant 0 : index
    %c0_220 = arith.constant 0 : index
    %295 = vector.load %arg16[%c0_219, %c0_220] : memref<288x768xbf16, #tpu.memory_space<vmem>>, vector<288x768xbf16>
    %cst_221 = arith.constant dense<0.000000e+00> : vector<4x768xf32>
    %296 = tpu.matmul %294, %295, %cst_221 {dimension_numbers = #tpu.dot_dimension_numbers<[1], [0], [0], [1], [0, 0, 1, 1], [], []>} : vector<4x288xbf16>, vector<288x768xbf16>, vector<4x768xf32> -> vector<4x768xf32>
    %c0_222 = arith.constant 0 : index
    %c0_223 = arith.constant 0 : index
    %297 = vector.load %arg13[%c0_222, %c0_223] : memref<4x1xf32, #tpu.memory_space<vmem>>, vector<4x1xf32>
    %298 = vector.broadcast %297 : vector<4x1xf32> to vector<4x768xf32>
    %299 = arith.addf %296, %298 : vector<4x768xf32>
    %c0_224 = arith.constant 0 : index
    %c0_225 = arith.constant 0 : index
    %300 = vector.load %arg14[%c0_224, %c0_225] : memref<4x768xf32, #tpu.memory_space<vmem>>, vector<4x768xf32>
    tpu.vector_store %arg14[%c0_224, %c0_225], %299 {strides = array<i32>} : memref<4x768xf32, #tpu.memory_space<vmem>>, vector<4x768xf32>,
    return
  }
}

</mosaic_0001>

<llo_original>
// kernel: tile.13
$region0: #{tile.13}
  #allocation0 [shape = 's32[1]{0}', space=sflag, size = 0x4, scoped, tag = 'scoped memory for tile.13']
  %s0 = inlined_call_operand.vmem [shape: f32[324], index: 0, kind: input, shape index: {}]
  %s1 = inlined_call_operand.vmem [shape: f32[2,324], index: 1, kind: output, shape index: {}]
  // Predicated region
  $region2: #{tile.13} parent=0 // pred_check
    _
  $region3: #{tile.13} parent=0 // pred_check_branch
    %3 = sbr.rel (0) target = $region5
  $region4: #{tile.13} parent=0 // pred_region
    _
  $region5: #{tile.13} parent=0 // pred_fallthru
    _
  %v4 = vld [vmem:[%s0] ss:$0 sm:$0xff]
  %5 = vst [vmem:[%s1] sm:$0x3] %v4
  %s6 = scalar_lea.vmem %s0, 1
  %v7 = vld [vmem:[%s6] ss:$0 sm:$0xff]
  %s8 = scalar_lea.vmem %s1, 2
  %9 = vst [vmem:[%s8] sm:$0x3] %v7
  %s10 = scalar_lea.vmem %s0, 2
  %v11 = vld [vmem:[%s10] ss:$0 sm:$0xff]
  %s12 = scalar_lea.vmem %s1, 4
  %13 = vst [vmem:[%s12] sm:$0x3] %v11

// kernel: tile.14
$region0: #{tile.14}
  %s0 = inlined_call_operand.vmem [shape: f32[2,324], index: 0, kind: input, shape index: {}]
  %s1 = inlined_call_operand.vmem [shape: f32[648], index: 1, kind: output, shape index: {}]
  $region1: #{tile.14} parent=0
    #allocation0 [shape = 'u8[12288]{0}', space=vmem, size = 0x3000, scoped, tag = 'scoped mem for input reshape']
    %s3 = sshllo.u32 0, 2
    %s4 = smul.addr 2, 2
    %s5 = scalar_lea.vmem %s0, %s4
    %v6 = vld [vmem:[%s5] sm:%s3]
    %s7 = scalar_lea.vmem [#allocation0], 16
    %8 = vst [vmem:[%s7] sm:%s3] %v6
    %s9 = scalar_lea.vmem %s0, 2
    %v10 = vld [vmem:[%s9] sm:%s3]
    %s11 = scalar_lea.vmem [#allocation0], 8
    %12 = vst [vmem:[%s11] sm:%s3] %v10
    %v13 = vld [vmem:[%s0] sm:%s3]
    %14 = vst [vmem:[#allocation0] sm:%s3] %v13
    %s15 = scalar_lea.vmem [#allocation0], 16
    %v16 = vld [vmem:[%s15] sm:$0x1]
    %vm17 = vcmask 556032
    %s18 = scalar_lea.vmem %s1, 2
    %19 = vst.msk [vmem:[%s18] sm:$0x1] %vm17, %v16
    %s20 = smov 3
    %v21 = vld [vmem:[#allocation0] ss:$8 sm:%s20]
    %22 = vst [vmem:[%s1] sm:$0x3] %v21
    %s23 = scalar_lea.vmem [#allocation0], 17
    %v24 = vld [vmem:[%s23] sm:$0x1]
    %s25 = scalar_lea.vmem [#allocation0], 1
    %v26 = vld [vmem:[%s25] ss:$8 sm:$0x7]
    %vm27 = vcmask 490496
    %v28 = vsel %vm27, %v26, %v24
    %29 = vrot.lane.b32.xlu0 %v28, 68
    %v30 = vpop.permute.xlu0 %29
    %vm31 = vcmask 64512
    %s32 = scalar_lea.vmem %s1, 5
    %33 = vst.msk [vmem:[%s32] sm:$0x1] %vm31, %v30
    %vm34 = vcmask 1048096
    %s35 = scalar_lea.vmem %s1, 2
    %36 = vst.msk [vmem:[%s35] sm:$0x7] %vm34, %v30
    %s37 = scalar_lea.vmem [#allocation0], 1
    %s38 = smov 3
    %v39 = vld [vmem:[%s37] ss:$8 sm:%s38]
    %40 = vrot.lane.b32.xlu0 %v39, 68
    %v41 = vpop.permute.xlu0 %40
    %vm42 = vcmask 556032
    %s43 = scalar_lea.vmem %s1, 3
    %44 = vst.msk [vmem:[%s43] sm:$0x3] %vm42, %v41

// kernel: resconv_forward.1
$region0: #{resconv_forward.1}
  #allocation0 [shape = 'u32[]', space=smem, size = 0x4, offset = 0x4, fixed_abs, tag = 'smem constant byte address 0x4 - core index']
  #allocation1 [shape = 'u32[144,128]{1,0:T(1,128)}', space=vmem, size = 0x12000, scoped, tag = 'internal scratch']
  #allocation2 [shape = 'f32[36,768]{1,0:T(8,128)}', space=vmem, size = 0x1e000, scoped, tag = 'scratch operand']
  #allocation3 [shape = 'bf16[288,768]{1,0:T(16,128)(2,1)}', space=vmem, size = 0x6c000, scoped, tag = 'scratch operand']
  #allocation4 [shape = 'bf16[32,1024]{1,0:T(16,128)(2,1)}', space=vmem, size = 0x10000, scoped, tag = 'scratch operand']
  #allocation5 [shape = 'bf16[32,1024]{1,0:T(16,128)(2,1)}', space=vmem, size = 0x10000, scoped, tag = 'scratch operand']
  #allocation6 [shape = 'bf16[32,1024]{1,0:T(16,128)(2,1)}', space=vmem, size = 0x10000, scoped, tag = 'scratch operand']
  %s0 = inlined_call_operand.vmem [shape: f32[4,1024], index: 0, kind: input, shape index: {}]
  %s1 = inlined_call_operand.vmem [shape: f32[2,768], index: 1, kind: input, shape index: {}]
  %s2 = inlined_call_operand.vmem [shape: f32[4,1], index: 2, kind: input, shape index: {}]
  %s3 = inlined_call_operand.vmem [shape: f32[4,1], index: 3, kind: input, shape index: {}]
  %s4 = inlined_call_operand.vmem [shape: f32[32,36], index: 4, kind: input, shape index: {}]
  %s5 = inlined_call_operand.vmem [shape: f32[32,1], index: 5, kind: input, shape index: {}]
  %s6 = inlined_call_operand.vmem [shape: bf16[32,288], index: 6, kind: input, shape index: {}]
  %s7 = inlined_call_operand.vmem [shape: f32[32,1], index: 7, kind: input, shape index: {}]
  %s8 = inlined_call_operand.vmem [shape: f32[32,1], index: 8, kind: input, shape index: {}]
  %s9 = inlined_call_operand.vmem [shape: f32[32,1], index: 9, kind: input, shape index: {}]
  %s10 = inlined_call_operand.vmem [shape: bf16[32,288], index: 10, kind: input, shape index: {}]
  %s11 = inlined_call_operand.vmem [shape: f32[32,1], index: 11, kind: input, shape index: {}]
  %s12 = inlined_call_operand.vmem [shape: bf16[4,288], index: 12, kind: input, shape index: {}]
  %s13 = inlined_call_operand.vmem [shape: f32[4,1], index: 13, kind: input, shape index: {}]
  %s14 = inlined_call_operand.vmem [shape: f32[4,768], index: 14, kind: output, shape index: {}]
  %s15 = sld [smem:[#allocation0]]
  $region66: #{resconv_forward.1} parent=0
    _
  %s17 = ssub.s32 1, %s15
  %s18 = scalar_select 0, %s17, %s15
  // Predicated region
  $region2: #{resconv_forward.1} parent=0 // pred_check
    _
  $region3: #{resconv_forward.1} parent=0 // pred_check_branch
    %20 = sbr.rel (0) target = $region5
  $region4: #{resconv_forward.1} parent=0 // pred_region
    _
  $region5: #{resconv_forward.1} parent=0 // pred_fallthru
    _
  // Predicated region
  $region6: #{resconv_forward.1} parent=0 // pred_check
    _
  $region7: #{resconv_forward.1} parent=0 // pred_check_branch
    %22 = sbr.rel (0) target = $region9
  $region8: #{resconv_forward.1} parent=0 // pred_region
    _
  $region9: #{resconv_forward.1} parent=0 // pred_fallthru
    _
  // Predicated region
  $region10: #{resconv_forward.1} parent=0 // pred_check
    _
  $region11: #{resconv_forward.1} parent=0 // pred_check_branch
    %24 = sbr.rel (0) target = $region13
  $region12: #{resconv_forward.1} parent=0 // pred_region
    _
  $region13: #{resconv_forward.1} parent=0 // pred_fallthru
    _
  // Predicated region
  $region14: #{resconv_forward.1} parent=0 // pred_check
    _
  $region15: #{resconv_forward.1} parent=0 // pred_check_branch
    %26 = sbr.rel (0) target = $region17
  $region16: #{resconv_forward.1} parent=0 // pred_region
    _
  $region17: #{resconv_forward.1} parent=0 // pred_fallthru
    _
  // Predicated region
  $region18: #{resconv_forward.1} parent=0 // pred_check
    _
  $region19: #{resconv_forward.1} parent=0 // pred_check_branch
    %28 = sbr.rel (0) target = $region21
  $region20: #{resconv_forward.1} parent=0 // pred_region
    _
  $region21: #{resconv_forward.1} parent=0 // pred_fallthru
    _
  // Predicated region
  $region22: #{resconv_forward.1} parent=0 // pred_check
    _
  $region23: #{resconv_forward.1} parent=0 // pred_check_branch
    %30 = sbr.rel (0) target = $region25
  $region24: #{resconv_forward.1} parent=0 // pred_region
    _
  $region25: #{resconv_forward.1} parent=0 // pred_fallthru
    _
  // Predicated region
  $region26: #{resconv_forward.1} parent=0 // pred_check
    _
  $region27: #{resconv_forward.1} parent=0 // pred_check_branch
    %32 = sbr.rel (0) target = $region29
  $region28: #{resconv_forward.1} parent=0 // pred_region
    _
  $region29: #{resconv_forward.1} parent=0 // pred_fallthru
    _
  // Predicated region
  $region30: #{resconv_forward.1} parent=0 // pred_check
    _
  $region31: #{resconv_forward.1} parent=0 // pred_check_branch
    %34 = sbr.rel (0) target = $region33
  $region32: #{resconv_forward.1} parent=0 // pred_region
    _
  $region33: #{resconv_forward.1} parent=0 // pred_fallthru
    _
  // Predicated region
  $region34: #{resconv_forward.1} parent=0 // pred_check
    _
  $region35: #{resconv_forward.1} parent=0 // pred_check_branch
    %36 = sbr.rel (0) target = $region37
  $region36: #{resconv_forward.1} parent=0 // pred_region
    _
  $region37: #{resconv_forward.1} parent=0 // pred_fallthru
    _
  // Predicated region
  $region38: #{resconv_forward.1} parent=0 // pred_check
    _
  $region39: #{resconv_forward.1} parent=0 // pred_check_branch
    %38 = sbr.rel (0) target = $region41
  $region40: #{resconv_forward.1} parent=0 // pred_region
    _
  $region41: #{resconv_forward.1} parent=0 // pred_fallthru
    _
  // Predicated region
  $region42: #{resconv_forward.1} parent=0 // pred_check
    _
  $region43: #{resconv_forward.1} parent=0 // pred_check_branch
    %40 = sbr.rel (0) target = $region45
  $region44: #{resconv_forward.1} parent=0 // pred_region
    _
  $region45: #{resconv_forward.1} parent=0 // pred_fallthru
    _
  // Predicated region
  $region46: #{resconv_forward.1} parent=0 // pred_check
    _
  $region47: #{resconv_forward.1} parent=0 // pred_check_branch
    %42 = sbr.rel (0) target = $region49
  $region48: #{resconv_forward.1} parent=0 // pred_region
    _
  $region49: #{resconv_forward.1} parent=0 // pred_fallthru
    _
  // Predicated region
  $region50: #{resconv_forward.1} parent=0 // pred_check
    _
  $region51: #{resconv_forward.1} parent=0 // pred_check_branch
    %44 = sbr.rel (0) target = $region53
  $region52: #{resconv_forward.1} parent=0 // pred_region
    _
  $region53: #{resconv_forward.1} parent=0 // pred_fallthru
    _
  // Predicated region
  $region54: #{resconv_forward.1} parent=0 // pred_check
    _
  $region55: #{resconv_forward.1} parent=0 // pred_check_branch
    %46 = sbr.rel (0) target = $region57
  $region56: #{resconv_forward.1} parent=0 // pred_region
    _
  $region57: #{resconv_forward.1} parent=0 // pred_fallthru
    _
  %48 = vst [vmem:[#allocation4] sm:$0xff] 0
  %49 = vst [vmem:[#allocation4 + $0x40] sm:$0xff] 0
  %50 = vst [vmem:[#allocation4 + $0x38] sm:$0xff] 0
  %51 = vst [vmem:[#allocation4 + $0x78] sm:$0xff] 0
  %52 = vst [vmem:[#allocation5] sm:$0xff] 0
  %53 = vst [vmem:[#allocation5 + $0x40] sm:$0xff] 0
  %54 = vst [vmem:[#allocation5 + $0x38] sm:$0xff] 0
  %55 = vst [vmem:[#allocation5 + $0x78] sm:$0xff] 0
  %56 = vst [vmem:[#allocation6] sm:$0xff] 0
  %57 = vst [vmem:[#allocation6 + $0x40] sm:$0xff] 0
  %58 = vst [vmem:[#allocation6 + $0x38] sm:$0xff] 0
  %59 = vst [vmem:[#allocation6 + $0x78] sm:$0xff] 0
  %v60 = vld [vmem:[%s1] ss:$2 sm:$0x3f]
  %s61 = scalar_lea.vmem %s1, 1
  %v62 = vld [vmem:[%s61] ss:$2 sm:$0x3f]
  %v63 = vld [vmem:[%s0 + $0x4] sm:$0xff]
  %v64 = vld [vmem:[%s0 + $0xc] sm:$0xff]
  %v65 = vld [vmem:[%s0 + $0x14] sm:$0xff]
  %v69 = vcombine.high %v63, %v63
  %v70 = vcombine.high %v64, %v64
  %v71 = vcombine.high %v65, %v65
  %vm75 = vcmask 1043456
  %v76 = vsel %vm75, %v63, 0.0
  %v77 = vsel %vm75, %v69, 0.0
  %v78 = vadd.f32 %v76, %v77
  %v79 = vsel %vm75, %v64, 0.0
  %v80 = vadd.f32 %v78, %v79
  %v81 = vsel %vm75, %v70, 0.0
  %v82 = vadd.f32 %v80, %v81
  %v83 = vsel %vm75, %v65, 0.0
  %v84 = vadd.f32 %v82, %v83
  %v85 = vsel %vm75, %v71, 0.0
  %v86 = vadd.f32 %v84, %v85
  %87 = vadd.xlane.f32.xlu0 %v86
  %v88 = vpop.xlane.xlu0 %87
  %v89 = vmul.f32 %v88, 0.001953125
  %v90 = vmul.f32 %v63, %v63
  %v91 = vmul.f32 %v64, %v64
  %v92 = vmul.f32 %v65, %v65
  %v96 = vcombine.high %v90, %v90
  %v97 = vcombine.high %v91, %v91
  %v98 = vcombine.high %v92, %v92
  %v102 = vsel %vm75, %v90, 0.0
  %v103 = vsel %vm75, %v96, 0.0
  %v104 = vadd.f32 %v102, %v103
  %v105 = vsel %vm75, %v91, 0.0
  %v106 = vadd.f32 %v104, %v105
  %v107 = vsel %vm75, %v97, 0.0
  %v108 = vadd.f32 %v106, %v107
  %v109 = vsel %vm75, %v92, 0.0
  %v110 = vadd.f32 %v108, %v109
  %v111 = vsel %vm75, %v98, 0.0
  %v112 = vadd.f32 %v110, %v111
  %113 = vadd.xlane.f32.xlu0 %v112
  %v114 = vpop.xlane.xlu0 %113
  %v115 = vmul.f32 %v114, 0.001953125
  %v116 = vmul.f32 %v89, %v89
  %v117 = vsub.f32 %v115, %v116
  %v118 = vmax.f32 %v117, 0.0
  %v119 = vld [vmem:[%s2] sm:$0xf]
  %v120 = vadd.f32 %v118, 1e-05
  %v121 = vrsqrt.pop %v120
  %v122 = vmul.f32 %v119, %v121
  %v123 = vld [vmem:[%s3] sm:$0xf]
  %v124 = vmul.f32 %v89, %v122
  %v125 = vsub.f32 %v123, %v124
  %127 = vset.pattern.permute.xlu0 0
  %128 = vperm.xlu0 %127, %v122
  %v129 = vpop.permute.xlu0 %128
  %v131 = vunpack.c.l.s4 839922192
  %v132 = vunpack.c.0.s8 %v131
  %v133 = vlaneseq
  %v134 = vshrl.u32 %v133, 7
  %v135 = vsub.s32 %v132, %v134
  %v136 = vrot.slane %v129, %v135
  %v138 = vmul.f32 %v63, %v136
  %v139 = vmul.f32 %v64, %v136
  %v140 = vmul.f32 %v65, %v136
  %142 = vset.pattern.permute.xlu0 0
  %143 = vperm.xlu0 %142, %v125
  %v144 = vpop.permute.xlu0 %143
  %v146 = vunpack.c.l.s4 839922192
  %v147 = vunpack.c.0.s8 %v146
  %v148 = vlaneseq
  %v149 = vshrl.u32 %v148, 7
  %v150 = vsub.s32 %v147, %v149
  %v151 = vrot.slane %v144, %v150
  %v153 = vadd.f32 %v138, %v151
  %v154 = vadd.f32 %v139, %v151
  %v155 = vadd.f32 %v140, %v151
  %v159 = vcombine.high %v153, %v153
  %v160 = vcombine.high %v154, %v154
  %v161 = vcombine.high %v155, %v155
  %165 = vst [vmem:[#allocation2] sm:$0xf] %v153
  %166 = vst [vmem:[#allocation2 + $0x8] sm:$0xf] %v159
  %167 = vst [vmem:[#allocation2 + $0x10] sm:$0xf] %v154
  %168 = vst [vmem:[#allocation2 + $0x18] sm:$0xf] %v160
  %169 = vst [vmem:[#allocation2 + $0x20] sm:$0xf] %v155
  %170 = vst [vmem:[#allocation2 + $0x28] sm:$0xf] %v161
  %v171 = vld [vmem:[%s0 + $0x4] sm:$0xff]
  %v172 = vld [vmem:[%s0 + $0xc] sm:$0xff]
  %v173 = vld [vmem:[%s0 + $0x14] sm:$0xff]
  %v174 = vld [vmem:[%s0 + $0x1c] sm:$0xf]
  %v175 = vmul.f32 %v171, %v136
  %v176 = vmul.f32 %v172, %v136
  %v177 = vmul.f32 %v173, %v136
  %v178 = vmul.f32 %v174, %v136
  %v179 = vadd.f32 %v175, %v151
  %v180 = vadd.f32 %v176, %v151
  %v181 = vadd.f32 %v177, %v151
  %v182 = vadd.f32 %v178, %v151
  %v187 = vcombine.low %v179, %v179
  %v188 = vcombine.low %v180, %v180
  %v189 = vcombine.low %v181, %v181
  %v190 = vcombine.low %v182, %v182
  %191 = vrot.lane.b32.xlu0 %v187, 127
  %v192 = vpop.permute.xlu0 %191
  %193 = vrot.lane.b32.xlu0 %v179, 127
  %v194 = vpop.permute.xlu0 %193
  %195 = vrot.lane.b32.xlu0 %v188, 127
  %v196 = vpop.permute.xlu0 %195
  %197 = vrot.lane.b32.xlu0 %v180, 127
  %v198 = vpop.permute.xlu0 %197
  %199 = vrot.lane.b32.xlu0 %v189, 127
  %v200 = vpop.permute.xlu0 %199
  %201 = vrot.lane.b32.xlu0 %v181, 127
  %v202 = vpop.permute.xlu0 %201
  %203 = vrot.lane.b32.xlu0 %v190, 127
  %v204 = vpop.permute.xlu0 %203
  %vm205 = vcmask 1039360
  %v206 = vsel %vm205, %v192, %v194
  %v207 = vsel %vm205, %v194, %v196
  %v208 = vsel %vm205, %v196, %v198
  %v209 = vsel %vm205, %v198, %v200
  %v210 = vsel %vm205, %v200, %v202
  %v211 = vsel %vm205, %v202, %v204
  %218 = vst [vmem:[#allocation2] sm:$0xf0] %v206
  %219 = vst [vmem:[#allocation2 + $0x8] sm:$0xf0] %v207
  %220 = vst [vmem:[#allocation2 + $0x10] sm:$0xf0] %v208
  %221 = vst [vmem:[#allocation2 + $0x18] sm:$0xf0] %v209
  %222 = vst [vmem:[#allocation2 + $0x20] sm:$0xf0] %v210
  %223 = vst [vmem:[#allocation2 + $0x28] sm:$0xf0] %v211
  %v224 = vld [vmem:[%s0 + $0x4] sm:$0xff]
  %v225 = vld [vmem:[%s0 + $0xc] sm:$0xff]
  %v226 = vld [vmem:[%s0 + $0x14] sm:$0xff]
  %v227 = vld [vmem:[%s0 + $0x1c] sm:$0xf]
  %v228 = vmul.f32 %v224, %v136
  %v229 = vmul.f32 %v225, %v136
  %v230 = vmul.f32 %v226, %v136
  %v231 = vmul.f32 %v227, %v136
  %v232 = vadd.f32 %v228, %v151
  %v233 = vadd.f32 %v229, %v151
  %v234 = vadd.f32 %v230, %v151
  %v235 = vadd.f32 %v231, %v151
  %v240 = vcombine.high %v232, %v232
  %v241 = vcombine.high %v233, %v233
  %v242 = vcombine.high %v234, %v234
  %243 = vrot.lane.b32.xlu0 %v232, 126
  %v244 = vpop.permute.xlu0 %243
  %245 = vrot.lane.b32.xlu0 %v240, 126
  %v246 = vpop.permute.xlu0 %245
  %247 = vrot.lane.b32.xlu0 %v233, 126
  %v248 = vpop.permute.xlu0 %247
  %249 = vrot.lane.b32.xlu0 %v241, 126
  %v250 = vpop.permute.xlu0 %249
  %251 = vrot.lane.b32.xlu0 %v234, 126
  %v252 = vpop.permute.xlu0 %251
  %253 = vrot.lane.b32.xlu0 %v242, 126
  %v254 = vpop.permute.xlu0 %253
  %255 = vrot.lane.b32.xlu0 %v235, 126
  %v256 = vpop.permute.xlu0 %255
  %vm257 = vcmask 1031168
  %v258 = vsel %vm257, %v244, %v246
  %v259 = vsel %vm257, %v246, %v248
  %v260 = vsel %vm257, %v248, %v250
  %v261 = vsel %vm257, %v250, %v252
  %v262 = vsel %vm257, %v252, %v254
  %v263 = vsel %vm257, %v254, %v256
  %270 = vst [vmem:[#allocation2 + $0x30] sm:$0xf] %v258
  %271 = vst [vmem:[#allocation2 + $0x38] sm:$0xf] %v259
  %272 = vst [vmem:[#allocation2 + $0x40] sm:$0xf] %v260
  %273 = vst [vmem:[#allocation2 + $0x48] sm:$0xf] %v261
  %274 = vst [vmem:[#allocation2 + $0x50] sm:$0xf] %v262
  %275 = vst [vmem:[#allocation2 + $0x58] sm:$0xf] %v263
  %v276 = vld [vmem:[%s0 + $0x4] sm:$0xff]
  %v277 = vld [vmem:[%s0 + $0xc] sm:$0xff]
  %v278 = vld [vmem:[%s0 + $0x14] sm:$0xff]
  %v279 = vld [vmem:[%s0 + $0x1c] sm:$0xf]
  %v280 = vmul.f32 %v276, %v136
  %v281 = vmul.f32 %v277, %v136
  %v282 = vmul.f32 %v278, %v136
  %v283 = vmul.f32 %v279, %v136
  %v284 = vadd.f32 %v280, %v151
  %v285 = vadd.f32 %v281, %v151
  %v286 = vadd.f32 %v282, %v151
  %v287 = vadd.f32 %v283, %v151
  %v292 = vcombine.low %v284, %v284
  %v293 = vcombine.low %v285, %v285
  %v294 = vcombine.low %v286, %v286
  %v295 = vcombine.low %v287, %v287
  %296 = vrot.lane.b32.xlu0 %v292, 110
  %v297 = vpop.permute.xlu0 %296
  %298 = vrot.lane.b32.xlu0 %v284, 110
  %v299 = vpop.permute.xlu0 %298
  %300 = vrot.lane.b32.xlu0 %v293, 110
  %v301 = vpop.permute.xlu0 %300
  %302 = vrot.lane.b32.xlu0 %v285, 110
  %v303 = vpop.permute.xlu0 %302
  %304 = vrot.lane.b32.xlu0 %v294, 110
  %v305 = vpop.permute.xlu0 %304
  %306 = vrot.lane.b32.xlu0 %v286, 110
  %v307 = vpop.permute.xlu0 %306
  %308 = vrot.lane.b32.xlu0 %v295, 110
  %v309 = vpop.permute.xlu0 %308
  %vm310 = vcmask 900096
  %v311 = vsel %vm310, %v297, %v299
  %v312 = vsel %vm310, %v299, %v301
  %v313 = vsel %vm310, %v301, %v303
  %v314 = vsel %vm310, %v303, %v305
  %v315 = vsel %vm310, %v305, %v307
  %v316 = vsel %vm310, %v307, %v309
  %323 = vst [vmem:[#allocation2 + $0x30] sm:$0xf0] %v311
  %324 = vst [vmem:[#allocation2 + $0x38] sm:$0xf0] %v312
  %325 = vst [vmem:[#allocation2 + $0x40] sm:$0xf0] %v313
  %326 = vst [vmem:[#allocation2 + $0x48] sm:$0xf0] %v314
  %327 = vst [vmem:[#allocation2 + $0x50] sm:$0xf0] %v315
  %328 = vst [vmem:[#allocation2 + $0x58] sm:$0xf0] %v316
  %v329 = vld [vmem:[%s0 + $0x4] sm:$0xff]
  %v330 = vld [vmem:[%s0 + $0xc] sm:$0xff]
  %v331 = vld [vmem:[%s0 + $0x14] sm:$0xff]
  %v332 = vld [vmem:[%s0 + $0x1c] sm:$0xf]
  %v333 = vmul.f32 %v329, %v136
  %v334 = vmul.f32 %v330, %v136
  %v335 = vmul.f32 %v331, %v136
  %v336 = vmul.f32 %v332, %v136
  %v337 = vadd.f32 %v333, %v151
  %v338 = vadd.f32 %v334, %v151
  %v339 = vadd.f32 %v335, %v151
  %v340 = vadd.f32 %v336, %v151
  %v345 = vcombine.high %v337, %v337
  %v346 = vcombine.high %v338, %v338
  %v347 = vcombine.high %v339, %v339
  %348 = vrot.lane.b32.xlu0 %v337, 109
  %v349 = vpop.permute.xlu0 %348
  %350 = vrot.lane.b32.xlu0 %v345, 109
  %v351 = vpop.permute.xlu0 %350
  %352 = vrot.lane.b32.xlu0 %v338, 109
  %v353 = vpop.permute.xlu0 %352
  %354 = vrot.lane.b32.xlu0 %v346, 109
  %v355 = vpop.permute.xlu0 %354
  %356 = vrot.lane.b32.xlu0 %v339, 109
  %v357 = vpop.permute.xlu0 %356
  %358 = vrot.lane.b32.xlu0 %v347, 109
  %v359 = vpop.permute.xlu0 %358
  %360 = vrot.lane.b32.xlu0 %v340, 109
  %v361 = vpop.permute.xlu0 %360
  %vm362 = vcmask 891904
  %v363 = vsel %vm362, %v349, %v351
  %v364 = vsel %vm362, %v351, %v353
  %v365 = vsel %vm362, %v353, %v355
  %v366 = vsel %vm362, %v355, %v357
  %v367 = vsel %vm362, %v357, %v359
  %v368 = vsel %vm362, %v359, %v361
  %375 = vst [vmem:[#allocation2 + $0x60] sm:$0xf] %v363
  %376 = vst [vmem:[#allocation2 + $0x68] sm:$0xf] %v364
  %377 = vst [vmem:[#allocation2 + $0x70] sm:$0xf] %v365
  %378 = vst [vmem:[#allocation2 + $0x78] sm:$0xf] %v366
  %379 = vst [vmem:[#allocation2 + $0x80] sm:$0xf] %v367
  %380 = vst [vmem:[#allocation2 + $0x88] sm:$0xf] %v368
  %v381 = vld [vmem:[%s0 + $0x4] sm:$0xff]
  %v382 = vld [vmem:[%s0 + $0xc] sm:$0xff]
  %v383 = vld [vmem:[%s0 + $0x14] sm:$0xff]
  %v384 = vld [vmem:[%s0 + $0x1c] sm:$0xf]
  %v385 = vmul.f32 %v381, %v136
  %v386 = vmul.f32 %v382, %v136
  %v387 = vmul.f32 %v383, %v136
  %v388 = vmul.f32 %v384, %v136
  %v389 = vadd.f32 %v385, %v151
  %v390 = vadd.f32 %v386, %v151
  %v391 = vadd.f32 %v387, %v151
  %v392 = vadd.f32 %v388, %v151
  %v397 = vcombine.low %v389, %v389
  %v398 = vcombine.low %v390, %v390
  %v399 = vcombine.low %v391, %v391
  %v400 = vcombine.low %v392, %v392
  %401 = vrot.lane.b32.xlu0 %v397, 108
  %v402 = vpop.permute.xlu0 %401
  %403 = vrot.lane.b32.xlu0 %v389, 108
  %v404 = vpop.permute.xlu0 %403
  %405 = vrot.lane.b32.xlu0 %v398, 108
  %v406 = vpop.permute.xlu0 %405
  %407 = vrot.lane.b32.xlu0 %v390, 108
  %v408 = vpop.permute.xlu0 %407
  %409 = vrot.lane.b32.xlu0 %v399, 108
  %v410 = vpop.permute.xlu0 %409
  %411 = vrot.lane.b32.xlu0 %v391, 108
  %v412 = vpop.permute.xlu0 %411
  %413 = vrot.lane.b32.xlu0 %v400, 108
  %v414 = vpop.permute.xlu0 %413
  %vm415 = vcmask 883712
  %v416 = vsel %vm415, %v402, %v404
  %v417 = vsel %vm415, %v404, %v406
  %v418 = vsel %vm415, %v406, %v408
  %v419 = vsel %vm415, %v408, %v410
  %v420 = vsel %vm415, %v410, %v412
  %v421 = vsel %vm415, %v412, %v414
  %428 = vst [vmem:[#allocation2 + $0x60] sm:$0xf0] %v416
  %429 = vst [vmem:[#allocation2 + $0x68] sm:$0xf0] %v417
  %430 = vst [vmem:[#allocation2 + $0x70] sm:$0xf0] %v418
  %431 = vst [vmem:[#allocation2 + $0x78] sm:$0xf0] %v419
  %432 = vst [vmem:[#allocation2 + $0x80] sm:$0xf0] %v420
  %433 = vst [vmem:[#allocation2 + $0x88] sm:$0xf0] %v421
  %v434 = vld [vmem:[%s0 + $0x4] sm:$0xff]
  %v435 = vld [vmem:[%s0 + $0xc] sm:$0xff]
  %v436 = vld [vmem:[%s0 + $0x14] sm:$0xff]
  %v437 = vld [vmem:[%s0 + $0x1c] sm:$0xf]
  %v438 = vmul.f32 %v434, %v136
  %v439 = vmul.f32 %v435, %v136
  %v440 = vmul.f32 %v436, %v136
  %v441 = vmul.f32 %v437, %v136
  %v442 = vadd.f32 %v438, %v151
  %v443 = vadd.f32 %v439, %v151
  %v444 = vadd.f32 %v440, %v151
  %v445 = vadd.f32 %v441, %v151
  %v450 = vcombine.high %v442, %v442
  %v451 = vcombine.high %v443, %v443
  %v452 = vcombine.high %v444, %v444
  %453 = vrot.lane.b32.xlu0 %v442, 92
  %v454 = vpop.permute.xlu0 %453
  %455 = vrot.lane.b32.xlu0 %v450, 92
  %v456 = vpop.permute.xlu0 %455
  %457 = vrot.lane.b32.xlu0 %v443, 92
  %v458 = vpop.permute.xlu0 %457
  %459 = vrot.lane.b32.xlu0 %v451, 92
  %v460 = vpop.permute.xlu0 %459
  %461 = vrot.lane.b32.xlu0 %v444, 92
  %v462 = vpop.permute.xlu0 %461
  %463 = vrot.lane.b32.xlu0 %v452, 92
  %v464 = vpop.permute.xlu0 %463
  %465 = vrot.lane.b32.xlu0 %v445, 92
  %v466 = vpop.permute.xlu0 %465
  %vm467 = vcmask 752640
  %v468 = vsel %vm467, %v454, %v456
  %v469 = vsel %vm467, %v456, %v458
  %v470 = vsel %vm467, %v458, %v460
  %v471 = vsel %vm467, %v460, %v462
  %v472 = vsel %vm467, %v462, %v464
  %v473 = vsel %vm467, %v464, %v466
  %480 = vst [vmem:[#allocation2 + $0x90] sm:$0xf] %v468
  %481 = vst [vmem:[#allocation2 + $0x98] sm:$0xf] %v469
  %482 = vst [vmem:[#allocation2 + $0xa0] sm:$0xf] %v470
  %483 = vst [vmem:[#allocation2 + $0xa8] sm:$0xf] %v471
  %484 = vst [vmem:[#allocation2 + $0xb0] sm:$0xf] %v472
  %485 = vst [vmem:[#allocation2 + $0xb8] sm:$0xf] %v473
  %v486 = vld [vmem:[%s0 + $0x4] sm:$0xff]
  %v487 = vld [vmem:[%s0 + $0xc] sm:$0xff]
  %v488 = vld [vmem:[%s0 + $0x14] sm:$0xff]
  %v489 = vld [vmem:[%s0 + $0x1c] sm:$0xf]
  %v490 = vmul.f32 %v486, %v136
  %v491 = vmul.f32 %v487, %v136
  %v492 = vmul.f32 %v488, %v136
  %v493 = vmul.f32 %v489, %v136
  %v494 = vadd.f32 %v490, %v151
  %v495 = vadd.f32 %v491, %v151
  %v496 = vadd.f32 %v492, %v151
  %v497 = vadd.f32 %v493, %v151
  %v502 = vcombine.low %v494, %v494
  %v503 = vcombine.low %v495, %v495
  %v504 = vcombine.low %v496, %v496
  %v505 = vcombine.low %v497, %v497
  %506 = vrot.lane.b32.xlu0 %v502, 91
  %v507 = vpop.permute.xlu0 %506
  %508 = vrot.lane.b32.xlu0 %v494, 91
  %v509 = vpop.permute.xlu0 %508
  %510 = vrot.lane.b32.xlu0 %v503, 91
  %v511 = vpop.permute.xlu0 %510
  %512 = vrot.lane.b32.xlu0 %v495, 91
  %v513 = vpop.permute.xlu0 %512
  %514 = vrot.lane.b32.xlu0 %v504, 91
  %v515 = vpop.permute.xlu0 %514
  %516 = vrot.lane.b32.xlu0 %v496, 91
  %v517 = vpop.permute.xlu0 %516
  %518 = vrot.lane.b32.xlu0 %v505, 91
  %v519 = vpop.permute.xlu0 %518
  %vm520 = vcmask 744448
  %v521 = vsel %vm520, %v507, %v509
  %v522 = vsel %vm520, %v509, %v511
  %v523 = vsel %vm520, %v511, %v513
  %v524 = vsel %vm520, %v513, %v515
  %v525 = vsel %vm520, %v515, %v517
  %v526 = vsel %vm520, %v517, %v519
  %533 = vst [vmem:[#allocation2 + $0x90] sm:$0xf0] %v521
  %534 = vst [vmem:[#allocation2 + $0x98] sm:$0xf0] %v522
  %535 = vst [vmem:[#allocation2 + $0xa0] sm:$0xf0] %v523
  %536 = vst [vmem:[#allocation2 + $0xa8] sm:$0xf0] %v524
  %537 = vst [vmem:[#allocation2 + $0xb0] sm:$0xf0] %v525
  %538 = vst [vmem:[#allocation2 + $0xb8] sm:$0xf0] %v526
  %v539 = vld [vmem:[%s0 + $0x4] sm:$0xff]
  %v540 = vld [vmem:[%s0 + $0xc] sm:$0xff]
  %v541 = vld [vmem:[%s0 + $0x14] sm:$0xff]
  %v542 = vld [vmem:[%s0 + $0x1c] sm:$0xf]
  %v543 = vmul.f32 %v539, %v136
  %v544 = vmul.f32 %v540, %v136
  %v545 = vmul.f32 %v541, %v136
  %v546 = vmul.f32 %v542, %v136
  %v547 = vadd.f32 %v543, %v151
  %v548 = vadd.f32 %v544, %v151
  %v549 = vadd.f32 %v545, %v151
  %v550 = vadd.f32 %v546, %v151
  %v555 = vcombine.high %v547, %v547
  %v556 = vcombine.high %v548, %v548
  %v557 = vcombine.high %v549, %v549
  %558 = vrot.lane.b32.xlu0 %v547, 90
  %v559 = vpop.permute.xlu0 %558
  %560 = vrot.lane.b32.xlu0 %v555, 90
  %v561 = vpop.permute.xlu0 %560
  %562 = vrot.lane.b32.xlu0 %v548, 90
  %v563 = vpop.permute.xlu0 %562
  %564 = vrot.lane.b32.xlu0 %v556, 90
  %v565 = vpop.permute.xlu0 %564
  %566 = vrot.lane.b32.xlu0 %v549, 90
  %v567 = vpop.permute.xlu0 %566
  %568 = vrot.lane.b32.xlu0 %v557, 90
  %v569 = vpop.permute.xlu0 %568
  %570 = vrot.lane.b32.xlu0 %v550, 90
  %v571 = vpop.permute.xlu0 %570
  %vm572 = vcmask 736256
  %v573 = vsel %vm572, %v559, %v561
  %v574 = vsel %vm572, %v561, %v563
  %v575 = vsel %vm572, %v563, %v565
  %v576 = vsel %vm572, %v565, %v567
  %v577 = vsel %vm572, %v567, %v569
  %v578 = vsel %vm572, %v569, %v571
  %585 = vst [vmem:[#allocation2 + $0xc0] sm:$0xf] %v573
  %586 = vst [vmem:[#allocation2 + $0xc8] sm:$0xf] %v574
  %587 = vst [vmem:[#allocation2 + $0xd0] sm:$0xf] %v575
  %588 = vst [vmem:[#allocation2 + $0xd8] sm:$0xf] %v576
  %589 = vst [vmem:[#allocation2 + $0xe0] sm:$0xf] %v577
  %590 = vst [vmem:[#allocation2 + $0xe8] sm:$0xf] %v578
  %v591 = vld [vmem:[%s4] sm:$0xff]
  %v592 = vld [vmem:[%s4 + $0x8] sm:$0xff]
  %v593 = vld [vmem:[%s4 + $0x10] sm:$0xff]
  %v594 = vld [vmem:[%s4 + $0x18] sm:$0xff]
  %v595 = vld [vmem:[#allocation2] sm:$0xff]
  %v596 = vld [vmem:[#allocation2 + $0x8] sm:$0xff]
  %v597 = vld [vmem:[#allocation2 + $0x10] sm:$0xff]
  %v598 = vld [vmem:[#allocation2 + $0x18] sm:$0xff]
  %v599 = vld [vmem:[#allocation2 + $0x20] sm:$0xff]
  %v600 = vld [vmem:[#allocation2 + $0x28] sm:$0xff]
  %v601 = vld [vmem:[#allocation2 + $0x30] sm:$0xff]
  %v602 = vld [vmem:[#allocation2 + $0x38] sm:$0xff]
  %v603 = vld [vmem:[#allocation2 + $0x40] sm:$0xff]
  %v604 = vld [vmem:[#allocation2 + $0x48] sm:$0xff]
  %v605 = vld [vmem:[#allocation2 + $0x50] sm:$0xff]
  %v606 = vld [vmem:[#allocation2 + $0x58] sm:$0xff]
  %v607 = vld [vmem:[#allocation2 + $0x60] sm:$0xff]
  %v608 = vld [vmem:[#allocation2 + $0x68] sm:$0xff]
  %v609 = vld [vmem:[#allocation2 + $0x70] sm:$0xff]
  %v610 = vld [vmem:[#allocation2 + $0x78] sm:$0xff]
  %v611 = vld [vmem:[#allocation2 + $0x80] sm:$0xff]
  %v612 = vld [vmem:[#allocation2 + $0x88] sm:$0xff]
  %v613 = vld [vmem:[#allocation2 + $0x90] sm:$0xff]
  %v614 = vld [vmem:[#allocation2 + $0x98] sm:$0xff]
  %v615 = vld [vmem:[#allocation2 + $0xa0] sm:$0xff]
  %v616 = vld [vmem:[#allocation2 + $0xa8] sm:$0xff]
  %v617 = vld [vmem:[#allocation2 + $0xb0] sm:$0xff]
  %v618 = vld [vmem:[#allocation2 + $0xb8] sm:$0xff]
  %v619 = vld [vmem:[#allocation2 + $0xc0] sm:$0xf]
  %v620 = vld [vmem:[#allocation2 + $0xc8] sm:$0xf]
  %v621 = vld [vmem:[#allocation2 + $0xd0] sm:$0xf]
  %v622 = vld [vmem:[#allocation2 + $0xd8] sm:$0xf]
  %v623 = vld [vmem:[#allocation2 + $0xe0] sm:$0xf]
  %v624 = vld [vmem:[#allocation2 + $0xe8] sm:$0xf]
  %v625 = vld [vmem:[%s5] sm:$0xff]
  %v626 = vld [vmem:[%s5 + $0x8] sm:$0xff]
  %v627 = vld [vmem:[%s5 + $0x10] sm:$0xff]
  %v628 = vld [vmem:[%s5 + $0x18] sm:$0xff]
  %630 = vset.pattern.permute.xlu0 0
  %631 = vperm.xlu0 %630, %v625
  %v632 = vpop.permute.xlu0 %631
  %635 = vset.pattern.permute.xlu0 0
  %636 = vperm.xlu0 %635, %v626
  %v637 = vpop.permute.xlu0 %636
  %640 = vset.pattern.permute.xlu0 0
  %641 = vperm.xlu0 %640, %v627
  %v642 = vpop.permute.xlu0 %641
  %645 = vset.pattern.permute.xlu0 0
  %646 = vperm.xlu0 %645, %v628
  %v647 = vpop.permute.xlu0 %646
  %vm649 = vcmask 293888
  %v651 = vsel %vm649, %v591, 0
  %v654 = vsel %vm649, %v592, 0
  %v657 = vsel %vm649, %v593, 0
  %v660 = vsel %vm649, %v594, 0
  %v663 = vsel %vm75, %v619, 0
  %v666 = vsel %vm75, %v620, 0
  %v669 = vsel %vm75, %v621, 0
  %v672 = vsel %vm75, %v622, 0
  %v675 = vsel %vm75, %v623, 0
  %v678 = vsel %vm75, %v624, 0
  %680 = vmatprep.subr.mxu0 %v596
  %681 = vmatpush1.msra.mxu0 %v595
  %682 = vmatprep.subr.mxu0 %v602
  %683 = vmatpush1.msra.mxu0 %v601
  %684 = vmatprep.subr.mxu0 %v608
  %685 = vmatpush1.msra.mxu0 %v607
  %686 = vmatprep.subr.mxu0 %v614
  %687 = vmatpush1.msra.mxu0 %v613
  %688 = vmatprep.subr.mxu0 %v666
  %689 = vmatpush1.msra.mxu0 %v663
  %690 = vmatprep.subr.mxu0 0.0
  %691 = vmatpush1.msra.mxu0 0.0
  %692 = vmatprep.subr.mxu0 0.0
  %693 = vmatpush1.msra.mxu0 0.0
  %694 = vmatprep.subr.mxu0 0.0
  %695 = vmatpush1.msra.mxu0 0.0
  %696 = vmatprep.subr.mxu0 0.0
  %697 = vmatpush1.msra.mxu0 0.0
  %698 = vmatprep.subr.mxu0 0.0
  %699 = vmatpush1.msra.mxu0 0.0
  %700 = vmatprep.subr.mxu0 0.0
  %701 = vmatpush1.msra.mxu0 0.0
  %702 = vmatprep.subr.mxu0 0.0
  %703 = vmatpush1.msra.mxu0 0.0
  %704 = vmatprep.subr.mxu0 0.0
  %705 = vmatpush1.msra.mxu0 0.0
  %706 = vmatprep.subr.mxu0 0.0
  %707 = vmatpush1.msra.mxu0 0.0
  %708 = vmatprep.subr.mxu0 0.0
  %709 = vmatpush1.msra.mxu0 0.0
  %710 = vmatprep.subr.mxu0 0.0
  %711 = vmatpush1.msra.mxu0 0.0
  %712 = vmatprep.subr.mxu0 0.0
  %713 = vmatpush1.msra.mxu0 0.0
  %714 = vmatprep.subr.mxu0 0.0
  %715 = vmatpush1.msra.mxu0 0.0
  %716 = vmatprep.subr.mxu0 0.0
  %717 = vmatpush1.msra.mxu0 0.0
  %718 = vmatprep.subr.mxu0 0.0
  %719 = vmatpush1.msra.mxu0 0.0
  %720 = vmatprep.subr.mxu0 0.0
  %721 = vmatpush1.msra.mxu0 0.0
  %722 = vmatprep.subr.mxu0 0.0
  %723 = vmatpush1.msra.mxu0 0.0
  %724 = vmatprep.subr.mxu0 0.0
  %725 = vmatpush1.msra.mxu0 0.0
  %726 = vmatprep.subr.mxu0 0.0
  %727 = vmatpush1.msra.mxu0 0.0
  %728 = vmatprep.subr.mxu0 0.0
  %729 = vmatpush1.msra.mxu0 0.0
  %730 = vmatprep.subr.mxu0 0.0
  %731 = vmatpush1.msra.mxu0 0.0
  %732 = vmatprep.subr.mxu0 0.0
  %733 = vmatpush1.msra.mxu0 0.0
  %734 = vmatprep.subr.mxu0 0.0
  %735 = vmatpush1.msra.mxu0 0.0
  %736 = vmatprep.subr.mxu0 0.0
  %737 = vmatpush1.msra.mxu0 0.0
  %738 = vmatprep.subr.mxu0 0.0
  %739 = vmatpush1.msra.mxu0 0.0
  %740 = vmatprep.subr.mxu0 0.0
  %741 = vmatpush1.msra.mxu0 0.0
  %742 = vmatprep.subr.mxu0 0.0
  %743 = vmatpush1.msra.mxu0 0.0
  %744 = vmatprep.mubr.f32.mxu0 0.0
  %745 = vmatmul.mubr.f32.gmra.mrb[0].mxu0 %v651
  %v746 = vpop.f32.mrb[0].mxu0
  %v747 = vadd.f32 %v632, %v746
  %v748 = vpop.f32.mrb[0].mxu0
  %v749 = vadd.f32 %v632, %v748
  %750 = vmatprep.mubr.f32.mxu0 0.0
  %751 = vmatmul.mubr.f32.gmra.mrb[0].mxu0 %v654
  %v752 = vpop.f32.mrb[0].mxu0
  %v753 = vadd.f32 %v637, %v752
  %v754 = vpop.f32.mrb[0].mxu0
  %v755 = vadd.f32 %v637, %v754
  %756 = vmatprep.mubr.f32.mxu0 0.0
  %757 = vmatmul.mubr.f32.gmra.mrb[0].mxu0 %v657
  %v758 = vpop.f32.mrb[0].mxu0
  %v759 = vadd.f32 %v642, %v758
  %v760 = vpop.f32.mrb[0].mxu0
  %v761 = vadd.f32 %v642, %v760
  %762 = vmatprep.mubr.f32.mxu0 0.0
  %763 = vmatmul.mubr.f32.gmra.mrb[0].mxu0 %v660
  %v764 = vpop.f32.mrb[0].mxu0
  %v765 = vadd.f32 %v647, %v764
  %v766 = vpop.f32.mrb[0].mxu0
  %v767 = vadd.f32 %v647, %v766
  %768 = vdwg.mxu0
  %769 = vmatprep.subr.mxu0 %v598
  %770 = vmatpush1.msra.mxu0 %v597
  %771 = vmatprep.subr.mxu0 %v604
  %772 = vmatpush1.msra.mxu0 %v603
  %773 = vmatprep.subr.mxu0 %v610
  %774 = vmatpush1.msra.mxu0 %v609
  %775 = vmatprep.subr.mxu0 %v616
  %776 = vmatpush1.msra.mxu0 %v615
  %777 = vmatprep.subr.mxu0 %v672
  %778 = vmatpush1.msra.mxu0 %v669
  %779 = vmatprep.subr.mxu0 0.0
  %780 = vmatpush1.msra.mxu0 0.0
  %781 = vmatprep.subr.mxu0 0.0
  %782 = vmatpush1.msra.mxu0 0.0
  %783 = vmatprep.subr.mxu0 0.0
  %784 = vmatpush1.msra.mxu0 0.0
  %785 = vmatprep.subr.mxu0 0.0
  %786 = vmatpush1.msra.mxu0 0.0
  %787 = vmatprep.subr.mxu0 0.0
  %788 = vmatpush1.msra.mxu0 0.0
  %789 = vmatprep.subr.mxu0 0.0
  %790 = vmatpush1.msra.mxu0 0.0
  %791 = vmatprep.subr.mxu0 0.0
  %792 = vmatpush1.msra.mxu0 0.0
  %793 = vmatprep.subr.mxu0 0.0
  %794 = vmatpush1.msra.mxu0 0.0
  %795 = vmatprep.subr.mxu0 0.0
  %796 = vmatpush1.msra.mxu0 0.0
  %797 = vmatprep.subr.mxu0 0.0
  %798 = vmatpush1.msra.mxu0 0.0
  %799 = vmatprep.subr.mxu0 0.0
  %800 = vmatpush1.msra.mxu0 0.0
  %801 = vmatprep.subr.mxu0 0.0
  %802 = vmatpush1.msra.mxu0 0.0
  %803 = vmatprep.subr.mxu0 0.0
  %804 = vmatpush1.msra.mxu0 0.0
  %805 = vmatprep.subr.mxu0 0.0
  %806 = vmatpush1.msra.mxu0 0.0
  %807 = vmatprep.subr.mxu0 0.0
  %808 = vmatpush1.msra.mxu0 0.0
  %809 = vmatprep.subr.mxu0 0.0
  %810 = vmatpush1.msra.mxu0 0.0
  %811 = vmatprep.subr.mxu0 0.0
  %812 = vmatpush1.msra.mxu0 0.0
  %813 = vmatprep.subr.mxu0 0.0
  %814 = vmatpush1.msra.mxu0 0.0
  %815 = vmatprep.subr.mxu0 0.0
  %816 = vmatpush1.msra.mxu0 0.0
  %817 = vmatprep.subr.mxu0 0.0
  %818 = vmatpush1.msra.mxu0 0.0
  %819 = vmatprep.subr.mxu0 0.0
  %820 = vmatpush1.msra.mxu0 0.0
  %821 = vmatprep.subr.mxu0 0.0
  %822 = vmatpush1.msra.mxu0 0.0
  %823 = vmatprep.subr.mxu0 0.0
  %824 = vmatpush1.msra.mxu0 0.0
  %825 = vmatprep.subr.mxu0 0.0
  %826 = vmatpush1.msra.mxu0 0.0
  %827 = vmatprep.subr.mxu0 0.0
  %828 = vmatpush1.msra.mxu0 0.0
  %829 = vmatprep.subr.mxu0 0.0
  %830 = vmatpush1.msra.mxu0 0.0
  %831 = vmatprep.subr.mxu0 0.0
  %832 = vmatpush1.msra.mxu0 0.0
  %833 = vmatprep.mubr.f32.mxu0 0.0
  %834 = vmatmul.mubr.f32.gmra.mrb[0].mxu0 %v651
  %v835 = vpop.f32.mrb[0].mxu0
  %v836 = vadd.f32 %v632, %v835
  %v837 = vpop.f32.mrb[0].mxu0
  %v838 = vadd.f32 %v632, %v837
  %839 = vmatprep.mubr.f32.mxu0 0.0
  %840 = vmatmul.mubr.f32.gmra.mrb[0].mxu0 %v654
  %v841 = vpop.f32.mrb[0].mxu0
  %v842 = vadd.f32 %v637, %v841
  %v843 = vpop.f32.mrb[0].mxu0
  %v844 = vadd.f32 %v637, %v843
  %845 = vmatprep.mubr.f32.mxu0 0.0
  %846 = vmatmul.mubr.f32.gmra.mrb[0].mxu0 %v657
  %v847 = vpop.f32.mrb[0].mxu0
  %v848 = vadd.f32 %v642, %v847
  %v849 = vpop.f32.mrb[0].mxu0
  %v850 = vadd.f32 %v642, %v849
  %851 = vmatprep.mubr.f32.mxu0 0.0
  %852 = vmatmul.mubr.f32.gmra.mrb[0].mxu0 %v660
  %v853 = vpop.f32.mrb[0].mxu0
  %v854 = vadd.f32 %v647, %v853
  %v855 = vpop.f32.mrb[0].mxu0
  %v856 = vadd.f32 %v647, %v855
  %857 = vdwg.mxu0
  %858 = vmatprep.subr.mxu0 %v600
  %859 = vmatpush1.msra.mxu0 %v599
  %860 = vmatprep.subr.mxu0 %v606
  %861 = vmatpush1.msra.mxu0 %v605
  %862 = vmatprep.subr.mxu0 %v612
  %863 = vmatpush1.msra.mxu0 %v611
  %864 = vmatprep.subr.mxu0 %v618
  %865 = vmatpush1.msra.mxu0 %v617
  %866 = vmatprep.subr.mxu0 %v678
  %867 = vmatpush1.msra.mxu0 %v675
  %868 = vmatprep.subr.mxu0 0.0
  %869 = vmatpush1.msra.mxu0 0.0
  %870 = vmatprep.subr.mxu0 0.0
  %871 = vmatpush1.msra.mxu0 0.0
  %872 = vmatprep.subr.mxu0 0.0
  %873 = vmatpush1.msra.mxu0 0.0
  %874 = vmatprep.subr.mxu0 0.0
  %875 = vmatpush1.msra.mxu0 0.0
  %876 = vmatprep.subr.mxu0 0.0
  %877 = vmatpush1.msra.mxu0 0.0
  %878 = vmatprep.subr.mxu0 0.0
  %879 = vmatpush1.msra.mxu0 0.0
  %880 = vmatprep.subr.mxu0 0.0
  %881 = vmatpush1.msra.mxu0 0.0
  %882 = vmatprep.subr.mxu0 0.0
  %883 = vmatpush1.msra.mxu0 0.0
  %884 = vmatprep.subr.mxu0 0.0
  %885 = vmatpush1.msra.mxu0 0.0
  %886 = vmatprep.subr.mxu0 0.0
  %887 = vmatpush1.msra.mxu0 0.0
  %888 = vmatprep.subr.mxu0 0.0
  %889 = vmatpush1.msra.mxu0 0.0
  %890 = vmatprep.subr.mxu0 0.0
  %891 = vmatpush1.msra.mxu0 0.0
  %892 = vmatprep.subr.mxu0 0.0
  %893 = vmatpush1.msra.mxu0 0.0
  %894 = vmatprep.subr.mxu0 0.0
  %895 = vmatpush1.msra.mxu0 0.0
  %896 = vmatprep.subr.mxu0 0.0
  %897 = vmatpush1.msra.mxu0 0.0
  %898 = vmatprep.subr.mxu0 0.0
  %899 = vmatpush1.msra.mxu0 0.0
  %900 = vmatprep.subr.mxu0 0.0
  %901 = vmatpush1.msra.mxu0 0.0
  %902 = vmatprep.subr.mxu0 0.0
  %903 = vmatpush1.msra.mxu0 0.0
  %904 = vmatprep.subr.mxu0 0.0
  %905 = vmatpush1.msra.mxu0 0.0
  %906 = vmatprep.subr.mxu0 0.0
  %907 = vmatpush1.msra.mxu0 0.0
  %908 = vmatprep.subr.mxu0 0.0
  %909 = vmatpush1.msra.mxu0 0.0
  %910 = vmatprep.subr.mxu0 0.0
  %911 = vmatpush1.msra.mxu0 0.0
  %912 = vmatprep.subr.mxu0 0.0
  %913 = vmatpush1.msra.mxu0 0.0
  %914 = vmatprep.subr.mxu0 0.0
  %915 = vmatpush1.msra.mxu0 0.0
  %916 = vmatprep.subr.mxu0 0.0
  %917 = vmatpush1.msra.mxu0 0.0
  %918 = vmatprep.subr.mxu0 0.0
  %919 = vmatpush1.msra.mxu0 0.0
  %920 = vmatprep.subr.mxu0 0.0
  %921 = vmatpush1.msra.mxu0 0.0
  %922 = vmatprep.mubr.f32.mxu0 0.0
  %923 = vmatmul.mubr.f32.gmra.mrb[0].mxu0 %v651
  %v924 = vpop.f32.mrb[0].mxu0
  %v925 = vadd.f32 %v632, %v924
  %v926 = vpop.f32.mrb[0].mxu0
  %v927 = vadd.f32 %v632, %v926
  %928 = vmatprep.mubr.f32.mxu0 0.0
  %929 = vmatmul.mubr.f32.gmra.mrb[0].mxu0 %v654
  %v930 = vpop.f32.mrb[0].mxu0
  %v931 = vadd.f32 %v637, %v930
  %v932 = vpop.f32.mrb[0].mxu0
  %v933 = vadd.f32 %v637, %v932
  %934 = vmatprep.mubr.f32.mxu0 0.0
  %935 = vmatmul.mubr.f32.gmra.mrb[0].mxu0 %v657
  %v936 = vpop.f32.mrb[0].mxu0
  %v937 = vadd.f32 %v642, %v936
  %v938 = vpop.f32.mrb[0].mxu0
  %v939 = vadd.f32 %v642, %v938
  %940 = vmatprep.mubr.f32.mxu0 0.0
  %941 = vmatmul.mubr.f32.gmra.mrb[0].mxu0 %v660
  %v942 = vpop.f32.mrb[0].mxu0
  %v943 = vadd.f32 %v647, %v942
  %v944 = vpop.f32.mrb[0].mxu0
  %v945 = vadd.f32 %v647, %v944
  %946 = vdwg.mxu0
  %v947 = vmul.f32 %v747, 0.5
  %v948 = vmul.f32 %v749, 0.5
  %v949 = vmul.f32 %v836, 0.5
  %v950 = vmul.f32 %v838, 0.5
  %v951 = vmul.f32 %v925, 0.5
  %v952 = vmul.f32 %v927, 0.5
  %v953 = vmul.f32 %v753, 0.5
  %v954 = vmul.f32 %v755, 0.5
  %v955 = vmul.f32 %v842, 0.5
  %v956 = vmul.f32 %v844, 0.5
  %v957 = vmul.f32 %v931, 0.5
  %v958 = vmul.f32 %v933, 0.5
  %v959 = vmul.f32 %v759, 0.5
  %v960 = vmul.f32 %v761, 0.5
  %v961 = vmul.f32 %v848, 0.5
  %v962 = vmul.f32 %v850, 0.5
  %v963 = vmul.f32 %v937, 0.5
  %v964 = vmul.f32 %v939, 0.5
  %v965 = vmul.f32 %v765, 0.5
  %v966 = vmul.f32 %v767, 0.5
  %v967 = vmul.f32 %v854, 0.5
  %v968 = vmul.f32 %v856, 0.5
  %v969 = vmul.f32 %v943, 0.5
  %v970 = vmul.f32 %v945, 0.5
  %v971 = vmul.f32 %v747, 0.70710677
  %v972 = vmul.f32 %v749, 0.70710677
  %v973 = vmul.f32 %v836, 0.70710677
  %v974 = vmul.f32 %v838, 0.70710677
  %v975 = vmul.f32 %v925, 0.70710677
  %v976 = vmul.f32 %v927, 0.70710677
  %v977 = vmul.f32 %v753, 0.70710677
  %v978 = vmul.f32 %v755, 0.70710677
  %v979 = vmul.f32 %v842, 0.70710677
  %v980 = vmul.f32 %v844, 0.70710677
  %v981 = vmul.f32 %v931, 0.70710677
  %v982 = vmul.f32 %v933, 0.70710677
  %v983 = vmul.f32 %v759, 0.70710677
  %v984 = vmul.f32 %v761, 0.70710677
  %v985 = vmul.f32 %v848, 0.70710677
  %v986 = vmul.f32 %v850, 0.70710677
  %v987 = vmul.f32 %v937, 0.70710677
  %v988 = vmul.f32 %v939, 0.70710677
  %v989 = vmul.f32 %v765, 0.70710677
  %v990 = vmul.f32 %v767, 0.70710677
  %v991 = vmul.f32 %v854, 0.70710677
  %v992 = vmul.f32 %v856, 0.70710677
  %v993 = vmul.f32 %v943, 0.70710677
  %v994 = vmul.f32 %v945, 0.70710677
  %vm995 = vcmp.ge.f32.partialorder %v971, 0.0
  %vm996 = vcmp.ge.f32.partialorder %v972, 0.0
  %vm997 = vcmp.ge.f32.partialorder %v973, 0.0
  %vm998 = vcmp.ge.f32.partialorder %v974, 0.0
  %vm999 = vcmp.ge.f32.partialorder %v975, 0.0
  %vm1000 = vcmp.ge.f32.partialorder %v976, 0.0
  %vm1001 = vcmp.ge.f32.partialorder %v977, 0.0
  %vm1002 = vcmp.ge.f32.partialorder %v978, 0.0
  %vm1003 = vcmp.ge.f32.partialorder %v979, 0.0
  %vm1004 = vcmp.ge.f32.partialorder %v980, 0.0
  %vm1005 = vcmp.ge.f32.partialorder %v981, 0.0
  %vm1006 = vcmp.ge.f32.partialorder %v982, 0.0
  %vm1007 = vcmp.ge.f32.partialorder %v983, 0.0
  %vm1008 = vcmp.ge.f32.partialorder %v984, 0.0
  %vm1009 = vcmp.ge.f32.partialorder %v985, 0.0
  %vm1010 = vcmp.ge.f32.partialorder %v986, 0.0
  %vm1011 = vcmp.ge.f32.partialorder %v987, 0.0
  %vm1012 = vcmp.ge.f32.partialorder %v988, 0.0
  %vm1013 = vcmp.ge.f32.partialorder %v989, 0.0
  %vm1014 = vcmp.ge.f32.partialorder %v990, 0.0
  %vm1015 = vcmp.ge.f32.partialorder %v991, 0.0
  %vm1016 = vcmp.ge.f32.partialorder %v992, 0.0
  %vm1017 = vcmp.ge.f32.partialorder %v993, 0.0
  %vm1018 = vcmp.ge.f32.partialorder %v994, 0.0
  %v1019 = vsel %vm995, 1.0, -1.0
  %v1020 = vsel %vm996, 1.0, -1.0
  %v1021 = vsel %vm997, 1.0, -1.0
  %v1022 = vsel %vm998, 1.0, -1.0
  %v1023 = vsel %vm999, 1.0, -1.0
  %v1024 = vsel %vm1000, 1.0, -1.0
  %v1025 = vsel %vm1001, 1.0, -1.0
  %v1026 = vsel %vm1002, 1.0, -1.0
  %v1027 = vsel %vm1003, 1.0, -1.0
  %v1028 = vsel %vm1004, 1.0, -1.0
  %v1029 = vsel %vm1005, 1.0, -1.0
  %v1030 = vsel %vm1006, 1.0, -1.0
  %v1031 = vsel %vm1007, 1.0, -1.0
  %v1032 = vsel %vm1008, 1.0, -1.0
  %v1033 = vsel %vm1009, 1.0, -1.0
  %v1034 = vsel %vm1010, 1.0, -1.0
  %v1035 = vsel %vm1011, 1.0, -1.0
  %v1036 = vsel %vm1012, 1.0, -1.0
  %v1037 = vsel %vm1013, 1.0, -1.0
  %v1038 = vsel %vm1014, 1.0, -1.0
  %v1039 = vsel %vm1015, 1.0, -1.0
  %v1040 = vsel %vm1016, 1.0, -1.0
  %v1041 = vsel %vm1017, 1.0, -1.0
  %v1042 = vsel %vm1018, 1.0, -1.0
  %v1043 = vand.u32 2147483647, %v971
  %v1044 = vand.u32 2147483647, %v972
  %v1045 = vand.u32 2147483647, %v973
  %v1046 = vand.u32 2147483647, %v974
  %v1047 = vand.u32 2147483647, %v975
  %v1048 = vand.u32 2147483647, %v976
  %v1049 = vand.u32 2147483647, %v977
  %v1050 = vand.u32 2147483647, %v978
  %v1051 = vand.u32 2147483647, %v979
  %v1052 = vand.u32 2147483647, %v980
  %v1053 = vand.u32 2147483647, %v981
  %v1054 = vand.u32 2147483647, %v982
  %v1055 = vand.u32 2147483647, %v983
  %v1056 = vand.u32 2147483647, %v984
  %v1057 = vand.u32 2147483647, %v985
  %v1058 = vand.u32 2147483647, %v986
  %v1059 = vand.u32 2147483647, %v987
  %v1060 = vand.u32 2147483647, %v988
  %v1061 = vand.u32 2147483647, %v989
  %v1062 = vand.u32 2147483647, %v990
  %v1063 = vand.u32 2147483647, %v991
  %v1064 = vand.u32 2147483647, %v992
  %v1065 = vand.u32 2147483647, %v993
  %v1066 = vand.u32 2147483647, %v994
  %v1067 = vmul.f32 %v1043, 0.3275911
  %v1068 = vmul.f32 %v1044, 0.3275911
  %v1069 = vmul.f32 %v1045, 0.3275911
  %v1070 = vmul.f32 %v1046, 0.3275911
  %v1071 = vmul.f32 %v1047, 0.3275911
  %v1072 = vmul.f32 %v1048, 0.3275911
  %v1073 = vmul.f32 %v1049, 0.3275911
  %v1074 = vmul.f32 %v1050, 0.3275911
  %v1075 = vmul.f32 %v1051, 0.3275911
  %v1076 = vmul.f32 %v1052, 0.3275911
  %v1077 = vmul.f32 %v1053, 0.3275911
  %v1078 = vmul.f32 %v1054, 0.3275911
  %v1079 = vmul.f32 %v1055, 0.3275911
  %v1080 = vmul.f32 %v1056, 0.3275911
  %v1081 = vmul.f32 %v1057, 0.3275911
  %v1082 = vmul.f32 %v1058, 0.3275911
  %v1083 = vmul.f32 %v1059, 0.3275911
  %v1084 = vmul.f32 %v1060, 0.3275911
  %v1085 = vmul.f32 %v1061, 0.3275911
  %v1086 = vmul.f32 %v1062, 0.3275911
  %v1087 = vmul.f32 %v1063, 0.3275911
  %v1088 = vmul.f32 %v1064, 0.3275911
  %v1089 = vmul.f32 %v1065, 0.3275911
  %v1090 = vmul.f32 %v1066, 0.3275911
  %v1091 = vadd.f32 %v1067, 1.0
  %v1092 = vadd.f32 %v1068, 1.0
  %v1093 = vadd.f32 %v1069, 1.0
  %v1094 = vadd.f32 %v1070, 1.0
  %v1095 = vadd.f32 %v1071, 1.0
  %v1096 = vadd.f32 %v1072, 1.0
  %v1097 = vadd.f32 %v1073, 1.0
  %v1098 = vadd.f32 %v1074, 1.0
  %v1099 = vadd.f32 %v1075, 1.0
  %v1100 = vadd.f32 %v1076, 1.0
  %v1101 = vadd.f32 %v1077, 1.0
  %v1102 = vadd.f32 %v1078, 1.0
  %v1103 = vadd.f32 %v1079, 1.0
  %v1104 = vadd.f32 %v1080, 1.0
  %v1105 = vadd.f32 %v1081, 1.0
  %v1106 = vadd.f32 %v1082, 1.0
  %v1107 = vadd.f32 %v1083, 1.0
  %v1108 = vadd.f32 %v1084, 1.0
  %v1109 = vadd.f32 %v1085, 1.0
  %v1110 = vadd.f32 %v1086, 1.0
  %v1111 = vadd.f32 %v1087, 1.0
  %v1112 = vadd.f32 %v1088, 1.0
  %v1113 = vadd.f32 %v1089, 1.0
  %v1114 = vadd.f32 %v1090, 1.0
  %v1115 = vrcp.pop %v1091
  %v1116 = vrcp.pop %v1092
  %v1117 = vrcp.pop %v1093
  %v1118 = vrcp.pop %v1094
  %v1119 = vrcp.pop %v1095
  %v1120 = vrcp.pop %v1096
  %v1121 = vrcp.pop %v1097
  %v1122 = vrcp.pop %v1098
  %v1123 = vrcp.pop %v1099
  %v1124 = vrcp.pop %v1100
  %v1125 = vrcp.pop %v1101
  %v1126 = vrcp.pop %v1102
  %v1127 = vrcp.pop %v1103
  %v1128 = vrcp.pop %v1104
  %v1129 = vrcp.pop %v1105
  %v1130 = vrcp.pop %v1106
  %v1131 = vrcp.pop %v1107
  %v1132 = vrcp.pop %v1108
  %v1133 = vrcp.pop %v1109
  %v1134 = vrcp.pop %v1110
  %v1135 = vrcp.pop %v1111
  %v1136 = vrcp.pop %v1112
  %v1137 = vrcp.pop %v1113
  %v1138 = vrcp.pop %v1114
  %v1139 = vmul.f32 %v1115, 1.0614054
  %v1140 = vmul.f32 %v1116, 1.0614054
  %v1141 = vmul.f32 %v1117, 1.0614054
  %v1142 = vmul.f32 %v1118, 1.0614054
  %v1143 = vmul.f32 %v1119, 1.0614054
  %v1144 = vmul.f32 %v1120, 1.0614054
  %v1145 = vmul.f32 %v1121, 1.0614054
  %v1146 = vmul.f32 %v1122, 1.0614054
  %v1147 = vmul.f32 %v1123, 1.0614054
  %v1148 = vmul.f32 %v1124, 1.0614054
  %v1149 = vmul.f32 %v1125, 1.0614054
  %v1150 = vmul.f32 %v1126, 1.0614054
  %v1151 = vmul.f32 %v1127, 1.0614054
  %v1152 = vmul.f32 %v1128, 1.0614054
  %v1153 = vmul.f32 %v1129, 1.0614054
  %v1154 = vmul.f32 %v1130, 1.0614054
  %v1155 = vmul.f32 %v1131, 1.0614054
  %v1156 = vmul.f32 %v1132, 1.0614054
  %v1157 = vmul.f32 %v1133, 1.0614054
  %v1158 = vmul.f32 %v1134, 1.0614054
  %v1159 = vmul.f32 %v1135, 1.0614054
  %v1160 = vmul.f32 %v1136, 1.0614054
  %v1161 = vmul.f32 %v1137, 1.0614054
  %v1162 = vmul.f32 %v1138, 1.0614054
  %v1163 = vadd.f32 %v1139, -1.4531521
  %v1164 = vadd.f32 %v1140, -1.4531521
  %v1165 = vadd.f32 %v1141, -1.4531521
  %v1166 = vadd.f32 %v1142, -1.4531521
  %v1167 = vadd.f32 %v1143, -1.4531521
  %v1168 = vadd.f32 %v1144, -1.4531521
  %v1169 = vadd.f32 %v1145, -1.4531521
  %v1170 = vadd.f32 %v1146, -1.4531521
  %v1171 = vadd.f32 %v1147, -1.4531521
  %v1172 = vadd.f32 %v1148, -1.4531521
  %v1173 = vadd.f32 %v1149, -1.4531521
  %v1174 = vadd.f32 %v1150, -1.4531521
  %v1175 = vadd.f32 %v1151, -1.4531521
  %v1176 = vadd.f32 %v1152, -1.4531521
  %v1177 = vadd.f32 %v1153, -1.4531521
  %v1178 = vadd.f32 %v1154, -1.4531521
  %v1179 = vadd.f32 %v1155, -1.4531521
  %v1180 = vadd.f32 %v1156, -1.4531521
  %v1181 = vadd.f32 %v1157, -1.4531521
  %v1182 = vadd.f32 %v1158, -1.4531521
  %v1183 = vadd.f32 %v1159, -1.4531521
  %v1184 = vadd.f32 %v1160, -1.4531521
  %v1185 = vadd.f32 %v1161, -1.4531521
  %v1186 = vadd.f32 %v1162, -1.4531521
  %v1187 = vmul.f32 %v1163, %v1115
  %v1188 = vmul.f32 %v1164, %v1116
  %v1189 = vmul.f32 %v1165, %v1117
  %v1190 = vmul.f32 %v1166, %v1118
  %v1191 = vmul.f32 %v1167, %v1119
  %v1192 = vmul.f32 %v1168, %v1120
  %v1193 = vmul.f32 %v1169, %v1121
  %v1194 = vmul.f32 %v1170, %v1122
  %v1195 = vmul.f32 %v1171, %v1123
  %v1196 = vmul.f32 %v1172, %v1124
  %v1197 = vmul.f32 %v1173, %v1125
  %v1198 = vmul.f32 %v1174, %v1126
  %v1199 = vmul.f32 %v1175, %v1127
  %v1200 = vmul.f32 %v1176, %v1128
  %v1201 = vmul.f32 %v1177, %v1129
  %v1202 = vmul.f32 %v1178, %v1130
  %v1203 = vmul.f32 %v1179, %v1131
  %v1204 = vmul.f32 %v1180, %v1132
  %v1205 = vmul.f32 %v1181, %v1133
  %v1206 = vmul.f32 %v1182, %v1134
  %v1207 = vmul.f32 %v1183, %v1135
  %v1208 = vmul.f32 %v1184, %v1136
  %v1209 = vmul.f32 %v1185, %v1137
  %v1210 = vmul.f32 %v1186, %v1138
  %v1211 = vadd.f32 %v1187, 1.4214138
  %v1212 = vadd.f32 %v1188, 1.4214138
  %v1213 = vadd.f32 %v1189, 1.4214138
  %v1214 = vadd.f32 %v1190, 1.4214138
  %v1215 = vadd.f32 %v1191, 1.4214138
  %v1216 = vadd.f32 %v1192, 1.4214138
  %v1217 = vadd.f32 %v1193, 1.4214138
  %v1218 = vadd.f32 %v1194, 1.4214138
  %v1219 = vadd.f32 %v1195, 1.4214138
  %v1220 = vadd.f32 %v1196, 1.4214138
  %v1221 = vadd.f32 %v1197, 1.4214138
  %v1222 = vadd.f32 %v1198, 1.4214138
  %v1223 = vadd.f32 %v1199, 1.4214138
  %v1224 = vadd.f32 %v1200, 1.4214138
  %v1225 = vadd.f32 %v1201, 1.4214138
  %v1226 = vadd.f32 %v1202, 1.4214138
  %v1227 = vadd.f32 %v1203, 1.4214138
  %v1228 = vadd.f32 %v1204, 1.4214138
  %v1229 = vadd.f32 %v1205, 1.4214138
  %v1230 = vadd.f32 %v1206, 1.4214138
  %v1231 = vadd.f32 %v1207, 1.4214138
  %v1232 = vadd.f32 %v1208, 1.4214138
  %v1233 = vadd.f32 %v1209, 1.4214138
  %v1234 = vadd.f32 %v1210, 1.4214138
  %v1235 = vmul.f32 %v1211, %v1115
  %v1236 = vmul.f32 %v1212, %v1116
  %v1237 = vmul.f32 %v1213, %v1117
  %v1238 = vmul.f32 %v1214, %v1118
  %v1239 = vmul.f32 %v1215, %v1119
  %v1240 = vmul.f32 %v1216, %v1120
  %v1241 = vmul.f32 %v1217, %v1121
  %v1242 = vmul.f32 %v1218, %v1122
  %v1243 = vmul.f32 %v1219, %v1123
  %v1244 = vmul.f32 %v1220, %v1124
  %v1245 = vmul.f32 %v1221, %v1125
  %v1246 = vmul.f32 %v1222, %v1126
  %v1247 = vmul.f32 %v1223, %v1127
  %v1248 = vmul.f32 %v1224, %v1128
  %v1249 = vmul.f32 %v1225, %v1129
  %v1250 = vmul.f32 %v1226, %v1130
  %v1251 = vmul.f32 %v1227, %v1131
  %v1252 = vmul.f32 %v1228, %v1132
  %v1253 = vmul.f32 %v1229, %v1133
  %v1254 = vmul.f32 %v1230, %v1134
  %v1255 = vmul.f32 %v1231, %v1135
  %v1256 = vmul.f32 %v1232, %v1136
  %v1257 = vmul.f32 %v1233, %v1137
  %v1258 = vmul.f32 %v1234, %v1138
  %v1259 = vadd.f32 %v1235, -0.28449672
  %v1260 = vadd.f32 %v1236, -0.28449672
  %v1261 = vadd.f32 %v1237, -0.28449672
  %v1262 = vadd.f32 %v1238, -0.28449672
  %v1263 = vadd.f32 %v1239, -0.28449672
  %v1264 = vadd.f32 %v1240, -0.28449672
  %v1265 = vadd.f32 %v1241, -0.28449672
  %v1266 = vadd.f32 %v1242, -0.28449672
  %v1267 = vadd.f32 %v1243, -0.28449672
  %v1268 = vadd.f32 %v1244, -0.28449672
  %v1269 = vadd.f32 %v1245, -0.28449672
  %v1270 = vadd.f32 %v1246, -0.28449672
  %v1271 = vadd.f32 %v1247, -0.28449672
  %v1272 = vadd.f32 %v1248, -0.28449672
  %v1273 = vadd.f32 %v1249, -0.28449672
  %v1274 = vadd.f32 %v1250, -0.28449672
  %v1275 = vadd.f32 %v1251, -0.28449672
  %v1276 = vadd.f32 %v1252, -0.28449672
  %v1277 = vadd.f32 %v1253, -0.28449672
  %v1278 = vadd.f32 %v1254, -0.28449672
  %v1279 = vadd.f32 %v1255, -0.28449672
  %v1280 = vadd.f32 %v1256, -0.28449672
  %v1281 = vadd.f32 %v1257, -0.28449672
  %v1282 = vadd.f32 %v1258, -0.28449672
  %v1283 = vmul.f32 %v1259, %v1115
  %v1284 = vmul.f32 %v1260, %v1116
  %v1285 = vmul.f32 %v1261, %v1117
  %v1286 = vmul.f32 %v1262, %v1118
  %v1287 = vmul.f32 %v1263, %v1119
  %v1288 = vmul.f32 %v1264, %v1120
  %v1289 = vmul.f32 %v1265, %v1121
  %v1290 = vmul.f32 %v1266, %v1122
  %v1291 = vmul.f32 %v1267, %v1123
  %v1292 = vmul.f32 %v1268, %v1124
  %v1293 = vmul.f32 %v1269, %v1125
  %v1294 = vmul.f32 %v1270, %v1126
  %v1295 = vmul.f32 %v1271, %v1127
  %v1296 = vmul.f32 %v1272, %v1128
  %v1297 = vmul.f32 %v1273, %v1129
  %v1298 = vmul.f32 %v1274, %v1130
  %v1299 = vmul.f32 %v1275, %v1131
  %v1300 = vmul.f32 %v1276, %v1132
  %v1301 = vmul.f32 %v1277, %v1133
  %v1302 = vmul.f32 %v1278, %v1134
  %v1303 = vmul.f32 %v1279, %v1135
  %v1304 = vmul.f32 %v1280, %v1136
  %v1305 = vmul.f32 %v1281, %v1137
  %v1306 = vmul.f32 %v1282, %v1138
  %v1307 = vadd.f32 %v1283, 0.2548296
  %v1308 = vadd.f32 %v1284, 0.2548296
  %v1309 = vadd.f32 %v1285, 0.2548296
  %v1310 = vadd.f32 %v1286, 0.2548296
  %v1311 = vadd.f32 %v1287, 0.2548296
  %v1312 = vadd.f32 %v1288, 0.2548296
  %v1313 = vadd.f32 %v1289, 0.2548296
  %v1314 = vadd.f32 %v1290, 0.2548296
  %v1315 = vadd.f32 %v1291, 0.2548296
  %v1316 = vadd.f32 %v1292, 0.2548296
  %v1317 = vadd.f32 %v1293, 0.2548296
  %v1318 = vadd.f32 %v1294, 0.2548296
  %v1319 = vadd.f32 %v1295, 0.2548296
  %v1320 = vadd.f32 %v1296, 0.2548296
  %v1321 = vadd.f32 %v1297, 0.2548296
  %v1322 = vadd.f32 %v1298, 0.2548296
  %v1323 = vadd.f32 %v1299, 0.2548296
  %v1324 = vadd.f32 %v1300, 0.2548296
  %v1325 = vadd.f32 %v1301, 0.2548296
  %v1326 = vadd.f32 %v1302, 0.2548296
  %v1327 = vadd.f32 %v1303, 0.2548296
  %v1328 = vadd.f32 %v1304, 0.2548296
  %v1329 = vadd.f32 %v1305, 0.2548296
  %v1330 = vadd.f32 %v1306, 0.2548296
  %v1331 = vmul.f32 %v1307, %v1115
  %v1332 = vmul.f32 %v1308, %v1116
  %v1333 = vmul.f32 %v1309, %v1117
  %v1334 = vmul.f32 %v1310, %v1118
  %v1335 = vmul.f32 %v1311, %v1119
  %v1336 = vmul.f32 %v1312, %v1120
  %v1337 = vmul.f32 %v1313, %v1121
  %v1338 = vmul.f32 %v1314, %v1122
  %v1339 = vmul.f32 %v1315, %v1123
  %v1340 = vmul.f32 %v1316, %v1124
  %v1341 = vmul.f32 %v1317, %v1125
  %v1342 = vmul.f32 %v1318, %v1126
  %v1343 = vmul.f32 %v1319, %v1127
  %v1344 = vmul.f32 %v1320, %v1128
  %v1345 = vmul.f32 %v1321, %v1129
  %v1346 = vmul.f32 %v1322, %v1130
  %v1347 = vmul.f32 %v1323, %v1131
  %v1348 = vmul.f32 %v1324, %v1132
  %v1349 = vmul.f32 %v1325, %v1133
  %v1350 = vmul.f32 %v1326, %v1134
  %v1351 = vmul.f32 %v1327, %v1135
  %v1352 = vmul.f32 %v1328, %v1136
  %v1353 = vmul.f32 %v1329, %v1137
  %v1354 = vmul.f32 %v1330, %v1138
  %v1355 = vsub.f32 0.0, %v1043
  %v1356 = vsub.f32 0.0, %v1044
  %v1357 = vsub.f32 0.0, %v1045
  %v1358 = vsub.f32 0.0, %v1046
  %v1359 = vsub.f32 0.0, %v1047
  %v1360 = vsub.f32 0.0, %v1048
  %v1361 = vsub.f32 0.0, %v1049
  %v1362 = vsub.f32 0.0, %v1050
  %v1363 = vsub.f32 0.0, %v1051
  %v1364 = vsub.f32 0.0, %v1052
  %v1365 = vsub.f32 0.0, %v1053
  %v1366 = vsub.f32 0.0, %v1054
  %v1367 = vsub.f32 0.0, %v1055
  %v1368 = vsub.f32 0.0, %v1056
  %v1369 = vsub.f32 0.0, %v1057
  %v1370 = vsub.f32 0.0, %v1058
  %v1371 = vsub.f32 0.0, %v1059
  %v1372 = vsub.f32 0.0, %v1060
  %v1373 = vsub.f32 0.0, %v1061
  %v1374 = vsub.f32 0.0, %v1062
  %v1375 = vsub.f32 0.0, %v1063
  %v1376 = vsub.f32 0.0, %v1064
  %v1377 = vsub.f32 0.0, %v1065
  %v1378 = vsub.f32 0.0, %v1066
  %v1379 = vmul.f32 %v1355, %v1043
  %v1380 = vmul.f32 %v1356, %v1044
  %v1381 = vmul.f32 %v1357, %v1045
  %v1382 = vmul.f32 %v1358, %v1046
  %v1383 = vmul.f32 %v1359, %v1047
  %v1384 = vmul.f32 %v1360, %v1048
  %v1385 = vmul.f32 %v1361, %v1049
  %v1386 = vmul.f32 %v1362, %v1050
  %v1387 = vmul.f32 %v1363, %v1051
  %v1388 = vmul.f32 %v1364, %v1052
  %v1389 = vmul.f32 %v1365, %v1053
  %v1390 = vmul.f32 %v1366, %v1054
  %v1391 = vmul.f32 %v1367, %v1055
  %v1392 = vmul.f32 %v1368, %v1056
  %v1393 = vmul.f32 %v1369, %v1057
  %v1394 = vmul.f32 %v1370, %v1058
  %v1395 = vmul.f32 %v1371, %v1059
  %v1396 = vmul.f32 %v1372, %v1060
  %v1397 = vmul.f32 %v1373, %v1061
  %v1398 = vmul.f32 %v1374, %v1062
  %v1399 = vmul.f32 %v1375, %v1063
  %v1400 = vmul.f32 %v1376, %v1064
  %v1401 = vmul.f32 %v1377, %v1065
  %v1402 = vmul.f32 %v1378, %v1066
  %v1403 = vmul.f32 %v1379, 1.442695
  %v1404 = vpow.pop %v1403
  %v1405 = vmul.f32 %v1380, 1.442695
  %v1406 = vpow.pop %v1405
  %v1407 = vmul.f32 %v1381, 1.442695
  %v1408 = vpow.pop %v1407
  %v1409 = vmul.f32 %v1382, 1.442695
  %v1410 = vpow.pop %v1409
  %v1411 = vmul.f32 %v1383, 1.442695
  %v1412 = vpow.pop %v1411
  %v1413 = vmul.f32 %v1384, 1.442695
  %v1414 = vpow.pop %v1413
  %v1415 = vmul.f32 %v1385, 1.442695
  %v1416 = vpow.pop %v1415
  %v1417 = vmul.f32 %v1386, 1.442695
  %v1418 = vpow.pop %v1417
  %v1419 = vmul.f32 %v1387, 1.442695
  %v1420 = vpow.pop %v1419
  %v1421 = vmul.f32 %v1388, 1.442695
  %v1422 = vpow.pop %v1421
  %v1423 = vmul.f32 %v1389, 1.442695
  %v1424 = vpow.pop %v1423
  %v1425 = vmul.f32 %v1390, 1.442695
  %v1426 = vpow.pop %v1425
  %v1427 = vmul.f32 %v1391, 1.442695
  %v1428 = vpow.pop %v1427
  %v1429 = vmul.f32 %v1392, 1.442695
  %v1430 = vpow.pop %v1429
  %v1431 = vmul.f32 %v1393, 1.442695
  %v1432 = vpow.pop %v1431
  %v1433 = vmul.f32 %v1394, 1.442695
  %v1434 = vpow.pop %v1433
  %v1435 = vmul.f32 %v1395, 1.442695
  %v1436 = vpow.pop %v1435
  %v1437 = vmul.f32 %v1396, 1.442695
  %v1438 = vpow.pop %v1437
  %v1439 = vmul.f32 %v1397, 1.442695
  %v1440 = vpow.pop %v1439
  %v1441 = vmul.f32 %v1398, 1.442695
  %v1442 = vpow.pop %v1441
  %v1443 = vmul.f32 %v1399, 1.442695
  %v1444 = vpow.pop %v1443
  %v1445 = vmul.f32 %v1400, 1.442695
  %v1446 = vpow.pop %v1445
  %v1447 = vmul.f32 %v1401, 1.442695
  %v1448 = vpow.pop %v1447
  %v1449 = vmul.f32 %v1402, 1.442695
  %v1450 = vpow.pop %v1449
  %v1451 = vmul.f32 %v1331, %v1404
  %v1452 = vmul.f32 %v1332, %v1406
  %v1453 = vmul.f32 %v1333, %v1408
  %v1454 = vmul.f32 %v1334, %v1410
  %v1455 = vmul.f32 %v1335, %v1412
  %v1456 = vmul.f32 %v1336, %v1414
  %v1457 = vmul.f32 %v1337, %v1416
  %v1458 = vmul.f32 %v1338, %v1418
  %v1459 = vmul.f32 %v1339, %v1420
  %v1460 = vmul.f32 %v1340, %v1422
  %v1461 = vmul.f32 %v1341, %v1424
  %v1462 = vmul.f32 %v1342, %v1426
  %v1463 = vmul.f32 %v1343, %v1428
  %v1464 = vmul.f32 %v1344, %v1430
  %v1465 = vmul.f32 %v1345, %v1432
  %v1466 = vmul.f32 %v1346, %v1434
  %v1467 = vmul.f32 %v1347, %v1436
  %v1468 = vmul.f32 %v1348, %v1438
  %v1469 = vmul.f32 %v1349, %v1440
  %v1470 = vmul.f32 %v1350, %v1442
  %v1471 = vmul.f32 %v1351, %v1444
  %v1472 = vmul.f32 %v1352, %v1446
  %v1473 = vmul.f32 %v1353, %v1448
  %v1474 = vmul.f32 %v1354, %v1450
  %v1475 = vsub.f32 1.0, %v1451
  %v1476 = vsub.f32 1.0, %v1452
  %v1477 = vsub.f32 1.0, %v1453
  %v1478 = vsub.f32 1.0, %v1454
  %v1479 = vsub.f32 1.0, %v1455
  %v1480 = vsub.f32 1.0, %v1456
  %v1481 = vsub.f32 1.0, %v1457
  %v1482 = vsub.f32 1.0, %v1458
  %v1483 = vsub.f32 1.0, %v1459
  %v1484 = vsub.f32 1.0, %v1460
  %v1485 = vsub.f32 1.0, %v1461
  %v1486 = vsub.f32 1.0, %v1462
  %v1487 = vsub.f32 1.0, %v1463
  %v1488 = vsub.f32 1.0, %v1464
  %v1489 = vsub.f32 1.0, %v1465
  %v1490 = vsub.f32 1.0, %v1466
  %v1491 = vsub.f32 1.0, %v1467
  %v1492 = vsub.f32 1.0, %v1468
  %v1493 = vsub.f32 1.0, %v1469
  %v1494 = vsub.f32 1.0, %v1470
  %v1495 = vsub.f32 1.0, %v1471
  %v1496 = vsub.f32 1.0, %v1472
  %v1497 = vsub.f32 1.0, %v1473
  %v1498 = vsub.f32 1.0, %v1474
  %v1499 = vmul.f32 %v1019, %v1475
  %v1500 = vmul.f32 %v1020, %v1476
  %v1501 = vmul.f32 %v1021, %v1477
  %v1502 = vmul.f32 %v1022, %v1478
  %v1503 = vmul.f32 %v1023, %v1479
  %v1504 = vmul.f32 %v1024, %v1480
  %v1505 = vmul.f32 %v1025, %v1481
  %v1506 = vmul.f32 %v1026, %v1482
  %v1507 = vmul.f32 %v1027, %v1483
  %v1508 = vmul.f32 %v1028, %v1484
  %v1509 = vmul.f32 %v1029, %v1485
  %v1510 = vmul.f32 %v1030, %v1486
  %v1511 = vmul.f32 %v1031, %v1487
  %v1512 = vmul.f32 %v1032, %v1488
  %v1513 = vmul.f32 %v1033, %v1489
  %v1514 = vmul.f32 %v1034, %v1490
  %v1515 = vmul.f32 %v1035, %v1491
  %v1516 = vmul.f32 %v1036, %v1492
  %v1517 = vmul.f32 %v1037, %v1493
  %v1518 = vmul.f32 %v1038, %v1494
  %v1519 = vmul.f32 %v1039, %v1495
  %v1520 = vmul.f32 %v1040, %v1496
  %v1521 = vmul.f32 %v1041, %v1497
  %v1522 = vmul.f32 %v1042, %v1498
  %v1523 = vadd.f32 %v1499, 1.0
  %v1524 = vadd.f32 %v1500, 1.0
  %v1525 = vadd.f32 %v1501, 1.0
  %v1526 = vadd.f32 %v1502, 1.0
  %v1527 = vadd.f32 %v1503, 1.0
  %v1528 = vadd.f32 %v1504, 1.0
  %v1529 = vadd.f32 %v1505, 1.0
  %v1530 = vadd.f32 %v1506, 1.0
  %v1531 = vadd.f32 %v1507, 1.0
  %v1532 = vadd.f32 %v1508, 1.0
  %v1533 = vadd.f32 %v1509, 1.0
  %v1534 = vadd.f32 %v1510, 1.0
  %v1535 = vadd.f32 %v1511, 1.0
  %v1536 = vadd.f32 %v1512, 1.0
  %v1537 = vadd.f32 %v1513, 1.0
  %v1538 = vadd.f32 %v1514, 1.0
  %v1539 = vadd.f32 %v1515, 1.0
  %v1540 = vadd.f32 %v1516, 1.0
  %v1541 = vadd.f32 %v1517, 1.0
  %v1542 = vadd.f32 %v1518, 1.0
  %v1543 = vadd.f32 %v1519, 1.0
  %v1544 = vadd.f32 %v1520, 1.0
  %v1545 = vadd.f32 %v1521, 1.0
  %v1546 = vadd.f32 %v1522, 1.0
  %v1547 = vmul.f32 %v947, %v1523
  %v1548 = vmul.f32 %v948, %v1524
  %v1549 = vmul.f32 %v949, %v1525
  %v1550 = vmul.f32 %v950, %v1526
  %v1551 = vmul.f32 %v951, %v1527
  %v1552 = vmul.f32 %v952, %v1528
  %v1553 = vmul.f32 %v953, %v1529
  %v1554 = vmul.f32 %v954, %v1530
  %v1555 = vmul.f32 %v955, %v1531
  %v1556 = vmul.f32 %v956, %v1532
  %v1557 = vmul.f32 %v957, %v1533
  %v1558 = vmul.f32 %v958, %v1534
  %v1559 = vmul.f32 %v959, %v1535
  %v1560 = vmul.f32 %v960, %v1536
  %v1561 = vmul.f32 %v961, %v1537
  %v1562 = vmul.f32 %v962, %v1538
  %v1563 = vmul.f32 %v963, %v1539
  %v1564 = vmul.f32 %v964, %v1540
  %v1565 = vmul.f32 %v965, %v1541
  %v1566 = vmul.f32 %v966, %v1542
  %v1567 = vmul.f32 %v967, %v1543
  %v1568 = vmul.f32 %v968, %v1544
  %v1569 = vmul.f32 %v969, %v1545
  %v1570 = vmul.f32 %v970, %v1546
  %v1571 = vpack.c.bf16 %v1553, %v1547
  %v1572 = vpack.c.bf16 %v1554, %v1548
  %v1573 = vpack.c.bf16 %v1555, %v1549
  %v1574 = vpack.c.bf16 %v1556, %v1550
  %v1575 = vpack.c.bf16 %v1557, %v1551
  %v1576 = vpack.c.bf16 %v1558, %v1552
  %v1577 = vpack.c.bf16 %v1565, %v1559
  %v1578 = vpack.c.bf16 %v1566, %v1560
  %v1579 = vpack.c.bf16 %v1567, %v1561
  %v1580 = vpack.c.bf16 %v1568, %v1562
  %v1581 = vpack.c.bf16 %v1569, %v1563
  %v1582 = vpack.c.bf16 %v1570, %v1564
  %1583 = vst [vmem:[#allocation4 + $0x8] sm:$0xff] %v1571
  %1584 = vst [vmem:[#allocation4 + $0x10] sm:$0xff] %v1572
  %1585 = vst [vmem:[#allocation4 + $0x18] sm:$0xff] %v1573
  %1586 = vst [vmem:[#allocation4 + $0x20] sm:$0xff] %v1574
  %1587 = vst [vmem:[#allocation4 + $0x28] sm:$0xff] %v1575
  %1588 = vst [vmem:[#allocation4 + $0x30] sm:$0xff] %v1576
  %1589 = vst [vmem:[#allocation4 + $0x48] sm:$0xff] %v1577
  %1590 = vst [vmem:[#allocation4 + $0x50] sm:$0xff] %v1578
  %1591 = vst [vmem:[#allocation4 + $0x58] sm:$0xff] %v1579
  %1592 = vst [vmem:[#allocation4 + $0x60] sm:$0xff] %v1580
  %1593 = vst [vmem:[#allocation4 + $0x68] sm:$0xff] %v1581
  %1594 = vst [vmem:[#allocation4 + $0x70] sm:$0xff] %v1582
  %v1595 = vld [vmem:[#allocation4 + $0x8] sm:$0xff]
  %v1596 = vld [vmem:[#allocation4 + $0x10] sm:$0xff]
  %v1597 = vld [vmem:[#allocation4 + $0x18] sm:$0xff]
  %v1598 = vld [vmem:[#allocation4 + $0x20] sm:$0xff]
  %v1599 = vld [vmem:[#allocation4 + $0x28] sm:$0xff]
  %v1600 = vld [vmem:[#allocation4 + $0x30] sm:$0xff]
  %v1601 = vld [vmem:[#allocation4 + $0x48] sm:$0xff]
  %v1602 = vld [vmem:[#allocation4 + $0x50] sm:$0xff]
  %v1603 = vld [vmem:[#allocation4 + $0x58] sm:$0xff]
  %v1604 = vld [vmem:[#allocation4 + $0x60] sm:$0xff]
  %v1605 = vld [vmem:[#allocation4 + $0x68] sm:$0xff]
  %v1606 = vld [vmem:[#allocation4 + $0x70] sm:$0xff]
  %1607 = vst [vmem:[#allocation3] sm:$0xff] %v1595
  %1608 = vst [vmem:[#allocation3 + $0x8] sm:$0xff] %v1596
  %1609 = vst [vmem:[#allocation3 + $0x10] sm:$0xff] %v1597
  %1610 = vst [vmem:[#allocation3 + $0x18] sm:$0xff] %v1598
  %1611 = vst [vmem:[#allocation3 + $0x20] sm:$0xff] %v1599
  %1612 = vst [vmem:[#allocation3 + $0x28] sm:$0xff] %v1600
  %1613 = vst [vmem:[#allocation3 + $0x30] sm:$0xff] %v1601
  %1614 = vst [vmem:[#allocation3 + $0x38] sm:$0xff] %v1602
  %1615 = vst [vmem:[#allocation3 + $0x40] sm:$0xff] %v1603
  %1616 = vst [vmem:[#allocation3 + $0x48] sm:$0xff] %v1604
  %1617 = vst [vmem:[#allocation3 + $0x50] sm:$0xff] %v1605
  %1618 = vst [vmem:[#allocation3 + $0x58] sm:$0xff] %v1606
  %v1619 = vld [vmem:[#allocation4 + $0x8] sm:$0xff]
  %v1620 = vld [vmem:[#allocation4 + $0x10] sm:$0xff]
  %v1621 = vld [vmem:[#allocation4 + $0x18] sm:$0xff]
  %v1622 = vld [vmem:[#allocation4 + $0x20] sm:$0xff]
  %v1623 = vld [vmem:[#allocation4 + $0x28] sm:$0xff]
  %v1624 = vld [vmem:[#allocation4 + $0x30] sm:$0xff]
  %v1625 = vld [vmem:[#allocation4 + $0x38] sm:$0xff]
  %v1626 = vld [vmem:[#allocation4 + $0x48] sm:$0xff]
  %v1627 = vld [vmem:[#allocation4 + $0x50] sm:$0xff]
  %v1628 = vld [vmem:[#allocation4 + $0x58] sm:$0xff]
  %v1629 = vld [vmem:[#allocation4 + $0x60] sm:$0xff]
  %v1630 = vld [vmem:[#allocation4 + $0x68] sm:$0xff]
  %v1631 = vld [vmem:[#allocation4 + $0x70] sm:$0xff]
  %v1632 = vld [vmem:[#allocation4 + $0x78] sm:$0xff]
  %1647 = vrot.lane.b32.xlu0 %v1619, 127
  %v1648 = vpop.permute.xlu0 %1647
  %1649 = vrot.lane.b32.xlu0 %v1620, 127
  %v1650 = vpop.permute.xlu0 %1649
  %1651 = vrot.lane.b32.xlu0 %v1621, 127
  %v1652 = vpop.permute.xlu0 %1651
  %1653 = vrot.lane.b32.xlu0 %v1622, 127
  %v1654 = vpop.permute.xlu0 %1653
  %1655 = vrot.lane.b32.xlu0 %v1623, 127
  %v1656 = vpop.permute.xlu0 %1655
  %1657 = vrot.lane.b32.xlu0 %v1624, 127
  %v1658 = vpop.permute.xlu0 %1657
  %1659 = vrot.lane.b32.xlu0 %v1625, 127
  %v1660 = vpop.permute.xlu0 %1659
  %1661 = vrot.lane.b32.xlu0 %v1626, 127
  %v1662 = vpop.permute.xlu0 %1661
  %1663 = vrot.lane.b32.xlu0 %v1627, 127
  %v1664 = vpop.permute.xlu0 %1663
  %1665 = vrot.lane.b32.xlu0 %v1628, 127
  %v1666 = vpop.permute.xlu0 %1665
  %1667 = vrot.lane.b32.xlu0 %v1629, 127
  %v1668 = vpop.permute.xlu0 %1667
  %1669 = vrot.lane.b32.xlu0 %v1630, 127
  %v1670 = vpop.permute.xlu0 %1669
  %1671 = vrot.lane.b32.xlu0 %v1631, 127
  %v1672 = vpop.permute.xlu0 %1671
  %1673 = vrot.lane.b32.xlu0 %v1632, 127
  %v1674 = vpop.permute.xlu0 %1673
  %vm1675 = vcmask 1039360
  %v1676 = vsel %vm1675, %v1648, %v1650
  %v1677 = vsel %vm1675, %v1650, %v1652
  %v1678 = vsel %vm1675, %v1652, %v1654
  %v1679 = vsel %vm1675, %v1654, %v1656
  %v1680 = vsel %vm1675, %v1656, %v1658
  %v1681 = vsel %vm1675, %v1658, %v1660
  %v1682 = vsel %vm1675, %v1662, %v1664
  %v1683 = vsel %vm1675, %v1664, %v1666
  %v1684 = vsel %vm1675, %v1666, %v1668
  %v1685 = vsel %vm1675, %v1668, %v1670
  %v1686 = vsel %vm1675, %v1670, %v1672
  %v1687 = vsel %vm1675, %v1672, %v1674
  %1700 = vst [vmem:[#allocation3 + $0x60] sm:$0xff] %v1676
  %1701 = vst [vmem:[#allocation3 + $0x68] sm:$0xff] %v1677
  %1702 = vst [vmem:[#allocation3 + $0x70] sm:$0xff] %v1678
  %1703 = vst [vmem:[#allocation3 + $0x78] sm:$0xff] %v1679
  %1704 = vst [vmem:[#allocation3 + $0x80] sm:$0xff] %v1680
  %1705 = vst [vmem:[#allocation3 + $0x88] sm:$0xff] %v1681
  %1706 = vst [vmem:[#allocation3 + $0x90] sm:$0xff] %v1682
  %1707 = vst [vmem:[#allocation3 + $0x98] sm:$0xff] %v1683
  %1708 = vst [vmem:[#allocation3 + $0xa0] sm:$0xff] %v1684
  %1709 = vst [vmem:[#allocation3 + $0xa8] sm:$0xff] %v1685
  %1710 = vst [vmem:[#allocation3 + $0xb0] sm:$0xff] %v1686
  %1711 = vst [vmem:[#allocation3 + $0xb8] sm:$0xff] %v1687
  %v1712 = vld [vmem:[#allocation4 + $0x8] sm:$0xff]
  %v1713 = vld [vmem:[#allocation4 + $0x10] sm:$0xff]
  %v1714 = vld [vmem:[#allocation4 + $0x18] sm:$0xff]
  %v1715 = vld [vmem:[#allocation4 + $0x20] sm:$0xff]
  %v1716 = vld [vmem:[#allocation4 + $0x28] sm:$0xff]
  %v1717 = vld [vmem:[#allocation4 + $0x30] sm:$0xff]
  %v1718 = vld [vmem:[#allocation4 + $0x38] sm:$0xff]
  %v1719 = vld [vmem:[#allocation4 + $0x48] sm:$0xff]
  %v1720 = vld [vmem:[#allocation4 + $0x50] sm:$0xff]
  %v1721 = vld [vmem:[#allocation4 + $0x58] sm:$0xff]
  %v1722 = vld [vmem:[#allocation4 + $0x60] sm:$0xff]
  %v1723 = vld [vmem:[#allocation4 + $0x68] sm:$0xff]
  %v1724 = vld [vmem:[#allocation4 + $0x70] sm:$0xff]
  %v1725 = vld [vmem:[#allocation4 + $0x78] sm:$0xff]
  %1740 = vrot.lane.b32.xlu0 %v1712, 126
  %v1741 = vpop.permute.xlu0 %1740
  %1742 = vrot.lane.b32.xlu0 %v1713, 126
  %v1743 = vpop.permute.xlu0 %1742
  %1744 = vrot.lane.b32.xlu0 %v1714, 126
  %v1745 = vpop.permute.xlu0 %1744
  %1746 = vrot.lane.b32.xlu0 %v1715, 126
  %v1747 = vpop.permute.xlu0 %1746
  %1748 = vrot.lane.b32.xlu0 %v1716, 126
  %v1749 = vpop.permute.xlu0 %1748
  %1750 = vrot.lane.b32.xlu0 %v1717, 126
  %v1751 = vpop.permute.xlu0 %1750
  %1752 = vrot.lane.b32.xlu0 %v1718, 126
  %v1753 = vpop.permute.xlu0 %1752
  %1754 = vrot.lane.b32.xlu0 %v1719, 126
  %v1755 = vpop.permute.xlu0 %1754
  %1756 = vrot.lane.b32.xlu0 %v1720, 126
  %v1757 = vpop.permute.xlu0 %1756
  %1758 = vrot.lane.b32.xlu0 %v1721, 126
  %v1759 = vpop.permute.xlu0 %1758
  %1760 = vrot.lane.b32.xlu0 %v1722, 126
  %v1761 = vpop.permute.xlu0 %1760
  %1762 = vrot.lane.b32.xlu0 %v1723, 126
  %v1763 = vpop.permute.xlu0 %1762
  %1764 = vrot.lane.b32.xlu0 %v1724, 126
  %v1765 = vpop.permute.xlu0 %1764
  %1766 = vrot.lane.b32.xlu0 %v1725, 126
  %v1767 = vpop.permute.xlu0 %1766
  %vm1768 = vcmask 1031168
  %v1769 = vsel %vm1768, %v1741, %v1743
  %v1770 = vsel %vm1768, %v1743, %v1745
  %v1771 = vsel %vm1768, %v1745, %v1747
  %v1772 = vsel %vm1768, %v1747, %v1749
  %v1773 = vsel %vm1768, %v1749, %v1751
  %v1774 = vsel %vm1768, %v1751, %v1753
  %v1775 = vsel %vm1768, %v1755, %v1757
  %v1776 = vsel %vm1768, %v1757, %v1759
  %v1777 = vsel %vm1768, %v1759, %v1761
  %v1778 = vsel %vm1768, %v1761, %v1763
  %v1779 = vsel %vm1768, %v1763, %v1765
  %v1780 = vsel %vm1768, %v1765, %v1767
  %1793 = vst [vmem:[#allocation3 + $0xc0] sm:$0xff] %v1769
  %1794 = vst [vmem:[#allocation3 + $0xc8] sm:$0xff] %v1770
  %1795 = vst [vmem:[#allocation3 + $0xd0] sm:$0xff] %v1771
  %1796 = vst [vmem:[#allocation3 + $0xd8] sm:$0xff] %v1772
  %1797 = vst [vmem:[#allocation3 + $0xe0] sm:$0xff] %v1773
  %1798 = vst [vmem:[#allocation3 + $0xe8] sm:$0xff] %v1774
  %1799 = vst [vmem:[#allocation3 + $0xf0] sm:$0xff] %v1775
  %1800 = vst [vmem:[#allocation3 + $0xf8] sm:$0xff] %v1776
  %1801 = vst [vmem:[#allocation3 + $0x100] sm:$0xff] %v1777
  %1802 = vst [vmem:[#allocation3 + $0x108] sm:$0xff] %v1778
  %1803 = vst [vmem:[#allocation3 + $0x110] sm:$0xff] %v1779
  %1804 = vst [vmem:[#allocation3 + $0x118] sm:$0xff] %v1780
  %v1805 = vld [vmem:[#allocation4 + $0x8] sm:$0xff]
  %v1806 = vld [vmem:[#allocation4 + $0x10] sm:$0xff]
  %v1807 = vld [vmem:[#allocation4 + $0x18] sm:$0xff]
  %v1808 = vld [vmem:[#allocation4 + $0x20] sm:$0xff]
  %v1809 = vld [vmem:[#allocation4 + $0x28] sm:$0xff]
  %v1810 = vld [vmem:[#allocation4 + $0x30] sm:$0xff]
  %v1811 = vld [vmem:[#allocation4 + $0x38] sm:$0xff]
  %v1812 = vld [vmem:[#allocation4 + $0x48] sm:$0xff]
  %v1813 = vld [vmem:[#allocation4 + $0x50] sm:$0xff]
  %v1814 = vld [vmem:[#allocation4 + $0x58] sm:$0xff]
  %v1815 = vld [vmem:[#allocation4 + $0x60] sm:$0xff]
  %v1816 = vld [vmem:[#allocation4 + $0x68] sm:$0xff]
  %v1817 = vld [vmem:[#allocation4 + $0x70] sm:$0xff]
  %v1818 = vld [vmem:[#allocation4 + $0x78] sm:$0xff]
  %1833 = vrot.lane.b32.xlu0 %v1805, 110
  %v1834 = vpop.permute.xlu0 %1833
  %1835 = vrot.lane.b32.xlu0 %v1806, 110
  %v1836 = vpop.permute.xlu0 %1835
  %1837 = vrot.lane.b32.xlu0 %v1807, 110
  %v1838 = vpop.permute.xlu0 %1837
  %1839 = vrot.lane.b32.xlu0 %v1808, 110
  %v1840 = vpop.permute.xlu0 %1839
  %1841 = vrot.lane.b32.xlu0 %v1809, 110
  %v1842 = vpop.permute.xlu0 %1841
  %1843 = vrot.lane.b32.xlu0 %v1810, 110
  %v1844 = vpop.permute.xlu0 %1843
  %1845 = vrot.lane.b32.xlu0 %v1811, 110
  %v1846 = vpop.permute.xlu0 %1845
  %1847 = vrot.lane.b32.xlu0 %v1812, 110
  %v1848 = vpop.permute.xlu0 %1847
  %1849 = vrot.lane.b32.xlu0 %v1813, 110
  %v1850 = vpop.permute.xlu0 %1849
  %1851 = vrot.lane.b32.xlu0 %v1814, 110
  %v1852 = vpop.permute.xlu0 %1851
  %1853 = vrot.lane.b32.xlu0 %v1815, 110
  %v1854 = vpop.permute.xlu0 %1853
  %1855 = vrot.lane.b32.xlu0 %v1816, 110
  %v1856 = vpop.permute.xlu0 %1855
  %1857 = vrot.lane.b32.xlu0 %v1817, 110
  %v1858 = vpop.permute.xlu0 %1857
  %1859 = vrot.lane.b32.xlu0 %v1818, 110
  %v1860 = vpop.permute.xlu0 %1859
  %vm1861 = vcmask 900096
  %v1862 = vsel %vm1861, %v1834, %v1836
  %v1863 = vsel %vm1861, %v1836, %v1838
  %v1864 = vsel %vm1861, %v1838, %v1840
  %v1865 = vsel %vm1861, %v1840, %v1842
  %v1866 = vsel %vm1861, %v1842, %v1844
  %v1867 = vsel %vm1861, %v1844, %v1846
  %v1868 = vsel %vm1861, %v1848, %v1850
  %v1869 = vsel %vm1861, %v1850, %v1852
  %v1870 = vsel %vm1861, %v1852, %v1854
  %v1871 = vsel %vm1861, %v1854, %v1856
  %v1872 = vsel %vm1861, %v1856, %v1858
  %v1873 = vsel %vm1861, %v1858, %v1860
  %1886 = vst [vmem:[#allocation3 + $0x120] sm:$0xff] %v1862
  %1887 = vst [vmem:[#allocation3 + $0x128] sm:$0xff] %v1863
  %1888 = vst [vmem:[#allocation3 + $0x130] sm:$0xff] %v1864
  %1889 = vst [vmem:[#allocation3 + $0x138] sm:$0xff] %v1865
  %1890 = vst [vmem:[#allocation3 + $0x140] sm:$0xff] %v1866
  %1891 = vst [vmem:[#allocation3 + $0x148] sm:$0xff] %v1867
  %1892 = vst [vmem:[#allocation3 + $0x150] sm:$0xff] %v1868
  %1893 = vst [vmem:[#allocation3 + $0x158] sm:$0xff] %v1869
  %1894 = vst [vmem:[#allocation3 + $0x160] sm:$0xff] %v1870
  %1895 = vst [vmem:[#allocation3 + $0x168] sm:$0xff] %v1871
  %1896 = vst [vmem:[#allocation3 + $0x170] sm:$0xff] %v1872
  %1897 = vst [vmem:[#allocation3 + $0x178] sm:$0xff] %v1873
  %v1898 = vld [vmem:[#allocation4 + $0x8] sm:$0xff]
  %v1899 = vld [vmem:[#allocation4 + $0x10] sm:$0xff]
  %v1900 = vld [vmem:[#allocation4 + $0x18] sm:$0xff]
  %v1901 = vld [vmem:[#allocation4 + $0x20] sm:$0xff]
  %v1902 = vld [vmem:[#allocation4 + $0x28] sm:$0xff]
  %v1903 = vld [vmem:[#allocation4 + $0x30] sm:$0xff]
  %v1904 = vld [vmem:[#allocation4 + $0x38] sm:$0xff]
  %v1905 = vld [vmem:[#allocation4 + $0x48] sm:$0xff]
  %v1906 = vld [vmem:[#allocation4 + $0x50] sm:$0xff]
  %v1907 = vld [vmem:[#allocation4 + $0x58] sm:$0xff]
  %v1908 = vld [vmem:[#allocation4 + $0x60] sm:$0xff]
  %v1909 = vld [vmem:[#allocation4 + $0x68] sm:$0xff]
  %v1910 = vld [vmem:[#allocation4 + $0x70] sm:$0xff]
  %v1911 = vld [vmem:[#allocation4 + $0x78] sm:$0xff]
  %1926 = vrot.lane.b32.xlu0 %v1898, 109
  %v1927 = vpop.permute.xlu0 %1926
  %1928 = vrot.lane.b32.xlu0 %v1899, 109
  %v1929 = vpop.permute.xlu0 %1928
  %1930 = vrot.lane.b32.xlu0 %v1900, 109
  %v1931 = vpop.permute.xlu0 %1930
  %1932 = vrot.lane.b32.xlu0 %v1901, 109
  %v1933 = vpop.permute.xlu0 %1932
  %1934 = vrot.lane.b32.xlu0 %v1902, 109
  %v1935 = vpop.permute.xlu0 %1934
  %1936 = vrot.lane.b32.xlu0 %v1903, 109
  %v1937 = vpop.permute.xlu0 %1936
  %1938 = vrot.lane.b32.xlu0 %v1904, 109
  %v1939 = vpop.permute.xlu0 %1938
  %1940 = vrot.lane.b32.xlu0 %v1905, 109
  %v1941 = vpop.permute.xlu0 %1940
  %1942 = vrot.lane.b32.xlu0 %v1906, 109
  %v1943 = vpop.permute.xlu0 %1942
  %1944 = vrot.lane.b32.xlu0 %v1907, 109
  %v1945 = vpop.permute.xlu0 %1944
  %1946 = vrot.lane.b32.xlu0 %v1908, 109
  %v1947 = vpop.permute.xlu0 %1946
  %1948 = vrot.lane.b32.xlu0 %v1909, 109
  %v1949 = vpop.permute.xlu0 %1948
  %1950 = vrot.lane.b32.xlu0 %v1910, 109
  %v1951 = vpop.permute.xlu0 %1950
  %1952 = vrot.lane.b32.xlu0 %v1911, 109
  %v1953 = vpop.permute.xlu0 %1952
  %vm1954 = vcmask 891904
  %v1955 = vsel %vm1954, %v1927, %v1929
  %v1956 = vsel %vm1954, %v1929, %v1931
  %v1957 = vsel %vm1954, %v1931, %v1933
  %v1958 = vsel %vm1954, %v1933, %v1935
  %v1959 = vsel %vm1954, %v1935, %v1937
  %v1960 = vsel %vm1954, %v1937, %v1939
  %v1961 = vsel %vm1954, %v1941, %v1943
  %v1962 = vsel %vm1954, %v1943, %v1945
  %v1963 = vsel %vm1954, %v1945, %v1947
  %v1964 = vsel %vm1954, %v1947, %v1949
  %v1965 = vsel %vm1954, %v1949, %v1951
  %v1966 = vsel %vm1954, %v1951, %v1953
  %1979 = vst [vmem:[#allocation3 + $0x180] sm:$0xff] %v1955
  %1980 = vst [vmem:[#allocation3 + $0x188] sm:$0xff] %v1956
  %1981 = vst [vmem:[#allocation3 + $0x190] sm:$0xff] %v1957
  %1982 = vst [vmem:[#allocation3 + $0x198] sm:$0xff] %v1958
  %1983 = vst [vmem:[#allocation3 + $0x1a0] sm:$0xff] %v1959
  %1984 = vst [vmem:[#allocation3 + $0x1a8] sm:$0xff] %v1960
  %1985 = vst [vmem:[#allocation3 + $0x1b0] sm:$0xff] %v1961
  %1986 = vst [vmem:[#allocation3 + $0x1b8] sm:$0xff] %v1962
  %1987 = vst [vmem:[#allocation3 + $0x1c0] sm:$0xff] %v1963
  %1988 = vst [vmem:[#allocation3 + $0x1c8] sm:$0xff] %v1964
  %1989 = vst [vmem:[#allocation3 + $0x1d0] sm:$0xff] %v1965
  %1990 = vst [vmem:[#allocation3 + $0x1d8] sm:$0xff] %v1966
  %v1991 = vld [vmem:[#allocation4 + $0x8] sm:$0xff]
  %v1992 = vld [vmem:[#allocation4 + $0x10] sm:$0xff]
  %v1993 = vld [vmem:[#allocation4 + $0x18] sm:$0xff]
  %v1994 = vld [vmem:[#allocation4 + $0x20] sm:$0xff]
  %v1995 = vld [vmem:[#allocation4 + $0x28] sm:$0xff]
  %v1996 = vld [vmem:[#allocation4 + $0x30] sm:$0xff]
  %v1997 = vld [vmem:[#allocation4 + $0x38] sm:$0xff]
  %v1998 = vld [vmem:[#allocation4 + $0x48] sm:$0xff]
  %v1999 = vld [vmem:[#allocation4 + $0x50] sm:$0xff]
  %v2000 = vld [vmem:[#allocation4 + $0x58] sm:$0xff]
  %v2001 = vld [vmem:[#allocation4 + $0x60] sm:$0xff]
  %v2002 = vld [vmem:[#allocation4 + $0x68] sm:$0xff]
  %v2003 = vld [vmem:[#allocation4 + $0x70] sm:$0xff]
  %v2004 = vld [vmem:[#allocation4 + $0x78] sm:$0xff]
  %2019 = vrot.lane.b32.xlu0 %v1991, 108
  %v2020 = vpop.permute.xlu0 %2019
  %2021 = vrot.lane.b32.xlu0 %v1992, 108
  %v2022 = vpop.permute.xlu0 %2021
  %2023 = vrot.lane.b32.xlu0 %v1993, 108
  %v2024 = vpop.permute.xlu0 %2023
  %2025 = vrot.lane.b32.xlu0 %v1994, 108
  %v2026 = vpop.permute.xlu0 %2025
  %2027 = vrot.lane.b32.xlu0 %v1995, 108
  %v2028 = vpop.permute.xlu0 %2027
  %2029 = vrot.lane.b32.xlu0 %v1996, 108
  %v2030 = vpop.permute.xlu0 %2029
  %2031 = vrot.lane.b32.xlu0 %v1997, 108
  %v2032 = vpop.permute.xlu0 %2031
  %2033 = vrot.lane.b32.xlu0 %v1998, 108
  %v2034 = vpop.permute.xlu0 %2033
  %2035 = vrot.lane.b32.xlu0 %v1999, 108
  %v2036 = vpop.permute.xlu0 %2035
  %2037 = vrot.lane.b32.xlu0 %v2000, 108
  %v2038 = vpop.permute.xlu0 %2037
  %2039 = vrot.lane.b32.xlu0 %v2001, 108
  %v2040 = vpop.permute.xlu0 %2039
  %2041 = vrot.lane.b32.xlu0 %v2002, 108
  %v2042 = vpop.permute.xlu0 %2041
  %2043 = vrot.lane.b32.xlu0 %v2003, 108
  %v2044 = vpop.permute.xlu0 %2043
  %2045 = vrot.lane.b32.xlu0 %v2004, 108
  %v2046 = vpop.permute.xlu0 %2045
  %vm2047 = vcmask 883712
  %v2048 = vsel %vm2047, %v2020, %v2022
  %v2049 = vsel %vm2047, %v2022, %v2024
  %v2050 = vsel %vm2047, %v2024, %v2026
  %v2051 = vsel %vm2047, %v2026, %v2028
  %v2052 = vsel %vm2047, %v2028, %v2030
  %v2053 = vsel %vm2047, %v2030, %v2032
  %v2054 = vsel %vm2047, %v2034, %v2036
  %v2055 = vsel %vm2047, %v2036, %v2038
  %v2056 = vsel %vm2047, %v2038, %v2040
  %v2057 = vsel %vm2047, %v2040, %v2042
  %v2058 = vsel %vm2047, %v2042, %v2044
  %v2059 = vsel %vm2047, %v2044, %v2046
  %2072 = vst [vmem:[#allocation3 + $0x1e0] sm:$0xff] %v2048
  %2073 = vst [vmem:[#allocation3 + $0x1e8] sm:$0xff] %v2049
  %2074 = vst [vmem:[#allocation3 + $0x1f0] sm:$0xff] %v2050
  %2075 = vst [vmem:[#allocation3 + $0x1f8] sm:$0xff] %v2051
  %2076 = vst [vmem:[#allocation3 + $0x200] sm:$0xff] %v2052
  %2077 = vst [vmem:[#allocation3 + $0x208] sm:$0xff] %v2053
  %2078 = vst [vmem:[#allocation3 + $0x210] sm:$0xff] %v2054
  %2079 = vst [vmem:[#allocation3 + $0x218] sm:$0xff] %v2055
  %2080 = vst [vmem:[#allocation3 + $0x220] sm:$0xff] %v2056
  %2081 = vst [vmem:[#allocation3 + $0x228] sm:$0xff] %v2057
  %2082 = vst [vmem:[#allocation3 + $0x230] sm:$0xff] %v2058
  %2083 = vst [vmem:[#allocation3 + $0x238] sm:$0xff] %v2059
  %v2084 = vld [vmem:[#allocation4 + $0x8] sm:$0xff]
  %v2085 = vld [vmem:[#allocation4 + $0x10] sm:$0xff]
  %v2086 = vld [vmem:[#allocation4 + $0x18] sm:$0xff]
  %v2087 = vld [vmem:[#allocation4 + $0x20] sm:$0xff]
  %v2088 = vld [vmem:[#allocation4 + $0x28] sm:$0xff]
  %v2089 = vld [vmem:[#allocation4 + $0x30] sm:$0xff]
  %v2090 = vld [vmem:[#allocation4 + $0x38] sm:$0xff]
  %v2091 = vld [vmem:[#allocation4 + $0x48] sm:$0xff]
  %v2092 = vld [vmem:[#allocation4 + $0x50] sm:$0xff]
  %v2093 = vld [vmem:[#allocation4 + $0x58] sm:$0xff]
  %v2094 = vld [vmem:[#allocation4 + $0x60] sm:$0xff]
  %v2095 = vld [vmem:[#allocation4 + $0x68] sm:$0xff]
  %v2096 = vld [vmem:[#allocation4 + $0x70] sm:$0xff]
  %v2097 = vld [vmem:[#allocation4 + $0x78] sm:$0xff]
  %2112 = vrot.lane.b32.xlu0 %v2084, 92
  %v2113 = vpop.permute.xlu0 %2112
  %2114 = vrot.lane.b32.xlu0 %v2085, 92
  %v2115 = vpop.permute.xlu0 %2114
  %2116 = vrot.lane.b32.xlu0 %v2086, 92
  %v2117 = vpop.permute.xlu0 %2116
  %2118 = vrot.lane.b32.xlu0 %v2087, 92
  %v2119 = vpop.permute.xlu0 %2118
  %2120 = vrot.lane.b32.xlu0 %v2088, 92
  %v2121 = vpop.permute.xlu0 %2120
  %2122 = vrot.lane.b32.xlu0 %v2089, 92
  %v2123 = vpop.permute.xlu0 %2122
  %2124 = vrot.lane.b32.xlu0 %v2090, 92
  %v2125 = vpop.permute.xlu0 %2124
  %2126 = vrot.lane.b32.xlu0 %v2091, 92
  %v2127 = vpop.permute.xlu0 %2126
  %2128 = vrot.lane.b32.xlu0 %v2092, 92
  %v2129 = vpop.permute.xlu0 %2128
  %2130 = vrot.lane.b32.xlu0 %v2093, 92
  %v2131 = vpop.permute.xlu0 %2130
  %2132 = vrot.lane.b32.xlu0 %v2094, 92
  %v2133 = vpop.permute.xlu0 %2132
  %2134 = vrot.lane.b32.xlu0 %v2095, 92
  %v2135 = vpop.permute.xlu0 %2134
  %2136 = vrot.lane.b32.xlu0 %v2096, 92
  %v2137 = vpop.permute.xlu0 %2136
  %2138 = vrot.lane.b32.xlu0 %v2097, 92
  %v2139 = vpop.permute.xlu0 %2138
  %vm2140 = vcmask 752640
  %v2141 = vsel %vm2140, %v2113, %v2115
  %v2142 = vsel %vm2140, %v2115, %v2117
  %v2143 = vsel %vm2140, %v2117, %v2119
  %v2144 = vsel %vm2140, %v2119, %v2121
  %v2145 = vsel %vm2140, %v2121, %v2123
  %v2146 = vsel %vm2140, %v2123, %v2125
  %v2147 = vsel %vm2140, %v2127, %v2129
  %v2148 = vsel %vm2140, %v2129, %v2131
  %v2149 = vsel %vm2140, %v2131, %v2133
  %v2150 = vsel %vm2140, %v2133, %v2135
  %v2151 = vsel %vm2140, %v2135, %v2137
  %v2152 = vsel %vm2140, %v2137, %v2139
  %2165 = vst [vmem:[#allocation3 + $0x240] sm:$0xff] %v2141
  %2166 = vst [vmem:[#allocation3 + $0x248] sm:$0xff] %v2142
  %2167 = vst [vmem:[#allocation3 + $0x250] sm:$0xff] %v2143
  %2168 = vst [vmem:[#allocation3 + $0x258] sm:$0xff] %v2144
  %2169 = vst [vmem:[#allocation3 + $0x260] sm:$0xff] %v2145
  %2170 = vst [vmem:[#allocation3 + $0x268] sm:$0xff] %v2146
  %2171 = vst [vmem:[#allocation3 + $0x270] sm:$0xff] %v2147
  %2172 = vst [vmem:[#allocation3 + $0x278] sm:$0xff] %v2148
  %2173 = vst [vmem:[#allocation3 + $0x280] sm:$0xff] %v2149
  %2174 = vst [vmem:[#allocation3 + $0x288] sm:$0xff] %v2150
  %2175 = vst [vmem:[#allocation3 + $0x290] sm:$0xff] %v2151
  %2176 = vst [vmem:[#allocation3 + $0x298] sm:$0xff] %v2152
  %v2177 = vld [vmem:[#allocation4 + $0x8] sm:$0xff]
  %v2178 = vld [vmem:[#allocation4 + $0x10] sm:$0xff]
  %v2179 = vld [vmem:[#allocation4 + $0x18] sm:$0xff]
  %v2180 = vld [vmem:[#allocation4 + $0x20] sm:$0xff]
  %v2181 = vld [vmem:[#allocation4 + $0x28] sm:$0xff]
  %v2182 = vld [vmem:[#allocation4 + $0x30] sm:$0xff]
  %v2183 = vld [vmem:[#allocation4 + $0x38] sm:$0xff]
  %v2184 = vld [vmem:[#allocation4 + $0x48] sm:$0xff]
  %v2185 = vld [vmem:[#allocation4 + $0x50] sm:$0xff]
  %v2186 = vld [vmem:[#allocation4 + $0x58] sm:$0xff]
  %v2187 = vld [vmem:[#allocation4 + $0x60] sm:$0xff]
  %v2188 = vld [vmem:[#allocation4 + $0x68] sm:$0xff]
  %v2189 = vld [vmem:[#allocation4 + $0x70] sm:$0xff]
  %v2190 = vld [vmem:[#allocation4 + $0x78] sm:$0xff]
  %2205 = vrot.lane.b32.xlu0 %v2177, 91
  %v2206 = vpop.permute.xlu0 %2205
  %2207 = vrot.lane.b32.xlu0 %v2178, 91
  %v2208 = vpop.permute.xlu0 %2207
  %2209 = vrot.lane.b32.xlu0 %v2179, 91
  %v2210 = vpop.permute.xlu0 %2209
  %2211 = vrot.lane.b32.xlu0 %v2180, 91
  %v2212 = vpop.permute.xlu0 %2211
  %2213 = vrot.lane.b32.xlu0 %v2181, 91
  %v2214 = vpop.permute.xlu0 %2213
  %2215 = vrot.lane.b32.xlu0 %v2182, 91
  %v2216 = vpop.permute.xlu0 %2215
  %2217 = vrot.lane.b32.xlu0 %v2183, 91
  %v2218 = vpop.permute.xlu0 %2217
  %2219 = vrot.lane.b32.xlu0 %v2184, 91
  %v2220 = vpop.permute.xlu0 %2219
  %2221 = vrot.lane.b32.xlu0 %v2185, 91
  %v2222 = vpop.permute.xlu0 %2221
  %2223 = vrot.lane.b32.xlu0 %v2186, 91
  %v2224 = vpop.permute.xlu0 %2223
  %2225 = vrot.lane.b32.xlu0 %v2187, 91
  %v2226 = vpop.permute.xlu0 %2225
  %2227 = vrot.lane.b32.xlu0 %v2188, 91
  %v2228 = vpop.permute.xlu0 %2227
  %2229 = vrot.lane.b32.xlu0 %v2189, 91
  %v2230 = vpop.permute.xlu0 %2229
  %2231 = vrot.lane.b32.xlu0 %v2190, 91
  %v2232 = vpop.permute.xlu0 %2231
  %vm2233 = vcmask 744448
  %v2234 = vsel %vm2233, %v2206, %v2208
  %v2235 = vsel %vm2233, %v2208, %v2210
  %v2236 = vsel %vm2233, %v2210, %v2212
  %v2237 = vsel %vm2233, %v2212, %v2214
  %v2238 = vsel %vm2233, %v2214, %v2216
  %v2239 = vsel %vm2233, %v2216, %v2218
  %v2240 = vsel %vm2233, %v2220, %v2222
  %v2241 = vsel %vm2233, %v2222, %v2224
  %v2242 = vsel %vm2233, %v2224, %v2226
  %v2243 = vsel %vm2233, %v2226, %v2228
  %v2244 = vsel %vm2233, %v2228, %v2230
  %v2245 = vsel %vm2233, %v2230, %v2232
  %2258 = vst [vmem:[#allocation3 + $0x2a0] sm:$0xff] %v2234
  %2259 = vst [vmem:[#allocation3 + $0x2a8] sm:$0xff] %v2235
  %2260 = vst [vmem:[#allocation3 + $0x2b0] sm:$0xff] %v2236
  %2261 = vst [vmem:[#allocation3 + $0x2b8] sm:$0xff] %v2237
  %2262 = vst [vmem:[#allocation3 + $0x2c0] sm:$0xff] %v2238
  %2263 = vst [vmem:[#allocation3 + $0x2c8] sm:$0xff] %v2239
  %2264 = vst [vmem:[#allocation3 + $0x2d0] sm:$0xff] %v2240
  %2265 = vst [vmem:[#allocation3 + $0x2d8] sm:$0xff] %v2241
  %2266 = vst [vmem:[#allocation3 + $0x2e0] sm:$0xff] %v2242
  %2267 = vst [vmem:[#allocation3 + $0x2e8] sm:$0xff] %v2243
  %2268 = vst [vmem:[#allocation3 + $0x2f0] sm:$0xff] %v2244
  %2269 = vst [vmem:[#allocation3 + $0x2f8] sm:$0xff] %v2245
  %v2270 = vld [vmem:[#allocation4 + $0x8] sm:$0xff]
  %v2271 = vld [vmem:[#allocation4 + $0x10] sm:$0xff]
  %v2272 = vld [vmem:[#allocation4 + $0x18] sm:$0xff]
  %v2273 = vld [vmem:[#allocation4 + $0x20] sm:$0xff]
  %v2274 = vld [vmem:[#allocation4 + $0x28] sm:$0xff]
  %v2275 = vld [vmem:[#allocation4 + $0x30] sm:$0xff]
  %v2276 = vld [vmem:[#allocation4 + $0x38] sm:$0xff]
  %v2277 = vld [vmem:[#allocation4 + $0x48] sm:$0xff]
  %v2278 = vld [vmem:[#allocation4 + $0x50] sm:$0xff]
  %v2279 = vld [vmem:[#allocation4 + $0x58] sm:$0xff]
  %v2280 = vld [vmem:[#allocation4 + $0x60] sm:$0xff]
  %v2281 = vld [vmem:[#allocation4 + $0x68] sm:$0xff]
  %v2282 = vld [vmem:[#allocation4 + $0x70] sm:$0xff]
  %v2283 = vld [vmem:[#allocation4 + $0x78] sm:$0xff]
  %2298 = vrot.lane.b32.xlu0 %v2270, 90
  %v2299 = vpop.permute.xlu0 %2298
  %2300 = vrot.lane.b32.xlu0 %v2271, 90
  %v2301 = vpop.permute.xlu0 %2300
  %2302 = vrot.lane.b32.xlu0 %v2272, 90
  %v2303 = vpop.permute.xlu0 %2302
  %2304 = vrot.lane.b32.xlu0 %v2273, 90
  %v2305 = vpop.permute.xlu0 %2304
  %2306 = vrot.lane.b32.xlu0 %v2274, 90
  %v2307 = vpop.permute.xlu0 %2306
  %2308 = vrot.lane.b32.xlu0 %v2275, 90
  %v2309 = vpop.permute.xlu0 %2308
  %2310 = vrot.lane.b32.xlu0 %v2276, 90
  %v2311 = vpop.permute.xlu0 %2310
  %2312 = vrot.lane.b32.xlu0 %v2277, 90
  %v2313 = vpop.permute.xlu0 %2312
  %2314 = vrot.lane.b32.xlu0 %v2278, 90
  %v2315 = vpop.permute.xlu0 %2314
  %2316 = vrot.lane.b32.xlu0 %v2279, 90
  %v2317 = vpop.permute.xlu0 %2316
  %2318 = vrot.lane.b32.xlu0 %v2280, 90
  %v2319 = vpop.permute.xlu0 %2318
  %2320 = vrot.lane.b32.xlu0 %v2281, 90
  %v2321 = vpop.permute.xlu0 %2320
  %2322 = vrot.lane.b32.xlu0 %v2282, 90
  %v2323 = vpop.permute.xlu0 %2322
  %2324 = vrot.lane.b32.xlu0 %v2283, 90
  %v2325 = vpop.permute.xlu0 %2324
  %vm2326 = vcmask 736256
  %v2327 = vsel %vm2326, %v2299, %v2301
  %v2328 = vsel %vm2326, %v2301, %v2303
  %v2329 = vsel %vm2326, %v2303, %v2305
  %v2330 = vsel %vm2326, %v2305, %v2307
  %v2331 = vsel %vm2326, %v2307, %v2309
  %v2332 = vsel %vm2326, %v2309, %v2311
  %v2333 = vsel %vm2326, %v2313, %v2315
  %v2334 = vsel %vm2326, %v2315, %v2317
  %v2335 = vsel %vm2326, %v2317, %v2319
  %v2336 = vsel %vm2326, %v2319, %v2321
  %v2337 = vsel %vm2326, %v2321, %v2323
  %v2338 = vsel %vm2326, %v2323, %v2325
  %2351 = vst [vmem:[#allocation3 + $0x300] sm:$0xff] %v2327
  %2352 = vst [vmem:[#allocation3 + $0x308] sm:$0xff] %v2328
  %2353 = vst [vmem:[#allocation3 + $0x310] sm:$0xff] %v2329
  %2354 = vst [vmem:[#allocation3 + $0x318] sm:$0xff] %v2330
  %2355 = vst [vmem:[#allocation3 + $0x320] sm:$0xff] %v2331
  %2356 = vst [vmem:[#allocation3 + $0x328] sm:$0xff] %v2332
  %2357 = vst [vmem:[#allocation3 + $0x330] sm:$0xff] %v2333
  %2358 = vst [vmem:[#allocation3 + $0x338] sm:$0xff] %v2334
  %2359 = vst [vmem:[#allocation3 + $0x340] sm:$0xff] %v2335
  %2360 = vst [vmem:[#allocation3 + $0x348] sm:$0xff] %v2336
  %2361 = vst [vmem:[#allocation3 + $0x350] sm:$0xff] %v2337
  %2362 = vst [vmem:[#allocation3 + $0x358] sm:$0xff] %v2338
  %v2363 = vld [vmem:[%s6] sm:$0xff]
  %v2364 = vld [vmem:[%s6 + $0x8] sm:$0xf]
  %v2365 = vld [vmem:[%s6 + $0xc] sm:$0xff]
  %v2366 = vld [vmem:[%s6 + $0x14] sm:$0xf]
  %v2367 = vld [vmem:[%s6 + $0x18] sm:$0xff]
  %v2368 = vld [vmem:[%s6 + $0x20] sm:$0xf]
  %v2369 = vld [vmem:[%s6 + $0x24] sm:$0xff]
  %v2370 = vld [vmem:[%s6 + $0x2c] sm:$0xf]
  %v2371 = vld [vmem:[#allocation3] sm:$0xff]
  %v2372 = vld [vmem:[#allocation3 + $0x8] sm:$0xff]
  %v2373 = vld [vmem:[#allocation3 + $0x10] sm:$0xff]
  %v2374 = vld [vmem:[#allocation3 + $0x18] sm:$0xff]
  %v2375 = vld [vmem:[#allocation3 + $0x20] sm:$0xff]
  %v2376 = vld [vmem:[#allocation3 + $0x28] sm:$0xff]
  %v2377 = vld [vmem:[#allocation3 + $0x30] sm:$0xff]
  %v2378 = vld [vmem:[#allocation3 + $0x38] sm:$0xff]
  %v2379 = vld [vmem:[#allocation3 + $0x40] sm:$0xff]
  %v2380 = vld [vmem:[#allocation3 + $0x48] sm:$0xff]
  %v2381 = vld [vmem:[#allocation3 + $0x50] sm:$0xff]
  %v2382 = vld [vmem:[#allocation3 + $0x58] sm:$0xff]
  %v2383 = vld [vmem:[#allocation3 + $0x60] sm:$0xff]
  %v2384 = vld [vmem:[#allocation3 + $0x68] sm:$0xff]
  %v2385 = vld [vmem:[#allocation3 + $0x70] sm:$0xff]
  %v2386 = vld [vmem:[#allocation3 + $0x78] sm:$0xff]
  %v2387 = vld [vmem:[#allocation3 + $0x80] sm:$0xff]
  %v2388 = vld [vmem:[#allocation3 + $0x88] sm:$0xff]
  %v2389 = vld [vmem:[#allocation3 + $0x90] sm:$0xff]
  %v2390 = vld [vmem:[#allocation3 + $0x98] sm:$0xff]
  %v2391 = vld [vmem:[#allocation3 + $0xa0] sm:$0xff]
  %v2392 = vld [vmem:[#allocation3 + $0xa8] sm:$0xff]
  %v2393 = vld [vmem:[#allocation3 + $0xb0] sm:$0xff]
  %v2394 = vld [vmem:[#allocation3 + $0xb8] sm:$0xff]
  %v2395 = vld [vmem:[#allocation3 + $0xc0] sm:$0xff]
  %v2396 = vld [vmem:[#allocation3 + $0xc8] sm:$0xff]
  %v2397 = vld [vmem:[#allocation3 + $0xd0] sm:$0xff]
  %v2398 = vld [vmem:[#allocation3 + $0xd8] sm:$0xff]
  %v2399 = vld [vmem:[#allocation3 + $0xe0] sm:$0xff]
  %v2400 = vld [vmem:[#allocation3 + $0xe8] sm:$0xff]
  %v2401 = vld [vmem:[#allocation3 + $0xf0] sm:$0xff]
  %v2402 = vld [vmem:[#allocation3 + $0xf8] sm:$0xff]
  %v2403 = vld [vmem:[#allocation3 + $0x100] sm:$0xff]
  %v2404 = vld [vmem:[#allocation3 + $0x108] sm:$0xff]
  %v2405 = vld [vmem:[#allocation3 + $0x110] sm:$0xff]
  %v2406 = vld [vmem:[#allocation3 + $0x118] sm:$0xff]
  %v2407 = vld [vmem:[#allocation3 + $0x120] sm:$0xff]
  %v2408 = vld [vmem:[#allocation3 + $0x128] sm:$0xff]
  %v2409 = vld [vmem:[#allocation3 + $0x130] sm:$0xff]
  %v2410 = vld [vmem:[#allocation3 + $0x138] sm:$0xff]
  %v2411 = vld [vmem:[#allocation3 + $0x140] sm:$0xff]
  %v2412 = vld [vmem:[#allocation3 + $0x148] sm:$0xff]
  %v2413 = vld [vmem:[#allocation3 + $0x150] sm:$0xff]
  %v2414 = vld [vmem:[#allocation3 + $0x158] sm:$0xff]
  %v2415 = vld [vmem:[#allocation3 + $0x160] sm:$0xff]
  %v2416 = vld [vmem:[#allocation3 + $0x168] sm:$0xff]
  %v2417 = vld [vmem:[#allocation3 + $0x170] sm:$0xff]
  %v2418 = vld [vmem:[#allocation3 + $0x178] sm:$0xff]
  %v2419 = vld [vmem:[#allocation3 + $0x180] sm:$0xff]
  %v2420 = vld [vmem:[#allocation3 + $0x188] sm:$0xff]
  %v2421 = vld [vmem:[#allocation3 + $0x190] sm:$0xff]
  %v2422 = vld [vmem:[#allocation3 + $0x198] sm:$0xff]
  %v2423 = vld [vmem:[#allocation3 + $0x1a0] sm:$0xff]
  %v2424 = vld [vmem:[#allocation3 + $0x1a8] sm:$0xff]
  %v2425 = vld [vmem:[#allocation3 + $0x1b0] sm:$0xff]
  %v2426 = vld [vmem:[#allocation3 + $0x1b8] sm:$0xff]
  %v2427 = vld [vmem:[#allocation3 + $0x1c0] sm:$0xff]
  %v2428 = vld [vmem:[#allocation3 + $0x1c8] sm:$0xff]
  %v2429 = vld [vmem:[#allocation3 + $0x1d0] sm:$0xff]
  %v2430 = vld [vmem:[#allocation3 + $0x1d8] sm:$0xff]
  %v2431 = vld [vmem:[#allocation3 + $0x1e0] sm:$0xff]
  %v2432 = vld [vmem:[#allocation3 + $0x1e8] sm:$0xff]
  %v2433 = vld [vmem:[#allocation3 + $0x1f0] sm:$0xff]
  %v2434 = vld [vmem:[#allocation3 + $0x1f8] sm:$0xff]
  %v2435 = vld [vmem:[#allocation3 + $0x200] sm:$0xff]
  %v2436 = vld [vmem:[#allocation3 + $0x208] sm:$0xff]
  %v2437 = vld [vmem:[#allocation3 + $0x210] sm:$0xff]
  %v2438 = vld [vmem:[#allocation3 + $0x218] sm:$0xff]
  %v2439 = vld [vmem:[#allocation3 + $0x220] sm:$0xff]
  %v2440 = vld [vmem:[#allocation3 + $0x228] sm:$0xff]
  %v2441 = vld [vmem:[#allocation3 + $0x230] sm:$0xff]
  %v2442 = vld [vmem:[#allocation3 + $0x238] sm:$0xff]
  %v2443 = vld [vmem:[#allocation3 + $0x240] sm:$0xff]
  %v2444 = vld [vmem:[#allocation3 + $0x248] sm:$0xff]
  %v2445 = vld [vmem:[#allocation3 + $0x250] sm:$0xff]
  %v2446 = vld [vmem:[#allocation3 + $0x258] sm:$0xff]
  %v2447 = vld [vmem:[#allocation3 + $0x260] sm:$0xff]
  %v2448 = vld [vmem:[#allocation3 + $0x268] sm:$0xff]
  %v2449 = vld [vmem:[#allocation3 + $0x270] sm:$0xff]
  %v2450 = vld [vmem:[#allocation3 + $0x278] sm:$0xff]
  %v2451 = vld [vmem:[#allocation3 + $0x280] sm:$0xff]
  %v2452 = vld [vmem:[#allocation3 + $0x288] sm:$0xff]
  %v2453 = vld [vmem:[#allocation3 + $0x290] sm:$0xff]
  %v2454 = vld [vmem:[#allocation3 + $0x298] sm:$0xff]
  %v2455 = vld [vmem:[#allocation3 + $0x2a0] sm:$0xff]
  %v2456 = vld [vmem:[#allocation3 + $0x2a8] sm:$0xff]
  %v2457 = vld [vmem:[#allocation3 + $0x2b0] sm:$0xff]
  %v2458 = vld [vmem:[#allocation3 + $0x2b8] sm:$0xff]
  %v2459 = vld [vmem:[#allocation3 + $0x2c0] sm:$0xff]
  %v2460 = vld [vmem:[#allocation3 + $0x2c8] sm:$0xff]
  %v2461 = vld [vmem:[#allocation3 + $0x2d0] sm:$0xff]
  %v2462 = vld [vmem:[#allocation3 + $0x2d8] sm:$0xff]
  %v2463 = vld [vmem:[#allocation3 + $0x2e0] sm:$0xff]
  %v2464 = vld [vmem:[#allocation3 + $0x2e8] sm:$0xff]
  %v2465 = vld [vmem:[#allocation3 + $0x2f0] sm:$0xff]
  %v2466 = vld [vmem:[#allocation3 + $0x2f8] sm:$0xff]
  %v2467 = vld [vmem:[#allocation3 + $0x300] sm:$0xff]
  %v2468 = vld [vmem:[#allocation3 + $0x308] sm:$0xff]
  %v2469 = vld [vmem:[#allocation3 + $0x310] sm:$0xff]
  %v2470 = vld [vmem:[#allocation3 + $0x318] sm:$0xff]
  %v2471 = vld [vmem:[#allocation3 + $0x320] sm:$0xff]
  %v2472 = vld [vmem:[#allocation3 + $0x328] sm:$0xff]
  %v2473 = vld [vmem:[#allocation3 + $0x330] sm:$0xff]
  %v2474 = vld [vmem:[#allocation3 + $0x338] sm:$0xff]
  %v2475 = vld [vmem:[#allocation3 + $0x340] sm:$0xff]
  %v2476 = vld [vmem:[#allocation3 + $0x348] sm:$0xff]
  %v2477 = vld [vmem:[#allocation3 + $0x350] sm:$0xff]
  %v2478 = vld [vmem:[#allocation3 + $0x358] sm:$0xff]
  %v2479 = vld [vmem:[%s7] sm:$0xff]
  %v2480 = vld [vmem:[%s7 + $0x8] sm:$0xff]
  %v2481 = vld [vmem:[%s7 + $0x10] sm:$0xff]
  %v2482 = vld [vmem:[%s7 + $0x18] sm:$0xff]
  %2484 = vset.pattern.permute.xlu0 0
  %2485 = vperm.xlu0 %2484, %v2479
  %v2486 = vpop.permute.xlu0 %2485
  %2489 = vset.pattern.permute.xlu0 0
  %2490 = vperm.xlu0 %2489, %v2480
  %v2491 = vpop.permute.xlu0 %2490
  %2494 = vset.pattern.permute.xlu0 0
  %2495 = vperm.xlu0 %2494, %v2481
  %v2496 = vpop.permute.xlu0 %2495
  %2499 = vset.pattern.permute.xlu0 0
  %2500 = vperm.xlu0 %2499, %v2482
  %v2501 = vpop.permute.xlu0 %2500
  %v2511 = vunpack.c.l.b16 %v2363
  %v2512 = vunpack.c.h.b16 %v2363
  %v2513 = vunpack.c.l.b16 %v2364
  %v2514 = vunpack.c.l.b16 %v2365
  %v2515 = vunpack.c.h.b16 %v2365
  %v2516 = vunpack.c.l.b16 %v2366
  %v2517 = vunpack.c.l.b16 %v2367
  %v2518 = vunpack.c.h.b16 %v2367
  %v2519 = vunpack.c.l.b16 %v2368
  %v2520 = vunpack.c.l.b16 %v2369
  %v2521 = vunpack.c.h.b16 %v2369
  %v2522 = vunpack.c.l.b16 %v2370
  %v2523 = vpack.c.b16 %v2514, %v2511
  %v2524 = vpack.c.b16 %v2515, %v2512
  %v2525 = vpack.c.b16 %v2516, %v2513
  %v2526 = vpack.c.b16 %v2520, %v2517
  %v2527 = vpack.c.b16 %v2521, %v2518
  %v2528 = vpack.c.b16 %v2522, %v2519
  %vm2533 = vcmask 261120
  %v2535 = vsel %vm2533, %v2525, 0
  %v2538 = vsel %vm2533, %v2528, 0
  %2540 = vmatprep.subr.bf16.mxu0 %v2372
  %2541 = vmatpush1.bf16.msra.mxu0 %v2371
  %2542 = vmatprep.subr.bf16.mxu0 %v2378
  %2543 = vmatpush1.bf16.msra.mxu0 %v2377
  %2544 = vmatprep.subr.bf16.mxu0 %v2384
  %2545 = vmatpush1.bf16.msra.mxu0 %v2383
  %2546 = vmatprep.subr.bf16.mxu0 %v2390
  %2547 = vmatpush1.bf16.msra.mxu0 %v2389
  %2548 = vmatprep.subr.bf16.mxu0 %v2396
  %2549 = vmatpush1.bf16.msra.mxu0 %v2395
  %2550 = vmatprep.subr.bf16.mxu0 %v2402
  %2551 = vmatpush1.bf16.msra.mxu0 %v2401
  %2552 = vmatprep.subr.bf16.mxu0 %v2408
  %2553 = vmatpush1.bf16.msra.mxu0 %v2407
  %2554 = vmatprep.subr.bf16.mxu0 %v2414
  %2555 = vmatpush1.bf16.msra.mxu0 %v2413
  %2556 = vmatprep.subr.bf16.mxu0 %v2420
  %2557 = vmatpush1.bf16.msra.mxu0 %v2419
  %2558 = vmatprep.subr.bf16.mxu0 %v2426
  %2559 = vmatpush1.bf16.msra.mxu0 %v2425
  %2560 = vmatprep.subr.bf16.mxu0 %v2432
  %2561 = vmatpush1.bf16.msra.mxu0 %v2431
  %2562 = vmatprep.subr.bf16.mxu0 %v2438
  %2563 = vmatpush1.bf16.msra.mxu0 %v2437
  %2564 = vmatprep.subr.bf16.mxu0 %v2444
  %2565 = vmatpush1.bf16.msra.mxu0 %v2443
  %2566 = vmatprep.subr.bf16.mxu0 %v2450
  %2567 = vmatpush1.bf16.msra.mxu0 %v2449
  %2568 = vmatprep.subr.bf16.mxu0 %v2456
  %2569 = vmatpush1.bf16.msra.mxu0 %v2455
  %2570 = vmatprep.subr.bf16.mxu0 %v2462
  %2571 = vmatpush1.bf16.msra.mxu0 %v2461
  %2572 = vmatprep.mubr.bf16.mxu0 %v2524
  %2573 = vmatmul.mubr.bf16.gmra.mrb[0].mxu0 %v2523
  %v2574 = vpop.f32.mrb[0].mxu0
  %v2575 = vadd.f32 %v2486, %v2574
  %v2576 = vpop.f32.mrb[0].mxu0
  %v2577 = vadd.f32 %v2486, %v2576
  %v2578 = vpop.f32.mrb[0].mxu0
  %v2579 = vadd.f32 %v2491, %v2578
  %v2580 = vpop.f32.mrb[0].mxu0
  %v2581 = vadd.f32 %v2491, %v2580
  %2582 = vmatprep.mubr.bf16.mxu0 %v2527
  %2583 = vmatmul.mubr.bf16.gmra.mrb[0].mxu0 %v2526
  %v2584 = vpop.f32.mrb[0].mxu0
  %v2585 = vadd.f32 %v2496, %v2584
  %v2586 = vpop.f32.mrb[0].mxu0
  %v2587 = vadd.f32 %v2496, %v2586
  %v2588 = vpop.f32.mrb[0].mxu0
  %v2589 = vadd.f32 %v2501, %v2588
  %v2590 = vpop.f32.mrb[0].mxu0
  %v2591 = vadd.f32 %v2501, %v2590
  %2592 = vdwg.mxu0
  %2593 = vmatprep.subr.bf16.mxu0 %v2468
  %2594 = vmatpush1.bf16.msra.mxu0 %v2467
  %2595 = vmatprep.subr.bf16.mxu0 %v2474
  %2596 = vmatpush1.bf16.msra.mxu0 %v2473
  %2597 = vmatprep.subr.bf16.mxu0 0
  %2598 = vmatpush1.bf16.msra.mxu0 0
  %2599 = vmatprep.subr.bf16.mxu0 0
  %2600 = vmatpush1.bf16.msra.mxu0 0
  %2601 = vmatprep.subr.bf16.mxu0 0
  %2602 = vmatpush1.bf16.msra.mxu0 0
  %2603 = vmatprep.subr.bf16.mxu0 0
  %2604 = vmatpush1.bf16.msra.mxu0 0
  %2605 = vmatprep.subr.bf16.mxu0 0
  %2606 = vmatpush1.bf16.msra.mxu0 0
  %2607 = vmatprep.subr.bf16.mxu0 0
  %2608 = vmatpush1.bf16.msra.mxu0 0
  %2609 = vmatprep.subr.bf16.mxu0 0
  %2610 = vmatpush1.bf16.msra.mxu0 0
  %2611 = vmatprep.subr.bf16.mxu0 0
  %2612 = vmatpush1.bf16.msra.mxu0 0
  %2613 = vmatprep.subr.bf16.mxu0 0
  %2614 = vmatpush1.bf16.msra.mxu0 0
  %2615 = vmatprep.subr.bf16.mxu0 0
  %2616 = vmatpush1.bf16.msra.mxu0 0
  %2617 = vmatprep.subr.bf16.mxu0 0
  %2618 = vmatpush1.bf16.msra.mxu0 0
  %2619 = vmatprep.subr.bf16.mxu0 0
  %2620 = vmatpush1.bf16.msra.mxu0 0
  %2621 = vmatprep.subr.bf16.mxu0 0
  %2622 = vmatpush1.bf16.msra.mxu0 0
  %2623 = vmatprep.subr.bf16.mxu0 0
  %2624 = vmatpush1.bf16.msra.mxu0 0
  %2625 = vmatprep.mubr.bf16.mxu0 0
  %2626 = vmatmul.mubr.bf16.gmra.mrb[0].mxu0 %v2535
  %v2627 = vpop.f32.mrb[0].mxu0
  %v2628 = vadd.f32 %v2575, %v2627
  %v2629 = vpop.f32.mrb[0].mxu0
  %v2630 = vadd.f32 %v2577, %v2629
  %v2631 = vpop.f32.mrb[0].mxu0
  %v2632 = vadd.f32 %v2579, %v2631
  %v2633 = vpop.f32.mrb[0].mxu0
  %v2634 = vadd.f32 %v2581, %v2633
  %2635 = vmatprep.mubr.bf16.mxu0 0
  %2636 = vmatmul.mubr.bf16.gmra.mrb[0].mxu0 %v2538
  %v2637 = vpop.f32.mrb[0].mxu0
  %v2638 = vadd.f32 %v2585, %v2637
  %v2639 = vpop.f32.mrb[0].mxu0
  %v2640 = vadd.f32 %v2587, %v2639
  %v2641 = vpop.f32.mrb[0].mxu0
  %v2642 = vadd.f32 %v2589, %v2641
  %v2643 = vpop.f32.mrb[0].mxu0
  %v2644 = vadd.f32 %v2591, %v2643
  %2645 = vdwg.mxu0
  %2646 = vmatprep.subr.bf16.mxu0 %v2374
  %2647 = vmatpush1.bf16.msra.mxu0 %v2373
  %2648 = vmatprep.subr.bf16.mxu0 %v2380
  %2649 = vmatpush1.bf16.msra.mxu0 %v2379
  %2650 = vmatprep.subr.bf16.mxu0 %v2386
  %2651 = vmatpush1.bf16.msra.mxu0 %v2385
  %2652 = vmatprep.subr.bf16.mxu0 %v2392
  %2653 = vmatpush1.bf16.msra.mxu0 %v2391
  %2654 = vmatprep.subr.bf16.mxu0 %v2398
  %2655 = vmatpush1.bf16.msra.mxu0 %v2397
  %2656 = vmatprep.subr.bf16.mxu0 %v2404
  %2657 = vmatpush1.bf16.msra.mxu0 %v2403
  %2658 = vmatprep.subr.bf16.mxu0 %v2410
  %2659 = vmatpush1.bf16.msra.mxu0 %v2409
  %2660 = vmatprep.subr.bf16.mxu0 %v2416
  %2661 = vmatpush1.bf16.msra.mxu0 %v2415
  %2662 = vmatprep.subr.bf16.mxu0 %v2422
  %2663 = vmatpush1.bf16.msra.mxu0 %v2421
  %2664 = vmatprep.subr.bf16.mxu0 %v2428
  %2665 = vmatpush1.bf16.msra.mxu0 %v2427
  %2666 = vmatprep.subr.bf16.mxu0 %v2434
  %2667 = vmatpush1.bf16.msra.mxu0 %v2433
  %2668 = vmatprep.subr.bf16.mxu0 %v2440
  %2669 = vmatpush1.bf16.msra.mxu0 %v2439
  %2670 = vmatprep.subr.bf16.mxu0 %v2446
  %2671 = vmatpush1.bf16.msra.mxu0 %v2445
  %2672 = vmatprep.subr.bf16.mxu0 %v2452
  %2673 = vmatpush1.bf16.msra.mxu0 %v2451
  %2674 = vmatprep.subr.bf16.mxu0 %v2458
  %2675 = vmatpush1.bf16.msra.mxu0 %v2457
  %2676 = vmatprep.subr.bf16.mxu0 %v2464
  %2677 = vmatpush1.bf16.msra.mxu0 %v2463
  %2678 = vmatprep.mubr.bf16.mxu0 %v2524
  %2679 = vmatmul.mubr.bf16.gmra.mrb[0].mxu0 %v2523
  %v2680 = vpop.f32.mrb[0].mxu0
  %v2681 = vadd.f32 %v2486, %v2680
  %v2682 = vpop.f32.mrb[0].mxu0
  %v2683 = vadd.f32 %v2486, %v2682
  %v2684 = vpop.f32.mrb[0].mxu0
  %v2685 = vadd.f32 %v2491, %v2684
  %v2686 = vpop.f32.mrb[0].mxu0
  %v2687 = vadd.f32 %v2491, %v2686
  %2688 = vmatprep.mubr.bf16.mxu0 %v2527
  %2689 = vmatmul.mubr.bf16.gmra.mrb[0].mxu0 %v2526
  %v2690 = vpop.f32.mrb[0].mxu0
  %v2691 = vadd.f32 %v2496, %v2690
  %v2692 = vpop.f32.mrb[0].mxu0
  %v2693 = vadd.f32 %v2496, %v2692
  %v2694 = vpop.f32.mrb[0].mxu0
  %v2695 = vadd.f32 %v2501, %v2694
  %v2696 = vpop.f32.mrb[0].mxu0
  %v2697 = vadd.f32 %v2501, %v2696
  %2698 = vdwg.mxu0
  %2699 = vmatprep.subr.bf16.mxu0 %v2470
  %2700 = vmatpush1.bf16.msra.mxu0 %v2469
  %2701 = vmatprep.subr.bf16.mxu0 %v2476
  %2702 = vmatpush1.bf16.msra.mxu0 %v2475
  %2703 = vmatprep.subr.bf16.mxu0 0
  %2704 = vmatpush1.bf16.msra.mxu0 0
  %2705 = vmatprep.subr.bf16.mxu0 0
  %2706 = vmatpush1.bf16.msra.mxu0 0
  %2707 = vmatprep.subr.bf16.mxu0 0
  %2708 = vmatpush1.bf16.msra.mxu0 0
  %2709 = vmatprep.subr.bf16.mxu0 0
  %2710 = vmatpush1.bf16.msra.mxu0 0
  %2711 = vmatprep.subr.bf16.mxu0 0
  %2712 = vmatpush1.bf16.msra.mxu0 0
  %2713 = vmatprep.subr.bf16.mxu0 0
  %2714 = vmatpush1.bf16.msra.mxu0 0
  %2715 = vmatprep.subr.bf16.mxu0 0
  %2716 = vmatpush1.bf16.msra.mxu0 0
  %2717 = vmatprep.subr.bf16.mxu0 0
  %2718 = vmatpush1.bf16.msra.mxu0 0
  %2719 = vmatprep.subr.bf16.mxu0 0
  %2720 = vmatpush1.bf16.msra.mxu0 0
  %2721 = vmatprep.subr.bf16.mxu0 0
  %2722 = vmatpush1.bf16.msra.mxu0 0
  %2723 = vmatprep.subr.bf16.mxu0 0
  %2724 = vmatpush1.bf16.msra.mxu0 0
  %2725 = vmatprep.subr.bf16.mxu0 0
  %2726 = vmatpush1.bf16.msra.mxu0 0
  %2727 = vmatprep.subr.bf16.mxu0 0
  %2728 = vmatpush1.bf16.msra.mxu0 0
  %2729 = vmatprep.subr.bf16.mxu0 0
  %2730 = vmatpush1.bf16.msra.mxu0 0
  %2731 = vmatprep.mubr.bf16.mxu0 0
  %2732 = vmatmul.mubr.bf16.gmra.mrb[0].mxu0 %v2535
  %v2733 = vpop.f32.mrb[0].mxu0
  %v2734 = vadd.f32 %v2681, %v2733
  %v2735 = vpop.f32.mrb[0].mxu0
  %v2736 = vadd.f32 %v2683, %v2735
  %v2737 = vpop.f32.mrb[0].mxu0
  %v2738 = vadd.f32 %v2685, %v2737
  %v2739 = vpop.f32.mrb[0].mxu0
  %v2740 = vadd.f32 %v2687, %v2739
  %2741 = vmatprep.mubr.bf16.mxu0 0
  %2742 = vmatmul.mubr.bf16.gmra.mrb[0].mxu0 %v2538
  %v2743 = vpop.f32.mrb[0].mxu0
  %v2744 = vadd.f32 %v2691, %v2743
  %v2745 = vpop.f32.mrb[0].mxu0
  %v2746 = vadd.f32 %v2693, %v2745
  %v2747 = vpop.f32.mrb[0].mxu0
  %v2748 = vadd.f32 %v2695, %v2747
  %v2749 = vpop.f32.mrb[0].mxu0
  %v2750 = vadd.f32 %v2697, %v2749
  %2751 = vdwg.mxu0
  %2752 = vmatprep.subr.bf16.mxu0 %v2376
  %2753 = vmatpush1.bf16.msra.mxu0 %v2375
  %2754 = vmatprep.subr.bf16.mxu0 %v2382
  %2755 = vmatpush1.bf16.msra.mxu0 %v2381
  %2756 = vmatprep.subr.bf16.mxu0 %v2388
  %2757 = vmatpush1.bf16.msra.mxu0 %v2387
  %2758 = vmatprep.subr.bf16.mxu0 %v2394
  %2759 = vmatpush1.bf16.msra.mxu0 %v2393
  %2760 = vmatprep.subr.bf16.mxu0 %v2400
  %2761 = vmatpush1.bf16.msra.mxu0 %v2399
  %2762 = vmatprep.subr.bf16.mxu0 %v2406
  %2763 = vmatpush1.bf16.msra.mxu0 %v2405
  %2764 = vmatprep.subr.bf16.mxu0 %v2412
  %2765 = vmatpush1.bf16.msra.mxu0 %v2411
  %2766 = vmatprep.subr.bf16.mxu0 %v2418
  %2767 = vmatpush1.bf16.msra.mxu0 %v2417
  %2768 = vmatprep.subr.bf16.mxu0 %v2424
  %2769 = vmatpush1.bf16.msra.mxu0 %v2423
  %2770 = vmatprep.subr.bf16.mxu0 %v2430
  %2771 = vmatpush1.bf16.msra.mxu0 %v2429
  %2772 = vmatprep.subr.bf16.mxu0 %v2436
  %2773 = vmatpush1.bf16.msra.mxu0 %v2435
  %2774 = vmatprep.subr.bf16.mxu0 %v2442
  %2775 = vmatpush1.bf16.msra.mxu0 %v2441
  %2776 = vmatprep.subr.bf16.mxu0 %v2448
  %2777 = vmatpush1.bf16.msra.mxu0 %v2447
  %2778 = vmatprep.subr.bf16.mxu0 %v2454
  %2779 = vmatpush1.bf16.msra.mxu0 %v2453
  %2780 = vmatprep.subr.bf16.mxu0 %v2460
  %2781 = vmatpush1.bf16.msra.mxu0 %v2459
  %2782 = vmatprep.subr.bf16.mxu0 %v2466
  %2783 = vmatpush1.bf16.msra.mxu0 %v2465
  %2784 = vmatprep.mubr.bf16.mxu0 %v2524
  %2785 = vmatmul.mubr.bf16.gmra.mrb[0].mxu0 %v2523
  %v2786 = vpop.f32.mrb[0].mxu0
  %v2787 = vadd.f32 %v2486, %v2786
  %v2788 = vpop.f32.mrb[0].mxu0
  %v2789 = vadd.f32 %v2486, %v2788
  %v2790 = vpop.f32.mrb[0].mxu0
  %v2791 = vadd.f32 %v2491, %v2790
  %v2792 = vpop.f32.mrb[0].mxu0
  %v2793 = vadd.f32 %v2491, %v2792
  %2794 = vmatprep.mubr.bf16.mxu0 %v2527
  %2795 = vmatmul.mubr.bf16.gmra.mrb[0].mxu0 %v2526
  %v2796 = vpop.f32.mrb[0].mxu0
  %v2797 = vadd.f32 %v2496, %v2796
  %v2798 = vpop.f32.mrb[0].mxu0
  %v2799 = vadd.f32 %v2496, %v2798
  %v2800 = vpop.f32.mrb[0].mxu0
  %v2801 = vadd.f32 %v2501, %v2800
  %v2802 = vpop.f32.mrb[0].mxu0
  %v2803 = vadd.f32 %v2501, %v2802
  %2804 = vdwg.mxu0
  %2805 = vmatprep.subr.bf16.mxu0 %v2472
  %2806 = vmatpush1.bf16.msra.mxu0 %v2471
  %2807 = vmatprep.subr.bf16.mxu0 %v2478
  %2808 = vmatpush1.bf16.msra.mxu0 %v2477
  %2809 = vmatprep.subr.bf16.mxu0 0
  %2810 = vmatpush1.bf16.msra.mxu0 0
  %2811 = vmatprep.subr.bf16.mxu0 0
  %2812 = vmatpush1.bf16.msra.mxu0 0
  %2813 = vmatprep.subr.bf16.mxu0 0
  %2814 = vmatpush1.bf16.msra.mxu0 0
  %2815 = vmatprep.subr.bf16.mxu0 0
  %2816 = vmatpush1.bf16.msra.mxu0 0
  %2817 = vmatprep.subr.bf16.mxu0 0
  %2818 = vmatpush1.bf16.msra.mxu0 0
  %2819 = vmatprep.subr.bf16.mxu0 0
  %2820 = vmatpush1.bf16.msra.mxu0 0
  %2821 = vmatprep.subr.bf16.mxu0 0
  %2822 = vmatpush1.bf16.msra.mxu0 0
  %2823 = vmatprep.subr.bf16.mxu0 0
  %2824 = vmatpush1.bf16.msra.mxu0 0
  %2825 = vmatprep.subr.bf16.mxu0 0
  %2826 = vmatpush1.bf16.msra.mxu0 0
  %2827 = vmatprep.subr.bf16.mxu0 0
  %2828 = vmatpush1.bf16.msra.mxu0 0
  %2829 = vmatprep.subr.bf16.mxu0 0
  %2830 = vmatpush1.bf16.msra.mxu0 0
  %2831 = vmatprep.subr.bf16.mxu0 0
  %2832 = vmatpush1.bf16.msra.mxu0 0
  %2833 = vmatprep.subr.bf16.mxu0 0
  %2834 = vmatpush1.bf16.msra.mxu0 0
  %2835 = vmatprep.subr.bf16.mxu0 0
  %2836 = vmatpush1.bf16.msra.mxu0 0
  %2837 = vmatprep.mubr.bf16.mxu0 0
  %2838 = vmatmul.mubr.bf16.gmra.mrb[0].mxu0 %v2535
  %v2839 = vpop.f32.mrb[0].mxu0
  %v2840 = vadd.f32 %v2787, %v2839
  %v2841 = vpop.f32.mrb[0].mxu0
  %v2842 = vadd.f32 %v2789, %v2841
  %v2843 = vpop.f32.mrb[0].mxu0
  %v2844 = vadd.f32 %v2791, %v2843
  %v2845 = vpop.f32.mrb[0].mxu0
  %v2846 = vadd.f32 %v2793, %v2845
  %2847 = vmatprep.mubr.bf16.mxu0 0
  %2848 = vmatmul.mubr.bf16.gmra.mrb[0].mxu0 %v2538
  %v2849 = vpop.f32.mrb[0].mxu0
  %v2850 = vadd.f32 %v2797, %v2849
  %v2851 = vpop.f32.mrb[0].mxu0
  %v2852 = vadd.f32 %v2799, %v2851
  %v2853 = vpop.f32.mrb[0].mxu0
  %v2854 = vadd.f32 %v2801, %v2853
  %v2855 = vpop.f32.mrb[0].mxu0
  %v2856 = vadd.f32 %v2803, %v2855
  %2857 = vdwg.mxu0
  %vm2858 = vcmp.ne.f32.partialorder %v60, 0.0
  %v2859 = vsel %vm2858, 1, 0
  %v2860 = vlaneseq
  %v2861 = vshrl.u32 %v2860, 7
  %v2862 = vsub.s32 0, %v2861
  %v2863 = vrot.slane %v2859, %v2862
  %v2864 = vlaneseq
  %v2865 = vshrl.u32 %v2864, 7
  %v2866 = vsub.s32 1, %v2865
  %v2867 = vrot.slane %v2859, %v2866
  %v2868 = vlaneseq
  %v2869 = vshrl.u32 %v2868, 7
  %v2870 = vsub.s32 2, %v2869
  %v2871 = vrot.slane %v2859, %v2870
  %v2872 = vlaneseq
  %v2873 = vshrl.u32 %v2872, 7
  %v2874 = vsub.s32 3, %v2873
  %v2875 = vrot.slane %v2859, %v2874
  %v2876 = vlaneseq
  %v2877 = vshrl.u32 %v2876, 7
  %v2878 = vsub.s32 4, %v2877
  %v2879 = vrot.slane %v2859, %v2878
  %v2880 = vlaneseq
  %v2881 = vshrl.u32 %v2880, 7
  %v2882 = vsub.s32 5, %v2881
  %v2883 = vrot.slane %v2859, %v2882
  %vm2884 = vcmp.eq.s32.totalorder %v2863, 1
  %vm2885 = vcmp.eq.s32.totalorder %v2867, 1
  %vm2886 = vcmp.eq.s32.totalorder %v2871, 1
  %vm2887 = vcmp.eq.s32.totalorder %v2875, 1
  %vm2888 = vcmp.eq.s32.totalorder %v2879, 1
  %vm2889 = vcmp.eq.s32.totalorder %v2883, 1
  %v2890 = vsel %vm2884, %v2628, 0.0
  %v2891 = vsel %vm2885, %v2630, 0.0
  %v2892 = vsel %vm2886, %v2734, 0.0
  %v2893 = vsel %vm2887, %v2736, 0.0
  %v2894 = vsel %vm2888, %v2840, 0.0
  %v2895 = vsel %vm2889, %v2842, 0.0
  %v2896 = vsel %vm2884, %v2632, 0.0
  %v2897 = vsel %vm2885, %v2634, 0.0
  %v2898 = vsel %vm2886, %v2738, 0.0
  %v2899 = vsel %vm2887, %v2740, 0.0
  %v2900 = vsel %vm2888, %v2844, 0.0
  %v2901 = vsel %vm2889, %v2846, 0.0
  %v2902 = vsel %vm2884, %v2638, 0.0
  %v2903 = vsel %vm2885, %v2640, 0.0
  %v2904 = vsel %vm2886, %v2744, 0.0
  %v2905 = vsel %vm2887, %v2746, 0.0
  %v2906 = vsel %vm2888, %v2850, 0.0
  %v2907 = vsel %vm2889, %v2852, 0.0
  %v2908 = vsel %vm2884, %v2642, 0.0
  %v2909 = vsel %vm2885, %v2644, 0.0
  %v2910 = vsel %vm2886, %v2748, 0.0
  %v2911 = vsel %vm2887, %v2750, 0.0
  %v2912 = vsel %vm2888, %v2854, 0.0
  %v2913 = vsel %vm2889, %v2856, 0.0
  %v2914 = vadd.f32 %v2890, %v2891
  %v2915 = vadd.f32 %v2914, %v2892
  %v2916 = vadd.f32 %v2915, %v2893
  %v2917 = vadd.f32 %v2916, %v2894
  %v2918 = vadd.f32 %v2917, %v2895
  %2919 = vadd.xlane.f32.xlu0 %v2918
  %v2920 = vpop.xlane.xlu0 %2919
  %v2921 = vadd.f32 %v2896, %v2897
  %v2922 = vadd.f32 %v2921, %v2898
  %v2923 = vadd.f32 %v2922, %v2899
  %v2924 = vadd.f32 %v2923, %v2900
  %v2925 = vadd.f32 %v2924, %v2901
  %2926 = vadd.xlane.f32.xlu0 %v2925
  %v2927 = vpop.xlane.xlu0 %2926
  %v2928 = vadd.f32 %v2902, %v2903
  %v2929 = vadd.f32 %v2928, %v2904
  %v2930 = vadd.f32 %v2929, %v2905
  %v2931 = vadd.f32 %v2930, %v2906
  %v2932 = vadd.f32 %v2931, %v2907
  %2933 = vadd.xlane.f32.xlu0 %v2932
  %v2934 = vpop.xlane.xlu0 %2933
  %v2935 = vadd.f32 %v2908, %v2909
  %v2936 = vadd.f32 %v2935, %v2910
  %v2937 = vadd.f32 %v2936, %v2911
  %v2938 = vadd.f32 %v2937, %v2912
  %v2939 = vadd.f32 %v2938, %v2913
  %2940 = vadd.xlane.f32.xlu0 %v2939
  %v2941 = vpop.xlane.xlu0 %2940
  %v2942 = vmul.f32 %v2920, 0.0034722222
  %v2943 = vmul.f32 %v2927, 0.0034722222
  %v2944 = vmul.f32 %v2934, 0.0034722222
  %v2945 = vmul.f32 %v2941, 0.0034722222
  %v2946 = vmul.f32 %v2890, %v2890
  %v2947 = vmul.f32 %v2891, %v2891
  %v2948 = vmul.f32 %v2892, %v2892
  %v2949 = vmul.f32 %v2893, %v2893
  %v2950 = vmul.f32 %v2894, %v2894
  %v2951 = vmul.f32 %v2895, %v2895
  %v2952 = vmul.f32 %v2896, %v2896
  %v2953 = vmul.f32 %v2897, %v2897
  %v2954 = vmul.f32 %v2898, %v2898
  %v2955 = vmul.f32 %v2899, %v2899
  %v2956 = vmul.f32 %v2900, %v2900
  %v2957 = vmul.f32 %v2901, %v2901
  %v2958 = vmul.f32 %v2902, %v2902
  %v2959 = vmul.f32 %v2903, %v2903
  %v2960 = vmul.f32 %v2904, %v2904
  %v2961 = vmul.f32 %v2905, %v2905
  %v2962 = vmul.f32 %v2906, %v2906
  %v2963 = vmul.f32 %v2907, %v2907
  %v2964 = vmul.f32 %v2908, %v2908
  %v2965 = vmul.f32 %v2909, %v2909
  %v2966 = vmul.f32 %v2910, %v2910
  %v2967 = vmul.f32 %v2911, %v2911
  %v2968 = vmul.f32 %v2912, %v2912
  %v2969 = vmul.f32 %v2913, %v2913
  %v2970 = vadd.f32 %v2946, %v2947
  %v2971 = vadd.f32 %v2970, %v2948
  %v2972 = vadd.f32 %v2971, %v2949
  %v2973 = vadd.f32 %v2972, %v2950
  %v2974 = vadd.f32 %v2973, %v2951
  %2975 = vadd.xlane.f32.xlu0 %v2974
  %v2976 = vpop.xlane.xlu0 %2975
  %v2977 = vadd.f32 %v2952, %v2953
  %v2978 = vadd.f32 %v2977, %v2954
  %v2979 = vadd.f32 %v2978, %v2955
  %v2980 = vadd.f32 %v2979, %v2956
  %v2981 = vadd.f32 %v2980, %v2957
  %2982 = vadd.xlane.f32.xlu0 %v2981
  %v2983 = vpop.xlane.xlu0 %2982
  %v2984 = vadd.f32 %v2958, %v2959
  %v2985 = vadd.f32 %v2984, %v2960
  %v2986 = vadd.f32 %v2985, %v2961
  %v2987 = vadd.f32 %v2986, %v2962
  %v2988 = vadd.f32 %v2987, %v2963
  %2989 = vadd.xlane.f32.xlu0 %v2988
  %v2990 = vpop.xlane.xlu0 %2989
  %v2991 = vadd.f32 %v2964, %v2965
  %v2992 = vadd.f32 %v2991, %v2966
  %v2993 = vadd.f32 %v2992, %v2967
  %v2994 = vadd.f32 %v2993, %v2968
  %v2995 = vadd.f32 %v2994, %v2969
  %2996 = vadd.xlane.f32.xlu0 %v2995
  %v2997 = vpop.xlane.xlu0 %2996
  %v2998 = vmul.f32 %v2976, 0.0034722222
  %v2999 = vmul.f32 %v2983, 0.0034722222
  %v3000 = vmul.f32 %v2990, 0.0034722222
  %v3001 = vmul.f32 %v2997, 0.0034722222
  %v3002 = vmul.f32 %v2942, %v2942
  %v3003 = vmul.f32 %v2943, %v2943
  %v3004 = vmul.f32 %v2944, %v2944
  %v3005 = vmul.f32 %v2945, %v2945
  %v3006 = vsub.f32 %v2998, %v3002
  %v3007 = vsub.f32 %v2999, %v3003
  %v3008 = vsub.f32 %v3000, %v3004
  %v3009 = vsub.f32 %v3001, %v3005
  %v3010 = vmax.f32 %v3006, 0.0
  %v3011 = vmax.f32 %v3007, 0.0
  %v3012 = vmax.f32 %v3008, 0.0
  %v3013 = vmax.f32 %v3009, 0.0
  %v3014 = vsub.f32 %v2628, %v2942
  %v3015 = vsub.f32 %v2630, %v2942
  %v3016 = vsub.f32 %v2734, %v2942
  %v3017 = vsub.f32 %v2736, %v2942
  %v3018 = vsub.f32 %v2840, %v2942
  %v3019 = vsub.f32 %v2842, %v2942
  %v3020 = vsub.f32 %v2632, %v2943
  %v3021 = vsub.f32 %v2634, %v2943
  %v3022 = vsub.f32 %v2738, %v2943
  %v3023 = vsub.f32 %v2740, %v2943
  %v3024 = vsub.f32 %v2844, %v2943
  %v3025 = vsub.f32 %v2846, %v2943
  %v3026 = vsub.f32 %v2638, %v2944
  %v3027 = vsub.f32 %v2640, %v2944
  %v3028 = vsub.f32 %v2744, %v2944
  %v3029 = vsub.f32 %v2746, %v2944
  %v3030 = vsub.f32 %v2850, %v2944
  %v3031 = vsub.f32 %v2852, %v2944
  %v3032 = vsub.f32 %v2642, %v2945
  %v3033 = vsub.f32 %v2644, %v2945
  %v3034 = vsub.f32 %v2748, %v2945
  %v3035 = vsub.f32 %v2750, %v2945
  %v3036 = vsub.f32 %v2854, %v2945
  %v3037 = vsub.f32 %v2856, %v2945
  %v3038 = vld [vmem:[%s8] sm:$0xff]
  %v3039 = vld [vmem:[%s8 + $0x8] sm:$0xff]
  %v3040 = vld [vmem:[%s8 + $0x10] sm:$0xff]
  %v3041 = vld [vmem:[%s8 + $0x18] sm:$0xff]
  %v3042 = vadd.f32 %v3010, 1e-05
  %v3043 = vadd.f32 %v3011, 1e-05
  %v3044 = vadd.f32 %v3012, 1e-05
  %v3045 = vadd.f32 %v3013, 1e-05
  %v3046 = vrsqrt.pop %v3042
  %v3047 = vrsqrt.pop %v3043
  %v3048 = vrsqrt.pop %v3044
  %v3049 = vrsqrt.pop %v3045
  %v3050 = vmul.f32 %v3038, %v3046
  %v3051 = vmul.f32 %v3039, %v3047
  %v3052 = vmul.f32 %v3040, %v3048
  %v3053 = vmul.f32 %v3041, %v3049
  %3055 = vset.pattern.permute.xlu0 0
  %3056 = vperm.xlu0 %3055, %v3050
  %v3057 = vpop.permute.xlu0 %3056
  %3060 = vset.pattern.permute.xlu0 0
  %3061 = vperm.xlu0 %3060, %v3051
  %v3062 = vpop.permute.xlu0 %3061
  %3065 = vset.pattern.permute.xlu0 0
  %3066 = vperm.xlu0 %3065, %v3052
  %v3067 = vpop.permute.xlu0 %3066
  %3070 = vset.pattern.permute.xlu0 0
  %3071 = vperm.xlu0 %3070, %v3053
  %v3072 = vpop.permute.xlu0 %3071
  %v3074 = vmul.f32 %v3014, %v3057
  %v3075 = vmul.f32 %v3015, %v3057
  %v3076 = vmul.f32 %v3016, %v3057
  %v3077 = vmul.f32 %v3017, %v3057
  %v3078 = vmul.f32 %v3018, %v3057
  %v3079 = vmul.f32 %v3019, %v3057
  %v3080 = vmul.f32 %v3020, %v3062
  %v3081 = vmul.f32 %v3021, %v3062
  %v3082 = vmul.f32 %v3022, %v3062
  %v3083 = vmul.f32 %v3023, %v3062
  %v3084 = vmul.f32 %v3024, %v3062
  %v3085 = vmul.f32 %v3025, %v3062
  %v3086 = vmul.f32 %v3026, %v3067
  %v3087 = vmul.f32 %v3027, %v3067
  %v3088 = vmul.f32 %v3028, %v3067
  %v3089 = vmul.f32 %v3029, %v3067
  %v3090 = vmul.f32 %v3030, %v3067
  %v3091 = vmul.f32 %v3031, %v3067
  %v3092 = vmul.f32 %v3032, %v3072
  %v3093 = vmul.f32 %v3033, %v3072
  %v3094 = vmul.f32 %v3034, %v3072
  %v3095 = vmul.f32 %v3035, %v3072
  %v3096 = vmul.f32 %v3036, %v3072
  %v3097 = vmul.f32 %v3037, %v3072
  %v3098 = vld [vmem:[%s9] sm:$0xff]
  %v3099 = vld [vmem:[%s9 + $0x8] sm:$0xff]
  %v3100 = vld [vmem:[%s9 + $0x10] sm:$0xff]
  %v3101 = vld [vmem:[%s9 + $0x18] sm:$0xff]
  %3103 = vset.pattern.permute.xlu0 0
  %3104 = vperm.xlu0 %3103, %v3098
  %v3105 = vpop.permute.xlu0 %3104
  %3108 = vset.pattern.permute.xlu0 0
  %3109 = vperm.xlu0 %3108, %v3099
  %v3110 = vpop.permute.xlu0 %3109
  %3113 = vset.pattern.permute.xlu0 0
  %3114 = vperm.xlu0 %3113, %v3100
  %v3115 = vpop.permute.xlu0 %3114
  %3118 = vset.pattern.permute.xlu0 0
  %3119 = vperm.xlu0 %3118, %v3101
  %v3120 = vpop.permute.xlu0 %3119
  %v3122 = vadd.f32 %v3074, %v3105
  %v3123 = vadd.f32 %v3075, %v3105
  %v3124 = vadd.f32 %v3076, %v3105
  %v3125 = vadd.f32 %v3077, %v3105
  %v3126 = vadd.f32 %v3078, %v3105
  %v3127 = vadd.f32 %v3079, %v3105
  %v3128 = vadd.f32 %v3080, %v3110
  %v3129 = vadd.f32 %v3081, %v3110
  %v3130 = vadd.f32 %v3082, %v3110
  %v3131 = vadd.f32 %v3083, %v3110
  %v3132 = vadd.f32 %v3084, %v3110
  %v3133 = vadd.f32 %v3085, %v3110
  %v3134 = vadd.f32 %v3086, %v3115
  %v3135 = vadd.f32 %v3087, %v3115
  %v3136 = vadd.f32 %v3088, %v3115
  %v3137 = vadd.f32 %v3089, %v3115
  %v3138 = vadd.f32 %v3090, %v3115
  %v3139 = vadd.f32 %v3091, %v3115
  %v3140 = vadd.f32 %v3092, %v3120
  %v3141 = vadd.f32 %v3093, %v3120
  %v3142 = vadd.f32 %v3094, %v3120
  %v3143 = vadd.f32 %v3095, %v3120
  %v3144 = vadd.f32 %v3096, %v3120
  %v3145 = vadd.f32 %v3097, %v3120
  %v3146 = vsel %vm2884, %v3122, 0.0
  %v3147 = vsel %vm2885, %v3123, 0.0
  %v3148 = vsel %vm2886, %v3124, 0.0
  %v3149 = vsel %vm2887, %v3125, 0.0
  %v3150 = vsel %vm2888, %v3126, 0.0
  %v3151 = vsel %vm2889, %v3127, 0.0
  %v3152 = vsel %vm2884, %v3128, 0.0
  %v3153 = vsel %vm2885, %v3129, 0.0
  %v3154 = vsel %vm2886, %v3130, 0.0
  %v3155 = vsel %vm2887, %v3131, 0.0
  %v3156 = vsel %vm2888, %v3132, 0.0
  %v3157 = vsel %vm2889, %v3133, 0.0
  %v3158 = vsel %vm2884, %v3134, 0.0
  %v3159 = vsel %vm2885, %v3135, 0.0
  %v3160 = vsel %vm2886, %v3136, 0.0
  %v3161 = vsel %vm2887, %v3137, 0.0
  %v3162 = vsel %vm2888, %v3138, 0.0
  %v3163 = vsel %vm2889, %v3139, 0.0
  %v3164 = vsel %vm2884, %v3140, 0.0
  %v3165 = vsel %vm2885, %v3141, 0.0
  %v3166 = vsel %vm2886, %v3142, 0.0
  %v3167 = vsel %vm2887, %v3143, 0.0
  %v3168 = vsel %vm2888, %v3144, 0.0
  %v3169 = vsel %vm2889, %v3145, 0.0
  %v3170 = vpack.c.bf16 %v3152, %v3146
  %v3171 = vpack.c.bf16 %v3153, %v3147
  %v3172 = vpack.c.bf16 %v3154, %v3148
  %v3173 = vpack.c.bf16 %v3155, %v3149
  %v3174 = vpack.c.bf16 %v3156, %v3150
  %v3175 = vpack.c.bf16 %v3157, %v3151
  %v3176 = vpack.c.bf16 %v3164, %v3158
  %v3177 = vpack.c.bf16 %v3165, %v3159
  %v3178 = vpack.c.bf16 %v3166, %v3160
  %v3179 = vpack.c.bf16 %v3167, %v3161
  %v3180 = vpack.c.bf16 %v3168, %v3162
  %v3181 = vpack.c.bf16 %v3169, %v3163
  %3182 = vst [vmem:[#allocation5 + $0x8] sm:$0xff] %v3170
  %3183 = vst [vmem:[#allocation5 + $0x10] sm:$0xff] %v3171
  %3184 = vst [vmem:[#allocation5 + $0x18] sm:$0xff] %v3172
  %3185 = vst [vmem:[#allocation5 + $0x20] sm:$0xff] %v3173
  %3186 = vst [vmem:[#allocation5 + $0x28] sm:$0xff] %v3174
  %3187 = vst [vmem:[#allocation5 + $0x30] sm:$0xff] %v3175
  %3188 = vst [vmem:[#allocation5 + $0x48] sm:$0xff] %v3176
  %3189 = vst [vmem:[#allocation5 + $0x50] sm:$0xff] %v3177
  %3190 = vst [vmem:[#allocation5 + $0x58] sm:$0xff] %v3178
  %3191 = vst [vmem:[#allocation5 + $0x60] sm:$0xff] %v3179
  %3192 = vst [vmem:[#allocation5 + $0x68] sm:$0xff] %v3180
  %3193 = vst [vmem:[#allocation5 + $0x70] sm:$0xff] %v3181
  %v3194 = vld [vmem:[#allocation5] sm:$0xff]
  %v3195 = vld [vmem:[#allocation5 + $0x8] sm:$0xff]
  %v3196 = vld [vmem:[#allocation5 + $0x10] sm:$0xff]
  %v3197 = vld [vmem:[#allocation5 + $0x18] sm:$0xff]
  %v3198 = vld [vmem:[#allocation5 + $0x20] sm:$0xff]
  %v3199 = vld [vmem:[#allocation5 + $0x28] sm:$0xff]
  %v3200 = vld [vmem:[#allocation5 + $0x30] sm:$0xff]
  %v3201 = vld [vmem:[#allocation5 + $0x40] sm:$0xff]
  %v3202 = vld [vmem:[#allocation5 + $0x48] sm:$0xff]
  %v3203 = vld [vmem:[#allocation5 + $0x50] sm:$0xff]
  %v3204 = vld [vmem:[#allocation5 + $0x58] sm:$0xff]
  %v3205 = vld [vmem:[#allocation5 + $0x60] sm:$0xff]
  %v3206 = vld [vmem:[#allocation5 + $0x68] sm:$0xff]
  %v3207 = vld [vmem:[#allocation5 + $0x70] sm:$0xff]
  %3222 = vrot.lane.b32.xlu0 %v3194, 38
  %v3223 = vpop.permute.xlu0 %3222
  %3224 = vrot.lane.b32.xlu0 %v3195, 38
  %v3225 = vpop.permute.xlu0 %3224
  %3226 = vrot.lane.b32.xlu0 %v3196, 38
  %v3227 = vpop.permute.xlu0 %3226
  %3228 = vrot.lane.b32.xlu0 %v3197, 38
  %v3229 = vpop.permute.xlu0 %3228
  %3230 = vrot.lane.b32.xlu0 %v3198, 38
  %v3231 = vpop.permute.xlu0 %3230
  %3232 = vrot.lane.b32.xlu0 %v3199, 38
  %v3233 = vpop.permute.xlu0 %3232
  %3234 = vrot.lane.b32.xlu0 %v3200, 38
  %v3235 = vpop.permute.xlu0 %3234
  %3236 = vrot.lane.b32.xlu0 %v3201, 38
  %v3237 = vpop.permute.xlu0 %3236
  %3238 = vrot.lane.b32.xlu0 %v3202, 38
  %v3239 = vpop.permute.xlu0 %3238
  %3240 = vrot.lane.b32.xlu0 %v3203, 38
  %v3241 = vpop.permute.xlu0 %3240
  %3242 = vrot.lane.b32.xlu0 %v3204, 38
  %v3243 = vpop.permute.xlu0 %3242
  %3244 = vrot.lane.b32.xlu0 %v3205, 38
  %v3245 = vpop.permute.xlu0 %3244
  %3246 = vrot.lane.b32.xlu0 %v3206, 38
  %v3247 = vpop.permute.xlu0 %3246
  %3248 = vrot.lane.b32.xlu0 %v3207, 38
  %v3249 = vpop.permute.xlu0 %3248
  %vm3250 = vcmask 310272
  %v3251 = vsel %vm3250, %v3223, %v3225
  %v3252 = vsel %vm3250, %v3225, %v3227
  %v3253 = vsel %vm3250, %v3227, %v3229
  %v3254 = vsel %vm3250, %v3229, %v3231
  %v3255 = vsel %vm3250, %v3231, %v3233
  %v3256 = vsel %vm3250, %v3233, %v3235
  %v3257 = vsel %vm3250, %v3237, %v3239
  %v3258 = vsel %vm3250, %v3239, %v3241
  %v3259 = vsel %vm3250, %v3241, %v3243
  %v3260 = vsel %vm3250, %v3243, %v3245
  %v3261 = vsel %vm3250, %v3245, %v3247
  %v3262 = vsel %vm3250, %v3247, %v3249
  %3275 = vst [vmem:[#allocation3] sm:$0xff] %v3251
  %3276 = vst [vmem:[#allocation3 + $0x8] sm:$0xff] %v3252
  %3277 = vst [vmem:[#allocation3 + $0x10] sm:$0xff] %v3253
  %3278 = vst [vmem:[#allocation3 + $0x18] sm:$0xff] %v3254
  %3279 = vst [vmem:[#allocation3 + $0x20] sm:$0xff] %v3255
  %3280 = vst [vmem:[#allocation3 + $0x28] sm:$0xff] %v3256
  %3281 = vst [vmem:[#allocation3 + $0x30] sm:$0xff] %v3257
  %3282 = vst [vmem:[#allocation3 + $0x38] sm:$0xff] %v3258
  %3283 = vst [vmem:[#allocation3 + $0x40] sm:$0xff] %v3259
  %3284 = vst [vmem:[#allocation3 + $0x48] sm:$0xff] %v3260
  %3285 = vst [vmem:[#allocation3 + $0x50] sm:$0xff] %v3261
  %3286 = vst [vmem:[#allocation3 + $0x58] sm:$0xff] %v3262
  %v3287 = vld [vmem:[#allocation5] sm:$0xff]
  %v3288 = vld [vmem:[#allocation5 + $0x8] sm:$0xff]
  %v3289 = vld [vmem:[#allocation5 + $0x10] sm:$0xff]
  %v3290 = vld [vmem:[#allocation5 + $0x18] sm:$0xff]
  %v3291 = vld [vmem:[#allocation5 + $0x20] sm:$0xff]
  %v3292 = vld [vmem:[#allocation5 + $0x28] sm:$0xff]
  %v3293 = vld [vmem:[#allocation5 + $0x30] sm:$0xff]
  %v3294 = vld [vmem:[#allocation5 + $0x40] sm:$0xff]
  %v3295 = vld [vmem:[#allocation5 + $0x48] sm:$0xff]
  %v3296 = vld [vmem:[#allocation5 + $0x50] sm:$0xff]
  %v3297 = vld [vmem:[#allocation5 + $0x58] sm:$0xff]
  %v3298 = vld [vmem:[#allocation5 + $0x60] sm:$0xff]
  %v3299 = vld [vmem:[#allocation5 + $0x68] sm:$0xff]
  %v3300 = vld [vmem:[#allocation5 + $0x70] sm:$0xff]
  %3315 = vrot.lane.b32.xlu0 %v3287, 37
  %v3316 = vpop.permute.xlu0 %3315
  %3317 = vrot.lane.b32.xlu0 %v3288, 37
  %v3318 = vpop.permute.xlu0 %3317
  %3319 = vrot.lane.b32.xlu0 %v3289, 37
  %v3320 = vpop.permute.xlu0 %3319
  %3321 = vrot.lane.b32.xlu0 %v3290, 37
  %v3322 = vpop.permute.xlu0 %3321
  %3323 = vrot.lane.b32.xlu0 %v3291, 37
  %v3324 = vpop.permute.xlu0 %3323
  %3325 = vrot.lane.b32.xlu0 %v3292, 37
  %v3326 = vpop.permute.xlu0 %3325
  %3327 = vrot.lane.b32.xlu0 %v3293, 37
  %v3328 = vpop.permute.xlu0 %3327
  %3329 = vrot.lane.b32.xlu0 %v3294, 37
  %v3330 = vpop.permute.xlu0 %3329
  %3331 = vrot.lane.b32.xlu0 %v3295, 37
  %v3332 = vpop.permute.xlu0 %3331
  %3333 = vrot.lane.b32.xlu0 %v3296, 37
  %v3334 = vpop.permute.xlu0 %3333
  %3335 = vrot.lane.b32.xlu0 %v3297, 37
  %v3336 = vpop.permute.xlu0 %3335
  %3337 = vrot.lane.b32.xlu0 %v3298, 37
  %v3338 = vpop.permute.xlu0 %3337
  %3339 = vrot.lane.b32.xlu0 %v3299, 37
  %v3340 = vpop.permute.xlu0 %3339
  %3341 = vrot.lane.b32.xlu0 %v3300, 37
  %v3342 = vpop.permute.xlu0 %3341
  %vm3343 = vcmask 302080
  %v3344 = vsel %vm3343, %v3316, %v3318
  %v3345 = vsel %vm3343, %v3318, %v3320
  %v3346 = vsel %vm3343, %v3320, %v3322
  %v3347 = vsel %vm3343, %v3322, %v3324
  %v3348 = vsel %vm3343, %v3324, %v3326
  %v3349 = vsel %vm3343, %v3326, %v3328
  %v3350 = vsel %vm3343, %v3330, %v3332
  %v3351 = vsel %vm3343, %v3332, %v3334
  %v3352 = vsel %vm3343, %v3334, %v3336
  %v3353 = vsel %vm3343, %v3336, %v3338
  %v3354 = vsel %vm3343, %v3338, %v3340
  %v3355 = vsel %vm3343, %v3340, %v3342
  %3368 = vst [vmem:[#allocation3 + $0x60] sm:$0xff] %v3344
  %3369 = vst [vmem:[#allocation3 + $0x68] sm:$0xff] %v3345
  %3370 = vst [vmem:[#allocation3 + $0x70] sm:$0xff] %v3346
  %3371 = vst [vmem:[#allocation3 + $0x78] sm:$0xff] %v3347
  %3372 = vst [vmem:[#allocation3 + $0x80] sm:$0xff] %v3348
  %3373 = vst [vmem:[#allocation3 + $0x88] sm:$0xff] %v3349
  %3374 = vst [vmem:[#allocation3 + $0x90] sm:$0xff] %v3350
  %3375 = vst [vmem:[#allocation3 + $0x98] sm:$0xff] %v3351
  %3376 = vst [vmem:[#allocation3 + $0xa0] sm:$0xff] %v3352
  %3377 = vst [vmem:[#allocation3 + $0xa8] sm:$0xff] %v3353
  %3378 = vst [vmem:[#allocation3 + $0xb0] sm:$0xff] %v3354
  %3379 = vst [vmem:[#allocation3 + $0xb8] sm:$0xff] %v3355
  %v3380 = vld [vmem:[#allocation5] sm:$0xff]
  %v3381 = vld [vmem:[#allocation5 + $0x8] sm:$0xff]
  %v3382 = vld [vmem:[#allocation5 + $0x10] sm:$0xff]
  %v3383 = vld [vmem:[#allocation5 + $0x18] sm:$0xff]
  %v3384 = vld [vmem:[#allocation5 + $0x20] sm:$0xff]
  %v3385 = vld [vmem:[#allocation5 + $0x28] sm:$0xff]
  %v3386 = vld [vmem:[#allocation5 + $0x30] sm:$0xff]
  %v3387 = vld [vmem:[#allocation5 + $0x40] sm:$0xff]
  %v3388 = vld [vmem:[#allocation5 + $0x48] sm:$0xff]
  %v3389 = vld [vmem:[#allocation5 + $0x50] sm:$0xff]
  %v3390 = vld [vmem:[#allocation5 + $0x58] sm:$0xff]
  %v3391 = vld [vmem:[#allocation5 + $0x60] sm:$0xff]
  %v3392 = vld [vmem:[#allocation5 + $0x68] sm:$0xff]
  %v3393 = vld [vmem:[#allocation5 + $0x70] sm:$0xff]
  %3408 = vrot.lane.b32.xlu0 %v3380, 36
  %v3409 = vpop.permute.xlu0 %3408
  %3410 = vrot.lane.b32.xlu0 %v3381, 36
  %v3411 = vpop.permute.xlu0 %3410
  %3412 = vrot.lane.b32.xlu0 %v3382, 36
  %v3413 = vpop.permute.xlu0 %3412
  %3414 = vrot.lane.b32.xlu0 %v3383, 36
  %v3415 = vpop.permute.xlu0 %3414
  %3416 = vrot.lane.b32.xlu0 %v3384, 36
  %v3417 = vpop.permute.xlu0 %3416
  %3418 = vrot.lane.b32.xlu0 %v3385, 36
  %v3419 = vpop.permute.xlu0 %3418
  %3420 = vrot.lane.b32.xlu0 %v3386, 36
  %v3421 = vpop.permute.xlu0 %3420
  %3422 = vrot.lane.b32.xlu0 %v3387, 36
  %v3423 = vpop.permute.xlu0 %3422
  %3424 = vrot.lane.b32.xlu0 %v3388, 36
  %v3425 = vpop.permute.xlu0 %3424
  %3426 = vrot.lane.b32.xlu0 %v3389, 36
  %v3427 = vpop.permute.xlu0 %3426
  %3428 = vrot.lane.b32.xlu0 %v3390, 36
  %v3429 = vpop.permute.xlu0 %3428
  %3430 = vrot.lane.b32.xlu0 %v3391, 36
  %v3431 = vpop.permute.xlu0 %3430
  %3432 = vrot.lane.b32.xlu0 %v3392, 36
  %v3433 = vpop.permute.xlu0 %3432
  %3434 = vrot.lane.b32.xlu0 %v3393, 36
  %v3435 = vpop.permute.xlu0 %3434
  %vm3436 = vcmask 293888
  %v3437 = vsel %vm3436, %v3409, %v3411
  %v3438 = vsel %vm3436, %v3411, %v3413
  %v3439 = vsel %vm3436, %v3413, %v3415
  %v3440 = vsel %vm3436, %v3415, %v3417
  %v3441 = vsel %vm3436, %v3417, %v3419
  %v3442 = vsel %vm3436, %v3419, %v3421
  %v3443 = vsel %vm3436, %v3423, %v3425
  %v3444 = vsel %vm3436, %v3425, %v3427
  %v3445 = vsel %vm3436, %v3427, %v3429
  %v3446 = vsel %vm3436, %v3429, %v3431
  %v3447 = vsel %vm3436, %v3431, %v3433
  %v3448 = vsel %vm3436, %v3433, %v3435
  %3461 = vst [vmem:[#allocation3 + $0xc0] sm:$0xff] %v3437
  %3462 = vst [vmem:[#allocation3 + $0xc8] sm:$0xff] %v3438
  %3463 = vst [vmem:[#allocation3 + $0xd0] sm:$0xff] %v3439
  %3464 = vst [vmem:[#allocation3 + $0xd8] sm:$0xff] %v3440
  %3465 = vst [vmem:[#allocation3 + $0xe0] sm:$0xff] %v3441
  %3466 = vst [vmem:[#allocation3 + $0xe8] sm:$0xff] %v3442
  %3467 = vst [vmem:[#allocation3 + $0xf0] sm:$0xff] %v3443
  %3468 = vst [vmem:[#allocation3 + $0xf8] sm:$0xff] %v3444
  %3469 = vst [vmem:[#allocation3 + $0x100] sm:$0xff] %v3445
  %3470 = vst [vmem:[#allocation3 + $0x108] sm:$0xff] %v3446
  %3471 = vst [vmem:[#allocation3 + $0x110] sm:$0xff] %v3447
  %3472 = vst [vmem:[#allocation3 + $0x118] sm:$0xff] %v3448
  %v3473 = vld [vmem:[#allocation5] sm:$0xff]
  %v3474 = vld [vmem:[#allocation5 + $0x8] sm:$0xff]
  %v3475 = vld [vmem:[#allocation5 + $0x10] sm:$0xff]
  %v3476 = vld [vmem:[#allocation5 + $0x18] sm:$0xff]
  %v3477 = vld [vmem:[#allocation5 + $0x20] sm:$0xff]
  %v3478 = vld [vmem:[#allocation5 + $0x28] sm:$0xff]
  %v3479 = vld [vmem:[#allocation5 + $0x30] sm:$0xff]
  %v3480 = vld [vmem:[#allocation5 + $0x40] sm:$0xff]
  %v3481 = vld [vmem:[#allocation5 + $0x48] sm:$0xff]
  %v3482 = vld [vmem:[#allocation5 + $0x50] sm:$0xff]
  %v3483 = vld [vmem:[#allocation5 + $0x58] sm:$0xff]
  %v3484 = vld [vmem:[#allocation5 + $0x60] sm:$0xff]
  %v3485 = vld [vmem:[#allocation5 + $0x68] sm:$0xff]
  %v3486 = vld [vmem:[#allocation5 + $0x70] sm:$0xff]
  %3501 = vrot.lane.b32.xlu0 %v3473, 20
  %v3502 = vpop.permute.xlu0 %3501
  %3503 = vrot.lane.b32.xlu0 %v3474, 20
  %v3504 = vpop.permute.xlu0 %3503
  %3505 = vrot.lane.b32.xlu0 %v3475, 20
  %v3506 = vpop.permute.xlu0 %3505
  %3507 = vrot.lane.b32.xlu0 %v3476, 20
  %v3508 = vpop.permute.xlu0 %3507
  %3509 = vrot.lane.b32.xlu0 %v3477, 20
  %v3510 = vpop.permute.xlu0 %3509
  %3511 = vrot.lane.b32.xlu0 %v3478, 20
  %v3512 = vpop.permute.xlu0 %3511
  %3513 = vrot.lane.b32.xlu0 %v3479, 20
  %v3514 = vpop.permute.xlu0 %3513
  %3515 = vrot.lane.b32.xlu0 %v3480, 20
  %v3516 = vpop.permute.xlu0 %3515
  %3517 = vrot.lane.b32.xlu0 %v3481, 20
  %v3518 = vpop.permute.xlu0 %3517
  %3519 = vrot.lane.b32.xlu0 %v3482, 20
  %v3520 = vpop.permute.xlu0 %3519
  %3521 = vrot.lane.b32.xlu0 %v3483, 20
  %v3522 = vpop.permute.xlu0 %3521
  %3523 = vrot.lane.b32.xlu0 %v3484, 20
  %v3524 = vpop.permute.xlu0 %3523
  %3525 = vrot.lane.b32.xlu0 %v3485, 20
  %v3526 = vpop.permute.xlu0 %3525
  %3527 = vrot.lane.b32.xlu0 %v3486, 20
  %v3528 = vpop.permute.xlu0 %3527
  %vm3529 = vcmask 162816
  %v3530 = vsel %vm3529, %v3502, %v3504
  %v3531 = vsel %vm3529, %v3504, %v3506
  %v3532 = vsel %vm3529, %v3506, %v3508
  %v3533 = vsel %vm3529, %v3508, %v3510
  %v3534 = vsel %vm3529, %v3510, %v3512
  %v3535 = vsel %vm3529, %v3512, %v3514
  %v3536 = vsel %vm3529, %v3516, %v3518
  %v3537 = vsel %vm3529, %v3518, %v3520
  %v3538 = vsel %vm3529, %v3520, %v3522
  %v3539 = vsel %vm3529, %v3522, %v3524
  %v3540 = vsel %vm3529, %v3524, %v3526
  %v3541 = vsel %vm3529, %v3526, %v3528
  %3554 = vst [vmem:[#allocation3 + $0x120] sm:$0xff] %v3530
  %3555 = vst [vmem:[#allocation3 + $0x128] sm:$0xff] %v3531
  %3556 = vst [vmem:[#allocation3 + $0x130] sm:$0xff] %v3532
  %3557 = vst [vmem:[#allocation3 + $0x138] sm:$0xff] %v3533
  %3558 = vst [vmem:[#allocation3 + $0x140] sm:$0xff] %v3534
  %3559 = vst [vmem:[#allocation3 + $0x148] sm:$0xff] %v3535
  %3560 = vst [vmem:[#allocation3 + $0x150] sm:$0xff] %v3536
  %3561 = vst [vmem:[#allocation3 + $0x158] sm:$0xff] %v3537
  %3562 = vst [vmem:[#allocation3 + $0x160] sm:$0xff] %v3538
  %3563 = vst [vmem:[#allocation3 + $0x168] sm:$0xff] %v3539
  %3564 = vst [vmem:[#allocation3 + $0x170] sm:$0xff] %v3540
  %3565 = vst [vmem:[#allocation3 + $0x178] sm:$0xff] %v3541
  %v3566 = vld [vmem:[#allocation5] sm:$0xff]
  %v3567 = vld [vmem:[#allocation5 + $0x8] sm:$0xff]
  %v3568 = vld [vmem:[#allocation5 + $0x10] sm:$0xff]
  %v3569 = vld [vmem:[#allocation5 + $0x18] sm:$0xff]
  %v3570 = vld [vmem:[#allocation5 + $0x20] sm:$0xff]
  %v3571 = vld [vmem:[#allocation5 + $0x28] sm:$0xff]
  %v3572 = vld [vmem:[#allocation5 + $0x30] sm:$0xff]
  %v3573 = vld [vmem:[#allocation5 + $0x40] sm:$0xff]
  %v3574 = vld [vmem:[#allocation5 + $0x48] sm:$0xff]
  %v3575 = vld [vmem:[#allocation5 + $0x50] sm:$0xff]
  %v3576 = vld [vmem:[#allocation5 + $0x58] sm:$0xff]
  %v3577 = vld [vmem:[#allocation5 + $0x60] sm:$0xff]
  %v3578 = vld [vmem:[#allocation5 + $0x68] sm:$0xff]
  %v3579 = vld [vmem:[#allocation5 + $0x70] sm:$0xff]
  %3594 = vrot.lane.b32.xlu0 %v3566, 19
  %v3595 = vpop.permute.xlu0 %3594
  %3596 = vrot.lane.b32.xlu0 %v3567, 19
  %v3597 = vpop.permute.xlu0 %3596
  %3598 = vrot.lane.b32.xlu0 %v3568, 19
  %v3599 = vpop.permute.xlu0 %3598
  %3600 = vrot.lane.b32.xlu0 %v3569, 19
  %v3601 = vpop.permute.xlu0 %3600
  %3602 = vrot.lane.b32.xlu0 %v3570, 19
  %v3603 = vpop.permute.xlu0 %3602
  %3604 = vrot.lane.b32.xlu0 %v3571, 19
  %v3605 = vpop.permute.xlu0 %3604
  %3606 = vrot.lane.b32.xlu0 %v3572, 19
  %v3607 = vpop.permute.xlu0 %3606
  %3608 = vrot.lane.b32.xlu0 %v3573, 19
  %v3609 = vpop.permute.xlu0 %3608
  %3610 = vrot.lane.b32.xlu0 %v3574, 19
  %v3611 = vpop.permute.xlu0 %3610
  %3612 = vrot.lane.b32.xlu0 %v3575, 19
  %v3613 = vpop.permute.xlu0 %3612
  %3614 = vrot.lane.b32.xlu0 %v3576, 19
  %v3615 = vpop.permute.xlu0 %3614
  %3616 = vrot.lane.b32.xlu0 %v3577, 19
  %v3617 = vpop.permute.xlu0 %3616
  %3618 = vrot.lane.b32.xlu0 %v3578, 19
  %v3619 = vpop.permute.xlu0 %3618
  %3620 = vrot.lane.b32.xlu0 %v3579, 19
  %v3621 = vpop.permute.xlu0 %3620
  %vm3622 = vcmask 154624
  %v3623 = vsel %vm3622, %v3595, %v3597
  %v3624 = vsel %vm3622, %v3597, %v3599
  %v3625 = vsel %vm3622, %v3599, %v3601
  %v3626 = vsel %vm3622, %v3601, %v3603
  %v3627 = vsel %vm3622, %v3603, %v3605
  %v3628 = vsel %vm3622, %v3605, %v3607
  %v3629 = vsel %vm3622, %v3609, %v3611
  %v3630 = vsel %vm3622, %v3611, %v3613
  %v3631 = vsel %vm3622, %v3613, %v3615
  %v3632 = vsel %vm3622, %v3615, %v3617
  %v3633 = vsel %vm3622, %v3617, %v3619
  %v3634 = vsel %vm3622, %v3619, %v3621
  %3647 = vst [vmem:[#allocation3 + $0x180] sm:$0xff] %v3623
  %3648 = vst [vmem:[#allocation3 + $0x188] sm:$0xff] %v3624
  %3649 = vst [vmem:[#allocation3 + $0x190] sm:$0xff] %v3625
  %3650 = vst [vmem:[#allocation3 + $0x198] sm:$0xff] %v3626
  %3651 = vst [vmem:[#allocation3 + $0x1a0] sm:$0xff] %v3627
  %3652 = vst [vmem:[#allocation3 + $0x1a8] sm:$0xff] %v3628
  %3653 = vst [vmem:[#allocation3 + $0x1b0] sm:$0xff] %v3629
  %3654 = vst [vmem:[#allocation3 + $0x1b8] sm:$0xff] %v3630
  %3655 = vst [vmem:[#allocation3 + $0x1c0] sm:$0xff] %v3631
  %3656 = vst [vmem:[#allocation3 + $0x1c8] sm:$0xff] %v3632
  %3657 = vst [vmem:[#allocation3 + $0x1d0] sm:$0xff] %v3633
  %3658 = vst [vmem:[#allocation3 + $0x1d8] sm:$0xff] %v3634
  %v3659 = vld [vmem:[#allocation5] sm:$0xff]
  %v3660 = vld [vmem:[#allocation5 + $0x8] sm:$0xff]
  %v3661 = vld [vmem:[#allocation5 + $0x10] sm:$0xff]
  %v3662 = vld [vmem:[#allocation5 + $0x18] sm:$0xff]
  %v3663 = vld [vmem:[#allocation5 + $0x20] sm:$0xff]
  %v3664 = vld [vmem:[#allocation5 + $0x28] sm:$0xff]
  %v3665 = vld [vmem:[#allocation5 + $0x30] sm:$0xff]
  %v3666 = vld [vmem:[#allocation5 + $0x40] sm:$0xff]
  %v3667 = vld [vmem:[#allocation5 + $0x48] sm:$0xff]
  %v3668 = vld [vmem:[#allocation5 + $0x50] sm:$0xff]
  %v3669 = vld [vmem:[#allocation5 + $0x58] sm:$0xff]
  %v3670 = vld [vmem:[#allocation5 + $0x60] sm:$0xff]
  %v3671 = vld [vmem:[#allocation5 + $0x68] sm:$0xff]
  %v3672 = vld [vmem:[#allocation5 + $0x70] sm:$0xff]
  %3687 = vrot.lane.b32.xlu0 %v3659, 18
  %v3688 = vpop.permute.xlu0 %3687
  %3689 = vrot.lane.b32.xlu0 %v3660, 18
  %v3690 = vpop.permute.xlu0 %3689
  %3691 = vrot.lane.b32.xlu0 %v3661, 18
  %v3692 = vpop.permute.xlu0 %3691
  %3693 = vrot.lane.b32.xlu0 %v3662, 18
  %v3694 = vpop.permute.xlu0 %3693
  %3695 = vrot.lane.b32.xlu0 %v3663, 18
  %v3696 = vpop.permute.xlu0 %3695
  %3697 = vrot.lane.b32.xlu0 %v3664, 18
  %v3698 = vpop.permute.xlu0 %3697
  %3699 = vrot.lane.b32.xlu0 %v3665, 18
  %v3700 = vpop.permute.xlu0 %3699
  %3701 = vrot.lane.b32.xlu0 %v3666, 18
  %v3702 = vpop.permute.xlu0 %3701
  %3703 = vrot.lane.b32.xlu0 %v3667, 18
  %v3704 = vpop.permute.xlu0 %3703
  %3705 = vrot.lane.b32.xlu0 %v3668, 18
  %v3706 = vpop.permute.xlu0 %3705
  %3707 = vrot.lane.b32.xlu0 %v3669, 18
  %v3708 = vpop.permute.xlu0 %3707
  %3709 = vrot.lane.b32.xlu0 %v3670, 18
  %v3710 = vpop.permute.xlu0 %3709
  %3711 = vrot.lane.b32.xlu0 %v3671, 18
  %v3712 = vpop.permute.xlu0 %3711
  %3713 = vrot.lane.b32.xlu0 %v3672, 18
  %v3714 = vpop.permute.xlu0 %3713
  %vm3715 = vcmask 146432
  %v3716 = vsel %vm3715, %v3688, %v3690
  %v3717 = vsel %vm3715, %v3690, %v3692
  %v3718 = vsel %vm3715, %v3692, %v3694
  %v3719 = vsel %vm3715, %v3694, %v3696
  %v3720 = vsel %vm3715, %v3696, %v3698
  %v3721 = vsel %vm3715, %v3698, %v3700
  %v3722 = vsel %vm3715, %v3702, %v3704
  %v3723 = vsel %vm3715, %v3704, %v3706
  %v3724 = vsel %vm3715, %v3706, %v3708
  %v3725 = vsel %vm3715, %v3708, %v3710
  %v3726 = vsel %vm3715, %v3710, %v3712
  %v3727 = vsel %vm3715, %v3712, %v3714
  %3740 = vst [vmem:[#allocation3 + $0x1e0] sm:$0xff] %v3716
  %3741 = vst [vmem:[#allocation3 + $0x1e8] sm:$0xff] %v3717
  %3742 = vst [vmem:[#allocation3 + $0x1f0] sm:$0xff] %v3718
  %3743 = vst [vmem:[#allocation3 + $0x1f8] sm:$0xff] %v3719
  %3744 = vst [vmem:[#allocation3 + $0x200] sm:$0xff] %v3720
  %3745 = vst [vmem:[#allocation3 + $0x208] sm:$0xff] %v3721
  %3746 = vst [vmem:[#allocation3 + $0x210] sm:$0xff] %v3722
  %3747 = vst [vmem:[#allocation3 + $0x218] sm:$0xff] %v3723
  %3748 = vst [vmem:[#allocation3 + $0x220] sm:$0xff] %v3724
  %3749 = vst [vmem:[#allocation3 + $0x228] sm:$0xff] %v3725
  %3750 = vst [vmem:[#allocation3 + $0x230] sm:$0xff] %v3726
  %3751 = vst [vmem:[#allocation3 + $0x238] sm:$0xff] %v3727
  %v3752 = vld [vmem:[#allocation5] sm:$0xff]
  %v3753 = vld [vmem:[#allocation5 + $0x8] sm:$0xff]
  %v3754 = vld [vmem:[#allocation5 + $0x10] sm:$0xff]
  %v3755 = vld [vmem:[#allocation5 + $0x18] sm:$0xff]
  %v3756 = vld [vmem:[#allocation5 + $0x20] sm:$0xff]
  %v3757 = vld [vmem:[#allocation5 + $0x28] sm:$0xff]
  %v3758 = vld [vmem:[#allocation5 + $0x30] sm:$0xff]
  %v3759 = vld [vmem:[#allocation5 + $0x40] sm:$0xff]
  %v3760 = vld [vmem:[#allocation5 + $0x48] sm:$0xff]
  %v3761 = vld [vmem:[#allocation5 + $0x50] sm:$0xff]
  %v3762 = vld [vmem:[#allocation5 + $0x58] sm:$0xff]
  %v3763 = vld [vmem:[#allocation5 + $0x60] sm:$0xff]
  %v3764 = vld [vmem:[#allocation5 + $0x68] sm:$0xff]
  %v3765 = vld [vmem:[#allocation5 + $0x70] sm:$0xff]
  %3780 = vrot.lane.b32.xlu0 %v3752, 2
  %v3781 = vpop.permute.xlu0 %3780
  %3782 = vrot.lane.b32.xlu0 %v3753, 2
  %v3783 = vpop.permute.xlu0 %3782
  %3784 = vrot.lane.b32.xlu0 %v3754, 2
  %v3785 = vpop.permute.xlu0 %3784
  %3786 = vrot.lane.b32.xlu0 %v3755, 2
  %v3787 = vpop.permute.xlu0 %3786
  %3788 = vrot.lane.b32.xlu0 %v3756, 2
  %v3789 = vpop.permute.xlu0 %3788
  %3790 = vrot.lane.b32.xlu0 %v3757, 2
  %v3791 = vpop.permute.xlu0 %3790
  %3792 = vrot.lane.b32.xlu0 %v3758, 2
  %v3793 = vpop.permute.xlu0 %3792
  %3794 = vrot.lane.b32.xlu0 %v3759, 2
  %v3795 = vpop.permute.xlu0 %3794
  %3796 = vrot.lane.b32.xlu0 %v3760, 2
  %v3797 = vpop.permute.xlu0 %3796
  %3798 = vrot.lane.b32.xlu0 %v3761, 2
  %v3799 = vpop.permute.xlu0 %3798
  %3800 = vrot.lane.b32.xlu0 %v3762, 2
  %v3801 = vpop.permute.xlu0 %3800
  %3802 = vrot.lane.b32.xlu0 %v3763, 2
  %v3803 = vpop.permute.xlu0 %3802
  %3804 = vrot.lane.b32.xlu0 %v3764, 2
  %v3805 = vpop.permute.xlu0 %3804
  %3806 = vrot.lane.b32.xlu0 %v3765, 2
  %v3807 = vpop.permute.xlu0 %3806
  %vm3808 = vcmask 15360
  %v3809 = vsel %vm3808, %v3781, %v3783
  %v3810 = vsel %vm3808, %v3783, %v3785
  %v3811 = vsel %vm3808, %v3785, %v3787
  %v3812 = vsel %vm3808, %v3787, %v3789
  %v3813 = vsel %vm3808, %v3789, %v3791
  %v3814 = vsel %vm3808, %v3791, %v3793
  %v3815 = vsel %vm3808, %v3795, %v3797
  %v3816 = vsel %vm3808, %v3797, %v3799
  %v3817 = vsel %vm3808, %v3799, %v3801
  %v3818 = vsel %vm3808, %v3801, %v3803
  %v3819 = vsel %vm3808, %v3803, %v3805
  %v3820 = vsel %vm3808, %v3805, %v3807
  %3833 = vst [vmem:[#allocation3 + $0x240] sm:$0xff] %v3809
  %3834 = vst [vmem:[#allocation3 + $0x248] sm:$0xff] %v3810
  %3835 = vst [vmem:[#allocation3 + $0x250] sm:$0xff] %v3811
  %3836 = vst [vmem:[#allocation3 + $0x258] sm:$0xff] %v3812
  %3837 = vst [vmem:[#allocation3 + $0x260] sm:$0xff] %v3813
  %3838 = vst [vmem:[#allocation3 + $0x268] sm:$0xff] %v3814
  %3839 = vst [vmem:[#allocation3 + $0x270] sm:$0xff] %v3815
  %3840 = vst [vmem:[#allocation3 + $0x278] sm:$0xff] %v3816
  %3841 = vst [vmem:[#allocation3 + $0x280] sm:$0xff] %v3817
  %3842 = vst [vmem:[#allocation3 + $0x288] sm:$0xff] %v3818
  %3843 = vst [vmem:[#allocation3 + $0x290] sm:$0xff] %v3819
  %3844 = vst [vmem:[#allocation3 + $0x298] sm:$0xff] %v3820
  %v3845 = vld [vmem:[#allocation5] sm:$0xff]
  %v3846 = vld [vmem:[#allocation5 + $0x8] sm:$0xff]
  %v3847 = vld [vmem:[#allocation5 + $0x10] sm:$0xff]
  %v3848 = vld [vmem:[#allocation5 + $0x18] sm:$0xff]
  %v3849 = vld [vmem:[#allocation5 + $0x20] sm:$0xff]
  %v3850 = vld [vmem:[#allocation5 + $0x28] sm:$0xff]
  %v3851 = vld [vmem:[#allocation5 + $0x30] sm:$0xff]
  %v3852 = vld [vmem:[#allocation5 + $0x40] sm:$0xff]
  %v3853 = vld [vmem:[#allocation5 + $0x48] sm:$0xff]
  %v3854 = vld [vmem:[#allocation5 + $0x50] sm:$0xff]
  %v3855 = vld [vmem:[#allocation5 + $0x58] sm:$0xff]
  %v3856 = vld [vmem:[#allocation5 + $0x60] sm:$0xff]
  %v3857 = vld [vmem:[#allocation5 + $0x68] sm:$0xff]
  %v3858 = vld [vmem:[#allocation5 + $0x70] sm:$0xff]
  %3873 = vrot.lane.b32.xlu0 %v3845, 1
  %v3874 = vpop.permute.xlu0 %3873
  %3875 = vrot.lane.b32.xlu0 %v3846, 1
  %v3876 = vpop.permute.xlu0 %3875
  %3877 = vrot.lane.b32.xlu0 %v3847, 1
  %v3878 = vpop.permute.xlu0 %3877
  %3879 = vrot.lane.b32.xlu0 %v3848, 1
  %v3880 = vpop.permute.xlu0 %3879
  %3881 = vrot.lane.b32.xlu0 %v3849, 1
  %v3882 = vpop.permute.xlu0 %3881
  %3883 = vrot.lane.b32.xlu0 %v3850, 1
  %v3884 = vpop.permute.xlu0 %3883
  %3885 = vrot.lane.b32.xlu0 %v3851, 1
  %v3886 = vpop.permute.xlu0 %3885
  %3887 = vrot.lane.b32.xlu0 %v3852, 1
  %v3888 = vpop.permute.xlu0 %3887
  %3889 = vrot.lane.b32.xlu0 %v3853, 1
  %v3890 = vpop.permute.xlu0 %3889
  %3891 = vrot.lane.b32.xlu0 %v3854, 1
  %v3892 = vpop.permute.xlu0 %3891
  %3893 = vrot.lane.b32.xlu0 %v3855, 1
  %v3894 = vpop.permute.xlu0 %3893
  %3895 = vrot.lane.b32.xlu0 %v3856, 1
  %v3896 = vpop.permute.xlu0 %3895
  %3897 = vrot.lane.b32.xlu0 %v3857, 1
  %v3898 = vpop.permute.xlu0 %3897
  %3899 = vrot.lane.b32.xlu0 %v3858, 1
  %v3900 = vpop.permute.xlu0 %3899
  %vm3901 = vcmask 7168
  %v3902 = vsel %vm3901, %v3874, %v3876
  %v3903 = vsel %vm3901, %v3876, %v3878
  %v3904 = vsel %vm3901, %v3878, %v3880
  %v3905 = vsel %vm3901, %v3880, %v3882
  %v3906 = vsel %vm3901, %v3882, %v3884
  %v3907 = vsel %vm3901, %v3884, %v3886
  %v3908 = vsel %vm3901, %v3888, %v3890
  %v3909 = vsel %vm3901, %v3890, %v3892
  %v3910 = vsel %vm3901, %v3892, %v3894
  %v3911 = vsel %vm3901, %v3894, %v3896
  %v3912 = vsel %vm3901, %v3896, %v3898
  %v3913 = vsel %vm3901, %v3898, %v3900
  %3926 = vst [vmem:[#allocation3 + $0x2a0] sm:$0xff] %v3902
  %3927 = vst [vmem:[#allocation3 + $0x2a8] sm:$0xff] %v3903
  %3928 = vst [vmem:[#allocation3 + $0x2b0] sm:$0xff] %v3904
  %3929 = vst [vmem:[#allocation3 + $0x2b8] sm:$0xff] %v3905
  %3930 = vst [vmem:[#allocation3 + $0x2c0] sm:$0xff] %v3906
  %3931 = vst [vmem:[#allocation3 + $0x2c8] sm:$0xff] %v3907
  %3932 = vst [vmem:[#allocation3 + $0x2d0] sm:$0xff] %v3908
  %3933 = vst [vmem:[#allocation3 + $0x2d8] sm:$0xff] %v3909
  %3934 = vst [vmem:[#allocation3 + $0x2e0] sm:$0xff] %v3910
  %3935 = vst [vmem:[#allocation3 + $0x2e8] sm:$0xff] %v3911
  %3936 = vst [vmem:[#allocation3 + $0x2f0] sm:$0xff] %v3912
  %3937 = vst [vmem:[#allocation3 + $0x2f8] sm:$0xff] %v3913
  %v3938 = vld [vmem:[#allocation5 + $0x8] sm:$0xff]
  %v3939 = vld [vmem:[#allocation5 + $0x10] sm:$0xff]
  %v3940 = vld [vmem:[#allocation5 + $0x18] sm:$0xff]
  %v3941 = vld [vmem:[#allocation5 + $0x20] sm:$0xff]
  %v3942 = vld [vmem:[#allocation5 + $0x28] sm:$0xff]
  %v3943 = vld [vmem:[#allocation5 + $0x30] sm:$0xff]
  %v3944 = vld [vmem:[#allocation5 + $0x48] sm:$0xff]
  %v3945 = vld [vmem:[#allocation5 + $0x50] sm:$0xff]
  %v3946 = vld [vmem:[#allocation5 + $0x58] sm:$0xff]
  %v3947 = vld [vmem:[#allocation5 + $0x60] sm:$0xff]
  %v3948 = vld [vmem:[#allocation5 + $0x68] sm:$0xff]
  %v3949 = vld [vmem:[#allocation5 + $0x70] sm:$0xff]
  %3950 = vst [vmem:[#allocation3 + $0x300] sm:$0xff] %v3938
  %3951 = vst [vmem:[#allocation3 + $0x308] sm:$0xff] %v3939
  %3952 = vst [vmem:[#allocation3 + $0x310] sm:$0xff] %v3940
  %3953 = vst [vmem:[#allocation3 + $0x318] sm:$0xff] %v3941
  %3954 = vst [vmem:[#allocation3 + $0x320] sm:$0xff] %v3942
  %3955 = vst [vmem:[#allocation3 + $0x328] sm:$0xff] %v3943
  %3956 = vst [vmem:[#allocation3 + $0x330] sm:$0xff] %v3944
  %3957 = vst [vmem:[#allocation3 + $0x338] sm:$0xff] %v3945
  %3958 = vst [vmem:[#allocation3 + $0x340] sm:$0xff] %v3946
  %3959 = vst [vmem:[#allocation3 + $0x348] sm:$0xff] %v3947
  %3960 = vst [vmem:[#allocation3 + $0x350] sm:$0xff] %v3948
  %3961 = vst [vmem:[#allocation3 + $0x358] sm:$0xff] %v3949
  %v3962 = vld [vmem:[%s10] sm:$0xff]
  %v3963 = vld [vmem:[%s10 + $0x8] sm:$0xf]
  %v3964 = vld [vmem:[%s10 + $0xc] sm:$0xff]
  %v3965 = vld [vmem:[%s10 + $0x14] sm:$0xf]
  %v3966 = vld [vmem:[%s10 + $0x18] sm:$0xff]
  %v3967 = vld [vmem:[%s10 + $0x20] sm:$0xf]
  %v3968 = vld [vmem:[%s10 + $0x24] sm:$0xff]
  %v3969 = vld [vmem:[%s10 + $0x2c] sm:$0xf]
  %v3970 = vld [vmem:[#allocation3] sm:$0xff]
  %v3971 = vld [vmem:[#allocation3 + $0x8] sm:$0xff]
  %v3972 = vld [vmem:[#allocation3 + $0x10] sm:$0xff]
  %v3973 = vld [vmem:[#allocation3 + $0x18] sm:$0xff]
  %v3974 = vld [vmem:[#allocation3 + $0x20] sm:$0xff]
  %v3975 = vld [vmem:[#allocation3 + $0x28] sm:$0xff]
  %v3976 = vld [vmem:[#allocation3 + $0x30] sm:$0xff]
  %v3977 = vld [vmem:[#allocation3 + $0x38] sm:$0xff]
  %v3978 = vld [vmem:[#allocation3 + $0x40] sm:$0xff]
  %v3979 = vld [vmem:[#allocation3 + $0x48] sm:$0xff]
  %v3980 = vld [vmem:[#allocation3 + $0x50] sm:$0xff]
  %v3981 = vld [vmem:[#allocation3 + $0x58] sm:$0xff]
  %v3982 = vld [vmem:[#allocation3 + $0x60] sm:$0xff]
  %v3983 = vld [vmem:[#allocation3 + $0x68] sm:$0xff]
  %v3984 = vld [vmem:[#allocation3 + $0x70] sm:$0xff]
  %v3985 = vld [vmem:[#allocation3 + $0x78] sm:$0xff]
  %v3986 = vld [vmem:[#allocation3 + $0x80] sm:$0xff]
  %v3987 = vld [vmem:[#allocation3 + $0x88] sm:$0xff]
  %v3988 = vld [vmem:[#allocation3 + $0x90] sm:$0xff]
  %v3989 = vld [vmem:[#allocation3 + $0x98] sm:$0xff]
  %v3990 = vld [vmem:[#allocation3 + $0xa0] sm:$0xff]
  %v3991 = vld [vmem:[#allocation3 + $0xa8] sm:$0xff]
  %v3992 = vld [vmem:[#allocation3 + $0xb0] sm:$0xff]
  %v3993 = vld [vmem:[#allocation3 + $0xb8] sm:$0xff]
  %v3994 = vld [vmem:[#allocation3 + $0xc0] sm:$0xff]
  %v3995 = vld [vmem:[#allocation3 + $0xc8] sm:$0xff]
  %v3996 = vld [vmem:[#allocation3 + $0xd0] sm:$0xff]
  %v3997 = vld [vmem:[#allocation3 + $0xd8] sm:$0xff]
  %v3998 = vld [vmem:[#allocation3 + $0xe0] sm:$0xff]
  %v3999 = vld [vmem:[#allocation3 + $0xe8] sm:$0xff]
  %v4000 = vld [vmem:[#allocation3 + $0xf0] sm:$0xff]
  %v4001 = vld [vmem:[#allocation3 + $0xf8] sm:$0xff]
  %v4002 = vld [vmem:[#allocation3 + $0x100] sm:$0xff]
  %v4003 = vld [vmem:[#allocation3 + $0x108] sm:$0xff]
  %v4004 = vld [vmem:[#allocation3 + $0x110] sm:$0xff]
  %v4005 = vld [vmem:[#allocation3 + $0x118] sm:$0xff]
  %v4006 = vld [vmem:[#allocation3 + $0x120] sm:$0xff]
  %v4007 = vld [vmem:[#allocation3 + $0x128] sm:$0xff]
  %v4008 = vld [vmem:[#allocation3 + $0x130] sm:$0xff]
  %v4009 = vld [vmem:[#allocation3 + $0x138] sm:$0xff]
  %v4010 = vld [vmem:[#allocation3 + $0x140] sm:$0xff]
  %v4011 = vld [vmem:[#allocation3 + $0x148] sm:$0xff]
  %v4012 = vld [vmem:[#allocation3 + $0x150] sm:$0xff]
  %v4013 = vld [vmem:[#allocation3 + $0x158] sm:$0xff]
  %v4014 = vld [vmem:[#allocation3 + $0x160] sm:$0xff]
  %v4015 = vld [vmem:[#allocation3 + $0x168] sm:$0xff]
  %v4016 = vld [vmem:[#allocation3 + $0x170] sm:$0xff]
  %v4017 = vld [vmem:[#allocation3 + $0x178] sm:$0xff]
  %v4018 = vld [vmem:[#allocation3 + $0x180] sm:$0xff]
  %v4019 = vld [vmem:[#allocation3 + $0x188] sm:$0xff]
  %v4020 = vld [vmem:[#allocation3 + $0x190] sm:$0xff]
  %v4021 = vld [vmem:[#allocation3 + $0x198] sm:$0xff]
  %v4022 = vld [vmem:[#allocation3 + $0x1a0] sm:$0xff]
  %v4023 = vld [vmem:[#allocation3 + $0x1a8] sm:$0xff]
  %v4024 = vld [vmem:[#allocation3 + $0x1b0] sm:$0xff]
  %v4025 = vld [vmem:[#allocation3 + $0x1b8] sm:$0xff]
  %v4026 = vld [vmem:[#allocation3 + $0x1c0] sm:$0xff]
  %v4027 = vld [vmem:[#allocation3 + $0x1c8] sm:$0xff]
  %v4028 = vld [vmem:[#allocation3 + $0x1d0] sm:$0xff]
  %v4029 = vld [vmem:[#allocation3 + $0x1d8] sm:$0xff]
  %v4030 = vld [vmem:[#allocation3 + $0x1e0] sm:$0xff]
  %v4031 = vld [vmem:[#allocation3 + $0x1e8] sm:$0xff]
  %v4032 = vld [vmem:[#allocation3 + $0x1f0] sm:$0xff]
  %v4033 = vld [vmem:[#allocation3 + $0x1f8] sm:$0xff]
  %v4034 = vld [vmem:[#allocation3 + $0x200] sm:$0xff]
  %v4035 = vld [vmem:[#allocation3 + $0x208] sm:$0xff]
  %v4036 = vld [vmem:[#allocation3 + $0x210] sm:$0xff]
  %v4037 = vld [vmem:[#allocation3 + $0x218] sm:$0xff]
  %v4038 = vld [vmem:[#allocation3 + $0x220] sm:$0xff]
  %v4039 = vld [vmem:[#allocation3 + $0x228] sm:$0xff]
  %v4040 = vld [vmem:[#allocation3 + $0x230] sm:$0xff]
  %v4041 = vld [vmem:[#allocation3 + $0x238] sm:$0xff]
  %v4042 = vld [vmem:[#allocation3 + $0x240] sm:$0xff]
  %v4043 = vld [vmem:[#allocation3 + $0x248] sm:$0xff]
  %v4044 = vld [vmem:[#allocation3 + $0x250] sm:$0xff]
  %v4045 = vld [vmem:[#allocation3 + $0x258] sm:$0xff]
  %v4046 = vld [vmem:[#allocation3 + $0x260] sm:$0xff]
  %v4047 = vld [vmem:[#allocation3 + $0x268] sm:$0xff]
  %v4048 = vld [vmem:[#allocation3 + $0x270] sm:$0xff]
  %v4049 = vld [vmem:[#allocation3 + $0x278] sm:$0xff]
  %v4050 = vld [vmem:[#allocation3 + $0x280] sm:$0xff]
  %v4051 = vld [vmem:[#allocation3 + $0x288] sm:$0xff]
  %v4052 = vld [vmem:[#allocation3 + $0x290] sm:$0xff]
  %v4053 = vld [vmem:[#allocation3 + $0x298] sm:$0xff]
  %v4054 = vld [vmem:[#allocation3 + $0x2a0] sm:$0xff]
  %v4055 = vld [vmem:[#allocation3 + $0x2a8] sm:$0xff]
  %v4056 = vld [vmem:[#allocation3 + $0x2b0] sm:$0xff]
  %v4057 = vld [vmem:[#allocation3 + $0x2b8] sm:$0xff]
  %v4058 = vld [vmem:[#allocation3 + $0x2c0] sm:$0xff]
  %v4059 = vld [vmem:[#allocation3 + $0x2c8] sm:$0xff]
  %v4060 = vld [vmem:[#allocation3 + $0x2d0] sm:$0xff]
  %v4061 = vld [vmem:[#allocation3 + $0x2d8] sm:$0xff]
  %v4062 = vld [vmem:[#allocation3 + $0x2e0] sm:$0xff]
  %v4063 = vld [vmem:[#allocation3 + $0x2e8] sm:$0xff]
  %v4064 = vld [vmem:[#allocation3 + $0x2f0] sm:$0xff]
  %v4065 = vld [vmem:[#allocation3 + $0x2f8] sm:$0xff]
  %v4066 = vld [vmem:[#allocation3 + $0x300] sm:$0xff]
  %v4067 = vld [vmem:[#allocation3 + $0x308] sm:$0xff]
  %v4068 = vld [vmem:[#allocation3 + $0x310] sm:$0xff]
  %v4069 = vld [vmem:[#allocation3 + $0x318] sm:$0xff]
  %v4070 = vld [vmem:[#allocation3 + $0x320] sm:$0xff]
  %v4071 = vld [vmem:[#allocation3 + $0x328] sm:$0xff]
  %v4072 = vld [vmem:[#allocation3 + $0x330] sm:$0xff]
  %v4073 = vld [vmem:[#allocation3 + $0x338] sm:$0xff]
  %v4074 = vld [vmem:[#allocation3 + $0x340] sm:$0xff]
  %v4075 = vld [vmem:[#allocation3 + $0x348] sm:$0xff]
  %v4076 = vld [vmem:[#allocation3 + $0x350] sm:$0xff]
  %v4077 = vld [vmem:[#allocation3 + $0x358] sm:$0xff]
  %v4078 = vld [vmem:[%s11] sm:$0xff]
  %v4079 = vld [vmem:[%s11 + $0x8] sm:$0xff]
  %v4080 = vld [vmem:[%s11 + $0x10] sm:$0xff]
  %v4081 = vld [vmem:[%s11 + $0x18] sm:$0xff]
  %4083 = vset.pattern.permute.xlu0 0
  %4084 = vperm.xlu0 %4083, %v4078
  %v4085 = vpop.permute.xlu0 %4084
  %4088 = vset.pattern.permute.xlu0 0
  %4089 = vperm.xlu0 %4088, %v4079
  %v4090 = vpop.permute.xlu0 %4089
  %4093 = vset.pattern.permute.xlu0 0
  %4094 = vperm.xlu0 %4093, %v4080
  %v4095 = vpop.permute.xlu0 %4094
  %4098 = vset.pattern.permute.xlu0 0
  %4099 = vperm.xlu0 %4098, %v4081
  %v4100 = vpop.permute.xlu0 %4099
  %v4110 = vunpack.c.l.b16 %v3962
  %v4111 = vunpack.c.h.b16 %v3962
  %v4112 = vunpack.c.l.b16 %v3963
  %v4113 = vunpack.c.l.b16 %v3964
  %v4114 = vunpack.c.h.b16 %v3964
  %v4115 = vunpack.c.l.b16 %v3965
  %v4116 = vunpack.c.l.b16 %v3966
  %v4117 = vunpack.c.h.b16 %v3966
  %v4118 = vunpack.c.l.b16 %v3967
  %v4119 = vunpack.c.l.b16 %v3968
  %v4120 = vunpack.c.h.b16 %v3968
  %v4121 = vunpack.c.l.b16 %v3969
  %v4122 = vpack.c.b16 %v4113, %v4110
  %v4123 = vpack.c.b16 %v4114, %v4111
  %v4124 = vpack.c.b16 %v4115, %v4112
  %v4125 = vpack.c.b16 %v4119, %v4116
  %v4126 = vpack.c.b16 %v4120, %v4117
  %v4127 = vpack.c.b16 %v4121, %v4118
  %v4133 = vsel %vm2533, %v4124, 0
  %v4136 = vsel %vm2533, %v4127, 0
  %4138 = vmatprep.subr.bf16.mxu0 %v3971
  %4139 = vmatpush1.bf16.msra.mxu0 %v3970
  %4140 = vmatprep.subr.bf16.mxu0 %v3977
  %4141 = vmatpush1.bf16.msra.mxu0 %v3976
  %4142 = vmatprep.subr.bf16.mxu0 %v3983
  %4143 = vmatpush1.bf16.msra.mxu0 %v3982
  %4144 = vmatprep.subr.bf16.mxu0 %v3989
  %4145 = vmatpush1.bf16.msra.mxu0 %v3988
  %4146 = vmatprep.subr.bf16.mxu0 %v3995
  %4147 = vmatpush1.bf16.msra.mxu0 %v3994
  %4148 = vmatprep.subr.bf16.mxu0 %v4001
  %4149 = vmatpush1.bf16.msra.mxu0 %v4000
  %4150 = vmatprep.subr.bf16.mxu0 %v4007
  %4151 = vmatpush1.bf16.msra.mxu0 %v4006
  %4152 = vmatprep.subr.bf16.mxu0 %v4013
  %4153 = vmatpush1.bf16.msra.mxu0 %v4012
  %4154 = vmatprep.subr.bf16.mxu0 %v4019
  %4155 = vmatpush1.bf16.msra.mxu0 %v4018
  %4156 = vmatprep.subr.bf16.mxu0 %v4025
  %4157 = vmatpush1.bf16.msra.mxu0 %v4024
  %4158 = vmatprep.subr.bf16.mxu0 %v4031
  %4159 = vmatpush1.bf16.msra.mxu0 %v4030
  %4160 = vmatprep.subr.bf16.mxu0 %v4037
  %4161 = vmatpush1.bf16.msra.mxu0 %v4036
  %4162 = vmatprep.subr.bf16.mxu0 %v4043
  %4163 = vmatpush1.bf16.msra.mxu0 %v4042
  %4164 = vmatprep.subr.bf16.mxu0 %v4049
  %4165 = vmatpush1.bf16.msra.mxu0 %v4048
  %4166 = vmatprep.subr.bf16.mxu0 %v4055
  %4167 = vmatpush1.bf16.msra.mxu0 %v4054
  %4168 = vmatprep.subr.bf16.mxu0 %v4061
  %4169 = vmatpush1.bf16.msra.mxu0 %v4060
  %4170 = vmatprep.mubr.bf16.mxu0 %v4123
  %4171 = vmatmul.mubr.bf16.gmra.mrb[0].mxu0 %v4122
  %v4172 = vpop.f32.mrb[0].mxu0
  %v4173 = vadd.f32 %v4085, %v4172
  %v4174 = vpop.f32.mrb[0].mxu0
  %v4175 = vadd.f32 %v4085, %v4174
  %v4176 = vpop.f32.mrb[0].mxu0
  %v4177 = vadd.f32 %v4090, %v4176
  %v4178 = vpop.f32.mrb[0].mxu0
  %v4179 = vadd.f32 %v4090, %v4178
  %4180 = vmatprep.mubr.bf16.mxu0 %v4126
  %4181 = vmatmul.mubr.bf16.gmra.mrb[0].mxu0 %v4125
  %v4182 = vpop.f32.mrb[0].mxu0
  %v4183 = vadd.f32 %v4095, %v4182
  %v4184 = vpop.f32.mrb[0].mxu0
  %v4185 = vadd.f32 %v4095, %v4184
  %v4186 = vpop.f32.mrb[0].mxu0
  %v4187 = vadd.f32 %v4100, %v4186
  %v4188 = vpop.f32.mrb[0].mxu0
  %v4189 = vadd.f32 %v4100, %v4188
  %4190 = vdwg.mxu0
  %4191 = vmatprep.subr.bf16.mxu0 %v4067
  %4192 = vmatpush1.bf16.msra.mxu0 %v4066
  %4193 = vmatprep.subr.bf16.mxu0 %v4073
  %4194 = vmatpush1.bf16.msra.mxu0 %v4072
  %4195 = vmatprep.subr.bf16.mxu0 0
  %4196 = vmatpush1.bf16.msra.mxu0 0
  %4197 = vmatprep.subr.bf16.mxu0 0
  %4198 = vmatpush1.bf16.msra.mxu0 0
  %4199 = vmatprep.subr.bf16.mxu0 0
  %4200 = vmatpush1.bf16.msra.mxu0 0
  %4201 = vmatprep.subr.bf16.mxu0 0
  %4202 = vmatpush1.bf16.msra.mxu0 0
  %4203 = vmatprep.subr.bf16.mxu0 0
  %4204 = vmatpush1.bf16.msra.mxu0 0
  %4205 = vmatprep.subr.bf16.mxu0 0
  %4206 = vmatpush1.bf16.msra.mxu0 0
  %4207 = vmatprep.subr.bf16.mxu0 0
  %4208 = vmatpush1.bf16.msra.mxu0 0
  %4209 = vmatprep.subr.bf16.mxu0 0
  %4210 = vmatpush1.bf16.msra.mxu0 0
  %4211 = vmatprep.subr.bf16.mxu0 0
  %4212 = vmatpush1.bf16.msra.mxu0 0
  %4213 = vmatprep.subr.bf16.mxu0 0
  %4214 = vmatpush1.bf16.msra.mxu0 0
  %4215 = vmatprep.subr.bf16.mxu0 0
  %4216 = vmatpush1.bf16.msra.mxu0 0
  %4217 = vmatprep.subr.bf16.mxu0 0
  %4218 = vmatpush1.bf16.msra.mxu0 0
  %4219 = vmatprep.subr.bf16.mxu0 0
  %4220 = vmatpush1.bf16.msra.mxu0 0
  %4221 = vmatprep.subr.bf16.mxu0 0
  %4222 = vmatpush1.bf16.msra.mxu0 0
  %4223 = vmatprep.mubr.bf16.mxu0 0
  %4224 = vmatmul.mubr.bf16.gmra.mrb[0].mxu0 %v4133
  %v4225 = vpop.f32.mrb[0].mxu0
  %v4226 = vadd.f32 %v4173, %v4225
  %v4227 = vpop.f32.mrb[0].mxu0
  %v4228 = vadd.f32 %v4175, %v4227
  %v4229 = vpop.f32.mrb[0].mxu0
  %v4230 = vadd.f32 %v4177, %v4229
  %v4231 = vpop.f32.mrb[0].mxu0
  %v4232 = vadd.f32 %v4179, %v4231
  %4233 = vmatprep.mubr.bf16.mxu0 0
  %4234 = vmatmul.mubr.bf16.gmra.mrb[0].mxu0 %v4136
  %v4235 = vpop.f32.mrb[0].mxu0
  %v4236 = vadd.f32 %v4183, %v4235
  %v4237 = vpop.f32.mrb[0].mxu0
  %v4238 = vadd.f32 %v4185, %v4237
  %v4239 = vpop.f32.mrb[0].mxu0
  %v4240 = vadd.f32 %v4187, %v4239
  %v4241 = vpop.f32.mrb[0].mxu0
  %v4242 = vadd.f32 %v4189, %v4241
  %4243 = vdwg.mxu0
  %4244 = vmatprep.subr.bf16.mxu0 %v3973
  %4245 = vmatpush1.bf16.msra.mxu0 %v3972
  %4246 = vmatprep.subr.bf16.mxu0 %v3979
  %4247 = vmatpush1.bf16.msra.mxu0 %v3978
  %4248 = vmatprep.subr.bf16.mxu0 %v3985
  %4249 = vmatpush1.bf16.msra.mxu0 %v3984
  %4250 = vmatprep.subr.bf16.mxu0 %v3991
  %4251 = vmatpush1.bf16.msra.mxu0 %v3990
  %4252 = vmatprep.subr.bf16.mxu0 %v3997
  %4253 = vmatpush1.bf16.msra.mxu0 %v3996
  %4254 = vmatprep.subr.bf16.mxu0 %v4003
  %4255 = vmatpush1.bf16.msra.mxu0 %v4002
  %4256 = vmatprep.subr.bf16.mxu0 %v4009
  %4257 = vmatpush1.bf16.msra.mxu0 %v4008
  %4258 = vmatprep.subr.bf16.mxu0 %v4015
  %4259 = vmatpush1.bf16.msra.mxu0 %v4014
  %4260 = vmatprep.subr.bf16.mxu0 %v4021
  %4261 = vmatpush1.bf16.msra.mxu0 %v4020
  %4262 = vmatprep.subr.bf16.mxu0 %v4027
  %4263 = vmatpush1.bf16.msra.mxu0 %v4026
  %4264 = vmatprep.subr.bf16.mxu0 %v4033
  %4265 = vmatpush1.bf16.msra.mxu0 %v4032
  %4266 = vmatprep.subr.bf16.mxu0 %v4039
  %4267 = vmatpush1.bf16.msra.mxu0 %v4038
  %4268 = vmatprep.subr.bf16.mxu0 %v4045
  %4269 = vmatpush1.bf16.msra.mxu0 %v4044
  %4270 = vmatprep.subr.bf16.mxu0 %v4051
  %4271 = vmatpush1.bf16.msra.mxu0 %v4050
  %4272 = vmatprep.subr.bf16.mxu0 %v4057
  %4273 = vmatpush1.bf16.msra.mxu0 %v4056
  %4274 = vmatprep.subr.bf16.mxu0 %v4063
  %4275 = vmatpush1.bf16.msra.mxu0 %v4062
  %4276 = vmatprep.mubr.bf16.mxu0 %v4123
  %4277 = vmatmul.mubr.bf16.gmra.mrb[0].mxu0 %v4122
  %v4278 = vpop.f32.mrb[0].mxu0
  %v4279 = vadd.f32 %v4085, %v4278
  %v4280 = vpop.f32.mrb[0].mxu0
  %v4281 = vadd.f32 %v4085, %v4280
  %v4282 = vpop.f32.mrb[0].mxu0
  %v4283 = vadd.f32 %v4090, %v4282
  %v4284 = vpop.f32.mrb[0].mxu0
  %v4285 = vadd.f32 %v4090, %v4284
  %4286 = vmatprep.mubr.bf16.mxu0 %v4126
  %4287 = vmatmul.mubr.bf16.gmra.mrb[0].mxu0 %v4125
  %v4288 = vpop.f32.mrb[0].mxu0
  %v4289 = vadd.f32 %v4095, %v4288
  %v4290 = vpop.f32.mrb[0].mxu0
  %v4291 = vadd.f32 %v4095, %v4290
  %v4292 = vpop.f32.mrb[0].mxu0
  %v4293 = vadd.f32 %v4100, %v4292
  %v4294 = vpop.f32.mrb[0].mxu0
  %v4295 = vadd.f32 %v4100, %v4294
  %4296 = vdwg.mxu0
  %4297 = vmatprep.subr.bf16.mxu0 %v4069
  %4298 = vmatpush1.bf16.msra.mxu0 %v4068
  %4299 = vmatprep.subr.bf16.mxu0 %v4075
  %4300 = vmatpush1.bf16.msra.mxu0 %v4074
  %4301 = vmatprep.subr.bf16.mxu0 0
  %4302 = vmatpush1.bf16.msra.mxu0 0
  %4303 = vmatprep.subr.bf16.mxu0 0
  %4304 = vmatpush1.bf16.msra.mxu0 0
  %4305 = vmatprep.subr.bf16.mxu0 0
  %4306 = vmatpush1.bf16.msra.mxu0 0
  %4307 = vmatprep.subr.bf16.mxu0 0
  %4308 = vmatpush1.bf16.msra.mxu0 0
  %4309 = vmatprep.subr.bf16.mxu0 0
  %4310 = vmatpush1.bf16.msra.mxu0 0
  %4311 = vmatprep.subr.bf16.mxu0 0
  %4312 = vmatpush1.bf16.msra.mxu0 0
  %4313 = vmatprep.subr.bf16.mxu0 0
  %4314 = vmatpush1.bf16.msra.mxu0 0
  %4315 = vmatprep.subr.bf16.mxu0 0
  %4316 = vmatpush1.bf16.msra.mxu0 0
  %4317 = vmatprep.subr.bf16.mxu0 0
  %4318 = vmatpush1.bf16.msra.mxu0 0
  %4319 = vmatprep.subr.bf16.mxu0 0
  %4320 = vmatpush1.bf16.msra.mxu0 0
  %4321 = vmatprep.subr.bf16.mxu0 0
  %4322 = vmatpush1.bf16.msra.mxu0 0
  %4323 = vmatprep.subr.bf16.mxu0 0
  %4324 = vmatpush1.bf16.msra.mxu0 0
  %4325 = vmatprep.subr.bf16.mxu0 0
  %4326 = vmatpush1.bf16.msra.mxu0 0
  %4327 = vmatprep.subr.bf16.mxu0 0
  %4328 = vmatpush1.bf16.msra.mxu0 0
  %4329 = vmatprep.mubr.bf16.mxu0 0
  %4330 = vmatmul.mubr.bf16.gmra.mrb[0].mxu0 %v4133
  %v4331 = vpop.f32.mrb[0].mxu0
  %v4332 = vadd.f32 %v4279, %v4331
  %v4333 = vpop.f32.mrb[0].mxu0
  %v4334 = vadd.f32 %v4281, %v4333
  %v4335 = vpop.f32.mrb[0].mxu0
  %v4336 = vadd.f32 %v4283, %v4335
  %v4337 = vpop.f32.mrb[0].mxu0
  %v4338 = vadd.f32 %v4285, %v4337
  %4339 = vmatprep.mubr.bf16.mxu0 0
  %4340 = vmatmul.mubr.bf16.gmra.mrb[0].mxu0 %v4136
  %v4341 = vpop.f32.mrb[0].mxu0
  %v4342 = vadd.f32 %v4289, %v4341
  %v4343 = vpop.f32.mrb[0].mxu0
  %v4344 = vadd.f32 %v4291, %v4343
  %v4345 = vpop.f32.mrb[0].mxu0
  %v4346 = vadd.f32 %v4293, %v4345
  %v4347 = vpop.f32.mrb[0].mxu0
  %v4348 = vadd.f32 %v4295, %v4347
  %4349 = vdwg.mxu0
  %4350 = vmatprep.subr.bf16.mxu0 %v3975
  %4351 = vmatpush1.bf16.msra.mxu0 %v3974
  %4352 = vmatprep.subr.bf16.mxu0 %v3981
  %4353 = vmatpush1.bf16.msra.mxu0 %v3980
  %4354 = vmatprep.subr.bf16.mxu0 %v3987
  %4355 = vmatpush1.bf16.msra.mxu0 %v3986
  %4356 = vmatprep.subr.bf16.mxu0 %v3993
  %4357 = vmatpush1.bf16.msra.mxu0 %v3992
  %4358 = vmatprep.subr.bf16.mxu0 %v3999
  %4359 = vmatpush1.bf16.msra.mxu0 %v3998
  %4360 = vmatprep.subr.bf16.mxu0 %v4005
  %4361 = vmatpush1.bf16.msra.mxu0 %v4004
  %4362 = vmatprep.subr.bf16.mxu0 %v4011
  %4363 = vmatpush1.bf16.msra.mxu0 %v4010
  %4364 = vmatprep.subr.bf16.mxu0 %v4017
  %4365 = vmatpush1.bf16.msra.mxu0 %v4016
  %4366 = vmatprep.subr.bf16.mxu0 %v4023
  %4367 = vmatpush1.bf16.msra.mxu0 %v4022
  %4368 = vmatprep.subr.bf16.mxu0 %v4029
  %4369 = vmatpush1.bf16.msra.mxu0 %v4028
  %4370 = vmatprep.subr.bf16.mxu0 %v4035
  %4371 = vmatpush1.bf16.msra.mxu0 %v4034
  %4372 = vmatprep.subr.bf16.mxu0 %v4041
  %4373 = vmatpush1.bf16.msra.mxu0 %v4040
  %4374 = vmatprep.subr.bf16.mxu0 %v4047
  %4375 = vmatpush1.bf16.msra.mxu0 %v4046
  %4376 = vmatprep.subr.bf16.mxu0 %v4053
  %4377 = vmatpush1.bf16.msra.mxu0 %v4052
  %4378 = vmatprep.subr.bf16.mxu0 %v4059
  %4379 = vmatpush1.bf16.msra.mxu0 %v4058
  %4380 = vmatprep.subr.bf16.mxu0 %v4065
  %4381 = vmatpush1.bf16.msra.mxu0 %v4064
  %4382 = vmatprep.mubr.bf16.mxu0 %v4123
  %4383 = vmatmul.mubr.bf16.gmra.mrb[0].mxu0 %v4122
  %v4384 = vpop.f32.mrb[0].mxu0
  %v4385 = vadd.f32 %v4085, %v4384
  %v4386 = vpop.f32.mrb[0].mxu0
  %v4387 = vadd.f32 %v4085, %v4386
  %v4388 = vpop.f32.mrb[0].mxu0
  %v4389 = vadd.f32 %v4090, %v4388
  %v4390 = vpop.f32.mrb[0].mxu0
  %v4391 = vadd.f32 %v4090, %v4390
  %4392 = vmatprep.mubr.bf16.mxu0 %v4126
  %4393 = vmatmul.mubr.bf16.gmra.mrb[0].mxu0 %v4125
  %v4394 = vpop.f32.mrb[0].mxu0
  %v4395 = vadd.f32 %v4095, %v4394
  %v4396 = vpop.f32.mrb[0].mxu0
  %v4397 = vadd.f32 %v4095, %v4396
  %v4398 = vpop.f32.mrb[0].mxu0
  %v4399 = vadd.f32 %v4100, %v4398
  %v4400 = vpop.f32.mrb[0].mxu0
  %v4401 = vadd.f32 %v4100, %v4400
  %4402 = vdwg.mxu0
  %4403 = vmatprep.subr.bf16.mxu0 %v4071
  %4404 = vmatpush1.bf16.msra.mxu0 %v4070
  %4405 = vmatprep.subr.bf16.mxu0 %v4077
  %4406 = vmatpush1.bf16.msra.mxu0 %v4076
  %4407 = vmatprep.subr.bf16.mxu0 0
  %4408 = vmatpush1.bf16.msra.mxu0 0
  %4409 = vmatprep.subr.bf16.mxu0 0
  %4410 = vmatpush1.bf16.msra.mxu0 0
  %4411 = vmatprep.subr.bf16.mxu0 0
  %4412 = vmatpush1.bf16.msra.mxu0 0
  %4413 = vmatprep.subr.bf16.mxu0 0
  %4414 = vmatpush1.bf16.msra.mxu0 0
  %4415 = vmatprep.subr.bf16.mxu0 0
  %4416 = vmatpush1.bf16.msra.mxu0 0
  %4417 = vmatprep.subr.bf16.mxu0 0
  %4418 = vmatpush1.bf16.msra.mxu0 0
  %4419 = vmatprep.subr.bf16.mxu0 0
  %4420 = vmatpush1.bf16.msra.mxu0 0
  %4421 = vmatprep.subr.bf16.mxu0 0
  %4422 = vmatpush1.bf16.msra.mxu0 0
  %4423 = vmatprep.subr.bf16.mxu0 0
  %4424 = vmatpush1.bf16.msra.mxu0 0
  %4425 = vmatprep.subr.bf16.mxu0 0
  %4426 = vmatpush1.bf16.msra.mxu0 0
  %4427 = vmatprep.subr.bf16.mxu0 0
  %4428 = vmatpush1.bf16.msra.mxu0 0
  %4429 = vmatprep.subr.bf16.mxu0 0
  %4430 = vmatpush1.bf16.msra.mxu0 0
  %4431 = vmatprep.subr.bf16.mxu0 0
  %4432 = vmatpush1.bf16.msra.mxu0 0
  %4433 = vmatprep.subr.bf16.mxu0 0
  %4434 = vmatpush1.bf16.msra.mxu0 0
  %4435 = vmatprep.mubr.bf16.mxu0 0
  %4436 = vmatmul.mubr.bf16.gmra.mrb[0].mxu0 %v4133
  %v4437 = vpop.f32.mrb[0].mxu0
  %v4438 = vadd.f32 %v4385, %v4437
  %v4439 = vpop.f32.mrb[0].mxu0
  %v4440 = vadd.f32 %v4387, %v4439
  %v4441 = vpop.f32.mrb[0].mxu0
  %v4442 = vadd.f32 %v4389, %v4441
  %v4443 = vpop.f32.mrb[0].mxu0
  %v4444 = vadd.f32 %v4391, %v4443
  %4445 = vmatprep.mubr.bf16.mxu0 0
  %4446 = vmatmul.mubr.bf16.gmra.mrb[0].mxu0 %v4136
  %v4447 = vpop.f32.mrb[0].mxu0
  %v4448 = vadd.f32 %v4395, %v4447
  %v4449 = vpop.f32.mrb[0].mxu0
  %v4450 = vadd.f32 %v4397, %v4449
  %v4451 = vpop.f32.mrb[0].mxu0
  %v4452 = vadd.f32 %v4399, %v4451
  %v4453 = vpop.f32.mrb[0].mxu0
  %v4454 = vadd.f32 %v4401, %v4453
  %4455 = vdwg.mxu0
  %v4456 = vmul.f32 %v4226, 0.5
  %v4457 = vmul.f32 %v4228, 0.5
  %v4458 = vmul.f32 %v4332, 0.5
  %v4459 = vmul.f32 %v4334, 0.5
  %v4460 = vmul.f32 %v4438, 0.5
  %v4461 = vmul.f32 %v4440, 0.5
  %v4462 = vmul.f32 %v4230, 0.5
  %v4463 = vmul.f32 %v4232, 0.5
  %v4464 = vmul.f32 %v4336, 0.5
  %v4465 = vmul.f32 %v4338, 0.5
  %v4466 = vmul.f32 %v4442, 0.5
  %v4467 = vmul.f32 %v4444, 0.5
  %v4468 = vmul.f32 %v4236, 0.5
  %v4469 = vmul.f32 %v4238, 0.5
  %v4470 = vmul.f32 %v4342, 0.5
  %v4471 = vmul.f32 %v4344, 0.5
  %v4472 = vmul.f32 %v4448, 0.5
  %v4473 = vmul.f32 %v4450, 0.5
  %v4474 = vmul.f32 %v4240, 0.5
  %v4475 = vmul.f32 %v4242, 0.5
  %v4476 = vmul.f32 %v4346, 0.5
  %v4477 = vmul.f32 %v4348, 0.5
  %v4478 = vmul.f32 %v4452, 0.5
  %v4479 = vmul.f32 %v4454, 0.5
  %v4480 = vmul.f32 %v4226, 0.70710677
  %v4481 = vmul.f32 %v4228, 0.70710677
  %v4482 = vmul.f32 %v4332, 0.70710677
  %v4483 = vmul.f32 %v4334, 0.70710677
  %v4484 = vmul.f32 %v4438, 0.70710677
  %v4485 = vmul.f32 %v4440, 0.70710677
  %v4486 = vmul.f32 %v4230, 0.70710677
  %v4487 = vmul.f32 %v4232, 0.70710677
  %v4488 = vmul.f32 %v4336, 0.70710677
  %v4489 = vmul.f32 %v4338, 0.70710677
  %v4490 = vmul.f32 %v4442, 0.70710677
  %v4491 = vmul.f32 %v4444, 0.70710677
  %v4492 = vmul.f32 %v4236, 0.70710677
  %v4493 = vmul.f32 %v4238, 0.70710677
  %v4494 = vmul.f32 %v4342, 0.70710677
  %v4495 = vmul.f32 %v4344, 0.70710677
  %v4496 = vmul.f32 %v4448, 0.70710677
  %v4497 = vmul.f32 %v4450, 0.70710677
  %v4498 = vmul.f32 %v4240, 0.70710677
  %v4499 = vmul.f32 %v4242, 0.70710677
  %v4500 = vmul.f32 %v4346, 0.70710677
  %v4501 = vmul.f32 %v4348, 0.70710677
  %v4502 = vmul.f32 %v4452, 0.70710677
  %v4503 = vmul.f32 %v4454, 0.70710677
  %vm4504 = vcmp.ge.f32.partialorder %v4480, 0.0
  %vm4505 = vcmp.ge.f32.partialorder %v4481, 0.0
  %vm4506 = vcmp.ge.f32.partialorder %v4482, 0.0
  %vm4507 = vcmp.ge.f32.partialorder %v4483, 0.0
  %vm4508 = vcmp.ge.f32.partialorder %v4484, 0.0
  %vm4509 = vcmp.ge.f32.partialorder %v4485, 0.0
  %vm4510 = vcmp.ge.f32.partialorder %v4486, 0.0
  %vm4511 = vcmp.ge.f32.partialorder %v4487, 0.0
  %vm4512 = vcmp.ge.f32.partialorder %v4488, 0.0
  %vm4513 = vcmp.ge.f32.partialorder %v4489, 0.0
  %vm4514 = vcmp.ge.f32.partialorder %v4490, 0.0
  %vm4515 = vcmp.ge.f32.partialorder %v4491, 0.0
  %vm4516 = vcmp.ge.f32.partialorder %v4492, 0.0
  %vm4517 = vcmp.ge.f32.partialorder %v4493, 0.0
  %vm4518 = vcmp.ge.f32.partialorder %v4494, 0.0
  %vm4519 = vcmp.ge.f32.partialorder %v4495, 0.0
  %vm4520 = vcmp.ge.f32.partialorder %v4496, 0.0
  %vm4521 = vcmp.ge.f32.partialorder %v4497, 0.0
  %vm4522 = vcmp.ge.f32.partialorder %v4498, 0.0
  %vm4523 = vcmp.ge.f32.partialorder %v4499, 0.0
  %vm4524 = vcmp.ge.f32.partialorder %v4500, 0.0
  %vm4525 = vcmp.ge.f32.partialorder %v4501, 0.0
  %vm4526 = vcmp.ge.f32.partialorder %v4502, 0.0
  %vm4527 = vcmp.ge.f32.partialorder %v4503, 0.0
  %v4528 = vsel %vm4504, 1.0, -1.0
  %v4529 = vsel %vm4505, 1.0, -1.0
  %v4530 = vsel %vm4506, 1.0, -1.0
  %v4531 = vsel %vm4507, 1.0, -1.0
  %v4532 = vsel %vm4508, 1.0, -1.0
  %v4533 = vsel %vm4509, 1.0, -1.0
  %v4534 = vsel %vm4510, 1.0, -1.0
  %v4535 = vsel %vm4511, 1.0, -1.0
  %v4536 = vsel %vm4512, 1.0, -1.0
  %v4537 = vsel %vm4513, 1.0, -1.0
  %v4538 = vsel %vm4514, 1.0, -1.0
  %v4539 = vsel %vm4515, 1.0, -1.0
  %v4540 = vsel %vm4516, 1.0, -1.0
  %v4541 = vsel %vm4517, 1.0, -1.0
  %v4542 = vsel %vm4518, 1.0, -1.0
  %v4543 = vsel %vm4519, 1.0, -1.0
  %v4544 = vsel %vm4520, 1.0, -1.0
  %v4545 = vsel %vm4521, 1.0, -1.0
  %v4546 = vsel %vm4522, 1.0, -1.0
  %v4547 = vsel %vm4523, 1.0, -1.0
  %v4548 = vsel %vm4524, 1.0, -1.0
  %v4549 = vsel %vm4525, 1.0, -1.0
  %v4550 = vsel %vm4526, 1.0, -1.0
  %v4551 = vsel %vm4527, 1.0, -1.0
  %v4552 = vand.u32 2147483647, %v4480
  %v4553 = vand.u32 2147483647, %v4481
  %v4554 = vand.u32 2147483647, %v4482
  %v4555 = vand.u32 2147483647, %v4483
  %v4556 = vand.u32 2147483647, %v4484
  %v4557 = vand.u32 2147483647, %v4485
  %v4558 = vand.u32 2147483647, %v4486
  %v4559 = vand.u32 2147483647, %v4487
  %v4560 = vand.u32 2147483647, %v4488
  %v4561 = vand.u32 2147483647, %v4489
  %v4562 = vand.u32 2147483647, %v4490
  %v4563 = vand.u32 2147483647, %v4491
  %v4564 = vand.u32 2147483647, %v4492
  %v4565 = vand.u32 2147483647, %v4493
  %v4566 = vand.u32 2147483647, %v4494
  %v4567 = vand.u32 2147483647, %v4495
  %v4568 = vand.u32 2147483647, %v4496
  %v4569 = vand.u32 2147483647, %v4497
  %v4570 = vand.u32 2147483647, %v4498
  %v4571 = vand.u32 2147483647, %v4499
  %v4572 = vand.u32 2147483647, %v4500
  %v4573 = vand.u32 2147483647, %v4501
  %v4574 = vand.u32 2147483647, %v4502
  %v4575 = vand.u32 2147483647, %v4503
  %v4576 = vmul.f32 %v4552, 0.3275911
  %v4577 = vmul.f32 %v4553, 0.3275911
  %v4578 = vmul.f32 %v4554, 0.3275911
  %v4579 = vmul.f32 %v4555, 0.3275911
  %v4580 = vmul.f32 %v4556, 0.3275911
  %v4581 = vmul.f32 %v4557, 0.3275911
  %v4582 = vmul.f32 %v4558, 0.3275911
  %v4583 = vmul.f32 %v4559, 0.3275911
  %v4584 = vmul.f32 %v4560, 0.3275911
  %v4585 = vmul.f32 %v4561, 0.3275911
  %v4586 = vmul.f32 %v4562, 0.3275911
  %v4587 = vmul.f32 %v4563, 0.3275911
  %v4588 = vmul.f32 %v4564, 0.3275911
  %v4589 = vmul.f32 %v4565, 0.3275911
  %v4590 = vmul.f32 %v4566, 0.3275911
  %v4591 = vmul.f32 %v4567, 0.3275911
  %v4592 = vmul.f32 %v4568, 0.3275911
  %v4593 = vmul.f32 %v4569, 0.3275911
  %v4594 = vmul.f32 %v4570, 0.3275911
  %v4595 = vmul.f32 %v4571, 0.3275911
  %v4596 = vmul.f32 %v4572, 0.3275911
  %v4597 = vmul.f32 %v4573, 0.3275911
  %v4598 = vmul.f32 %v4574, 0.3275911
  %v4599 = vmul.f32 %v4575, 0.3275911
  %v4600 = vadd.f32 %v4576, 1.0
  %v4601 = vadd.f32 %v4577, 1.0
  %v4602 = vadd.f32 %v4578, 1.0
  %v4603 = vadd.f32 %v4579, 1.0
  %v4604 = vadd.f32 %v4580, 1.0
  %v4605 = vadd.f32 %v4581, 1.0
  %v4606 = vadd.f32 %v4582, 1.0
  %v4607 = vadd.f32 %v4583, 1.0
  %v4608 = vadd.f32 %v4584, 1.0
  %v4609 = vadd.f32 %v4585, 1.0
  %v4610 = vadd.f32 %v4586, 1.0
  %v4611 = vadd.f32 %v4587, 1.0
  %v4612 = vadd.f32 %v4588, 1.0
  %v4613 = vadd.f32 %v4589, 1.0
  %v4614 = vadd.f32 %v4590, 1.0
  %v4615 = vadd.f32 %v4591, 1.0
  %v4616 = vadd.f32 %v4592, 1.0
  %v4617 = vadd.f32 %v4593, 1.0
  %v4618 = vadd.f32 %v4594, 1.0
  %v4619 = vadd.f32 %v4595, 1.0
  %v4620 = vadd.f32 %v4596, 1.0
  %v4621 = vadd.f32 %v4597, 1.0
  %v4622 = vadd.f32 %v4598, 1.0
  %v4623 = vadd.f32 %v4599, 1.0
  %v4624 = vrcp.pop %v4600
  %v4625 = vrcp.pop %v4601
  %v4626 = vrcp.pop %v4602
  %v4627 = vrcp.pop %v4603
  %v4628 = vrcp.pop %v4604
  %v4629 = vrcp.pop %v4605
  %v4630 = vrcp.pop %v4606
  %v4631 = vrcp.pop %v4607
  %v4632 = vrcp.pop %v4608
  %v4633 = vrcp.pop %v4609
  %v4634 = vrcp.pop %v4610
  %v4635 = vrcp.pop %v4611
  %v4636 = vrcp.pop %v4612
  %v4637 = vrcp.pop %v4613
  %v4638 = vrcp.pop %v4614
  %v4639 = vrcp.pop %v4615
  %v4640 = vrcp.pop %v4616
  %v4641 = vrcp.pop %v4617
  %v4642 = vrcp.pop %v4618
  %v4643 = vrcp.pop %v4619
  %v4644 = vrcp.pop %v4620
  %v4645 = vrcp.pop %v4621
  %v4646 = vrcp.pop %v4622
  %v4647 = vrcp.pop %v4623
  %v4648 = vmul.f32 %v4624, 1.0614054
  %v4649 = vmul.f32 %v4625, 1.0614054
  %v4650 = vmul.f32 %v4626, 1.0614054
  %v4651 = vmul.f32 %v4627, 1.0614054
  %v4652 = vmul.f32 %v4628, 1.0614054
  %v4653 = vmul.f32 %v4629, 1.0614054
  %v4654 = vmul.f32 %v4630, 1.0614054
  %v4655 = vmul.f32 %v4631, 1.0614054
  %v4656 = vmul.f32 %v4632, 1.0614054
  %v4657 = vmul.f32 %v4633, 1.0614054
  %v4658 = vmul.f32 %v4634, 1.0614054
  %v4659 = vmul.f32 %v4635, 1.0614054
  %v4660 = vmul.f32 %v4636, 1.0614054
  %v4661 = vmul.f32 %v4637, 1.0614054
  %v4662 = vmul.f32 %v4638, 1.0614054
  %v4663 = vmul.f32 %v4639, 1.0614054
  %v4664 = vmul.f32 %v4640, 1.0614054
  %v4665 = vmul.f32 %v4641, 1.0614054
  %v4666 = vmul.f32 %v4642, 1.0614054
  %v4667 = vmul.f32 %v4643, 1.0614054
  %v4668 = vmul.f32 %v4644, 1.0614054
  %v4669 = vmul.f32 %v4645, 1.0614054
  %v4670 = vmul.f32 %v4646, 1.0614054
  %v4671 = vmul.f32 %v4647, 1.0614054
  %v4672 = vadd.f32 %v4648, -1.4531521
  %v4673 = vadd.f32 %v4649, -1.4531521
  %v4674 = vadd.f32 %v4650, -1.4531521
  %v4675 = vadd.f32 %v4651, -1.4531521
  %v4676 = vadd.f32 %v4652, -1.4531521
  %v4677 = vadd.f32 %v4653, -1.4531521
  %v4678 = vadd.f32 %v4654, -1.4531521
  %v4679 = vadd.f32 %v4655, -1.4531521
  %v4680 = vadd.f32 %v4656, -1.4531521
  %v4681 = vadd.f32 %v4657, -1.4531521
  %v4682 = vadd.f32 %v4658, -1.4531521
  %v4683 = vadd.f32 %v4659, -1.4531521
  %v4684 = vadd.f32 %v4660, -1.4531521
  %v4685 = vadd.f32 %v4661, -1.4531521
  %v4686 = vadd.f32 %v4662, -1.4531521
  %v4687 = vadd.f32 %v4663, -1.4531521
  %v4688 = vadd.f32 %v4664, -1.4531521
  %v4689 = vadd.f32 %v4665, -1.4531521
  %v4690 = vadd.f32 %v4666, -1.4531521
  %v4691 = vadd.f32 %v4667, -1.4531521
  %v4692 = vadd.f32 %v4668, -1.4531521
  %v4693 = vadd.f32 %v4669, -1.4531521
  %v4694 = vadd.f32 %v4670, -1.4531521
  %v4695 = vadd.f32 %v4671, -1.4531521
  %v4696 = vmul.f32 %v4672, %v4624
  %v4697 = vmul.f32 %v4673, %v4625
  %v4698 = vmul.f32 %v4674, %v4626
  %v4699 = vmul.f32 %v4675, %v4627
  %v4700 = vmul.f32 %v4676, %v4628
  %v4701 = vmul.f32 %v4677, %v4629
  %v4702 = vmul.f32 %v4678, %v4630
  %v4703 = vmul.f32 %v4679, %v4631
  %v4704 = vmul.f32 %v4680, %v4632
  %v4705 = vmul.f32 %v4681, %v4633
  %v4706 = vmul.f32 %v4682, %v4634
  %v4707 = vmul.f32 %v4683, %v4635
  %v4708 = vmul.f32 %v4684, %v4636
  %v4709 = vmul.f32 %v4685, %v4637
  %v4710 = vmul.f32 %v4686, %v4638
  %v4711 = vmul.f32 %v4687, %v4639
  %v4712 = vmul.f32 %v4688, %v4640
  %v4713 = vmul.f32 %v4689, %v4641
  %v4714 = vmul.f32 %v4690, %v4642
  %v4715 = vmul.f32 %v4691, %v4643
  %v4716 = vmul.f32 %v4692, %v4644
  %v4717 = vmul.f32 %v4693, %v4645
  %v4718 = vmul.f32 %v4694, %v4646
  %v4719 = vmul.f32 %v4695, %v4647
  %v4720 = vadd.f32 %v4696, 1.4214138
  %v4721 = vadd.f32 %v4697, 1.4214138
  %v4722 = vadd.f32 %v4698, 1.4214138
  %v4723 = vadd.f32 %v4699, 1.4214138
  %v4724 = vadd.f32 %v4700, 1.4214138
  %v4725 = vadd.f32 %v4701, 1.4214138
  %v4726 = vadd.f32 %v4702, 1.4214138
  %v4727 = vadd.f32 %v4703, 1.4214138
  %v4728 = vadd.f32 %v4704, 1.4214138
  %v4729 = vadd.f32 %v4705, 1.4214138
  %v4730 = vadd.f32 %v4706, 1.4214138
  %v4731 = vadd.f32 %v4707, 1.4214138
  %v4732 = vadd.f32 %v4708, 1.4214138
  %v4733 = vadd.f32 %v4709, 1.4214138
  %v4734 = vadd.f32 %v4710, 1.4214138
  %v4735 = vadd.f32 %v4711, 1.4214138
  %v4736 = vadd.f32 %v4712, 1.4214138
  %v4737 = vadd.f32 %v4713, 1.4214138
  %v4738 = vadd.f32 %v4714, 1.4214138
  %v4739 = vadd.f32 %v4715, 1.4214138
  %v4740 = vadd.f32 %v4716, 1.4214138
  %v4741 = vadd.f32 %v4717, 1.4214138
  %v4742 = vadd.f32 %v4718, 1.4214138
  %v4743 = vadd.f32 %v4719, 1.4214138
  %v4744 = vmul.f32 %v4720, %v4624
  %v4745 = vmul.f32 %v4721, %v4625
  %v4746 = vmul.f32 %v4722, %v4626
  %v4747 = vmul.f32 %v4723, %v4627
  %v4748 = vmul.f32 %v4724, %v4628
  %v4749 = vmul.f32 %v4725, %v4629
  %v4750 = vmul.f32 %v4726, %v4630
  %v4751 = vmul.f32 %v4727, %v4631
  %v4752 = vmul.f32 %v4728, %v4632
  %v4753 = vmul.f32 %v4729, %v4633
  %v4754 = vmul.f32 %v4730, %v4634
  %v4755 = vmul.f32 %v4731, %v4635
  %v4756 = vmul.f32 %v4732, %v4636
  %v4757 = vmul.f32 %v4733, %v4637
  %v4758 = vmul.f32 %v4734, %v4638
  %v4759 = vmul.f32 %v4735, %v4639
  %v4760 = vmul.f32 %v4736, %v4640
  %v4761 = vmul.f32 %v4737, %v4641
  %v4762 = vmul.f32 %v4738, %v4642
  %v4763 = vmul.f32 %v4739, %v4643
  %v4764 = vmul.f32 %v4740, %v4644
  %v4765 = vmul.f32 %v4741, %v4645
  %v4766 = vmul.f32 %v4742, %v4646
  %v4767 = vmul.f32 %v4743, %v4647
  %v4768 = vadd.f32 %v4744, -0.28449672
  %v4769 = vadd.f32 %v4745, -0.28449672
  %v4770 = vadd.f32 %v4746, -0.28449672
  %v4771 = vadd.f32 %v4747, -0.28449672
  %v4772 = vadd.f32 %v4748, -0.28449672
  %v4773 = vadd.f32 %v4749, -0.28449672
  %v4774 = vadd.f32 %v4750, -0.28449672
  %v4775 = vadd.f32 %v4751, -0.28449672
  %v4776 = vadd.f32 %v4752, -0.28449672
  %v4777 = vadd.f32 %v4753, -0.28449672
  %v4778 = vadd.f32 %v4754, -0.28449672
  %v4779 = vadd.f32 %v4755, -0.28449672
  %v4780 = vadd.f32 %v4756, -0.28449672
  %v4781 = vadd.f32 %v4757, -0.28449672
  %v4782 = vadd.f32 %v4758, -0.28449672
  %v4783 = vadd.f32 %v4759, -0.28449672
  %v4784 = vadd.f32 %v4760, -0.28449672
  %v4785 = vadd.f32 %v4761, -0.28449672
  %v4786 = vadd.f32 %v4762, -0.28449672
  %v4787 = vadd.f32 %v4763, -0.28449672
  %v4788 = vadd.f32 %v4764, -0.28449672
  %v4789 = vadd.f32 %v4765, -0.28449672
  %v4790 = vadd.f32 %v4766, -0.28449672
  %v4791 = vadd.f32 %v4767, -0.28449672
  %v4792 = vmul.f32 %v4768, %v4624
  %v4793 = vmul.f32 %v4769, %v4625
  %v4794 = vmul.f32 %v4770, %v4626
  %v4795 = vmul.f32 %v4771, %v4627
  %v4796 = vmul.f32 %v4772, %v4628
  %v4797 = vmul.f32 %v4773, %v4629
  %v4798 = vmul.f32 %v4774, %v4630
  %v4799 = vmul.f32 %v4775, %v4631
  %v4800 = vmul.f32 %v4776, %v4632
  %v4801 = vmul.f32 %v4777, %v4633
  %v4802 = vmul.f32 %v4778, %v4634
  %v4803 = vmul.f32 %v4779, %v4635
  %v4804 = vmul.f32 %v4780, %v4636
  %v4805 = vmul.f32 %v4781, %v4637
  %v4806 = vmul.f32 %v4782, %v4638
  %v4807 = vmul.f32 %v4783, %v4639
  %v4808 = vmul.f32 %v4784, %v4640
  %v4809 = vmul.f32 %v4785, %v4641
  %v4810 = vmul.f32 %v4786, %v4642
  %v4811 = vmul.f32 %v4787, %v4643
  %v4812 = vmul.f32 %v4788, %v4644
  %v4813 = vmul.f32 %v4789, %v4645
  %v4814 = vmul.f32 %v4790, %v4646
  %v4815 = vmul.f32 %v4791, %v4647
  %v4816 = vadd.f32 %v4792, 0.2548296
  %v4817 = vadd.f32 %v4793, 0.2548296
  %v4818 = vadd.f32 %v4794, 0.2548296
  %v4819 = vadd.f32 %v4795, 0.2548296
  %v4820 = vadd.f32 %v4796, 0.2548296
  %v4821 = vadd.f32 %v4797, 0.2548296
  %v4822 = vadd.f32 %v4798, 0.2548296
  %v4823 = vadd.f32 %v4799, 0.2548296
  %v4824 = vadd.f32 %v4800, 0.2548296
  %v4825 = vadd.f32 %v4801, 0.2548296
  %v4826 = vadd.f32 %v4802, 0.2548296
  %v4827 = vadd.f32 %v4803, 0.2548296
  %v4828 = vadd.f32 %v4804, 0.2548296
  %v4829 = vadd.f32 %v4805, 0.2548296
  %v4830 = vadd.f32 %v4806, 0.2548296
  %v4831 = vadd.f32 %v4807, 0.2548296
  %v4832 = vadd.f32 %v4808, 0.2548296
  %v4833 = vadd.f32 %v4809, 0.2548296
  %v4834 = vadd.f32 %v4810, 0.2548296
  %v4835 = vadd.f32 %v4811, 0.2548296
  %v4836 = vadd.f32 %v4812, 0.2548296
  %v4837 = vadd.f32 %v4813, 0.2548296
  %v4838 = vadd.f32 %v4814, 0.2548296
  %v4839 = vadd.f32 %v4815, 0.2548296
  %v4840 = vmul.f32 %v4816, %v4624
  %v4841 = vmul.f32 %v4817, %v4625
  %v4842 = vmul.f32 %v4818, %v4626
  %v4843 = vmul.f32 %v4819, %v4627
  %v4844 = vmul.f32 %v4820, %v4628
  %v4845 = vmul.f32 %v4821, %v4629
  %v4846 = vmul.f32 %v4822, %v4630
  %v4847 = vmul.f32 %v4823, %v4631
  %v4848 = vmul.f32 %v4824, %v4632
  %v4849 = vmul.f32 %v4825, %v4633
  %v4850 = vmul.f32 %v4826, %v4634
  %v4851 = vmul.f32 %v4827, %v4635
  %v4852 = vmul.f32 %v4828, %v4636
  %v4853 = vmul.f32 %v4829, %v4637
  %v4854 = vmul.f32 %v4830, %v4638
  %v4855 = vmul.f32 %v4831, %v4639
  %v4856 = vmul.f32 %v4832, %v4640
  %v4857 = vmul.f32 %v4833, %v4641
  %v4858 = vmul.f32 %v4834, %v4642
  %v4859 = vmul.f32 %v4835, %v4643
  %v4860 = vmul.f32 %v4836, %v4644
  %v4861 = vmul.f32 %v4837, %v4645
  %v4862 = vmul.f32 %v4838, %v4646
  %v4863 = vmul.f32 %v4839, %v4647
  %v4864 = vsub.f32 0.0, %v4552
  %v4865 = vsub.f32 0.0, %v4553
  %v4866 = vsub.f32 0.0, %v4554
  %v4867 = vsub.f32 0.0, %v4555
  %v4868 = vsub.f32 0.0, %v4556
  %v4869 = vsub.f32 0.0, %v4557
  %v4870 = vsub.f32 0.0, %v4558
  %v4871 = vsub.f32 0.0, %v4559
  %v4872 = vsub.f32 0.0, %v4560
  %v4873 = vsub.f32 0.0, %v4561
  %v4874 = vsub.f32 0.0, %v4562
  %v4875 = vsub.f32 0.0, %v4563
  %v4876 = vsub.f32 0.0, %v4564
  %v4877 = vsub.f32 0.0, %v4565
  %v4878 = vsub.f32 0.0, %v4566
  %v4879 = vsub.f32 0.0, %v4567
  %v4880 = vsub.f32 0.0, %v4568
  %v4881 = vsub.f32 0.0, %v4569
  %v4882 = vsub.f32 0.0, %v4570
  %v4883 = vsub.f32 0.0, %v4571
  %v4884 = vsub.f32 0.0, %v4572
  %v4885 = vsub.f32 0.0, %v4573
  %v4886 = vsub.f32 0.0, %v4574
  %v4887 = vsub.f32 0.0, %v4575
  %v4888 = vmul.f32 %v4864, %v4552
  %v4889 = vmul.f32 %v4865, %v4553
  %v4890 = vmul.f32 %v4866, %v4554
  %v4891 = vmul.f32 %v4867, %v4555
  %v4892 = vmul.f32 %v4868, %v4556
  %v4893 = vmul.f32 %v4869, %v4557
  %v4894 = vmul.f32 %v4870, %v4558
  %v4895 = vmul.f32 %v4871, %v4559
  %v4896 = vmul.f32 %v4872, %v4560
  %v4897 = vmul.f32 %v4873, %v4561
  %v4898 = vmul.f32 %v4874, %v4562
  %v4899 = vmul.f32 %v4875, %v4563
  %v4900 = vmul.f32 %v4876, %v4564
  %v4901 = vmul.f32 %v4877, %v4565
  %v4902 = vmul.f32 %v4878, %v4566
  %v4903 = vmul.f32 %v4879, %v4567
  %v4904 = vmul.f32 %v4880, %v4568
  %v4905 = vmul.f32 %v4881, %v4569
  %v4906 = vmul.f32 %v4882, %v4570
  %v4907 = vmul.f32 %v4883, %v4571
  %v4908 = vmul.f32 %v4884, %v4572
  %v4909 = vmul.f32 %v4885, %v4573
  %v4910 = vmul.f32 %v4886, %v4574
  %v4911 = vmul.f32 %v4887, %v4575
  %v4912 = vmul.f32 %v4888, 1.442695
  %v4913 = vpow.pop %v4912
  %v4914 = vmul.f32 %v4889, 1.442695
  %v4915 = vpow.pop %v4914
  %v4916 = vmul.f32 %v4890, 1.442695
  %v4917 = vpow.pop %v4916
  %v4918 = vmul.f32 %v4891, 1.442695
  %v4919 = vpow.pop %v4918
  %v4920 = vmul.f32 %v4892, 1.442695
  %v4921 = vpow.pop %v4920
  %v4922 = vmul.f32 %v4893, 1.442695
  %v4923 = vpow.pop %v4922
  %v4924 = vmul.f32 %v4894, 1.442695
  %v4925 = vpow.pop %v4924
  %v4926 = vmul.f32 %v4895, 1.442695
  %v4927 = vpow.pop %v4926
  %v4928 = vmul.f32 %v4896, 1.442695
  %v4929 = vpow.pop %v4928
  %v4930 = vmul.f32 %v4897, 1.442695
  %v4931 = vpow.pop %v4930
  %v4932 = vmul.f32 %v4898, 1.442695
  %v4933 = vpow.pop %v4932
  %v4934 = vmul.f32 %v4899, 1.442695
  %v4935 = vpow.pop %v4934
  %v4936 = vmul.f32 %v4900, 1.442695
  %v4937 = vpow.pop %v4936
  %v4938 = vmul.f32 %v4901, 1.442695
  %v4939 = vpow.pop %v4938
  %v4940 = vmul.f32 %v4902, 1.442695
  %v4941 = vpow.pop %v4940
  %v4942 = vmul.f32 %v4903, 1.442695
  %v4943 = vpow.pop %v4942
  %v4944 = vmul.f32 %v4904, 1.442695
  %v4945 = vpow.pop %v4944
  %v4946 = vmul.f32 %v4905, 1.442695
  %v4947 = vpow.pop %v4946
  %v4948 = vmul.f32 %v4906, 1.442695
  %v4949 = vpow.pop %v4948
  %v4950 = vmul.f32 %v4907, 1.442695
  %v4951 = vpow.pop %v4950
  %v4952 = vmul.f32 %v4908, 1.442695
  %v4953 = vpow.pop %v4952
  %v4954 = vmul.f32 %v4909, 1.442695
  %v4955 = vpow.pop %v4954
  %v4956 = vmul.f32 %v4910, 1.442695
  %v4957 = vpow.pop %v4956
  %v4958 = vmul.f32 %v4911, 1.442695
  %v4959 = vpow.pop %v4958
  %v4960 = vmul.f32 %v4840, %v4913
  %v4961 = vmul.f32 %v4841, %v4915
  %v4962 = vmul.f32 %v4842, %v4917
  %v4963 = vmul.f32 %v4843, %v4919
  %v4964 = vmul.f32 %v4844, %v4921
  %v4965 = vmul.f32 %v4845, %v4923
  %v4966 = vmul.f32 %v4846, %v4925
  %v4967 = vmul.f32 %v4847, %v4927
  %v4968 = vmul.f32 %v4848, %v4929
  %v4969 = vmul.f32 %v4849, %v4931
  %v4970 = vmul.f32 %v4850, %v4933
  %v4971 = vmul.f32 %v4851, %v4935
  %v4972 = vmul.f32 %v4852, %v4937
  %v4973 = vmul.f32 %v4853, %v4939
  %v4974 = vmul.f32 %v4854, %v4941
  %v4975 = vmul.f32 %v4855, %v4943
  %v4976 = vmul.f32 %v4856, %v4945
  %v4977 = vmul.f32 %v4857, %v4947
  %v4978 = vmul.f32 %v4858, %v4949
  %v4979 = vmul.f32 %v4859, %v4951
  %v4980 = vmul.f32 %v4860, %v4953
  %v4981 = vmul.f32 %v4861, %v4955
  %v4982 = vmul.f32 %v4862, %v4957
  %v4983 = vmul.f32 %v4863, %v4959
  %v4984 = vsub.f32 1.0, %v4960
  %v4985 = vsub.f32 1.0, %v4961
  %v4986 = vsub.f32 1.0, %v4962
  %v4987 = vsub.f32 1.0, %v4963
  %v4988 = vsub.f32 1.0, %v4964
  %v4989 = vsub.f32 1.0, %v4965
  %v4990 = vsub.f32 1.0, %v4966
  %v4991 = vsub.f32 1.0, %v4967
  %v4992 = vsub.f32 1.0, %v4968
  %v4993 = vsub.f32 1.0, %v4969
  %v4994 = vsub.f32 1.0, %v4970
  %v4995 = vsub.f32 1.0, %v4971
  %v4996 = vsub.f32 1.0, %v4972
  %v4997 = vsub.f32 1.0, %v4973
  %v4998 = vsub.f32 1.0, %v4974
  %v4999 = vsub.f32 1.0, %v4975
  %v5000 = vsub.f32 1.0, %v4976
  %v5001 = vsub.f32 1.0, %v4977
  %v5002 = vsub.f32 1.0, %v4978
  %v5003 = vsub.f32 1.0, %v4979
  %v5004 = vsub.f32 1.0, %v4980
  %v5005 = vsub.f32 1.0, %v4981
  %v5006 = vsub.f32 1.0, %v4982
  %v5007 = vsub.f32 1.0, %v4983
  %v5008 = vmul.f32 %v4528, %v4984
  %v5009 = vmul.f32 %v4529, %v4985
  %v5010 = vmul.f32 %v4530, %v4986
  %v5011 = vmul.f32 %v4531, %v4987
  %v5012 = vmul.f32 %v4532, %v4988
  %v5013 = vmul.f32 %v4533, %v4989
  %v5014 = vmul.f32 %v4534, %v4990
  %v5015 = vmul.f32 %v4535, %v4991
  %v5016 = vmul.f32 %v4536, %v4992
  %v5017 = vmul.f32 %v4537, %v4993
  %v5018 = vmul.f32 %v4538, %v4994
  %v5019 = vmul.f32 %v4539, %v4995
  %v5020 = vmul.f32 %v4540, %v4996
  %v5021 = vmul.f32 %v4541, %v4997
  %v5022 = vmul.f32 %v4542, %v4998
  %v5023 = vmul.f32 %v4543, %v4999
  %v5024 = vmul.f32 %v4544, %v5000
  %v5025 = vmul.f32 %v4545, %v5001
  %v5026 = vmul.f32 %v4546, %v5002
  %v5027 = vmul.f32 %v4547, %v5003
  %v5028 = vmul.f32 %v4548, %v5004
  %v5029 = vmul.f32 %v4549, %v5005
  %v5030 = vmul.f32 %v4550, %v5006
  %v5031 = vmul.f32 %v4551, %v5007
  %v5032 = vadd.f32 %v5008, 1.0
  %v5033 = vadd.f32 %v5009, 1.0
  %v5034 = vadd.f32 %v5010, 1.0
  %v5035 = vadd.f32 %v5011, 1.0
  %v5036 = vadd.f32 %v5012, 1.0
  %v5037 = vadd.f32 %v5013, 1.0
  %v5038 = vadd.f32 %v5014, 1.0
  %v5039 = vadd.f32 %v5015, 1.0
  %v5040 = vadd.f32 %v5016, 1.0
  %v5041 = vadd.f32 %v5017, 1.0
  %v5042 = vadd.f32 %v5018, 1.0
  %v5043 = vadd.f32 %v5019, 1.0
  %v5044 = vadd.f32 %v5020, 1.0
  %v5045 = vadd.f32 %v5021, 1.0
  %v5046 = vadd.f32 %v5022, 1.0
  %v5047 = vadd.f32 %v5023, 1.0
  %v5048 = vadd.f32 %v5024, 1.0
  %v5049 = vadd.f32 %v5025, 1.0
  %v5050 = vadd.f32 %v5026, 1.0
  %v5051 = vadd.f32 %v5027, 1.0
  %v5052 = vadd.f32 %v5028, 1.0
  %v5053 = vadd.f32 %v5029, 1.0
  %v5054 = vadd.f32 %v5030, 1.0
  %v5055 = vadd.f32 %v5031, 1.0
  %v5056 = vmul.f32 %v4456, %v5032
  %v5057 = vmul.f32 %v4457, %v5033
  %v5058 = vmul.f32 %v4458, %v5034
  %v5059 = vmul.f32 %v4459, %v5035
  %v5060 = vmul.f32 %v4460, %v5036
  %v5061 = vmul.f32 %v4461, %v5037
  %v5062 = vmul.f32 %v4462, %v5038
  %v5063 = vmul.f32 %v4463, %v5039
  %v5064 = vmul.f32 %v4464, %v5040
  %v5065 = vmul.f32 %v4465, %v5041
  %v5066 = vmul.f32 %v4466, %v5042
  %v5067 = vmul.f32 %v4467, %v5043
  %v5068 = vmul.f32 %v4468, %v5044
  %v5069 = vmul.f32 %v4469, %v5045
  %v5070 = vmul.f32 %v4470, %v5046
  %v5071 = vmul.f32 %v4471, %v5047
  %v5072 = vmul.f32 %v4472, %v5048
  %v5073 = vmul.f32 %v4473, %v5049
  %v5074 = vmul.f32 %v4474, %v5050
  %v5075 = vmul.f32 %v4475, %v5051
  %v5076 = vmul.f32 %v4476, %v5052
  %v5077 = vmul.f32 %v4477, %v5053
  %v5078 = vmul.f32 %v4478, %v5054
  %v5079 = vmul.f32 %v4479, %v5055
  %vm5080 = vcmp.ne.f32.partialorder %v62, 0.0
  %v5081 = vadd.f32 %v5056, %v1547
  %v5082 = vadd.f32 %v5057, %v1548
  %v5083 = vadd.f32 %v5058, %v1549
  %v5084 = vadd.f32 %v5059, %v1550
  %v5085 = vadd.f32 %v5060, %v1551
  %v5086 = vadd.f32 %v5061, %v1552
  %v5087 = vadd.f32 %v5062, %v1553
  %v5088 = vadd.f32 %v5063, %v1554
  %v5089 = vadd.f32 %v5064, %v1555
  %v5090 = vadd.f32 %v5065, %v1556
  %v5091 = vadd.f32 %v5066, %v1557
  %v5092 = vadd.f32 %v5067, %v1558
  %v5093 = vadd.f32 %v5068, %v1559
  %v5094 = vadd.f32 %v5069, %v1560
  %v5095 = vadd.f32 %v5070, %v1561
  %v5096 = vadd.f32 %v5071, %v1562
  %v5097 = vadd.f32 %v5072, %v1563
  %v5098 = vadd.f32 %v5073, %v1564
  %v5099 = vadd.f32 %v5074, %v1565
  %v5100 = vadd.f32 %v5075, %v1566
  %v5101 = vadd.f32 %v5076, %v1567
  %v5102 = vadd.f32 %v5077, %v1568
  %v5103 = vadd.f32 %v5078, %v1569
  %v5104 = vadd.f32 %v5079, %v1570
  %v5105 = vsel %vm5080, 1, 0
  %v5106 = vlaneseq
  %v5107 = vshrl.u32 %v5106, 7
  %v5108 = vsub.s32 0, %v5107
  %v5109 = vrot.slane %v5105, %v5108
  %v5110 = vlaneseq
  %v5111 = vshrl.u32 %v5110, 7
  %v5112 = vsub.s32 1, %v5111
  %v5113 = vrot.slane %v5105, %v5112
  %v5114 = vlaneseq
  %v5115 = vshrl.u32 %v5114, 7
  %v5116 = vsub.s32 2, %v5115
  %v5117 = vrot.slane %v5105, %v5116
  %v5118 = vlaneseq
  %v5119 = vshrl.u32 %v5118, 7
  %v5120 = vsub.s32 3, %v5119
  %v5121 = vrot.slane %v5105, %v5120
  %v5122 = vlaneseq
  %v5123 = vshrl.u32 %v5122, 7
  %v5124 = vsub.s32 4, %v5123
  %v5125 = vrot.slane %v5105, %v5124
  %v5126 = vlaneseq
  %v5127 = vshrl.u32 %v5126, 7
  %v5128 = vsub.s32 5, %v5127
  %v5129 = vrot.slane %v5105, %v5128
  %vm5130 = vcmp.eq.s32.totalorder %v5109, 1
  %vm5131 = vcmp.eq.s32.totalorder %v5113, 1
  %vm5132 = vcmp.eq.s32.totalorder %v5117, 1
  %vm5133 = vcmp.eq.s32.totalorder %v5121, 1
  %vm5134 = vcmp.eq.s32.totalorder %v5125, 1
  %vm5135 = vcmp.eq.s32.totalorder %v5129, 1
  %v5136 = vsel %vm5130, %v5081, 0.0
  %v5137 = vsel %vm5131, %v5082, 0.0
  %v5138 = vsel %vm5132, %v5083, 0.0
  %v5139 = vsel %vm5133, %v5084, 0.0
  %v5140 = vsel %vm5134, %v5085, 0.0
  %v5141 = vsel %vm5135, %v5086, 0.0
  %v5142 = vsel %vm5130, %v5087, 0.0
  %v5143 = vsel %vm5131, %v5088, 0.0
  %v5144 = vsel %vm5132, %v5089, 0.0
  %v5145 = vsel %vm5133, %v5090, 0.0
  %v5146 = vsel %vm5134, %v5091, 0.0
  %v5147 = vsel %vm5135, %v5092, 0.0
  %v5148 = vsel %vm5130, %v5093, 0.0
  %v5149 = vsel %vm5131, %v5094, 0.0
  %v5150 = vsel %vm5132, %v5095, 0.0
  %v5151 = vsel %vm5133, %v5096, 0.0
  %v5152 = vsel %vm5134, %v5097, 0.0
  %v5153 = vsel %vm5135, %v5098, 0.0
  %v5154 = vsel %vm5130, %v5099, 0.0
  %v5155 = vsel %vm5131, %v5100, 0.0
  %v5156 = vsel %vm5132, %v5101, 0.0
  %v5157 = vsel %vm5133, %v5102, 0.0
  %v5158 = vsel %vm5134, %v5103, 0.0
  %v5159 = vsel %vm5135, %v5104, 0.0
  %v5160 = vpack.c.bf16 %v5142, %v5136
  %v5161 = vpack.c.bf16 %v5143, %v5137
  %v5162 = vpack.c.bf16 %v5144, %v5138
  %v5163 = vpack.c.bf16 %v5145, %v5139
  %v5164 = vpack.c.bf16 %v5146, %v5140
  %v5165 = vpack.c.bf16 %v5147, %v5141
  %v5166 = vpack.c.bf16 %v5154, %v5148
  %v5167 = vpack.c.bf16 %v5155, %v5149
  %v5168 = vpack.c.bf16 %v5156, %v5150
  %v5169 = vpack.c.bf16 %v5157, %v5151
  %v5170 = vpack.c.bf16 %v5158, %v5152
  %v5171 = vpack.c.bf16 %v5159, %v5153
  %5172 = vst [vmem:[#allocation6 + $0x8] sm:$0xff] %v5160
  %5173 = vst [vmem:[#allocation6 + $0x10] sm:$0xff] %v5161
  %5174 = vst [vmem:[#allocation6 + $0x18] sm:$0xff] %v5162
  %5175 = vst [vmem:[#allocation6 + $0x20] sm:$0xff] %v5163
  %5176 = vst [vmem:[#allocation6 + $0x28] sm:$0xff] %v5164
  %5177 = vst [vmem:[#allocation6 + $0x30] sm:$0xff] %v5165
  %5178 = vst [vmem:[#allocation6 + $0x48] sm:$0xff] %v5166
  %5179 = vst [vmem:[#allocation6 + $0x50] sm:$0xff] %v5167
  %5180 = vst [vmem:[#allocation6 + $0x58] sm:$0xff] %v5168
  %5181 = vst [vmem:[#allocation6 + $0x60] sm:$0xff] %v5169
  %5182 = vst [vmem:[#allocation6 + $0x68] sm:$0xff] %v5170
  %5183 = vst [vmem:[#allocation6 + $0x70] sm:$0xff] %v5171
  %v5184 = vld [vmem:[#allocation6] sm:$0xff]
  %v5185 = vld [vmem:[#allocation6 + $0x8] sm:$0xff]
  %v5186 = vld [vmem:[#allocation6 + $0x10] sm:$0xff]
  %v5187 = vld [vmem:[#allocation6 + $0x18] sm:$0xff]
  %v5188 = vld [vmem:[#allocation6 + $0x20] sm:$0xff]
  %v5189 = vld [vmem:[#allocation6 + $0x28] sm:$0xff]
  %v5190 = vld [vmem:[#allocation6 + $0x30] sm:$0xff]
  %v5191 = vld [vmem:[#allocation6 + $0x40] sm:$0xff]
  %v5192 = vld [vmem:[#allocation6 + $0x48] sm:$0xff]
  %v5193 = vld [vmem:[#allocation6 + $0x50] sm:$0xff]
  %v5194 = vld [vmem:[#allocation6 + $0x58] sm:$0xff]
  %v5195 = vld [vmem:[#allocation6 + $0x60] sm:$0xff]
  %v5196 = vld [vmem:[#allocation6 + $0x68] sm:$0xff]
  %v5197 = vld [vmem:[#allocation6 + $0x70] sm:$0xff]
  %5212 = vrot.lane.b32.xlu0 %v5184, 38
  %v5213 = vpop.permute.xlu0 %5212
  %5214 = vrot.lane.b32.xlu0 %v5185, 38
  %v5215 = vpop.permute.xlu0 %5214
  %5216 = vrot.lane.b32.xlu0 %v5186, 38
  %v5217 = vpop.permute.xlu0 %5216
  %5218 = vrot.lane.b32.xlu0 %v5187, 38
  %v5219 = vpop.permute.xlu0 %5218
  %5220 = vrot.lane.b32.xlu0 %v5188, 38
  %v5221 = vpop.permute.xlu0 %5220
  %5222 = vrot.lane.b32.xlu0 %v5189, 38
  %v5223 = vpop.permute.xlu0 %5222
  %5224 = vrot.lane.b32.xlu0 %v5190, 38
  %v5225 = vpop.permute.xlu0 %5224
  %5226 = vrot.lane.b32.xlu0 %v5191, 38
  %v5227 = vpop.permute.xlu0 %5226
  %5228 = vrot.lane.b32.xlu0 %v5192, 38
  %v5229 = vpop.permute.xlu0 %5228
  %5230 = vrot.lane.b32.xlu0 %v5193, 38
  %v5231 = vpop.permute.xlu0 %5230
  %5232 = vrot.lane.b32.xlu0 %v5194, 38
  %v5233 = vpop.permute.xlu0 %5232
  %5234 = vrot.lane.b32.xlu0 %v5195, 38
  %v5235 = vpop.permute.xlu0 %5234
  %5236 = vrot.lane.b32.xlu0 %v5196, 38
  %v5237 = vpop.permute.xlu0 %5236
  %5238 = vrot.lane.b32.xlu0 %v5197, 38
  %v5239 = vpop.permute.xlu0 %5238
  %v5240 = vsel %vm3250, %v5213, %v5215
  %v5241 = vsel %vm3250, %v5215, %v5217
  %v5242 = vsel %vm3250, %v5217, %v5219
  %v5243 = vsel %vm3250, %v5219, %v5221
  %v5244 = vsel %vm3250, %v5221, %v5223
  %v5245 = vsel %vm3250, %v5223, %v5225
  %v5246 = vsel %vm3250, %v5227, %v5229
  %v5247 = vsel %vm3250, %v5229, %v5231
  %v5248 = vsel %vm3250, %v5231, %v5233
  %v5249 = vsel %vm3250, %v5233, %v5235
  %v5250 = vsel %vm3250, %v5235, %v5237
  %v5251 = vsel %vm3250, %v5237, %v5239
  %5264 = vst [vmem:[#allocation3] sm:$0xff] %v5240
  %5265 = vst [vmem:[#allocation3 + $0x8] sm:$0xff] %v5241
  %5266 = vst [vmem:[#allocation3 + $0x10] sm:$0xff] %v5242
  %5267 = vst [vmem:[#allocation3 + $0x18] sm:$0xff] %v5243
  %5268 = vst [vmem:[#allocation3 + $0x20] sm:$0xff] %v5244
  %5269 = vst [vmem:[#allocation3 + $0x28] sm:$0xff] %v5245
  %5270 = vst [vmem:[#allocation3 + $0x30] sm:$0xff] %v5246
  %5271 = vst [vmem:[#allocation3 + $0x38] sm:$0xff] %v5247
  %5272 = vst [vmem:[#allocation3 + $0x40] sm:$0xff] %v5248
  %5273 = vst [vmem:[#allocation3 + $0x48] sm:$0xff] %v5249
  %5274 = vst [vmem:[#allocation3 + $0x50] sm:$0xff] %v5250
  %5275 = vst [vmem:[#allocation3 + $0x58] sm:$0xff] %v5251
  %v5276 = vld [vmem:[#allocation6] sm:$0xff]
  %v5277 = vld [vmem:[#allocation6 + $0x8] sm:$0xff]
  %v5278 = vld [vmem:[#allocation6 + $0x10] sm:$0xff]
  %v5279 = vld [vmem:[#allocation6 + $0x18] sm:$0xff]
  %v5280 = vld [vmem:[#allocation6 + $0x20] sm:$0xff]
  %v5281 = vld [vmem:[#allocation6 + $0x28] sm:$0xff]
  %v5282 = vld [vmem:[#allocation6 + $0x30] sm:$0xff]
  %v5283 = vld [vmem:[#allocation6 + $0x40] sm:$0xff]
  %v5284 = vld [vmem:[#allocation6 + $0x48] sm:$0xff]
  %v5285 = vld [vmem:[#allocation6 + $0x50] sm:$0xff]
  %v5286 = vld [vmem:[#allocation6 + $0x58] sm:$0xff]
  %v5287 = vld [vmem:[#allocation6 + $0x60] sm:$0xff]
  %v5288 = vld [vmem:[#allocation6 + $0x68] sm:$0xff]
  %v5289 = vld [vmem:[#allocation6 + $0x70] sm:$0xff]
  %5304 = vrot.lane.b32.xlu0 %v5276, 37
  %v5305 = vpop.permute.xlu0 %5304
  %5306 = vrot.lane.b32.xlu0 %v5277, 37
  %v5307 = vpop.permute.xlu0 %5306
  %5308 = vrot.lane.b32.xlu0 %v5278, 37
  %v5309 = vpop.permute.xlu0 %5308
  %5310 = vrot.lane.b32.xlu0 %v5279, 37
  %v5311 = vpop.permute.xlu0 %5310
  %5312 = vrot.lane.b32.xlu0 %v5280, 37
  %v5313 = vpop.permute.xlu0 %5312
  %5314 = vrot.lane.b32.xlu0 %v5281, 37
  %v5315 = vpop.permute.xlu0 %5314
  %5316 = vrot.lane.b32.xlu0 %v5282, 37
  %v5317 = vpop.permute.xlu0 %5316
  %5318 = vrot.lane.b32.xlu0 %v5283, 37
  %v5319 = vpop.permute.xlu0 %5318
  %5320 = vrot.lane.b32.xlu0 %v5284, 37
  %v5321 = vpop.permute.xlu0 %5320
  %5322 = vrot.lane.b32.xlu0 %v5285, 37
  %v5323 = vpop.permute.xlu0 %5322
  %5324 = vrot.lane.b32.xlu0 %v5286, 37
  %v5325 = vpop.permute.xlu0 %5324
  %5326 = vrot.lane.b32.xlu0 %v5287, 37
  %v5327 = vpop.permute.xlu0 %5326
  %5328 = vrot.lane.b32.xlu0 %v5288, 37
  %v5329 = vpop.permute.xlu0 %5328
  %5330 = vrot.lane.b32.xlu0 %v5289, 37
  %v5331 = vpop.permute.xlu0 %5330
  %v5332 = vsel %vm3343, %v5305, %v5307
  %v5333 = vsel %vm3343, %v5307, %v5309
  %v5334 = vsel %vm3343, %v5309, %v5311
  %v5335 = vsel %vm3343, %v5311, %v5313
  %v5336 = vsel %vm3343, %v5313, %v5315
  %v5337 = vsel %vm3343, %v5315, %v5317
  %v5338 = vsel %vm3343, %v5319, %v5321
  %v5339 = vsel %vm3343, %v5321, %v5323
  %v5340 = vsel %vm3343, %v5323, %v5325
  %v5341 = vsel %vm3343, %v5325, %v5327
  %v5342 = vsel %vm3343, %v5327, %v5329
  %v5343 = vsel %vm3343, %v5329, %v5331
  %5356 = vst [vmem:[#allocation3 + $0x60] sm:$0xff] %v5332
  %5357 = vst [vmem:[#allocation3 + $0x68] sm:$0xff] %v5333
  %5358 = vst [vmem:[#allocation3 + $0x70] sm:$0xff] %v5334
  %5359 = vst [vmem:[#allocation3 + $0x78] sm:$0xff] %v5335
  %5360 = vst [vmem:[#allocation3 + $0x80] sm:$0xff] %v5336
  %5361 = vst [vmem:[#allocation3 + $0x88] sm:$0xff] %v5337
  %5362 = vst [vmem:[#allocation3 + $0x90] sm:$0xff] %v5338
  %5363 = vst [vmem:[#allocation3 + $0x98] sm:$0xff] %v5339
  %5364 = vst [vmem:[#allocation3 + $0xa0] sm:$0xff] %v5340
  %5365 = vst [vmem:[#allocation3 + $0xa8] sm:$0xff] %v5341
  %5366 = vst [vmem:[#allocation3 + $0xb0] sm:$0xff] %v5342
  %5367 = vst [vmem:[#allocation3 + $0xb8] sm:$0xff] %v5343
  %v5368 = vld [vmem:[#allocation6] sm:$0xff]
  %v5369 = vld [vmem:[#allocation6 + $0x8] sm:$0xff]
  %v5370 = vld [vmem:[#allocation6 + $0x10] sm:$0xff]
  %v5371 = vld [vmem:[#allocation6 + $0x18] sm:$0xff]
  %v5372 = vld [vmem:[#allocation6 + $0x20] sm:$0xff]
  %v5373 = vld [vmem:[#allocation6 + $0x28] sm:$0xff]
  %v5374 = vld [vmem:[#allocation6 + $0x30] sm:$0xff]
  %v5375 = vld [vmem:[#allocation6 + $0x40] sm:$0xff]
  %v5376 = vld [vmem:[#allocation6 + $0x48] sm:$0xff]
  %v5377 = vld [vmem:[#allocation6 + $0x50] sm:$0xff]
  %v5378 = vld [vmem:[#allocation6 + $0x58] sm:$0xff]
  %v5379 = vld [vmem:[#allocation6 + $0x60] sm:$0xff]
  %v5380 = vld [vmem:[#allocation6 + $0x68] sm:$0xff]
  %v5381 = vld [vmem:[#allocation6 + $0x70] sm:$0xff]
  %5396 = vrot.lane.b32.xlu0 %v5368, 36
  %v5397 = vpop.permute.xlu0 %5396
  %5398 = vrot.lane.b32.xlu0 %v5369, 36
  %v5399 = vpop.permute.xlu0 %5398
  %5400 = vrot.lane.b32.xlu0 %v5370, 36
  %v5401 = vpop.permute.xlu0 %5400
  %5402 = vrot.lane.b32.xlu0 %v5371, 36
  %v5403 = vpop.permute.xlu0 %5402
  %5404 = vrot.lane.b32.xlu0 %v5372, 36
  %v5405 = vpop.permute.xlu0 %5404
  %5406 = vrot.lane.b32.xlu0 %v5373, 36
  %v5407 = vpop.permute.xlu0 %5406
  %5408 = vrot.lane.b32.xlu0 %v5374, 36
  %v5409 = vpop.permute.xlu0 %5408
  %5410 = vrot.lane.b32.xlu0 %v5375, 36
  %v5411 = vpop.permute.xlu0 %5410
  %5412 = vrot.lane.b32.xlu0 %v5376, 36
  %v5413 = vpop.permute.xlu0 %5412
  %5414 = vrot.lane.b32.xlu0 %v5377, 36
  %v5415 = vpop.permute.xlu0 %5414
  %5416 = vrot.lane.b32.xlu0 %v5378, 36
  %v5417 = vpop.permute.xlu0 %5416
  %5418 = vrot.lane.b32.xlu0 %v5379, 36
  %v5419 = vpop.permute.xlu0 %5418
  %5420 = vrot.lane.b32.xlu0 %v5380, 36
  %v5421 = vpop.permute.xlu0 %5420
  %5422 = vrot.lane.b32.xlu0 %v5381, 36
  %v5423 = vpop.permute.xlu0 %5422
  %v5424 = vsel %vm3436, %v5397, %v5399
  %v5425 = vsel %vm3436, %v5399, %v5401
  %v5426 = vsel %vm3436, %v5401, %v5403
  %v5427 = vsel %vm3436, %v5403, %v5405
  %v5428 = vsel %vm3436, %v5405, %v5407
  %v5429 = vsel %vm3436, %v5407, %v5409
  %v5430 = vsel %vm3436, %v5411, %v5413
  %v5431 = vsel %vm3436, %v5413, %v5415
  %v5432 = vsel %vm3436, %v5415, %v5417
  %v5433 = vsel %vm3436, %v5417, %v5419
  %v5434 = vsel %vm3436, %v5419, %v5421
  %v5435 = vsel %vm3436, %v5421, %v5423
  %5448 = vst [vmem:[#allocation3 + $0xc0] sm:$0xff] %v5424
  %5449 = vst [vmem:[#allocation3 + $0xc8] sm:$0xff] %v5425
  %5450 = vst [vmem:[#allocation3 + $0xd0] sm:$0xff] %v5426
  %5451 = vst [vmem:[#allocation3 + $0xd8] sm:$0xff] %v5427
  %5452 = vst [vmem:[#allocation3 + $0xe0] sm:$0xff] %v5428
  %5453 = vst [vmem:[#allocation3 + $0xe8] sm:$0xff] %v5429
  %5454 = vst [vmem:[#allocation3 + $0xf0] sm:$0xff] %v5430
  %5455 = vst [vmem:[#allocation3 + $0xf8] sm:$0xff] %v5431
  %5456 = vst [vmem:[#allocation3 + $0x100] sm:$0xff] %v5432
  %5457 = vst [vmem:[#allocation3 + $0x108] sm:$0xff] %v5433
  %5458 = vst [vmem:[#allocation3 + $0x110] sm:$0xff] %v5434
  %5459 = vst [vmem:[#allocation3 + $0x118] sm:$0xff] %v5435
  %v5460 = vld [vmem:[#allocation6] sm:$0xff]
  %v5461 = vld [vmem:[#allocation6 + $0x8] sm:$0xff]
  %v5462 = vld [vmem:[#allocation6 + $0x10] sm:$0xff]
  %v5463 = vld [vmem:[#allocation6 + $0x18] sm:$0xff]
  %v5464 = vld [vmem:[#allocation6 + $0x20] sm:$0xff]
  %v5465 = vld [vmem:[#allocation6 + $0x28] sm:$0xff]
  %v5466 = vld [vmem:[#allocation6 + $0x30] sm:$0xff]
  %v5467 = vld [vmem:[#allocation6 + $0x40] sm:$0xff]
  %v5468 = vld [vmem:[#allocation6 + $0x48] sm:$0xff]
  %v5469 = vld [vmem:[#allocation6 + $0x50] sm:$0xff]
  %v5470 = vld [vmem:[#allocation6 + $0x58] sm:$0xff]
  %v5471 = vld [vmem:[#allocation6 + $0x60] sm:$0xff]
  %v5472 = vld [vmem:[#allocation6 + $0x68] sm:$0xff]
  %v5473 = vld [vmem:[#allocation6 + $0x70] sm:$0xff]
  %5488 = vrot.lane.b32.xlu0 %v5460, 20
  %v5489 = vpop.permute.xlu0 %5488
  %5490 = vrot.lane.b32.xlu0 %v5461, 20
  %v5491 = vpop.permute.xlu0 %5490
  %5492 = vrot.lane.b32.xlu0 %v5462, 20
  %v5493 = vpop.permute.xlu0 %5492
  %5494 = vrot.lane.b32.xlu0 %v5463, 20
  %v5495 = vpop.permute.xlu0 %5494
  %5496 = vrot.lane.b32.xlu0 %v5464, 20
  %v5497 = vpop.permute.xlu0 %5496
  %5498 = vrot.lane.b32.xlu0 %v5465, 20
  %v5499 = vpop.permute.xlu0 %5498
  %5500 = vrot.lane.b32.xlu0 %v5466, 20
  %v5501 = vpop.permute.xlu0 %5500
  %5502 = vrot.lane.b32.xlu0 %v5467, 20
  %v5503 = vpop.permute.xlu0 %5502
  %5504 = vrot.lane.b32.xlu0 %v5468, 20
  %v5505 = vpop.permute.xlu0 %5504
  %5506 = vrot.lane.b32.xlu0 %v5469, 20
  %v5507 = vpop.permute.xlu0 %5506
  %5508 = vrot.lane.b32.xlu0 %v5470, 20
  %v5509 = vpop.permute.xlu0 %5508
  %5510 = vrot.lane.b32.xlu0 %v5471, 20
  %v5511 = vpop.permute.xlu0 %5510
  %5512 = vrot.lane.b32.xlu0 %v5472, 20
  %v5513 = vpop.permute.xlu0 %5512
  %5514 = vrot.lane.b32.xlu0 %v5473, 20
  %v5515 = vpop.permute.xlu0 %5514
  %v5516 = vsel %vm3529, %v5489, %v5491
  %v5517 = vsel %vm3529, %v5491, %v5493
  %v5518 = vsel %vm3529, %v5493, %v5495
  %v5519 = vsel %vm3529, %v5495, %v5497
  %v5520 = vsel %vm3529, %v5497, %v5499
  %v5521 = vsel %vm3529, %v5499, %v5501
  %v5522 = vsel %vm3529, %v5503, %v5505
  %v5523 = vsel %vm3529, %v5505, %v5507
  %v5524 = vsel %vm3529, %v5507, %v5509
  %v5525 = vsel %vm3529, %v5509, %v5511
  %v5526 = vsel %vm3529, %v5511, %v5513
  %v5527 = vsel %vm3529, %v5513, %v5515
  %5540 = vst [vmem:[#allocation3 + $0x120] sm:$0xff] %v5516
  %5541 = vst [vmem:[#allocation3 + $0x128] sm:$0xff] %v5517
  %5542 = vst [vmem:[#allocation3 + $0x130] sm:$0xff] %v5518
  %5543 = vst [vmem:[#allocation3 + $0x138] sm:$0xff] %v5519
  %5544 = vst [vmem:[#allocation3 + $0x140] sm:$0xff] %v5520
  %5545 = vst [vmem:[#allocation3 + $0x148] sm:$0xff] %v5521
  %5546 = vst [vmem:[#allocation3 + $0x150] sm:$0xff] %v5522
  %5547 = vst [vmem:[#allocation3 + $0x158] sm:$0xff] %v5523
  %5548 = vst [vmem:[#allocation3 + $0x160] sm:$0xff] %v5524
  %5549 = vst [vmem:[#allocation3 + $0x168] sm:$0xff] %v5525
  %5550 = vst [vmem:[#allocation3 + $0x170] sm:$0xff] %v5526
  %5551 = vst [vmem:[#allocation3 + $0x178] sm:$0xff] %v5527
  %v5552 = vld [vmem:[#allocation6] sm:$0xff]
  %v5553 = vld [vmem:[#allocation6 + $0x8] sm:$0xff]
  %v5554 = vld [vmem:[#allocation6 + $0x10] sm:$0xff]
  %v5555 = vld [vmem:[#allocation6 + $0x18] sm:$0xff]
  %v5556 = vld [vmem:[#allocation6 + $0x20] sm:$0xff]
  %v5557 = vld [vmem:[#allocation6 + $0x28] sm:$0xff]
  %v5558 = vld [vmem:[#allocation6 + $0x30] sm:$0xff]
  %v5559 = vld [vmem:[#allocation6 + $0x40] sm:$0xff]
  %v5560 = vld [vmem:[#allocation6 + $0x48] sm:$0xff]
  %v5561 = vld [vmem:[#allocation6 + $0x50] sm:$0xff]
  %v5562 = vld [vmem:[#allocation6 + $0x58] sm:$0xff]
  %v5563 = vld [vmem:[#allocation6 + $0x60] sm:$0xff]
  %v5564 = vld [vmem:[#allocation6 + $0x68] sm:$0xff]
  %v5565 = vld [vmem:[#allocation6 + $0x70] sm:$0xff]
  %5580 = vrot.lane.b32.xlu0 %v5552, 19
  %v5581 = vpop.permute.xlu0 %5580
  %5582 = vrot.lane.b32.xlu0 %v5553, 19
  %v5583 = vpop.permute.xlu0 %5582
  %5584 = vrot.lane.b32.xlu0 %v5554, 19
  %v5585 = vpop.permute.xlu0 %5584
  %5586 = vrot.lane.b32.xlu0 %v5555, 19
  %v5587 = vpop.permute.xlu0 %5586
  %5588 = vrot.lane.b32.xlu0 %v5556, 19
  %v5589 = vpop.permute.xlu0 %5588
  %5590 = vrot.lane.b32.xlu0 %v5557, 19
  %v5591 = vpop.permute.xlu0 %5590
  %5592 = vrot.lane.b32.xlu0 %v5558, 19
  %v5593 = vpop.permute.xlu0 %5592
  %5594 = vrot.lane.b32.xlu0 %v5559, 19
  %v5595 = vpop.permute.xlu0 %5594
  %5596 = vrot.lane.b32.xlu0 %v5560, 19
  %v5597 = vpop.permute.xlu0 %5596
  %5598 = vrot.lane.b32.xlu0 %v5561, 19
  %v5599 = vpop.permute.xlu0 %5598
  %5600 = vrot.lane.b32.xlu0 %v5562, 19
  %v5601 = vpop.permute.xlu0 %5600
  %5602 = vrot.lane.b32.xlu0 %v5563, 19
  %v5603 = vpop.permute.xlu0 %5602
  %5604 = vrot.lane.b32.xlu0 %v5564, 19
  %v5605 = vpop.permute.xlu0 %5604
  %5606 = vrot.lane.b32.xlu0 %v5565, 19
  %v5607 = vpop.permute.xlu0 %5606
  %v5608 = vsel %vm3622, %v5581, %v5583
  %v5609 = vsel %vm3622, %v5583, %v5585
  %v5610 = vsel %vm3622, %v5585, %v5587
  %v5611 = vsel %vm3622, %v5587, %v5589
  %v5612 = vsel %vm3622, %v5589, %v5591
  %v5613 = vsel %vm3622, %v5591, %v5593
  %v5614 = vsel %vm3622, %v5595, %v5597
  %v5615 = vsel %vm3622, %v5597, %v5599
  %v5616 = vsel %vm3622, %v5599, %v5601
  %v5617 = vsel %vm3622, %v5601, %v5603
  %v5618 = vsel %vm3622, %v5603, %v5605
  %v5619 = vsel %vm3622, %v5605, %v5607
  %5632 = vst [vmem:[#allocation3 + $0x180] sm:$0xff] %v5608
  %5633 = vst [vmem:[#allocation3 + $0x188] sm:$0xff] %v5609
  %5634 = vst [vmem:[#allocation3 + $0x190] sm:$0xff] %v5610
  %5635 = vst [vmem:[#allocation3 + $0x198] sm:$0xff] %v5611
  %5636 = vst [vmem:[#allocation3 + $0x1a0] sm:$0xff] %v5612
  %5637 = vst [vmem:[#allocation3 + $0x1a8] sm:$0xff] %v5613
  %5638 = vst [vmem:[#allocation3 + $0x1b0] sm:$0xff] %v5614
  %5639 = vst [vmem:[#allocation3 + $0x1b8] sm:$0xff] %v5615
  %5640 = vst [vmem:[#allocation3 + $0x1c0] sm:$0xff] %v5616
  %5641 = vst [vmem:[#allocation3 + $0x1c8] sm:$0xff] %v5617
  %5642 = vst [vmem:[#allocation3 + $0x1d0] sm:$0xff] %v5618
  %5643 = vst [vmem:[#allocation3 + $0x1d8] sm:$0xff] %v5619
  %v5644 = vld [vmem:[#allocation6] sm:$0xff]
  %v5645 = vld [vmem:[#allocation6 + $0x8] sm:$0xff]
  %v5646 = vld [vmem:[#allocation6 + $0x10] sm:$0xff]
  %v5647 = vld [vmem:[#allocation6 + $0x18] sm:$0xff]
  %v5648 = vld [vmem:[#allocation6 + $0x20] sm:$0xff]
  %v5649 = vld [vmem:[#allocation6 + $0x28] sm:$0xff]
  %v5650 = vld [vmem:[#allocation6 + $0x30] sm:$0xff]
  %v5651 = vld [vmem:[#allocation6 + $0x40] sm:$0xff]
  %v5652 = vld [vmem:[#allocation6 + $0x48] sm:$0xff]
  %v5653 = vld [vmem:[#allocation6 + $0x50] sm:$0xff]
  %v5654 = vld [vmem:[#allocation6 + $0x58] sm:$0xff]
  %v5655 = vld [vmem:[#allocation6 + $0x60] sm:$0xff]
  %v5656 = vld [vmem:[#allocation6 + $0x68] sm:$0xff]
  %v5657 = vld [vmem:[#allocation6 + $0x70] sm:$0xff]
  %5672 = vrot.lane.b32.xlu0 %v5644, 18
  %v5673 = vpop.permute.xlu0 %5672
  %5674 = vrot.lane.b32.xlu0 %v5645, 18
  %v5675 = vpop.permute.xlu0 %5674
  %5676 = vrot.lane.b32.xlu0 %v5646, 18
  %v5677 = vpop.permute.xlu0 %5676
  %5678 = vrot.lane.b32.xlu0 %v5647, 18
  %v5679 = vpop.permute.xlu0 %5678
  %5680 = vrot.lane.b32.xlu0 %v5648, 18
  %v5681 = vpop.permute.xlu0 %5680
  %5682 = vrot.lane.b32.xlu0 %v5649, 18
  %v5683 = vpop.permute.xlu0 %5682
  %5684 = vrot.lane.b32.xlu0 %v5650, 18
  %v5685 = vpop.permute.xlu0 %5684
  %5686 = vrot.lane.b32.xlu0 %v5651, 18
  %v5687 = vpop.permute.xlu0 %5686
  %5688 = vrot.lane.b32.xlu0 %v5652, 18
  %v5689 = vpop.permute.xlu0 %5688
  %5690 = vrot.lane.b32.xlu0 %v5653, 18
  %v5691 = vpop.permute.xlu0 %5690
  %5692 = vrot.lane.b32.xlu0 %v5654, 18
  %v5693 = vpop.permute.xlu0 %5692
  %5694 = vrot.lane.b32.xlu0 %v5655, 18
  %v5695 = vpop.permute.xlu0 %5694
  %5696 = vrot.lane.b32.xlu0 %v5656, 18
  %v5697 = vpop.permute.xlu0 %5696
  %5698 = vrot.lane.b32.xlu0 %v5657, 18
  %v5699 = vpop.permute.xlu0 %5698
  %v5700 = vsel %vm3715, %v5673, %v5675
  %v5701 = vsel %vm3715, %v5675, %v5677
  %v5702 = vsel %vm3715, %v5677, %v5679
  %v5703 = vsel %vm3715, %v5679, %v5681
  %v5704 = vsel %vm3715, %v5681, %v5683
  %v5705 = vsel %vm3715, %v5683, %v5685
  %v5706 = vsel %vm3715, %v5687, %v5689
  %v5707 = vsel %vm3715, %v5689, %v5691
  %v5708 = vsel %vm3715, %v5691, %v5693
  %v5709 = vsel %vm3715, %v5693, %v5695
  %v5710 = vsel %vm3715, %v5695, %v5697
  %v5711 = vsel %vm3715, %v5697, %v5699
  %5724 = vst [vmem:[#allocation3 + $0x1e0] sm:$0xff] %v5700
  %5725 = vst [vmem:[#allocation3 + $0x1e8] sm:$0xff] %v5701
  %5726 = vst [vmem:[#allocation3 + $0x1f0] sm:$0xff] %v5702
  %5727 = vst [vmem:[#allocation3 + $0x1f8] sm:$0xff] %v5703
  %5728 = vst [vmem:[#allocation3 + $0x200] sm:$0xff] %v5704
  %5729 = vst [vmem:[#allocation3 + $0x208] sm:$0xff] %v5705
  %5730 = vst [vmem:[#allocation3 + $0x210] sm:$0xff] %v5706
  %5731 = vst [vmem:[#allocation3 + $0x218] sm:$0xff] %v5707
  %5732 = vst [vmem:[#allocation3 + $0x220] sm:$0xff] %v5708
  %5733 = vst [vmem:[#allocation3 + $0x228] sm:$0xff] %v5709
  %5734 = vst [vmem:[#allocation3 + $0x230] sm:$0xff] %v5710
  %5735 = vst [vmem:[#allocation3 + $0x238] sm:$0xff] %v5711
  %v5736 = vld [vmem:[#allocation6] sm:$0xff]
  %v5737 = vld [vmem:[#allocation6 + $0x8] sm:$0xff]
  %v5738 = vld [vmem:[#allocation6 + $0x10] sm:$0xff]
  %v5739 = vld [vmem:[#allocation6 + $0x18] sm:$0xff]
  %v5740 = vld [vmem:[#allocation6 + $0x20] sm:$0xff]
  %v5741 = vld [vmem:[#allocation6 + $0x28] sm:$0xff]
  %v5742 = vld [vmem:[#allocation6 + $0x30] sm:$0xff]
  %v5743 = vld [vmem:[#allocation6 + $0x40] sm:$0xff]
  %v5744 = vld [vmem:[#allocation6 + $0x48] sm:$0xff]
  %v5745 = vld [vmem:[#allocation6 + $0x50] sm:$0xff]
  %v5746 = vld [vmem:[#allocation6 + $0x58] sm:$0xff]
  %v5747 = vld [vmem:[#allocation6 + $0x60] sm:$0xff]
  %v5748 = vld [vmem:[#allocation6 + $0x68] sm:$0xff]
  %v5749 = vld [vmem:[#allocation6 + $0x70] sm:$0xff]
  %5764 = vrot.lane.b32.xlu0 %v5736, 2
  %v5765 = vpop.permute.xlu0 %5764
  %5766 = vrot.lane.b32.xlu0 %v5737, 2
  %v5767 = vpop.permute.xlu0 %5766
  %5768 = vrot.lane.b32.xlu0 %v5738, 2
  %v5769 = vpop.permute.xlu0 %5768
  %5770 = vrot.lane.b32.xlu0 %v5739, 2
  %v5771 = vpop.permute.xlu0 %5770
  %5772 = vrot.lane.b32.xlu0 %v5740, 2
  %v5773 = vpop.permute.xlu0 %5772
  %5774 = vrot.lane.b32.xlu0 %v5741, 2
  %v5775 = vpop.permute.xlu0 %5774
  %5776 = vrot.lane.b32.xlu0 %v5742, 2
  %v5777 = vpop.permute.xlu0 %5776
  %5778 = vrot.lane.b32.xlu0 %v5743, 2
  %v5779 = vpop.permute.xlu0 %5778
  %5780 = vrot.lane.b32.xlu0 %v5744, 2
  %v5781 = vpop.permute.xlu0 %5780
  %5782 = vrot.lane.b32.xlu0 %v5745, 2
  %v5783 = vpop.permute.xlu0 %5782
  %5784 = vrot.lane.b32.xlu0 %v5746, 2
  %v5785 = vpop.permute.xlu0 %5784
  %5786 = vrot.lane.b32.xlu0 %v5747, 2
  %v5787 = vpop.permute.xlu0 %5786
  %5788 = vrot.lane.b32.xlu0 %v5748, 2
  %v5789 = vpop.permute.xlu0 %5788
  %5790 = vrot.lane.b32.xlu0 %v5749, 2
  %v5791 = vpop.permute.xlu0 %5790
  %v5792 = vsel %vm3808, %v5765, %v5767
  %v5793 = vsel %vm3808, %v5767, %v5769
  %v5794 = vsel %vm3808, %v5769, %v5771
  %v5795 = vsel %vm3808, %v5771, %v5773
  %v5796 = vsel %vm3808, %v5773, %v5775
  %v5797 = vsel %vm3808, %v5775, %v5777
  %v5798 = vsel %vm3808, %v5779, %v5781
  %v5799 = vsel %vm3808, %v5781, %v5783
  %v5800 = vsel %vm3808, %v5783, %v5785
  %v5801 = vsel %vm3808, %v5785, %v5787
  %v5802 = vsel %vm3808, %v5787, %v5789
  %v5803 = vsel %vm3808, %v5789, %v5791
  %5816 = vst [vmem:[#allocation3 + $0x240] sm:$0xff] %v5792
  %5817 = vst [vmem:[#allocation3 + $0x248] sm:$0xff] %v5793
  %5818 = vst [vmem:[#allocation3 + $0x250] sm:$0xff] %v5794
  %5819 = vst [vmem:[#allocation3 + $0x258] sm:$0xff] %v5795
  %5820 = vst [vmem:[#allocation3 + $0x260] sm:$0xff] %v5796
  %5821 = vst [vmem:[#allocation3 + $0x268] sm:$0xff] %v5797
  %5822 = vst [vmem:[#allocation3 + $0x270] sm:$0xff] %v5798
  %5823 = vst [vmem:[#allocation3 + $0x278] sm:$0xff] %v5799
  %5824 = vst [vmem:[#allocation3 + $0x280] sm:$0xff] %v5800
  %5825 = vst [vmem:[#allocation3 + $0x288] sm:$0xff] %v5801
  %5826 = vst [vmem:[#allocation3 + $0x290] sm:$0xff] %v5802
  %5827 = vst [vmem:[#allocation3 + $0x298] sm:$0xff] %v5803
  %v5828 = vld [vmem:[#allocation6] sm:$0xff]
  %v5829 = vld [vmem:[#allocation6 + $0x8] sm:$0xff]
  %v5830 = vld [vmem:[#allocation6 + $0x10] sm:$0xff]
  %v5831 = vld [vmem:[#allocation6 + $0x18] sm:$0xff]
  %v5832 = vld [vmem:[#allocation6 + $0x20] sm:$0xff]
  %v5833 = vld [vmem:[#allocation6 + $0x28] sm:$0xff]
  %v5834 = vld [vmem:[#allocation6 + $0x30] sm:$0xff]
  %v5835 = vld [vmem:[#allocation6 + $0x40] sm:$0xff]
  %v5836 = vld [vmem:[#allocation6 + $0x48] sm:$0xff]
  %v5837 = vld [vmem:[#allocation6 + $0x50] sm:$0xff]
  %v5838 = vld [vmem:[#allocation6 + $0x58] sm:$0xff]
  %v5839 = vld [vmem:[#allocation6 + $0x60] sm:$0xff]
  %v5840 = vld [vmem:[#allocation6 + $0x68] sm:$0xff]
  %v5841 = vld [vmem:[#allocation6 + $0x70] sm:$0xff]
  %5856 = vrot.lane.b32.xlu0 %v5828, 1
  %v5857 = vpop.permute.xlu0 %5856
  %5858 = vrot.lane.b32.xlu0 %v5829, 1
  %v5859 = vpop.permute.xlu0 %5858
  %5860 = vrot.lane.b32.xlu0 %v5830, 1
  %v5861 = vpop.permute.xlu0 %5860
  %5862 = vrot.lane.b32.xlu0 %v5831, 1
  %v5863 = vpop.permute.xlu0 %5862
  %5864 = vrot.lane.b32.xlu0 %v5832, 1
  %v5865 = vpop.permute.xlu0 %5864
  %5866 = vrot.lane.b32.xlu0 %v5833, 1
  %v5867 = vpop.permute.xlu0 %5866
  %5868 = vrot.lane.b32.xlu0 %v5834, 1
  %v5869 = vpop.permute.xlu0 %5868
  %5870 = vrot.lane.b32.xlu0 %v5835, 1
  %v5871 = vpop.permute.xlu0 %5870
  %5872 = vrot.lane.b32.xlu0 %v5836, 1
  %v5873 = vpop.permute.xlu0 %5872
  %5874 = vrot.lane.b32.xlu0 %v5837, 1
  %v5875 = vpop.permute.xlu0 %5874
  %5876 = vrot.lane.b32.xlu0 %v5838, 1
  %v5877 = vpop.permute.xlu0 %5876
  %5878 = vrot.lane.b32.xlu0 %v5839, 1
  %v5879 = vpop.permute.xlu0 %5878
  %5880 = vrot.lane.b32.xlu0 %v5840, 1
  %v5881 = vpop.permute.xlu0 %5880
  %5882 = vrot.lane.b32.xlu0 %v5841, 1
  %v5883 = vpop.permute.xlu0 %5882
  %v5884 = vsel %vm3901, %v5857, %v5859
  %v5885 = vsel %vm3901, %v5859, %v5861
  %v5886 = vsel %vm3901, %v5861, %v5863
  %v5887 = vsel %vm3901, %v5863, %v5865
  %v5888 = vsel %vm3901, %v5865, %v5867
  %v5889 = vsel %vm3901, %v5867, %v5869
  %v5890 = vsel %vm3901, %v5871, %v5873
  %v5891 = vsel %vm3901, %v5873, %v5875
  %v5892 = vsel %vm3901, %v5875, %v5877
  %v5893 = vsel %vm3901, %v5877, %v5879
  %v5894 = vsel %vm3901, %v5879, %v5881
  %v5895 = vsel %vm3901, %v5881, %v5883
  %5908 = vst [vmem:[#allocation3 + $0x2a0] sm:$0xff] %v5884
  %5909 = vst [vmem:[#allocation3 + $0x2a8] sm:$0xff] %v5885
  %5910 = vst [vmem:[#allocation3 + $0x2b0] sm:$0xff] %v5886
  %5911 = vst [vmem:[#allocation3 + $0x2b8] sm:$0xff] %v5887
  %5912 = vst [vmem:[#allocation3 + $0x2c0] sm:$0xff] %v5888
  %5913 = vst [vmem:[#allocation3 + $0x2c8] sm:$0xff] %v5889
  %5914 = vst [vmem:[#allocation3 + $0x2d0] sm:$0xff] %v5890
  %5915 = vst [vmem:[#allocation3 + $0x2d8] sm:$0xff] %v5891
  %5916 = vst [vmem:[#allocation3 + $0x2e0] sm:$0xff] %v5892
  %5917 = vst [vmem:[#allocation3 + $0x2e8] sm:$0xff] %v5893
  %5918 = vst [vmem:[#allocation3 + $0x2f0] sm:$0xff] %v5894
  %5919 = vst [vmem:[#allocation3 + $0x2f8] sm:$0xff] %v5895
  %v5920 = vld [vmem:[#allocation6 + $0x8] sm:$0xff]
  %v5921 = vld [vmem:[#allocation6 + $0x10] sm:$0xff]
  %v5922 = vld [vmem:[#allocation6 + $0x18] sm:$0xff]
  %v5923 = vld [vmem:[#allocation6 + $0x20] sm:$0xff]
  %v5924 = vld [vmem:[#allocation6 + $0x28] sm:$0xff]
  %v5925 = vld [vmem:[#allocation6 + $0x30] sm:$0xff]
  %v5926 = vld [vmem:[#allocation6 + $0x48] sm:$0xff]
  %v5927 = vld [vmem:[#allocation6 + $0x50] sm:$0xff]
  %v5928 = vld [vmem:[#allocation6 + $0x58] sm:$0xff]
  %v5929 = vld [vmem:[#allocation6 + $0x60] sm:$0xff]
  %v5930 = vld [vmem:[#allocation6 + $0x68] sm:$0xff]
  %v5931 = vld [vmem:[#allocation6 + $0x70] sm:$0xff]
  %5932 = vst [vmem:[#allocation3 + $0x300] sm:$0xff] %v5920
  %5933 = vst [vmem:[#allocation3 + $0x308] sm:$0xff] %v5921
  %5934 = vst [vmem:[#allocation3 + $0x310] sm:$0xff] %v5922
  %5935 = vst [vmem:[#allocation3 + $0x318] sm:$0xff] %v5923
  %5936 = vst [vmem:[#allocation3 + $0x320] sm:$0xff] %v5924
  %5937 = vst [vmem:[#allocation3 + $0x328] sm:$0xff] %v5925
  %5938 = vst [vmem:[#allocation3 + $0x330] sm:$0xff] %v5926
  %5939 = vst [vmem:[#allocation3 + $0x338] sm:$0xff] %v5927
  %5940 = vst [vmem:[#allocation3 + $0x340] sm:$0xff] %v5928
  %5941 = vst [vmem:[#allocation3 + $0x348] sm:$0xff] %v5929
  %5942 = vst [vmem:[#allocation3 + $0x350] sm:$0xff] %v5930
  %5943 = vst [vmem:[#allocation3 + $0x358] sm:$0xff] %v5931
  %v5944 = vld [vmem:[%s12] sm:$0x3f]
  %v5945 = vld [vmem:[#allocation3] sm:$0xff]
  %v5946 = vld [vmem:[#allocation3 + $0x8] sm:$0xff]
  %v5947 = vld [vmem:[#allocation3 + $0x10] sm:$0xff]
  %v5948 = vld [vmem:[#allocation3 + $0x18] sm:$0xff]
  %v5949 = vld [vmem:[#allocation3 + $0x20] sm:$0xff]
  %v5950 = vld [vmem:[#allocation3 + $0x28] sm:$0xff]
  %v5951 = vld [vmem:[#allocation3 + $0x30] sm:$0xff]
  %v5952 = vld [vmem:[#allocation3 + $0x38] sm:$0xff]
  %v5953 = vld [vmem:[#allocation3 + $0x40] sm:$0xff]
  %v5954 = vld [vmem:[#allocation3 + $0x48] sm:$0xff]
  %v5955 = vld [vmem:[#allocation3 + $0x50] sm:$0xff]
  %v5956 = vld [vmem:[#allocation3 + $0x58] sm:$0xff]
  %v5957 = vld [vmem:[#allocation3 + $0x60] sm:$0xff]
  %v5958 = vld [vmem:[#allocation3 + $0x68] sm:$0xff]
  %v5959 = vld [vmem:[#allocation3 + $0x70] sm:$0xff]
  %v5960 = vld [vmem:[#allocation3 + $0x78] sm:$0xff]
  %v5961 = vld [vmem:[#allocation3 + $0x80] sm:$0xff]
  %v5962 = vld [vmem:[#allocation3 + $0x88] sm:$0xff]
  %v5963 = vld [vmem:[#allocation3 + $0x90] sm:$0xff]
  %v5964 = vld [vmem:[#allocation3 + $0x98] sm:$0xff]
  %v5965 = vld [vmem:[#allocation3 + $0xa0] sm:$0xff]
  %v5966 = vld [vmem:[#allocation3 + $0xa8] sm:$0xff]
  %v5967 = vld [vmem:[#allocation3 + $0xb0] sm:$0xff]
  %v5968 = vld [vmem:[#allocation3 + $0xb8] sm:$0xff]
  %v5969 = vld [vmem:[#allocation3 + $0xc0] sm:$0xff]
  %v5970 = vld [vmem:[#allocation3 + $0xc8] sm:$0xff]
  %v5971 = vld [vmem:[#allocation3 + $0xd0] sm:$0xff]
  %v5972 = vld [vmem:[#allocation3 + $0xd8] sm:$0xff]
  %v5973 = vld [vmem:[#allocation3 + $0xe0] sm:$0xff]
  %v5974 = vld [vmem:[#allocation3 + $0xe8] sm:$0xff]
  %v5975 = vld [vmem:[#allocation3 + $0xf0] sm:$0xff]
  %v5976 = vld [vmem:[#allocation3 + $0xf8] sm:$0xff]
  %v5977 = vld [vmem:[#allocation3 + $0x100] sm:$0xff]
  %v5978 = vld [vmem:[#allocation3 + $0x108] sm:$0xff]
  %v5979 = vld [vmem:[#allocation3 + $0x110] sm:$0xff]
  %v5980 = vld [vmem:[#allocation3 + $0x118] sm:$0xff]
  %v5981 = vld [vmem:[#allocation3 + $0x120] sm:$0xff]
  %v5982 = vld [vmem:[#allocation3 + $0x128] sm:$0xff]
  %v5983 = vld [vmem:[#allocation3 + $0x130] sm:$0xff]
  %v5984 = vld [vmem:[#allocation3 + $0x138] sm:$0xff]
  %v5985 = vld [vmem:[#allocation3 + $0x140] sm:$0xff]
  %v5986 = vld [vmem:[#allocation3 + $0x148] sm:$0xff]
  %v5987 = vld [vmem:[#allocation3 + $0x150] sm:$0xff]
  %v5988 = vld [vmem:[#allocation3 + $0x158] sm:$0xff]
  %v5989 = vld [vmem:[#allocation3 + $0x160] sm:$0xff]
  %v5990 = vld [vmem:[#allocation3 + $0x168] sm:$0xff]
  %v5991 = vld [vmem:[#allocation3 + $0x170] sm:$0xff]
  %v5992 = vld [vmem:[#allocation3 + $0x178] sm:$0xff]
  %v5993 = vld [vmem:[#allocation3 + $0x180] sm:$0xff]
  %v5994 = vld [vmem:[#allocation3 + $0x188] sm:$0xff]
  %v5995 = vld [vmem:[#allocation3 + $0x190] sm:$0xff]
  %v5996 = vld [vmem:[#allocation3 + $0x198] sm:$0xff]
  %v5997 = vld [vmem:[#allocation3 + $0x1a0] sm:$0xff]
  %v5998 = vld [vmem:[#allocation3 + $0x1a8] sm:$0xff]
  %v5999 = vld [vmem:[#allocation3 + $0x1b0] sm:$0xff]
  %v6000 = vld [vmem:[#allocation3 + $0x1b8] sm:$0xff]
  %v6001 = vld [vmem:[#allocation3 + $0x1c0] sm:$0xff]
  %v6002 = vld [vmem:[#allocation3 + $0x1c8] sm:$0xff]
  %v6003 = vld [vmem:[#allocation3 + $0x1d0] sm:$0xff]
  %v6004 = vld [vmem:[#allocation3 + $0x1d8] sm:$0xff]
  %v6005 = vld [vmem:[#allocation3 + $0x1e0] sm:$0xff]
  %v6006 = vld [vmem:[#allocation3 + $0x1e8] sm:$0xff]
  %v6007 = vld [vmem:[#allocation3 + $0x1f0] sm:$0xff]
  %v6008 = vld [vmem:[#allocation3 + $0x1f8] sm:$0xff]
  %v6009 = vld [vmem:[#allocation3 + $0x200] sm:$0xff]
  %v6010 = vld [vmem:[#allocation3 + $0x208] sm:$0xff]
  %v6011 = vld [vmem:[#allocation3 + $0x210] sm:$0xff]
  %v6012 = vld [vmem:[#allocation3 + $0x218] sm:$0xff]
  %v6013 = vld [vmem:[#allocation3 + $0x220] sm:$0xff]
  %v6014 = vld [vmem:[#allocation3 + $0x228] sm:$0xff]
  %v6015 = vld [vmem:[#allocation3 + $0x230] sm:$0xff]
  %v6016 = vld [vmem:[#allocation3 + $0x238] sm:$0xff]
  %v6017 = vld [vmem:[#allocation3 + $0x240] sm:$0xff]
  %v6018 = vld [vmem:[#allocation3 + $0x248] sm:$0xff]
  %v6019 = vld [vmem:[#allocation3 + $0x250] sm:$0xff]
  %v6020 = vld [vmem:[#allocation3 + $0x258] sm:$0xff]
  %v6021 = vld [vmem:[#allocation3 + $0x260] sm:$0xff]
  %v6022 = vld [vmem:[#allocation3 + $0x268] sm:$0xff]
  %v6023 = vld [vmem:[#allocation3 + $0x270] sm:$0xff]
  %v6024 = vld [vmem:[#allocation3 + $0x278] sm:$0xff]
  %v6025 = vld [vmem:[#allocation3 + $0x280] sm:$0xff]
  %v6026 = vld [vmem:[#allocation3 + $0x288] sm:$0xff]
  %v6027 = vld [vmem:[#allocation3 + $0x290] sm:$0xff]
  %v6028 = vld [vmem:[#allocation3 + $0x298] sm:$0xff]
  %v6029 = vld [vmem:[#allocation3 + $0x2a0] sm:$0xff]
  %v6030 = vld [vmem:[#allocation3 + $0x2a8] sm:$0xff]
  %v6031 = vld [vmem:[#allocation3 + $0x2b0] sm:$0xff]
  %v6032 = vld [vmem:[#allocation3 + $0x2b8] sm:$0xff]
  %v6033 = vld [vmem:[#allocation3 + $0x2c0] sm:$0xff]
  %v6034 = vld [vmem:[#allocation3 + $0x2c8] sm:$0xff]
  %v6035 = vld [vmem:[#allocation3 + $0x2d0] sm:$0xff]
  %v6036 = vld [vmem:[#allocation3 + $0x2d8] sm:$0xff]
  %v6037 = vld [vmem:[#allocation3 + $0x2e0] sm:$0xff]
  %v6038 = vld [vmem:[#allocation3 + $0x2e8] sm:$0xff]
  %v6039 = vld [vmem:[#allocation3 + $0x2f0] sm:$0xff]
  %v6040 = vld [vmem:[#allocation3 + $0x2f8] sm:$0xff]
  %v6041 = vld [vmem:[#allocation3 + $0x300] sm:$0xff]
  %v6042 = vld [vmem:[#allocation3 + $0x308] sm:$0xff]
  %v6043 = vld [vmem:[#allocation3 + $0x310] sm:$0xff]
  %v6044 = vld [vmem:[#allocation3 + $0x318] sm:$0xff]
  %v6045 = vld [vmem:[#allocation3 + $0x320] sm:$0xff]
  %v6046 = vld [vmem:[#allocation3 + $0x328] sm:$0xff]
  %v6047 = vld [vmem:[#allocation3 + $0x330] sm:$0xff]
  %v6048 = vld [vmem:[#allocation3 + $0x338] sm:$0xff]
  %v6049 = vld [vmem:[#allocation3 + $0x340] sm:$0xff]
  %v6050 = vld [vmem:[#allocation3 + $0x348] sm:$0xff]
  %v6051 = vld [vmem:[#allocation3 + $0x350] sm:$0xff]
  %v6052 = vld [vmem:[#allocation3 + $0x358] sm:$0xff]
  %v6053 = vld [vmem:[%s13] sm:$0xf]
  %6055 = vset.pattern.permute.xlu0 0
  %6056 = vperm.xlu0 %6055, %v6053
  %v6057 = vpop.permute.xlu0 %6056
  %v6060 = vcombine.high %v5944, %v5944
  %v6062 = vunpack.c.l.s4 1983009808
  %v6063 = vunpack.c.0.s8 %v6062
  %v6064 = vlaneseq
  %v6065 = vshrl.u32 %v6064, 7
  %v6066 = vsub.s32 %v6063, %v6065
  %v6067 = vrot.slane %v5944, %v6066
  %v6069 = vunpack.c.l.s4 1983009808
  %v6070 = vunpack.c.0.s8 %v6069
  %v6071 = vlaneseq
  %v6072 = vshrl.u32 %v6071, 7
  %v6073 = vsub.s32 %v6070, %v6072
  %v6074 = vrot.slane %v6060, %v6073
  %v6075 = vcombine.high %v6067, %v6067
  %v6079 = vsel %vm2533, %v6074, 0
  %6081 = vmatprep.subr.bf16.mxu0 %v5946
  %6082 = vmatpush1.bf16.msra.mxu0 %v5945
  %6083 = vmatprep.subr.bf16.mxu0 %v5952
  %6084 = vmatpush1.bf16.msra.mxu0 %v5951
  %6085 = vmatprep.subr.bf16.mxu0 %v5958
  %6086 = vmatpush1.bf16.msra.mxu0 %v5957
  %6087 = vmatprep.subr.bf16.mxu0 %v5964
  %6088 = vmatpush1.bf16.msra.mxu0 %v5963
  %6089 = vmatprep.subr.bf16.mxu0 %v5970
  %6090 = vmatpush1.bf16.msra.mxu0 %v5969
  %6091 = vmatprep.subr.bf16.mxu0 %v5976
  %6092 = vmatpush1.bf16.msra.mxu0 %v5975
  %6093 = vmatprep.subr.bf16.mxu0 %v5982
  %6094 = vmatpush1.bf16.msra.mxu0 %v5981
  %6095 = vmatprep.subr.bf16.mxu0 %v5988
  %6096 = vmatpush1.bf16.msra.mxu0 %v5987
  %6097 = vmatprep.subr.bf16.mxu0 %v5994
  %6098 = vmatpush1.bf16.msra.mxu0 %v5993
  %6099 = vmatprep.subr.bf16.mxu0 %v6000
  %6100 = vmatpush1.bf16.msra.mxu0 %v5999
  %6101 = vmatprep.subr.bf16.mxu0 %v6006
  %6102 = vmatpush1.bf16.msra.mxu0 %v6005
  %6103 = vmatprep.subr.bf16.mxu0 %v6012
  %6104 = vmatpush1.bf16.msra.mxu0 %v6011
  %6105 = vmatprep.subr.bf16.mxu0 %v6018
  %6106 = vmatpush1.bf16.msra.mxu0 %v6017
  %6107 = vmatprep.subr.bf16.mxu0 %v6024
  %6108 = vmatpush1.bf16.msra.mxu0 %v6023
  %6109 = vmatprep.subr.bf16.mxu0 %v6030
  %6110 = vmatpush1.bf16.msra.mxu0 %v6029
  %6111 = vmatprep.subr.bf16.mxu0 %v6036
  %6112 = vmatpush1.bf16.msra.mxu0 %v6035
  %6113 = vmatprep.mubr.bf16.mxu0 %v6075
  %6114 = vmatmul.mubr.bf16.gmra.mrb[0].mxu0 %v6067
  %v6115 = vpop.f32.mrb[0].mxu0
  %v6116 = vadd.f32 %v6057, %v6115
  %v6117 = vpop.f32.mrb[0].mxu0
  %v6118 = vadd.f32 %v6057, %v6117
  %v6119 = vpop.f32.mrb[0].mxu0
  %v6120 = vpop.f32.mrb[0].mxu0
  %6121 = vdwg.mxu0
  %6122 = vmatprep.subr.bf16.mxu0 %v6042
  %6123 = vmatpush1.bf16.msra.mxu0 %v6041
  %6124 = vmatprep.subr.bf16.mxu0 %v6048
  %6125 = vmatpush1.bf16.msra.mxu0 %v6047
  %6126 = vmatprep.subr.bf16.mxu0 0
  %6127 = vmatpush1.bf16.msra.mxu0 0
  %6128 = vmatprep.subr.bf16.mxu0 0
  %6129 = vmatpush1.bf16.msra.mxu0 0
  %6130 = vmatprep.subr.bf16.mxu0 0
  %6131 = vmatpush1.bf16.msra.mxu0 0
  %6132 = vmatprep.subr.bf16.mxu0 0
  %6133 = vmatpush1.bf16.msra.mxu0 0
  %6134 = vmatprep.subr.bf16.mxu0 0
  %6135 = vmatpush1.bf16.msra.mxu0 0
  %6136 = vmatprep.subr.bf16.mxu0 0
  %6137 = vmatpush1.bf16.msra.mxu0 0
  %6138 = vmatprep.subr.bf16.mxu0 0
  %6139 = vmatpush1.bf16.msra.mxu0 0
  %6140 = vmatprep.subr.bf16.mxu0 0
  %6141 = vmatpush1.bf16.msra.mxu0 0
  %6142 = vmatprep.subr.bf16.mxu0 0
  %6143 = vmatpush1.bf16.msra.mxu0 0
  %6144 = vmatprep.subr.bf16.mxu0 0
  %6145 = vmatpush1.bf16.msra.mxu0 0
  %6146 = vmatprep.subr.bf16.mxu0 0
  %6147 = vmatpush1.bf16.msra.mxu0 0
  %6148 = vmatprep.subr.bf16.mxu0 0
  %6149 = vmatpush1.bf16.msra.mxu0 0
  %6150 = vmatprep.subr.bf16.mxu0 0
  %6151 = vmatpush1.bf16.msra.mxu0 0
  %6152 = vmatprep.subr.bf16.mxu0 0
  %6153 = vmatpush1.bf16.msra.mxu0 0
  %6154 = vmatprep.mubr.bf16.mxu0 0
  %6155 = vmatmul.mubr.bf16.gmra.mrb[0].mxu0 %v6079
  %v6156 = vpop.f32.mrb[0].mxu0
  %v6157 = vadd.f32 %v6116, %v6156
  %v6158 = vpop.f32.mrb[0].mxu0
  %v6159 = vadd.f32 %v6118, %v6158
  %v6160 = vpop.f32.mrb[0].mxu0
  %v6161 = vpop.f32.mrb[0].mxu0
  %6162 = vdwg.mxu0
  %6163 = vmatprep.subr.bf16.mxu0 %v5948
  %6164 = vmatpush1.bf16.msra.mxu0 %v5947
  %6165 = vmatprep.subr.bf16.mxu0 %v5954
  %6166 = vmatpush1.bf16.msra.mxu0 %v5953
  %6167 = vmatprep.subr.bf16.mxu0 %v5960
  %6168 = vmatpush1.bf16.msra.mxu0 %v5959
  %6169 = vmatprep.subr.bf16.mxu0 %v5966
  %6170 = vmatpush1.bf16.msra.mxu0 %v5965
  %6171 = vmatprep.subr.bf16.mxu0 %v5972
  %6172 = vmatpush1.bf16.msra.mxu0 %v5971
  %6173 = vmatprep.subr.bf16.mxu0 %v5978
  %6174 = vmatpush1.bf16.msra.mxu0 %v5977
  %6175 = vmatprep.subr.bf16.mxu0 %v5984
  %6176 = vmatpush1.bf16.msra.mxu0 %v5983
  %6177 = vmatprep.subr.bf16.mxu0 %v5990
  %6178 = vmatpush1.bf16.msra.mxu0 %v5989
  %6179 = vmatprep.subr.bf16.mxu0 %v5996
  %6180 = vmatpush1.bf16.msra.mxu0 %v5995
  %6181 = vmatprep.subr.bf16.mxu0 %v6002
  %6182 = vmatpush1.bf16.msra.mxu0 %v6001
  %6183 = vmatprep.subr.bf16.mxu0 %v6008
  %6184 = vmatpush1.bf16.msra.mxu0 %v6007
  %6185 = vmatprep.subr.bf16.mxu0 %v6014
  %6186 = vmatpush1.bf16.msra.mxu0 %v6013
  %6187 = vmatprep.subr.bf16.mxu0 %v6020
  %6188 = vmatpush1.bf16.msra.mxu0 %v6019
  %6189 = vmatprep.subr.bf16.mxu0 %v6026
  %6190 = vmatpush1.bf16.msra.mxu0 %v6025
  %6191 = vmatprep.subr.bf16.mxu0 %v6032
  %6192 = vmatpush1.bf16.msra.mxu0 %v6031
  %6193 = vmatprep.subr.bf16.mxu0 %v6038
  %6194 = vmatpush1.bf16.msra.mxu0 %v6037
  %6195 = vmatprep.mubr.bf16.mxu0 %v6075
  %6196 = vmatmul.mubr.bf16.gmra.mrb[0].mxu0 %v6067
  %v6197 = vpop.f32.mrb[0].mxu0
  %v6198 = vadd.f32 %v6057, %v6197
  %v6199 = vpop.f32.mrb[0].mxu0
  %v6200 = vadd.f32 %v6057, %v6199
  %v6201 = vpop.f32.mrb[0].mxu0
  %v6202 = vpop.f32.mrb[0].mxu0
  %6203 = vdwg.mxu0
  %6204 = vmatprep.subr.bf16.mxu0 %v6044
  %6205 = vmatpush1.bf16.msra.mxu0 %v6043
  %6206 = vmatprep.subr.bf16.mxu0 %v6050
  %6207 = vmatpush1.bf16.msra.mxu0 %v6049
  %6208 = vmatprep.subr.bf16.mxu0 0
  %6209 = vmatpush1.bf16.msra.mxu0 0
  %6210 = vmatprep.subr.bf16.mxu0 0
  %6211 = vmatpush1.bf16.msra.mxu0 0
  %6212 = vmatprep.subr.bf16.mxu0 0
  %6213 = vmatpush1.bf16.msra.mxu0 0
  %6214 = vmatprep.subr.bf16.mxu0 0
  %6215 = vmatpush1.bf16.msra.mxu0 0
  %6216 = vmatprep.subr.bf16.mxu0 0
  %6217 = vmatpush1.bf16.msra.mxu0 0
  %6218 = vmatprep.subr.bf16.mxu0 0
  %6219 = vmatpush1.bf16.msra.mxu0 0
  %6220 = vmatprep.subr.bf16.mxu0 0
  %6221 = vmatpush1.bf16.msra.mxu0 0
  %6222 = vmatprep.subr.bf16.mxu0 0
  %6223 = vmatpush1.bf16.msra.mxu0 0
  %6224 = vmatprep.subr.bf16.mxu0 0
  %6225 = vmatpush1.bf16.msra.mxu0 0
  %6226 = vmatprep.subr.bf16.mxu0 0
  %6227 = vmatpush1.bf16.msra.mxu0 0
  %6228 = vmatprep.subr.bf16.mxu0 0
  %6229 = vmatpush1.bf16.msra.mxu0 0
  %6230 = vmatprep.subr.bf16.mxu0 0
  %6231 = vmatpush1.bf16.msra.mxu0 0
  %6232 = vmatprep.subr.bf16.mxu0 0
  %6233 = vmatpush1.bf16.msra.mxu0 0
  %6234 = vmatprep.subr.bf16.mxu0 0
  %6235 = vmatpush1.bf16.msra.mxu0 0
  %6236 = vmatprep.mubr.bf16.mxu0 0
  %6237 = vmatmul.mubr.bf16.gmra.mrb[0].mxu0 %v6079
  %v6238 = vpop.f32.mrb[0].mxu0
  %v6239 = vadd.f32 %v6198, %v6238
  %v6240 = vpop.f32.mrb[0].mxu0
  %v6241 = vadd.f32 %v6200, %v6240
  %v6242 = vpop.f32.mrb[0].mxu0
  %v6243 = vpop.f32.mrb[0].mxu0
  %6244 = vdwg.mxu0
  %6245 = vmatprep.subr.bf16.mxu0 %v5950
  %6246 = vmatpush1.bf16.msra.mxu0 %v5949
  %6247 = vmatprep.subr.bf16.mxu0 %v5956
  %6248 = vmatpush1.bf16.msra.mxu0 %v5955
  %6249 = vmatprep.subr.bf16.mxu0 %v5962
  %6250 = vmatpush1.bf16.msra.mxu0 %v5961
  %6251 = vmatprep.subr.bf16.mxu0 %v5968
  %6252 = vmatpush1.bf16.msra.mxu0 %v5967
  %6253 = vmatprep.subr.bf16.mxu0 %v5974
  %6254 = vmatpush1.bf16.msra.mxu0 %v5973
  %6255 = vmatprep.subr.bf16.mxu0 %v5980
  %6256 = vmatpush1.bf16.msra.mxu0 %v5979
  %6257 = vmatprep.subr.bf16.mxu0 %v5986
  %6258 = vmatpush1.bf16.msra.mxu0 %v5985
  %6259 = vmatprep.subr.bf16.mxu0 %v5992
  %6260 = vmatpush1.bf16.msra.mxu0 %v5991
  %6261 = vmatprep.subr.bf16.mxu0 %v5998
  %6262 = vmatpush1.bf16.msra.mxu0 %v5997
  %6263 = vmatprep.subr.bf16.mxu0 %v6004
  %6264 = vmatpush1.bf16.msra.mxu0 %v6003
  %6265 = vmatprep.subr.bf16.mxu0 %v6010
  %6266 = vmatpush1.bf16.msra.mxu0 %v6009
  %6267 = vmatprep.subr.bf16.mxu0 %v6016
  %6268 = vmatpush1.bf16.msra.mxu0 %v6015
  %6269 = vmatprep.subr.bf16.mxu0 %v6022
  %6270 = vmatpush1.bf16.msra.mxu0 %v6021
  %6271 = vmatprep.subr.bf16.mxu0 %v6028
  %6272 = vmatpush1.bf16.msra.mxu0 %v6027
  %6273 = vmatprep.subr.bf16.mxu0 %v6034
  %6274 = vmatpush1.bf16.msra.mxu0 %v6033
  %6275 = vmatprep.subr.bf16.mxu0 %v6040
  %6276 = vmatpush1.bf16.msra.mxu0 %v6039
  %6277 = vmatprep.mubr.bf16.mxu0 %v6075
  %6278 = vmatmul.mubr.bf16.gmra.mrb[0].mxu0 %v6067
  %v6279 = vpop.f32.mrb[0].mxu0
  %v6280 = vadd.f32 %v6057, %v6279
  %v6281 = vpop.f32.mrb[0].mxu0
  %v6282 = vadd.f32 %v6057, %v6281
  %v6283 = vpop.f32.mrb[0].mxu0
  %v6284 = vpop.f32.mrb[0].mxu0
  %6285 = vdwg.mxu0
  %6286 = vmatprep.subr.bf16.mxu0 %v6046
  %6287 = vmatpush1.bf16.msra.mxu0 %v6045
  %6288 = vmatprep.subr.bf16.mxu0 %v6052
  %6289 = vmatpush1.bf16.msra.mxu0 %v6051
  %6290 = vmatprep.subr.bf16.mxu0 0
  %6291 = vmatpush1.bf16.msra.mxu0 0
  %6292 = vmatprep.subr.bf16.mxu0 0
  %6293 = vmatpush1.bf16.msra.mxu0 0
  %6294 = vmatprep.subr.bf16.mxu0 0
  %6295 = vmatpush1.bf16.msra.mxu0 0
  %6296 = vmatprep.subr.bf16.mxu0 0
  %6297 = vmatpush1.bf16.msra.mxu0 0
  %6298 = vmatprep.subr.bf16.mxu0 0
  %6299 = vmatpush1.bf16.msra.mxu0 0
  %6300 = vmatprep.subr.bf16.mxu0 0
  %6301 = vmatpush1.bf16.msra.mxu0 0
  %6302 = vmatprep.subr.bf16.mxu0 0
  %6303 = vmatpush1.bf16.msra.mxu0 0
  %6304 = vmatprep.subr.bf16.mxu0 0
  %6305 = vmatpush1.bf16.msra.mxu0 0
  %6306 = vmatprep.subr.bf16.mxu0 0
  %6307 = vmatpush1.bf16.msra.mxu0 0
  %6308 = vmatprep.subr.bf16.mxu0 0
  %6309 = vmatpush1.bf16.msra.mxu0 0
  %6310 = vmatprep.subr.bf16.mxu0 0
  %6311 = vmatpush1.bf16.msra.mxu0 0
  %6312 = vmatprep.subr.bf16.mxu0 0
  %6313 = vmatpush1.bf16.msra.mxu0 0
  %6314 = vmatprep.subr.bf16.mxu0 0
  %6315 = vmatpush1.bf16.msra.mxu0 0
  %6316 = vmatprep.subr.bf16.mxu0 0
  %6317 = vmatpush1.bf16.msra.mxu0 0
  %6318 = vmatprep.mubr.bf16.mxu0 0
  %6319 = vmatmul.mubr.bf16.gmra.mrb[0].mxu0 %v6079
  %v6320 = vpop.f32.mrb[0].mxu0
  %v6321 = vadd.f32 %v6280, %v6320
  %v6322 = vpop.f32.mrb[0].mxu0
  %v6323 = vadd.f32 %v6282, %v6322
  %v6324 = vpop.f32.mrb[0].mxu0
  %v6325 = vpop.f32.mrb[0].mxu0
  %6326 = vdwg.mxu0
  %v6333 = vcombine.low %v6157, %v6159
  %v6334 = vcombine.low %v6239, %v6241
  %v6335 = vcombine.low %v6321, %v6323
  %6339 = vst [vmem:[%s14] sm:$0xff] %v6333
  %6340 = vst [vmem:[%s14 + $0x8] sm:$0xff] %v6334
  %6341 = vst [vmem:[%s14 + $0x10] sm:$0xff] %v6335
  // Predicated region
  $region58: #{resconv_forward.1} parent=0 // pred_check
    _
  $region59: #{resconv_forward.1} parent=0 // pred_check_branch
    %6343 = sbr.rel (0) target = $region61
  $region60: #{resconv_forward.1} parent=0 // pred_region
    _
  $region61: #{resconv_forward.1} parent=0 // pred_fallthru
    _
  // Predicated region
  $region62: #{resconv_forward.1} parent=0 // pred_check
    _
  $region63: #{resconv_forward.1} parent=0 // pred_check_branch
    %6345 = sbr.rel (0) target = $region65
  $region64: #{resconv_forward.1} parent=0 // pred_region
    _
  $region65: #{resconv_forward.1} parent=0 // pred_fallthru
    _

</llo_original>
